<compile_context>
chip_gen: v7x
topology: tpu7x:2x2x1
jax: 0.10.0
libtpu: 0.0.40
codegen_flags: <defaults>
</compile_context>

<pallas_src>
import functools

import jax
import jax.numpy as jnp
from jax import lax
from jax.experimental import pallas as pl
from jax.experimental.pallas import tpu as pltpu


# ------------------------------- small helpers --------------------------------

def _round_up(x, m):
    return (x + m - 1) // m * m


def _pad_channels(c):
    # Lane-dense stores / full MXU N-dim for real WideResNet widths (160/320/640);
    # tiny channel counts are left alone (padding to 128 would be mostly wasted work).
    return _round_up(c, 128) if c > 64 else c


def _zero_border(ap_scr):
    """Zero the 1-pixel border of a (H+2, W+2, C) padded scratch.

    The interior is fully overwritten every grid step, so this (cheap) border clear is
    all the padding work needed; doing it every step keeps correctness even when the
    batch grid axis is split across TensorCores (scratch is per-core)."""
    hp, wp, c = ap_scr.shape
    zr = jnp.zeros((1, wp, c), ap_scr.dtype)
    ap_scr[pl.ds(0, 1), :, :] = zr
    ap_scr[pl.ds(hp - 1, 1), :, :] = zr
    zc = jnp.zeros((hp, 1, c), ap_scr.dtype)
    ap_scr[:, pl.ds(0, 1), :] = zc
    ap_scr[:, pl.ds(wp - 1, 1), :] = zc


def _bn_relu_img(x_ref, s_ref, b_ref):
    """relu(x * scale + bias) for one (1, H, W, C) block; f32 VPU math."""
    c = x_ref.shape[-1]
    x = x_ref[0].astype(jnp.float32)                        # (H, W, C)
    s = s_ref[...].reshape(1, 1, c).astype(jnp.float32)
    b = b_ref[...].reshape(1, 1, c).astype(jnp.float32)
    return jnp.maximum(x * s + b, 0.0)


def _strided_rows(cols, row_start, stride, ho):
    """Pick rows row_start + stride*i (i < ho) from a (H+2, Wo, C) column-strided value.

    Only leading-dim slicing / reshapes (free in Mosaic)."""
    wo, c = cols.shape[1], cols.shape[2]
    sub = cols[row_start:row_start + stride * ho]           # (stride*Ho, Wo, C)
    return sub.reshape(ho, stride, wo, c)[:, 0]             # (Ho, Wo, C)


# ------------------------------ fused block kernel -----------------------------

def _block_kernel(x_ref, s1_ref, b1_ref, w1_ref, s2_ref, b2_ref, w2_ref, *rest,
                  stride, has_shortcut):
    """Fully fused WideResNet basic block for one image.

      a1   = relu(bn1(x))                     (VPU, f32) -> padded VMEM scratch
      out1 = conv1_3x3_s1_p1(a1)              (9 accumulated MXU matmuls)
      a2   = relu(bn2(out1))                  (VPU, f32) -> padded VMEM scratch
      y    = conv2_3x3_s{stride}_p1(a2)       (9 accumulated MXU matmuls, stride on taps)
      res  = x                                (equal in/out planes)
           = convShortcut_1x1_s{stride}(a1)   (otherwise, fused 1x1 matmul)
      o    = y + res

    Only x and o ever touch HBM."""
    if has_shortcut:
        wsc_ref, o_ref, ap1, ap2, acc1, acc2 = rest
    else:
        o_ref, ap1, ap2, acc1, acc2 = rest
        wsc_ref = None

    f32 = jnp.float32
    _, h, w, cin = x_ref.shape
    _, ho, wo, cout = o_ref.shape
    mm_dt = w1_ref.dtype                                    # MXU operand dtype (bf16/f32)

    _zero_border(ap1)
    _zero_border(ap2)

    # ---- prologue 1: a1 = relu(bn1(x)) into padded scratch ----
    a1 = _bn_relu_img(x_ref, s1_ref, b1_ref)                # (H, W, Cin) f32
    ap1[pl.ds(1, h), pl.ds(1, w), :] = a1

    # ---- conv1: 3x3, stride 1, pad 1 -> 9 accumulated matmuls (K = Cin each) ----
    first = True
    for dy in range(3):
        for dx in range(3):
            tap = ap1[pl.ds(dy, h), pl.ds(dx, w), :].reshape(h * w, cin)
            contrib = jnp.dot(tap.astype(mm_dt), w1_ref[dy * 3 + dx],
                              preferred_element_type=f32)   # (H*W, Cout) f32
            if first:
                acc1[...] = contrib
                first = False
            else:
                acc1[...] += contrib

    # ---- prologue 2: a2 = relu(bn2(out1)) into padded scratch ----
    s2 = s2_ref[...].astype(f32)                            # (1, Cout)
    b2 = b2_ref[...].astype(f32)
    a2 = jnp.maximum(acc1[...] * s2 + b2, 0.0)              # (H*W, Cout) f32
    ap2[pl.ds(1, h), pl.ds(1, w), :] = a2.reshape(h, w, cout)
    # TODO(synk): dropout path (droprate_init > 0) not implemented; module default is 0.0.

    # ---- conv2: 3x3, stride s, pad 1; stride applied to the taps BEFORE the matmul ----
    first = True
    if stride == 1:
        for dy in range(3):
            for dx in range(3):
                tap = ap2[pl.ds(dy, h), pl.ds(dx, w), :].reshape(ho * wo, cout)
                contrib = jnp.dot(tap.astype(mm_dt), w2_ref[dy * 3 + dx],
                                  preferred_element_type=f32)
                if first:
                    acc2[...] = contrib
                    first = False
                else:
                    acc2[...] += contrib
    else:
        for dx in range(3):
            # W-stride via a sublane-strided f32 read (one per dx, shared by 3 dy taps)
            cols = ap2[:, pl.ds(dx, wo, stride), :]          # (H+2, Wo, Cout)
            for dy in range(3):
                tap = _strided_rows(cols, dy, stride, ho).reshape(ho * wo, cout)
                contrib = jnp.dot(tap.astype(mm_dt), w2_ref[dy * 3 + dx],
                                  preferred_element_type=f32)
                if first:
                    acc2[...] = contrib
                    first = False
                else:
                    acc2[...] += contrib

    # ---- residual: identity, or fused 1x1 strided shortcut conv of a1 ----
    if has_shortcut:
        if stride == 1:
            a1v = ap1[pl.ds(1, h), pl.ds(1, w), :].reshape(ho * wo, cin)
        else:
            cols = ap1[:, pl.ds(1, wo, stride), :]           # padded cols 1 + s*j
            a1v = _strided_rows(cols, 1, stride, ho).reshape(ho * wo, cin)
        res = jnp.dot(a1v.astype(wsc_ref.dtype), wsc_ref[...],
                      preferred_element_type=f32)            # (Ho*Wo, Cout)
    else:
        # equal in/out planes (wrapper enforces stride == 1): identity residual
        res = x_ref[0].astype(f32).reshape(ho * wo, cout)

    y = acc2[...] + res
    o_ref[...] = y.reshape(1, ho, wo, cout).astype(o_ref.dtype)


# ------------------------------- block forward --------------------------------

@functools.partial(jax.jit, static_argnames=("stride", "equal_in_out", "compute_dtype"))
def group_relaxed_tf1_basic_block_forward(x_nchw, params, *, stride, equal_in_out,
                                          compute_dtype=jnp.bfloat16):
    """Pallas TPU implementation of group_relaxed_TF1BasicBlock.forward (droprate_init==0).

    The whole block runs as ONE pallas_call with a grid over the batch; the conv1
    activation never leaves VMEM.  `compute_dtype` is the MXU operand dtype (bf16 by
    default; accumulation and BN/ReLU math stay f32)."""
    if equal_in_out and stride != 1:
        raise ValueError("equal_in_out=True requires stride == 1 (residual shape mismatch)")

    x = jnp.transpose(x_nchw, (0, 2, 3, 1))                  # NCHW -> NHWC
    # TODO(synk): when embedding in a full network, keep NHWC end-to-end and drop these
    #             two transposes (full-tensor HBM passes outside the kernel).
    n, h, w, cin = x.shape
    cout = params["conv1_w"].shape[-1]
    assert h % stride == 0 and w % stride == 0, "spatial dims must be divisible by stride"
    ho, wo = h // stride, w // stride

    f32 = jnp.float32
    cdt = jnp.dtype(compute_dtype)
    cin_p, cout_p = _pad_channels(cin), _pad_channels(cout)

    # Channel padding (lane-dense stores / full MXU width). Padded channels carry zeros
    # through BN (scale=bias=0 -> relu(0)=0), the convs (zero weight rows/cols) and the
    # residual, and are sliced off at the end.
    if cin_p != cin:
        x = jnp.pad(x, ((0, 0), (0, 0), (0, 0), (0, cin_p - cin)))

    def padc(v, c_to):
        pads = [(0, 0)] * (v.ndim - 1) + [(0, c_to - v.shape[-1])]
        return jnp.pad(v, pads)

    s1 = padc(params["bn1_scale"], cin_p).reshape(1, cin_p).astype(f32)
    b1 = padc(params["bn1_bias"], cin_p).reshape(1, cin_p).astype(f32)
    s2 = padc(params["bn2_scale"], cout_p).reshape(1, cout_p).astype(f32)
    b2 = padc(params["bn2_bias"], cout_p).reshape(1, cout_p).astype(f32)

    w1 = params["conv1_w"]                                   # (3, 3, Cin, Cout) HWIO
    w1 = jnp.pad(w1, ((0, 0), (0, 0), (0, cin_p - cin), (0, cout_p - cout)))
    w1 = w1.reshape(9, cin_p, cout_p).astype(cdt)
    w2 = params["conv2_w"]                                   # (3, 3, Cout, Cout)
    w2 = jnp.pad(w2, ((0, 0), (0, 0), (0, cout_p - cout), (0, cout_p - cout)))
    w2 = w2.reshape(9, cout_p, cout_p).astype(cdt)

    has_shortcut = not equal_in_out
    inputs = [x, s1, b1, w1, s2, b2, w2]
    in_specs = [
        pl.BlockSpec((1, h, w, cin_p), lambda i: (i, 0, 0, 0)),
        pl.BlockSpec((1, cin_p), lambda i: (0, 0)),
        pl.BlockSpec((1, cin_p), lambda i: (0, 0)),
        pl.BlockSpec((9, cin_p, cout_p), lambda i: (0, 0, 0)),
        pl.BlockSpec((1, cout_p), lambda i: (0, 0)),
        pl.BlockSpec((1, cout_p), lambda i: (0, 0)),
        pl.BlockSpec((9, cout_p, cout_p), lambda i: (0, 0, 0)),
    ]
    if has_shortcut:
        wsc = params["convsc_w"]                             # (Cin, Cout)
        wsc = jnp.pad(wsc, ((0, cin_p - cin), (0, cout_p - cout))).astype(cdt)
        inputs.append(wsc)
        in_specs.append(pl.BlockSpec((cin_p, cout_p), lambda i: (0, 0)))

    scratch_shapes = [
        pltpu.VMEM((h + 2, w + 2, cin_p), f32),              # padded relu(bn1(x))
        pltpu.VMEM((h + 2, w + 2, cout_p), f32),             # padded relu(bn2(out1))
        pltpu.VMEM((h * w, cout_p), f32),                    # conv1 accumulator
        pltpu.VMEM((ho * wo, cout_p), f32),                  # conv2 accumulator
    ]

    # VMEM budget: double-buffered x/o blocks + resident weights + scratches, 2x headroom.
    isz = jnp.dtype(x.dtype).itemsize
    need = (2 * h * w * cin_p * isz + 2 * ho * wo * cout_p * isz
            + 2 * (9 * cin_p + 9 * cout_p + cin_p) * cout_p * cdt.itemsize
            + ((h + 2) * (w + 2) * (cin_p + cout_p) + (h * w + ho * wo) * cout_p) * 4)
    vmem_limit = int(min(max(2 * need, 32 * 1024 * 1024), 96 * 1024 * 1024))
    # TODO(synk): for feature maps too large for this budget (esp. v7x's 64 MiB VMEM),
    #             add a second grid axis over H row-tiles with a 2-row halo.

    y = pl.pallas_call(
        functools.partial(_block_kernel, stride=stride, has_shortcut=has_shortcut),
        out_shape=jax.ShapeDtypeStruct((n, ho, wo, cout_p), x.dtype),
        grid=(n,),
        in_specs=in_specs,
        out_specs=pl.BlockSpec((1, ho, wo, cout_p), lambda i: (i, 0, 0, 0)),
        scratch_shapes=scratch_shapes,
        compiler_params=pltpu.CompilerParams(
            dimension_semantics=("parallel",),               # images are independent
            vmem_limit_bytes=vmem_limit,
        ),
    )(*inputs)

    y = y[..., :cout]                                        # drop channel padding
    return jnp.transpose(y, (0, 3, 1, 2))                    # NHWC -> NCHW


# ----------------------------- pure-JAX reference ------------------------------

def _reference_forward(x, params, stride, equal_in_out, compute_dtype=jnp.float32):
    """Reference forward.  compute_dtype mirrors the kernel's matmul-operand cast."""
    f32 = jnp.float32

    def bn(v, scale, bias):
        return v * scale[None, :, None, None] + bias[None, :, None, None]

    def conv(v, w_hwio, s, pad):
        w = jnp.transpose(w_hwio, (3, 2, 0, 1)).astype(compute_dtype)   # HWIO -> OIHW
        return lax.conv_general_dilated(
            v.astype(compute_dtype), w, (s, s), [(pad, pad), (pad, pad)],
            dimension_numbers=("NCHW", "OIHW", "NCHW"),
            preferred_element_type=f32)

    a1 = jax.nn.relu(bn(x, params["bn1_scale"], params["bn1_bias"]))
    out = conv(a1, params["conv1_w"], 1, 1)
    a2 = jax.nn.relu(bn(out, params["bn2_scale"], params["bn2_bias"]))
    y = conv(a2, params["conv2_w"], stride, 1)
    if equal_in_out:
        return y + x
    wsc = params["convsc_w"][None, None, :, :]               # (1, 1, Cin, Cout)
    return y + conv(a1, wsc, stride, 0)


# ----------------------------------- main --------------------------------------

def _init_params(key, in_planes, out_planes):
    ks = jax.random.split(key, 9)
    eps = 1e-5
    # eval-mode BatchNorm folded to per-channel scale/bias
    g1 = jax.random.uniform(ks[0], (in_planes,), jnp.float32, 0.5, 1.5)
    b1 = 0.1 * jax.random.normal(ks[1], (in_planes,), jnp.float32)
    m1 = 0.1 * jax.random.normal(ks[2], (in_planes,), jnp.float32)
    v1 = jax.random.uniform(ks[3], (in_planes,), jnp.float32, 0.5, 1.5)
    g2 = jax.random.uniform(ks[4], (out_planes,), jnp.float32, 0.5, 1.5)
    b2 = 0.1 * jax.random.normal(ks[5], (out_planes,), jnp.float32)
    m2 = jnp.zeros((out_planes,), jnp.float32)
    v2 = jnp.ones((out_planes,), jnp.float32)
    s1 = g1 / jnp.sqrt(v1 + eps)
    s2 = g2 / jnp.sqrt(v2 + eps)
    return {
        "bn1_scale": s1, "bn1_bias": b1 - m1 * s1,
        "bn2_scale": s2, "bn2_bias": b2 - m2 * s2,
        "conv1_w": 0.1 * jax.random.normal(ks[6], (3, 3, in_planes, out_planes), jnp.float32),
        "conv2_w": 0.1 * jax.random.normal(ks[7], (3, 3, out_planes, out_planes), jnp.float32),
        "convsc_w": 0.1 * jax.random.normal(ks[8], (in_planes, out_planes), jnp.float32),
    }


if __name__ == "__main__":
    key = jax.random.PRNGKey(0)
    kx1, kp1, kx2, kp2, kx3, kp3 = jax.random.split(key, 6)
    batch, hw = 2, 16

    # case 1: in != out planes, stride 2 (fused strided shortcut path), f32 compute.
    in_planes, out_planes, stride = 4, 8, 2
    x = jax.random.normal(kx1, (batch, in_planes, hw, hw), jnp.float32)  # NCHW like PyTorch
    params = _init_params(kp1, in_planes, out_planes)
    out = group_relaxed_tf1_basic_block_forward(
        x, params, stride=stride, equal_in_out=False, compute_dtype=jnp.float32)
    out = jax.block_until_ready(out)
    ref = _reference_forward(x, params, stride, False)
    assert out.shape == (batch, out_planes, hw // stride, hw // stride), out.shape
    assert jnp.allclose(out, ref, atol=2e-3, rtol=2e-3), float(jnp.max(jnp.abs(out - ref)))

    # case 2: in == out planes, stride 1 (identity residual path), f32 compute.
    planes = 8
    x2 = jax.random.normal(kx2, (batch, planes, hw, hw), jnp.float32)
    params2 = _init_params(kp2, planes, planes)
    out2 = group_relaxed_tf1_basic_block_forward(
        x2, params2, stride=1, equal_in_out=True, compute_dtype=jnp.float32)
    out2 = jax.block_until_ready(out2)
    ref2 = _reference_forward(x2, params2, 1, True)
    assert out2.shape == (batch, planes, hw, hw), out2.shape
    assert jnp.allclose(out2, ref2, atol=2e-3, rtol=2e-3), float(jnp.max(jnp.abs(out2 - ref2)))

    # case 3: wider channels (exercise lane padding 96->128 / 160->256) with the default
    #         bf16 matmul path; reference mirrors the bf16 operand cast (f32 accumulation).
    cin3, cout3, stride3 = 96, 160, 2
    x3 = jax.random.normal(kx3, (1, cin3, hw, hw), jnp.float32)
    params3 = _init_params(kp3, cin3, cout3)
    out3 = group_relaxed_tf1_basic_block_forward(
        x3, params3, stride=stride3, equal_in_out=False)     # compute_dtype=bf16 default
    out3 = jax.block_until_ready(out3)
    ref3 = _reference_forward(x3, params3, stride3, False, compute_dtype=jnp.bfloat16)
    assert out3.shape == (1, cout3, hw // stride3, hw // stride3), out3.shape
    assert jnp.allclose(out3, ref3, atol=1e-2, rtol=1e-2), float(jnp.max(jnp.abs(out3 - ref3)))

    print("KERNEL_OK")
</pallas_src>

<mosaic_0001>
module attributes {stable_mosaic.version = 11 : i64} {
  func.func @_block_kernel(%arg0: i32, %arg1: memref<1x16x16x4xf32, #tpu.memory_space<vmem>>, %arg2: memref<1x4xf32, #tpu.memory_space<vmem>>, %arg3: memref<1x4xf32, #tpu.memory_space<vmem>>, %arg4: memref<9x4x8xf32, #tpu.memory_space<vmem>>, %arg5: memref<1x8xf32, #tpu.memory_space<vmem>>, %arg6: memref<1x8xf32, #tpu.memory_space<vmem>>, %arg7: memref<9x8x8xf32, #tpu.memory_space<vmem>>, %arg8: memref<4x8xf32, #tpu.memory_space<vmem>>, %arg9: memref<1x8x8x8xf32, #tpu.memory_space<vmem>>, %arg10: memref<18x18x4xf32, #tpu.memory_space<vmem>>, %arg11: memref<18x18x8xf32, #tpu.memory_space<vmem>>, %arg12: memref<256x8xf32, #tpu.memory_space<vmem>>, %arg13: memref<64x8xf32, #tpu.memory_space<vmem>>) attributes {dimension_semantics = [#tpu.dimension_semantics<parallel>], iteration_bounds = array<i64: 2>, scalar_prefetch = 0 : i64, scratch_operands = 4 : i64, tpu.core_type = #tpu.core_type<tc>, window_params = [{transform_indices = @transform_0, window_bounds = array<i64: 1, 16, 16, 4>}, {pipeline_mode = #tpu.pipeline_mode<synchronous>, transform_indices = @transform_1, window_bounds = array<i64: 1, 4>}, {pipeline_mode = #tpu.pipeline_mode<synchronous>, transform_indices = @transform_2, window_bounds = array<i64: 1, 4>}, {pipeline_mode = #tpu.pipeline_mode<synchronous>, transform_indices = @transform_3, window_bounds = array<i64: 9, 4, 8>}, {pipeline_mode = #tpu.pipeline_mode<synchronous>, transform_indices = @transform_4, window_bounds = array<i64: 1, 8>}, {pipeline_mode = #tpu.pipeline_mode<synchronous>, transform_indices = @transform_5, window_bounds = array<i64: 1, 8>}, {pipeline_mode = #tpu.pipeline_mode<synchronous>, transform_indices = @transform_6, window_bounds = array<i64: 9, 8, 8>}, {pipeline_mode = #tpu.pipeline_mode<synchronous>, transform_indices = @transform_7, window_bounds = array<i64: 4, 8>}, {transform_indices = @transform_8, window_bounds = array<i64: 1, 8, 8, 8>}]} {
    %cst = arith.constant 0.000000e+00 : f32
    %0 = vector.broadcast %cst : f32 to vector<1x18x4xf32>
    %c0 = arith.constant 0 : index
    %c0_0 = arith.constant 0 : index
    %c0_1 = arith.constant 0 : index
    %1 = vector.load %arg10[%c0, %c0_0, %c0_1] : memref<18x18x4xf32, #tpu.memory_space<vmem>>, vector<1x18x4xf32>
    tpu.vector_store %arg10[%c0, %c0_0, %c0_1], %0 {strides = array<i32>} : memref<18x18x4xf32, #tpu.memory_space<vmem>>, vector<1x18x4xf32>,
    %c17 = arith.constant 17 : index
    %c0_2 = arith.constant 0 : index
    %c0_3 = arith.constant 0 : index
    %2 = vector.load %arg10[%c17, %c0_2, %c0_3] : memref<18x18x4xf32, #tpu.memory_space<vmem>>, vector<1x18x4xf32>
    tpu.vector_store %arg10[%c17, %c0_2, %c0_3], %0 {strides = array<i32>} : memref<18x18x4xf32, #tpu.memory_space<vmem>>, vector<1x18x4xf32>,
    %cst_4 = arith.constant 0.000000e+00 : f32
    %3 = vector.broadcast %cst_4 : f32 to vector<18x1x4xf32>
    %c0_5 = arith.constant 0 : index
    %c0_6 = arith.constant 0 : index
    %c0_7 = arith.constant 0 : index
    %4 = vector.load %arg10[%c0_5, %c0_6, %c0_7] : memref<18x18x4xf32, #tpu.memory_space<vmem>>, vector<18x1x4xf32>
    tpu.vector_store %arg10[%c0_5, %c0_6, %c0_7], %3 {strides = array<i32>} : memref<18x18x4xf32, #tpu.memory_space<vmem>>, vector<18x1x4xf32>,
    %c0_8 = arith.constant 0 : index
    %c17_9 = arith.constant 17 : index
    %c0_10 = arith.constant 0 : index
    %5 = vector.load %arg10[%c0_8, %c17_9, %c0_10] : memref<18x18x4xf32, #tpu.memory_space<vmem>>, vector<18x1x4xf32>
    tpu.vector_store %arg10[%c0_8, %c17_9, %c0_10], %3 {strides = array<i32>} : memref<18x18x4xf32, #tpu.memory_space<vmem>>, vector<18x1x4xf32>,
    %cst_11 = arith.constant 0.000000e+00 : f32
    %6 = vector.broadcast %cst_11 : f32 to vector<1x18x8xf32>
    %c0_12 = arith.constant 0 : index
    %c0_13 = arith.constant 0 : index
    %c0_14 = arith.constant 0 : index
    %7 = vector.load %arg11[%c0_12, %c0_13, %c0_14] : memref<18x18x8xf32, #tpu.memory_space<vmem>>, vector<1x18x8xf32>
    tpu.vector_store %arg11[%c0_12, %c0_13, %c0_14], %6 {strides = array<i32>} : memref<18x18x8xf32, #tpu.memory_space<vmem>>, vector<1x18x8xf32>,
    %c17_15 = arith.constant 17 : index
    %c0_16 = arith.constant 0 : index
    %c0_17 = arith.constant 0 : index
    %8 = vector.load %arg11[%c17_15, %c0_16, %c0_17] : memref<18x18x8xf32, #tpu.memory_space<vmem>>, vector<1x18x8xf32>
    tpu.vector_store %arg11[%c17_15, %c0_16, %c0_17], %6 {strides = array<i32>} : memref<18x18x8xf32, #tpu.memory_space<vmem>>, vector<1x18x8xf32>,
    %cst_18 = arith.constant 0.000000e+00 : f32
    %9 = vector.broadcast %cst_18 : f32 to vector<18x1x8xf32>
    %c0_19 = arith.constant 0 : index
    %c0_20 = arith.constant 0 : index
    %c0_21 = arith.constant 0 : index
    %10 = vector.load %arg11[%c0_19, %c0_20, %c0_21] : memref<18x18x8xf32, #tpu.memory_space<vmem>>, vector<18x1x8xf32>
    tpu.vector_store %arg11[%c0_19, %c0_20, %c0_21], %9 {strides = array<i32>} : memref<18x18x8xf32, #tpu.memory_space<vmem>>, vector<18x1x8xf32>,
    %c0_22 = arith.constant 0 : index
    %c17_23 = arith.constant 17 : index
    %c0_24 = arith.constant 0 : index
    %11 = vector.load %arg11[%c0_22, %c17_23, %c0_24] : memref<18x18x8xf32, #tpu.memory_space<vmem>>, vector<18x1x8xf32>
    tpu.vector_store %arg11[%c0_22, %c17_23, %c0_24], %9 {strides = array<i32>} : memref<18x18x8xf32, #tpu.memory_space<vmem>>, vector<18x1x8xf32>,
    %c0_25 = arith.constant 0 : index
    %c0_26 = arith.constant 0 : index
    %c0_27 = arith.constant 0 : index
    %c0_28 = arith.constant 0 : index
    %12 = vector.load %arg1[%c0_25, %c0_26, %c0_27, %c0_28] : memref<1x16x16x4xf32, #tpu.memory_space<vmem>>, vector<1x16x16x4xf32>
    %13 = vector.shape_cast %12 : vector<1x16x16x4xf32> to vector<16x16x4xf32>
    %c0_29 = arith.constant 0 : index
    %c0_30 = arith.constant 0 : index
    %14 = vector.load %arg2[%c0_29, %c0_30] : memref<1x4xf32, #tpu.memory_space<vmem>>, vector<1x4xf32>
    %15 = vector.shape_cast %14 : vector<1x4xf32> to vector<1x1x4xf32>
    %c0_31 = arith.constant 0 : index
    %c0_32 = arith.constant 0 : index
    %16 = vector.load %arg3[%c0_31, %c0_32] : memref<1x4xf32, #tpu.memory_space<vmem>>, vector<1x4xf32>
    %17 = vector.shape_cast %16 : vector<1x4xf32> to vector<1x1x4xf32>
    %18 = vector.broadcast %15 : vector<1x1x4xf32> to vector<16x16x4xf32>
    %19 = arith.mulf %13, %18 : vector<16x16x4xf32>
    %20 = vector.broadcast %17 : vector<1x1x4xf32> to vector<16x16x4xf32>
    %21 = arith.addf %19, %20 : vector<16x16x4xf32>
    %cst_33 = arith.constant 0.000000e+00 : f32
    %22 = vector.broadcast %cst_33 : f32 to vector<16x16x4xf32>
    %23 = arith.maximumf %21, %22 : vector<16x16x4xf32>
    %c1 = arith.constant 1 : index
    %c1_34 = arith.constant 1 : index
    %c0_35 = arith.constant 0 : index
    %24 = vector.load %arg10[%c1, %c1_34, %c0_35] : memref<18x18x4xf32, #tpu.memory_space<vmem>>, vector<16x16x4xf32>
    tpu.vector_store %arg10[%c1, %c1_34, %c0_35], %23 {strides = array<i32>} : memref<18x18x4xf32, #tpu.memory_space<vmem>>, vector<16x16x4xf32>,
    %c0_36 = arith.constant 0 : index
    %c0_37 = arith.constant 0 : index
    %c0_38 = arith.constant 0 : index
    %25 = vector.load %arg10[%c0_36, %c0_37, %c0_38] : memref<18x18x4xf32, #tpu.memory_space<vmem>>, vector<16x16x4xf32>
    %26 = vector.shape_cast %25 : vector<16x16x4xf32> to vector<256x4xf32>
    %c0_39 = arith.constant 0 : index
    %c0_40 = arith.constant 0 : index
    %c0_41 = arith.constant 0 : index
    %27 = vector.load %arg4[%c0_39, %c0_40, %c0_41] : memref<9x4x8xf32, #tpu.memory_space<vmem>>, vector<1x4x8xf32>
    %28 = vector.shape_cast %27 : vector<1x4x8xf32> to vector<4x8xf32>
    %cst_42 = arith.constant dense<0.000000e+00> : vector<256x8xf32>
    %29 = tpu.matmul %26, %28, %cst_42 {dimension_numbers = #tpu.dot_dimension_numbers<[1], [0], [0], [1], [0, 0, 1, 1], [], []>} : vector<256x4xf32>, vector<4x8xf32>, vector<256x8xf32> -> vector<256x8xf32>
    %c0_43 = arith.constant 0 : index
    %c0_44 = arith.constant 0 : index
    %30 = vector.load %arg12[%c0_43, %c0_44] : memref<256x8xf32, #tpu.memory_space<vmem>>, vector<256x8xf32>
    tpu.vector_store %arg12[%c0_43, %c0_44], %29 {strides = array<i32>} : memref<256x8xf32, #tpu.memory_space<vmem>>, vector<256x8xf32>,
    %c0_45 = arith.constant 0 : index
    %c1_46 = arith.constant 1 : index
    %c0_47 = arith.constant 0 : index
    %31 = vector.load %arg10[%c0_45, %c1_46, %c0_47] : memref<18x18x4xf32, #tpu.memory_space<vmem>>, vector<16x16x4xf32>
    %32 = vector.shape_cast %31 : vector<16x16x4xf32> to vector<256x4xf32>
    %c1_48 = arith.constant 1 : index
    %c0_49 = arith.constant 0 : index
    %c0_50 = arith.constant 0 : index
    %33 = vector.load %arg4[%c1_48, %c0_49, %c0_50] : memref<9x4x8xf32, #tpu.memory_space<vmem>>, vector<1x4x8xf32>
    %34 = vector.shape_cast %33 : vector<1x4x8xf32> to vector<4x8xf32>
    %cst_51 = arith.constant dense<0.000000e+00> : vector<256x8xf32>
    %35 = tpu.matmul %32, %34, %cst_51 {dimension_numbers = #tpu.dot_dimension_numbers<[1], [0], [0], [1], [0, 0, 1, 1], [], []>} : vector<256x4xf32>, vector<4x8xf32>, vector<256x8xf32> -> vector<256x8xf32>
    %c0_52 = arith.constant 0 : index
    %c0_53 = arith.constant 0 : index
    %36 = vector.load %arg12[%c0_52, %c0_53] : memref<256x8xf32, #tpu.memory_space<vmem>>, vector<256x8xf32>
    %37 = arith.addf %36, %35 : vector<256x8xf32>
    %c0_54 = arith.constant 0 : index
    %c0_55 = arith.constant 0 : index
    %38 = vector.load %arg12[%c0_54, %c0_55] : memref<256x8xf32, #tpu.memory_space<vmem>>, vector<256x8xf32>
    tpu.vector_store %arg12[%c0_54, %c0_55], %37 {strides = array<i32>} : memref<256x8xf32, #tpu.memory_space<vmem>>, vector<256x8xf32>,
    %c0_56 = arith.constant 0 : index
    %c2 = arith.constant 2 : index
    %c0_57 = arith.constant 0 : index
    %39 = vector.load %arg10[%c0_56, %c2, %c0_57] : memref<18x18x4xf32, #tpu.memory_space<vmem>>, vector<16x16x4xf32>
    %40 = vector.shape_cast %39 : vector<16x16x4xf32> to vector<256x4xf32>
    %c2_58 = arith.constant 2 : index
    %c0_59 = arith.constant 0 : index
    %c0_60 = arith.constant 0 : index
    %41 = vector.load %arg4[%c2_58, %c0_59, %c0_60] : memref<9x4x8xf32, #tpu.memory_space<vmem>>, vector<1x4x8xf32>
    %42 = vector.shape_cast %41 : vector<1x4x8xf32> to vector<4x8xf32>
    %cst_61 = arith.constant dense<0.000000e+00> : vector<256x8xf32>
    %43 = tpu.matmul %40, %42, %cst_61 {dimension_numbers = #tpu.dot_dimension_numbers<[1], [0], [0], [1], [0, 0, 1, 1], [], []>} : vector<256x4xf32>, vector<4x8xf32>, vector<256x8xf32> -> vector<256x8xf32>
    %c0_62 = arith.constant 0 : index
    %c0_63 = arith.constant 0 : index
    %44 = vector.load %arg12[%c0_62, %c0_63] : memref<256x8xf32, #tpu.memory_space<vmem>>, vector<256x8xf32>
    %45 = arith.addf %44, %43 : vector<256x8xf32>
    %c0_64 = arith.constant 0 : index
    %c0_65 = arith.constant 0 : index
    %46 = vector.load %arg12[%c0_64, %c0_65] : memref<256x8xf32, #tpu.memory_space<vmem>>, vector<256x8xf32>
    tpu.vector_store %arg12[%c0_64, %c0_65], %45 {strides = array<i32>} : memref<256x8xf32, #tpu.memory_space<vmem>>, vector<256x8xf32>,
    %c1_66 = arith.constant 1 : index
    %c0_67 = arith.constant 0 : index
    %c0_68 = arith.constant 0 : index
    %47 = vector.load %arg10[%c1_66, %c0_67, %c0_68] : memref<18x18x4xf32, #tpu.memory_space<vmem>>, vector<16x16x4xf32>
    %48 = vector.shape_cast %47 : vector<16x16x4xf32> to vector<256x4xf32>
    %c3 = arith.constant 3 : index
    %c0_69 = arith.constant 0 : index
    %c0_70 = arith.constant 0 : index
    %49 = vector.load %arg4[%c3, %c0_69, %c0_70] : memref<9x4x8xf32, #tpu.memory_space<vmem>>, vector<1x4x8xf32>
    %50 = vector.shape_cast %49 : vector<1x4x8xf32> to vector<4x8xf32>
    %cst_71 = arith.constant dense<0.000000e+00> : vector<256x8xf32>
    %51 = tpu.matmul %48, %50, %cst_71 {dimension_numbers = #tpu.dot_dimension_numbers<[1], [0], [0], [1], [0, 0, 1, 1], [], []>} : vector<256x4xf32>, vector<4x8xf32>, vector<256x8xf32> -> vector<256x8xf32>
    %c0_72 = arith.constant 0 : index
    %c0_73 = arith.constant 0 : index
    %52 = vector.load %arg12[%c0_72, %c0_73] : memref<256x8xf32, #tpu.memory_space<vmem>>, vector<256x8xf32>
    %53 = arith.addf %52, %51 : vector<256x8xf32>
    %c0_74 = arith.constant 0 : index
    %c0_75 = arith.constant 0 : index
    %54 = vector.load %arg12[%c0_74, %c0_75] : memref<256x8xf32, #tpu.memory_space<vmem>>, vector<256x8xf32>
    tpu.vector_store %arg12[%c0_74, %c0_75], %53 {strides = array<i32>} : memref<256x8xf32, #tpu.memory_space<vmem>>, vector<256x8xf32>,
    %c1_76 = arith.constant 1 : index
    %c1_77 = arith.constant 1 : index
    %c0_78 = arith.constant 0 : index
    %55 = vector.load %arg10[%c1_76, %c1_77, %c0_78] : memref<18x18x4xf32, #tpu.memory_space<vmem>>, vector<16x16x4xf32>
    %56 = vector.shape_cast %55 : vector<16x16x4xf32> to vector<256x4xf32>
    %c4 = arith.constant 4 : index
    %c0_79 = arith.constant 0 : index
    %c0_80 = arith.constant 0 : index
    %57 = vector.load %arg4[%c4, %c0_79, %c0_80] : memref<9x4x8xf32, #tpu.memory_space<vmem>>, vector<1x4x8xf32>
    %58 = vector.shape_cast %57 : vector<1x4x8xf32> to vector<4x8xf32>
    %cst_81 = arith.constant dense<0.000000e+00> : vector<256x8xf32>
    %59 = tpu.matmul %56, %58, %cst_81 {dimension_numbers = #tpu.dot_dimension_numbers<[1], [0], [0], [1], [0, 0, 1, 1], [], []>} : vector<256x4xf32>, vector<4x8xf32>, vector<256x8xf32> -> vector<256x8xf32>
    %c0_82 = arith.constant 0 : index
    %c0_83 = arith.constant 0 : index
    %60 = vector.load %arg12[%c0_82, %c0_83] : memref<256x8xf32, #tpu.memory_space<vmem>>, vector<256x8xf32>
    %61 = arith.addf %60, %59 : vector<256x8xf32>
    %c0_84 = arith.constant 0 : index
    %c0_85 = arith.constant 0 : index
    %62 = vector.load %arg12[%c0_84, %c0_85] : memref<256x8xf32, #tpu.memory_space<vmem>>, vector<256x8xf32>
    tpu.vector_store %arg12[%c0_84, %c0_85], %61 {strides = array<i32>} : memref<256x8xf32, #tpu.memory_space<vmem>>, vector<256x8xf32>,
    %c1_86 = arith.constant 1 : index
    %c2_87 = arith.constant 2 : index
    %c0_88 = arith.constant 0 : index
    %63 = vector.load %arg10[%c1_86, %c2_87, %c0_88] : memref<18x18x4xf32, #tpu.memory_space<vmem>>, vector<16x16x4xf32>
    %64 = vector.shape_cast %63 : vector<16x16x4xf32> to vector<256x4xf32>
    %c5 = arith.constant 5 : index
    %c0_89 = arith.constant 0 : index
    %c0_90 = arith.constant 0 : index
    %65 = vector.load %arg4[%c5, %c0_89, %c0_90] : memref<9x4x8xf32, #tpu.memory_space<vmem>>, vector<1x4x8xf32>
    %66 = vector.shape_cast %65 : vector<1x4x8xf32> to vector<4x8xf32>
    %cst_91 = arith.constant dense<0.000000e+00> : vector<256x8xf32>
    %67 = tpu.matmul %64, %66, %cst_91 {dimension_numbers = #tpu.dot_dimension_numbers<[1], [0], [0], [1], [0, 0, 1, 1], [], []>} : vector<256x4xf32>, vector<4x8xf32>, vector<256x8xf32> -> vector<256x8xf32>
    %c0_92 = arith.constant 0 : index
    %c0_93 = arith.constant 0 : index
    %68 = vector.load %arg12[%c0_92, %c0_93] : memref<256x8xf32, #tpu.memory_space<vmem>>, vector<256x8xf32>
    %69 = arith.addf %68, %67 : vector<256x8xf32>
    %c0_94 = arith.constant 0 : index
    %c0_95 = arith.constant 0 : index
    %70 = vector.load %arg12[%c0_94, %c0_95] : memref<256x8xf32, #tpu.memory_space<vmem>>, vector<256x8xf32>
    tpu.vector_store %arg12[%c0_94, %c0_95], %69 {strides = array<i32>} : memref<256x8xf32, #tpu.memory_space<vmem>>, vector<256x8xf32>,
    %c2_96 = arith.constant 2 : index
    %c0_97 = arith.constant 0 : index
    %c0_98 = arith.constant 0 : index
    %71 = vector.load %arg10[%c2_96, %c0_97, %c0_98] : memref<18x18x4xf32, #tpu.memory_space<vmem>>, vector<16x16x4xf32>
    %72 = vector.shape_cast %71 : vector<16x16x4xf32> to vector<256x4xf32>
    %c6 = arith.constant 6 : index
    %c0_99 = arith.constant 0 : index
    %c0_100 = arith.constant 0 : index
    %73 = vector.load %arg4[%c6, %c0_99, %c0_100] : memref<9x4x8xf32, #tpu.memory_space<vmem>>, vector<1x4x8xf32>
    %74 = vector.shape_cast %73 : vector<1x4x8xf32> to vector<4x8xf32>
    %cst_101 = arith.constant dense<0.000000e+00> : vector<256x8xf32>
    %75 = tpu.matmul %72, %74, %cst_101 {dimension_numbers = #tpu.dot_dimension_numbers<[1], [0], [0], [1], [0, 0, 1, 1], [], []>} : vector<256x4xf32>, vector<4x8xf32>, vector<256x8xf32> -> vector<256x8xf32>
    %c0_102 = arith.constant 0 : index
    %c0_103 = arith.constant 0 : index
    %76 = vector.load %arg12[%c0_102, %c0_103] : memref<256x8xf32, #tpu.memory_space<vmem>>, vector<256x8xf32>
    %77 = arith.addf %76, %75 : vector<256x8xf32>
    %c0_104 = arith.constant 0 : index
    %c0_105 = arith.constant 0 : index
    %78 = vector.load %arg12[%c0_104, %c0_105] : memref<256x8xf32, #tpu.memory_space<vmem>>, vector<256x8xf32>
    tpu.vector_store %arg12[%c0_104, %c0_105], %77 {strides = array<i32>} : memref<256x8xf32, #tpu.memory_space<vmem>>, vector<256x8xf32>,
    %c2_106 = arith.constant 2 : index
    %c1_107 = arith.constant 1 : index
    %c0_108 = arith.constant 0 : index
    %79 = vector.load %arg10[%c2_106, %c1_107, %c0_108] : memref<18x18x4xf32, #tpu.memory_space<vmem>>, vector<16x16x4xf32>
    %80 = vector.shape_cast %79 : vector<16x16x4xf32> to vector<256x4xf32>
    %c7 = arith.constant 7 : index
    %c0_109 = arith.constant 0 : index
    %c0_110 = arith.constant 0 : index
    %81 = vector.load %arg4[%c7, %c0_109, %c0_110] : memref<9x4x8xf32, #tpu.memory_space<vmem>>, vector<1x4x8xf32>
    %82 = vector.shape_cast %81 : vector<1x4x8xf32> to vector<4x8xf32>
    %cst_111 = arith.constant dense<0.000000e+00> : vector<256x8xf32>
    %83 = tpu.matmul %80, %82, %cst_111 {dimension_numbers = #tpu.dot_dimension_numbers<[1], [0], [0], [1], [0, 0, 1, 1], [], []>} : vector<256x4xf32>, vector<4x8xf32>, vector<256x8xf32> -> vector<256x8xf32>
    %c0_112 = arith.constant 0 : index
    %c0_113 = arith.constant 0 : index
    %84 = vector.load %arg12[%c0_112, %c0_113] : memref<256x8xf32, #tpu.memory_space<vmem>>, vector<256x8xf32>
    %85 = arith.addf %84, %83 : vector<256x8xf32>
    %c0_114 = arith.constant 0 : index
    %c0_115 = arith.constant 0 : index
    %86 = vector.load %arg12[%c0_114, %c0_115] : memref<256x8xf32, #tpu.memory_space<vmem>>, vector<256x8xf32>
    tpu.vector_store %arg12[%c0_114, %c0_115], %85 {strides = array<i32>} : memref<256x8xf32, #tpu.memory_space<vmem>>, vector<256x8xf32>,
    %c2_116 = arith.constant 2 : index
    %c2_117 = arith.constant 2 : index
    %c0_118 = arith.constant 0 : index
    %87 = vector.load %arg10[%c2_116, %c2_117, %c0_118] : memref<18x18x4xf32, #tpu.memory_space<vmem>>, vector<16x16x4xf32>
    %88 = vector.shape_cast %87 : vector<16x16x4xf32> to vector<256x4xf32>
    %c8 = arith.constant 8 : index
    %c0_119 = arith.constant 0 : index
    %c0_120 = arith.constant 0 : index
    %89 = vector.load %arg4[%c8, %c0_119, %c0_120] : memref<9x4x8xf32, #tpu.memory_space<vmem>>, vector<1x4x8xf32>
    %90 = vector.shape_cast %89 : vector<1x4x8xf32> to vector<4x8xf32>
    %cst_121 = arith.constant dense<0.000000e+00> : vector<256x8xf32>
    %91 = tpu.matmul %88, %90, %cst_121 {dimension_numbers = #tpu.dot_dimension_numbers<[1], [0], [0], [1], [0, 0, 1, 1], [], []>} : vector<256x4xf32>, vector<4x8xf32>, vector<256x8xf32> -> vector<256x8xf32>
    %c0_122 = arith.constant 0 : index
    %c0_123 = arith.constant 0 : index
    %92 = vector.load %arg12[%c0_122, %c0_123] : memref<256x8xf32, #tpu.memory_space<vmem>>, vector<256x8xf32>
    %93 = arith.addf %92, %91 : vector<256x8xf32>
    %c0_124 = arith.constant 0 : index
    %c0_125 = arith.constant 0 : index
    %94 = vector.load %arg12[%c0_124, %c0_125] : memref<256x8xf32, #tpu.memory_space<vmem>>, vector<256x8xf32>
    tpu.vector_store %arg12[%c0_124, %c0_125], %93 {strides = array<i32>} : memref<256x8xf32, #tpu.memory_space<vmem>>, vector<256x8xf32>,
    %c0_126 = arith.constant 0 : index
    %c0_127 = arith.constant 0 : index
    %95 = vector.load %arg5[%c0_126, %c0_127] : memref<1x8xf32, #tpu.memory_space<vmem>>, vector<1x8xf32>
    %c0_128 = arith.constant 0 : index
    %c0_129 = arith.constant 0 : index
    %96 = vector.load %arg6[%c0_128, %c0_129] : memref<1x8xf32, #tpu.memory_space<vmem>>, vector<1x8xf32>
    %c0_130 = arith.constant 0 : index
    %c0_131 = arith.constant 0 : index
    %97 = vector.load %arg12[%c0_130, %c0_131] : memref<256x8xf32, #tpu.memory_space<vmem>>, vector<256x8xf32>
    %98 = vector.broadcast %95 : vector<1x8xf32> to vector<256x8xf32>
    %99 = arith.mulf %97, %98 : vector<256x8xf32>
    %100 = vector.broadcast %96 : vector<1x8xf32> to vector<256x8xf32>
    %101 = arith.addf %99, %100 : vector<256x8xf32>
    %cst_132 = arith.constant 0.000000e+00 : f32
    %102 = vector.broadcast %cst_132 : f32 to vector<256x8xf32>
    %103 = arith.maximumf %101, %102 : vector<256x8xf32>
    %104 = vector.shape_cast %103 : vector<256x8xf32> to vector<16x16x8xf32>
    %c1_133 = arith.constant 1 : index
    %c1_134 = arith.constant 1 : index
    %c0_135 = arith.constant 0 : index
    %105 = vector.load %arg11[%c1_133, %c1_134, %c0_135] : memref<18x18x8xf32, #tpu.memory_space<vmem>>, vector<16x16x8xf32>
    tpu.vector_store %arg11[%c1_133, %c1_134, %c0_135], %104 {strides = array<i32>} : memref<18x18x8xf32, #tpu.memory_space<vmem>>, vector<16x16x8xf32>,
    %c0_136 = arith.constant 0 : index
    %c0_137 = arith.constant 0 : index
    %c0_138 = arith.constant 0 : index
    %106 = tpu.strided_load %arg11[%c0_136, %c0_137, %c0_138] {strides = array<i32: 1, 2, 1>} : memref<18x18x8xf32, #tpu.memory_space<vmem>>, vector<18x8x8xf32>
    %107 = vector.extract_strided_slice %106 {offsets = [0, 0, 0], sizes = [16, 8, 8], strides = [1, 1, 1]} : vector<18x8x8xf32> to vector<16x8x8xf32>
    %108 = vector.shape_cast %107 : vector<16x8x8xf32> to vector<8x2x8x8xf32>
    %109 = vector.extract_strided_slice %108 {offsets = [0, 0, 0, 0], sizes = [8, 1, 8, 8], strides = [1, 1, 1, 1]} : vector<8x2x8x8xf32> to vector<8x1x8x8xf32>
    %110 = vector.shape_cast %109 : vector<8x1x8x8xf32> to vector<8x8x8xf32>
    %111 = vector.shape_cast %110 : vector<8x8x8xf32> to vector<64x8xf32>
    %c0_139 = arith.constant 0 : index
    %c0_140 = arith.constant 0 : index
    %c0_141 = arith.constant 0 : index
    %112 = vector.load %arg7[%c0_139, %c0_140, %c0_141] : memref<9x8x8xf32, #tpu.memory_space<vmem>>, vector<1x8x8xf32>
    %113 = vector.shape_cast %112 : vector<1x8x8xf32> to vector<8x8xf32>
    %cst_142 = arith.constant dense<0.000000e+00> : vector<64x8xf32>
    %114 = tpu.matmul %111, %113, %cst_142 {dimension_numbers = #tpu.dot_dimension_numbers<[1], [0], [0], [1], [0, 0, 1, 1], [], []>} : vector<64x8xf32>, vector<8x8xf32>, vector<64x8xf32> -> vector<64x8xf32>
    %c0_143 = arith.constant 0 : index
    %c0_144 = arith.constant 0 : index
    %115 = vector.load %arg13[%c0_143, %c0_144] : memref<64x8xf32, #tpu.memory_space<vmem>>, vector<64x8xf32>
    tpu.vector_store %arg13[%c0_143, %c0_144], %114 {strides = array<i32>} : memref<64x8xf32, #tpu.memory_space<vmem>>, vector<64x8xf32>,
    %116 = vector.extract_strided_slice %106 {offsets = [1, 0, 0], sizes = [16, 8, 8], strides = [1, 1, 1]} : vector<18x8x8xf32> to vector<16x8x8xf32>
    %117 = vector.shape_cast %116 : vector<16x8x8xf32> to vector<8x2x8x8xf32>
    %118 = vector.extract_strided_slice %117 {offsets = [0, 0, 0, 0], sizes = [8, 1, 8, 8], strides = [1, 1, 1, 1]} : vector<8x2x8x8xf32> to vector<8x1x8x8xf32>
    %119 = vector.shape_cast %118 : vector<8x1x8x8xf32> to vector<8x8x8xf32>
    %120 = vector.shape_cast %119 : vector<8x8x8xf32> to vector<64x8xf32>
    %c3_145 = arith.constant 3 : index
    %c0_146 = arith.constant 0 : index
    %c0_147 = arith.constant 0 : index
    %121 = vector.load %arg7[%c3_145, %c0_146, %c0_147] : memref<9x8x8xf32, #tpu.memory_space<vmem>>, vector<1x8x8xf32>
    %122 = vector.shape_cast %121 : vector<1x8x8xf32> to vector<8x8xf32>
    %cst_148 = arith.constant dense<0.000000e+00> : vector<64x8xf32>
    %123 = tpu.matmul %120, %122, %cst_148 {dimension_numbers = #tpu.dot_dimension_numbers<[1], [0], [0], [1], [0, 0, 1, 1], [], []>} : vector<64x8xf32>, vector<8x8xf32>, vector<64x8xf32> -> vector<64x8xf32>
    %c0_149 = arith.constant 0 : index
    %c0_150 = arith.constant 0 : index
    %124 = vector.load %arg13[%c0_149, %c0_150] : memref<64x8xf32, #tpu.memory_space<vmem>>, vector<64x8xf32>
    %125 = arith.addf %124, %123 : vector<64x8xf32>
    %c0_151 = arith.constant 0 : index
    %c0_152 = arith.constant 0 : index
    %126 = vector.load %arg13[%c0_151, %c0_152] : memref<64x8xf32, #tpu.memory_space<vmem>>, vector<64x8xf32>
    tpu.vector_store %arg13[%c0_151, %c0_152], %125 {strides = array<i32>} : memref<64x8xf32, #tpu.memory_space<vmem>>, vector<64x8xf32>,
    %127 = vector.extract_strided_slice %106 {offsets = [2, 0, 0], sizes = [16, 8, 8], strides = [1, 1, 1]} : vector<18x8x8xf32> to vector<16x8x8xf32>
    %128 = vector.shape_cast %127 : vector<16x8x8xf32> to vector<8x2x8x8xf32>
    %129 = vector.extract_strided_slice %128 {offsets = [0, 0, 0, 0], sizes = [8, 1, 8, 8], strides = [1, 1, 1, 1]} : vector<8x2x8x8xf32> to vector<8x1x8x8xf32>
    %130 = vector.shape_cast %129 : vector<8x1x8x8xf32> to vector<8x8x8xf32>
    %131 = vector.shape_cast %130 : vector<8x8x8xf32> to vector<64x8xf32>
    %c6_153 = arith.constant 6 : index
    %c0_154 = arith.constant 0 : index
    %c0_155 = arith.constant 0 : index
    %132 = vector.load %arg7[%c6_153, %c0_154, %c0_155] : memref<9x8x8xf32, #tpu.memory_space<vmem>>, vector<1x8x8xf32>
    %133 = vector.shape_cast %132 : vector<1x8x8xf32> to vector<8x8xf32>
    %cst_156 = arith.constant dense<0.000000e+00> : vector<64x8xf32>
    %134 = tpu.matmul %131, %133, %cst_156 {dimension_numbers = #tpu.dot_dimension_numbers<[1], [0], [0], [1], [0, 0, 1, 1], [], []>} : vector<64x8xf32>, vector<8x8xf32>, vector<64x8xf32> -> vector<64x8xf32>
    %c0_157 = arith.constant 0 : index
    %c0_158 = arith.constant 0 : index
    %135 = vector.load %arg13[%c0_157, %c0_158] : memref<64x8xf32, #tpu.memory_space<vmem>>, vector<64x8xf32>
    %136 = arith.addf %135, %134 : vector<64x8xf32>
    %c0_159 = arith.constant 0 : index
    %c0_160 = arith.constant 0 : index
    %137 = vector.load %arg13[%c0_159, %c0_160] : memref<64x8xf32, #tpu.memory_space<vmem>>, vector<64x8xf32>
    tpu.vector_store %arg13[%c0_159, %c0_160], %136 {strides = array<i32>} : memref<64x8xf32, #tpu.memory_space<vmem>>, vector<64x8xf32>,
    %c0_161 = arith.constant 0 : index
    %c1_162 = arith.constant 1 : index
    %c0_163 = arith.constant 0 : index
    %138 = tpu.strided_load %arg11[%c0_161, %c1_162, %c0_163] {strides = array<i32: 1, 2, 1>} : memref<18x18x8xf32, #tpu.memory_space<vmem>>, vector<18x8x8xf32>
    %139 = vector.extract_strided_slice %138 {offsets = [0, 0, 0], sizes = [16, 8, 8], strides = [1, 1, 1]} : vector<18x8x8xf32> to vector<16x8x8xf32>
    %140 = vector.shape_cast %139 : vector<16x8x8xf32> to vector<8x2x8x8xf32>
    %141 = vector.extract_strided_slice %140 {offsets = [0, 0, 0, 0], sizes = [8, 1, 8, 8], strides = [1, 1, 1, 1]} : vector<8x2x8x8xf32> to vector<8x1x8x8xf32>
    %142 = vector.shape_cast %141 : vector<8x1x8x8xf32> to vector<8x8x8xf32>
    %143 = vector.shape_cast %142 : vector<8x8x8xf32> to vector<64x8xf32>
    %c1_164 = arith.constant 1 : index
    %c0_165 = arith.constant 0 : index
    %c0_166 = arith.constant 0 : index
    %144 = vector.load %arg7[%c1_164, %c0_165, %c0_166] : memref<9x8x8xf32, #tpu.memory_space<vmem>>, vector<1x8x8xf32>
    %145 = vector.shape_cast %144 : vector<1x8x8xf32> to vector<8x8xf32>
    %cst_167 = arith.constant dense<0.000000e+00> : vector<64x8xf32>
    %146 = tpu.matmul %143, %145, %cst_167 {dimension_numbers = #tpu.dot_dimension_numbers<[1], [0], [0], [1], [0, 0, 1, 1], [], []>} : vector<64x8xf32>, vector<8x8xf32>, vector<64x8xf32> -> vector<64x8xf32>
    %c0_168 = arith.constant 0 : index
    %c0_169 = arith.constant 0 : index
    %147 = vector.load %arg13[%c0_168, %c0_169] : memref<64x8xf32, #tpu.memory_space<vmem>>, vector<64x8xf32>
    %148 = arith.addf %147, %146 : vector<64x8xf32>
    %c0_170 = arith.constant 0 : index
    %c0_171 = arith.constant 0 : index
    %149 = vector.load %arg13[%c0_170, %c0_171] : memref<64x8xf32, #tpu.memory_space<vmem>>, vector<64x8xf32>
    tpu.vector_store %arg13[%c0_170, %c0_171], %148 {strides = array<i32>} : memref<64x8xf32, #tpu.memory_space<vmem>>, vector<64x8xf32>,
    %150 = vector.extract_strided_slice %138 {offsets = [1, 0, 0], sizes = [16, 8, 8], strides = [1, 1, 1]} : vector<18x8x8xf32> to vector<16x8x8xf32>
    %151 = vector.shape_cast %150 : vector<16x8x8xf32> to vector<8x2x8x8xf32>
    %152 = vector.extract_strided_slice %151 {offsets = [0, 0, 0, 0], sizes = [8, 1, 8, 8], strides = [1, 1, 1, 1]} : vector<8x2x8x8xf32> to vector<8x1x8x8xf32>
    %153 = vector.shape_cast %152 : vector<8x1x8x8xf32> to vector<8x8x8xf32>
    %154 = vector.shape_cast %153 : vector<8x8x8xf32> to vector<64x8xf32>
    %c4_172 = arith.constant 4 : index
    %c0_173 = arith.constant 0 : index
    %c0_174 = arith.constant 0 : index
    %155 = vector.load %arg7[%c4_172, %c0_173, %c0_174] : memref<9x8x8xf32, #tpu.memory_space<vmem>>, vector<1x8x8xf32>
    %156 = vector.shape_cast %155 : vector<1x8x8xf32> to vector<8x8xf32>
    %cst_175 = arith.constant dense<0.000000e+00> : vector<64x8xf32>
    %157 = tpu.matmul %154, %156, %cst_175 {dimension_numbers = #tpu.dot_dimension_numbers<[1], [0], [0], [1], [0, 0, 1, 1], [], []>} : vector<64x8xf32>, vector<8x8xf32>, vector<64x8xf32> -> vector<64x8xf32>
    %c0_176 = arith.constant 0 : index
    %c0_177 = arith.constant 0 : index
    %158 = vector.load %arg13[%c0_176, %c0_177] : memref<64x8xf32, #tpu.memory_space<vmem>>, vector<64x8xf32>
    %159 = arith.addf %158, %157 : vector<64x8xf32>
    %c0_178 = arith.constant 0 : index
    %c0_179 = arith.constant 0 : index
    %160 = vector.load %arg13[%c0_178, %c0_179] : memref<64x8xf32, #tpu.memory_space<vmem>>, vector<64x8xf32>
    tpu.vector_store %arg13[%c0_178, %c0_179], %159 {strides = array<i32>} : memref<64x8xf32, #tpu.memory_space<vmem>>, vector<64x8xf32>,
    %161 = vector.extract_strided_slice %138 {offsets = [2, 0, 0], sizes = [16, 8, 8], strides = [1, 1, 1]} : vector<18x8x8xf32> to vector<16x8x8xf32>
    %162 = vector.shape_cast %161 : vector<16x8x8xf32> to vector<8x2x8x8xf32>
    %163 = vector.extract_strided_slice %162 {offsets = [0, 0, 0, 0], sizes = [8, 1, 8, 8], strides = [1, 1, 1, 1]} : vector<8x2x8x8xf32> to vector<8x1x8x8xf32>
    %164 = vector.shape_cast %163 : vector<8x1x8x8xf32> to vector<8x8x8xf32>
    %165 = vector.shape_cast %164 : vector<8x8x8xf32> to vector<64x8xf32>
    %c7_180 = arith.constant 7 : index
    %c0_181 = arith.constant 0 : index
    %c0_182 = arith.constant 0 : index
    %166 = vector.load %arg7[%c7_180, %c0_181, %c0_182] : memref<9x8x8xf32, #tpu.memory_space<vmem>>, vector<1x8x8xf32>
    %167 = vector.shape_cast %166 : vector<1x8x8xf32> to vector<8x8xf32>
    %cst_183 = arith.constant dense<0.000000e+00> : vector<64x8xf32>
    %168 = tpu.matmul %165, %167, %cst_183 {dimension_numbers = #tpu.dot_dimension_numbers<[1], [0], [0], [1], [0, 0, 1, 1], [], []>} : vector<64x8xf32>, vector<8x8xf32>, vector<64x8xf32> -> vector<64x8xf32>
    %c0_184 = arith.constant 0 : index
    %c0_185 = arith.constant 0 : index
    %169 = vector.load %arg13[%c0_184, %c0_185] : memref<64x8xf32, #tpu.memory_space<vmem>>, vector<64x8xf32>
    %170 = arith.addf %169, %168 : vector<64x8xf32>
    %c0_186 = arith.constant 0 : index
    %c0_187 = arith.constant 0 : index
    %171 = vector.load %arg13[%c0_186, %c0_187] : memref<64x8xf32, #tpu.memory_space<vmem>>, vector<64x8xf32>
    tpu.vector_store %arg13[%c0_186, %c0_187], %170 {strides = array<i32>} : memref<64x8xf32, #tpu.memory_space<vmem>>, vector<64x8xf32>,
    %c0_188 = arith.constant 0 : index
    %c2_189 = arith.constant 2 : index
    %c0_190 = arith.constant 0 : index
    %172 = tpu.strided_load %arg11[%c0_188, %c2_189, %c0_190] {strides = array<i32: 1, 2, 1>} : memref<18x18x8xf32, #tpu.memory_space<vmem>>, vector<18x8x8xf32>
    %173 = vector.extract_strided_slice %172 {offsets = [0, 0, 0], sizes = [16, 8, 8], strides = [1, 1, 1]} : vector<18x8x8xf32> to vector<16x8x8xf32>
    %174 = vector.shape_cast %173 : vector<16x8x8xf32> to vector<8x2x8x8xf32>
    %175 = vector.extract_strided_slice %174 {offsets = [0, 0, 0, 0], sizes = [8, 1, 8, 8], strides = [1, 1, 1, 1]} : vector<8x2x8x8xf32> to vector<8x1x8x8xf32>
    %176 = vector.shape_cast %175 : vector<8x1x8x8xf32> to vector<8x8x8xf32>
    %177 = vector.shape_cast %176 : vector<8x8x8xf32> to vector<64x8xf32>
    %c2_191 = arith.constant 2 : index
    %c0_192 = arith.constant 0 : index
    %c0_193 = arith.constant 0 : index
    %178 = vector.load %arg7[%c2_191, %c0_192, %c0_193] : memref<9x8x8xf32, #tpu.memory_space<vmem>>, vector<1x8x8xf32>
    %179 = vector.shape_cast %178 : vector<1x8x8xf32> to vector<8x8xf32>
    %cst_194 = arith.constant dense<0.000000e+00> : vector<64x8xf32>
    %180 = tpu.matmul %177, %179, %cst_194 {dimension_numbers = #tpu.dot_dimension_numbers<[1], [0], [0], [1], [0, 0, 1, 1], [], []>} : vector<64x8xf32>, vector<8x8xf32>, vector<64x8xf32> -> vector<64x8xf32>
    %c0_195 = arith.constant 0 : index
    %c0_196 = arith.constant 0 : index
    %181 = vector.load %arg13[%c0_195, %c0_196] : memref<64x8xf32, #tpu.memory_space<vmem>>, vector<64x8xf32>
    %182 = arith.addf %181, %180 : vector<64x8xf32>
    %c0_197 = arith.constant 0 : index
    %c0_198 = arith.constant 0 : index
    %183 = vector.load %arg13[%c0_197, %c0_198] : memref<64x8xf32, #tpu.memory_space<vmem>>, vector<64x8xf32>
    tpu.vector_store %arg13[%c0_197, %c0_198], %182 {strides = array<i32>} : memref<64x8xf32, #tpu.memory_space<vmem>>, vector<64x8xf32>,
    %184 = vector.extract_strided_slice %172 {offsets = [1, 0, 0], sizes = [16, 8, 8], strides = [1, 1, 1]} : vector<18x8x8xf32> to vector<16x8x8xf32>
    %185 = vector.shape_cast %184 : vector<16x8x8xf32> to vector<8x2x8x8xf32>
    %186 = vector.extract_strided_slice %185 {offsets = [0, 0, 0, 0], sizes = [8, 1, 8, 8], strides = [1, 1, 1, 1]} : vector<8x2x8x8xf32> to vector<8x1x8x8xf32>
    %187 = vector.shape_cast %186 : vector<8x1x8x8xf32> to vector<8x8x8xf32>
    %188 = vector.shape_cast %187 : vector<8x8x8xf32> to vector<64x8xf32>
    %c5_199 = arith.constant 5 : index
    %c0_200 = arith.constant 0 : index
    %c0_201 = arith.constant 0 : index
    %189 = vector.load %arg7[%c5_199, %c0_200, %c0_201] : memref<9x8x8xf32, #tpu.memory_space<vmem>>, vector<1x8x8xf32>
    %190 = vector.shape_cast %189 : vector<1x8x8xf32> to vector<8x8xf32>
    %cst_202 = arith.constant dense<0.000000e+00> : vector<64x8xf32>
    %191 = tpu.matmul %188, %190, %cst_202 {dimension_numbers = #tpu.dot_dimension_numbers<[1], [0], [0], [1], [0, 0, 1, 1], [], []>} : vector<64x8xf32>, vector<8x8xf32>, vector<64x8xf32> -> vector<64x8xf32>
    %c0_203 = arith.constant 0 : index
    %c0_204 = arith.constant 0 : index
    %192 = vector.load %arg13[%c0_203, %c0_204] : memref<64x8xf32, #tpu.memory_space<vmem>>, vector<64x8xf32>
    %193 = arith.addf %192, %191 : vector<64x8xf32>
    %c0_205 = arith.constant 0 : index
    %c0_206 = arith.constant 0 : index
    %194 = vector.load %arg13[%c0_205, %c0_206] : memref<64x8xf32, #tpu.memory_space<vmem>>, vector<64x8xf32>
    tpu.vector_store %arg13[%c0_205, %c0_206], %193 {strides = array<i32>} : memref<64x8xf32, #tpu.memory_space<vmem>>, vector<64x8xf32>,
    %195 = vector.extract_strided_slice %172 {offsets = [2, 0, 0], sizes = [16, 8, 8], strides = [1, 1, 1]} : vector<18x8x8xf32> to vector<16x8x8xf32>
    %196 = vector.shape_cast %195 : vector<16x8x8xf32> to vector<8x2x8x8xf32>
    %197 = vector.extract_strided_slice %196 {offsets = [0, 0, 0, 0], sizes = [8, 1, 8, 8], strides = [1, 1, 1, 1]} : vector<8x2x8x8xf32> to vector<8x1x8x8xf32>
    %198 = vector.shape_cast %197 : vector<8x1x8x8xf32> to vector<8x8x8xf32>
    %199 = vector.shape_cast %198 : vector<8x8x8xf32> to vector<64x8xf32>
    %c8_207 = arith.constant 8 : index
    %c0_208 = arith.constant 0 : index
    %c0_209 = arith.constant 0 : index
    %200 = vector.load %arg7[%c8_207, %c0_208, %c0_209] : memref<9x8x8xf32, #tpu.memory_space<vmem>>, vector<1x8x8xf32>
    %201 = vector.shape_cast %200 : vector<1x8x8xf32> to vector<8x8xf32>
    %cst_210 = arith.constant dense<0.000000e+00> : vector<64x8xf32>
    %202 = tpu.matmul %199, %201, %cst_210 {dimension_numbers = #tpu.dot_dimension_numbers<[1], [0], [0], [1], [0, 0, 1, 1], [], []>} : vector<64x8xf32>, vector<8x8xf32>, vector<64x8xf32> -> vector<64x8xf32>
    %c0_211 = arith.constant 0 : index
    %c0_212 = arith.constant 0 : index
    %203 = vector.load %arg13[%c0_211, %c0_212] : memref<64x8xf32, #tpu.memory_space<vmem>>, vector<64x8xf32>
    %204 = arith.addf %203, %202 : vector<64x8xf32>
    %c0_213 = arith.constant 0 : index
    %c0_214 = arith.constant 0 : index
    %205 = vector.load %arg13[%c0_213, %c0_214] : memref<64x8xf32, #tpu.memory_space<vmem>>, vector<64x8xf32>
    tpu.vector_store %arg13[%c0_213, %c0_214], %204 {strides = array<i32>} : memref<64x8xf32, #tpu.memory_space<vmem>>, vector<64x8xf32>,
    %c0_215 = arith.constant 0 : index
    %c1_216 = arith.constant 1 : index
    %c0_217 = arith.constant 0 : index
    %206 = tpu.strided_load %arg10[%c0_215, %c1_216, %c0_217] {strides = array<i32: 1, 2, 1>} : memref<18x18x4xf32, #tpu.memory_space<vmem>>, vector<18x8x4xf32>
    %207 = vector.extract_strided_slice %206 {offsets = [1, 0, 0], sizes = [16, 8, 4], strides = [1, 1, 1]} : vector<18x8x4xf32> to vector<16x8x4xf32>
    %208 = vector.shape_cast %207 : vector<16x8x4xf32> to vector<8x2x8x4xf32>
    %209 = vector.extract_strided_slice %208 {offsets = [0, 0, 0, 0], sizes = [8, 1, 8, 4], strides = [1, 1, 1, 1]} : vector<8x2x8x4xf32> to vector<8x1x8x4xf32>
    %210 = vector.shape_cast %209 : vector<8x1x8x4xf32> to vector<8x8x4xf32>
    %211 = vector.shape_cast %210 : vector<8x8x4xf32> to vector<64x4xf32>
    %c0_218 = arith.constant 0 : index
    %c0_219 = arith.constant 0 : index
    %212 = vector.load %arg8[%c0_218, %c0_219] : memref<4x8xf32, #tpu.memory_space<vmem>>, vector<4x8xf32>
    %cst_220 = arith.constant dense<0.000000e+00> : vector<64x8xf32>
    %213 = tpu.matmul %211, %212, %cst_220 {dimension_numbers = #tpu.dot_dimension_numbers<[1], [0], [0], [1], [0, 0, 1, 1], [], []>} : vector<64x4xf32>, vector<4x8xf32>, vector<64x8xf32> -> vector<64x8xf32>
    %c0_221 = arith.constant 0 : index
    %c0_222 = arith.constant 0 : index
    %214 = vector.load %arg13[%c0_221, %c0_222] : memref<64x8xf32, #tpu.memory_space<vmem>>, vector<64x8xf32>
    %215 = arith.addf %214, %213 : vector<64x8xf32>
    %216 = vector.shape_cast %215 : vector<64x8xf32> to vector<1x8x8x8xf32>
    %c0_223 = arith.constant 0 : index
    %c0_224 = arith.constant 0 : index
    %c0_225 = arith.constant 0 : index
    %c0_226 = arith.constant 0 : index
    %217 = vector.load %arg9[%c0_223, %c0_224, %c0_225, %c0_226] : memref<1x8x8x8xf32, #tpu.memory_space<vmem>>, vector<1x8x8x8xf32>
    tpu.vector_store %arg9[%c0_223, %c0_224, %c0_225, %c0_226], %216 {strides = array<i32>} : memref<1x8x8x8xf32, #tpu.memory_space<vmem>>, vector<1x8x8x8xf32>,
    return
  }
  func.func @transform_0(%arg0: i32) -> (i32, i32, i32, i32) {
    %c0_i32 = arith.constant 0 : i32
    %c0_i32_0 = arith.constant 0 : i32
    %c0_i32_1 = arith.constant 0 : i32
    %c0_i32_2 = arith.constant 0 : i32
    return %arg0, %c0_i32, %c0_i32_0, %c0_i32_1 : i32, i32, i32, i32
  }
  func.func @transform_1(%arg0: i32) -> (i32, i32) {
    %c0_i32 = arith.constant 0 : i32
    %c0_i32_0 = arith.constant 0 : i32
    %c0_i32_1 = arith.constant 0 : i32
    return %c0_i32, %c0_i32_0 : i32, i32
  }
  func.func @transform_2(%arg0: i32) -> (i32, i32) {
    %c0_i32 = arith.constant 0 : i32
    %c0_i32_0 = arith.constant 0 : i32
    %c0_i32_1 = arith.constant 0 : i32
    return %c0_i32, %c0_i32_0 : i32, i32
  }
  func.func @transform_3(%arg0: i32) -> (i32, i32, i32) {
    %c0_i32 = arith.constant 0 : i32
    %c0_i32_0 = arith.constant 0 : i32
    %c0_i32_1 = arith.constant 0 : i32
    %c0_i32_2 = arith.constant 0 : i32
    return %c0_i32, %c0_i32_0, %c0_i32_1 : i32, i32, i32
  }
  func.func @transform_4(%arg0: i32) -> (i32, i32) {
    %c0_i32 = arith.constant 0 : i32
    %c0_i32_0 = arith.constant 0 : i32
    %c0_i32_1 = arith.constant 0 : i32
    return %c0_i32, %c0_i32_0 : i32, i32
  }
  func.func @transform_5(%arg0: i32) -> (i32, i32) {
    %c0_i32 = arith.constant 0 : i32
    %c0_i32_0 = arith.constant 0 : i32
    %c0_i32_1 = arith.constant 0 : i32
    return %c0_i32, %c0_i32_0 : i32, i32
  }
  func.func @transform_6(%arg0: i32) -> (i32, i32, i32) {
    %c0_i32 = arith.constant 0 : i32
    %c0_i32_0 = arith.constant 0 : i32
    %c0_i32_1 = arith.constant 0 : i32
    %c0_i32_2 = arith.constant 0 : i32
    return %c0_i32, %c0_i32_0, %c0_i32_1 : i32, i32, i32
  }
  func.func @transform_7(%arg0: i32) -> (i32, i32) {
    %c0_i32 = arith.constant 0 : i32
    %c0_i32_0 = arith.constant 0 : i32
    %c0_i32_1 = arith.constant 0 : i32
    return %c0_i32, %c0_i32_0 : i32, i32
  }
  func.func @transform_8(%arg0: i32) -> (i32, i32, i32, i32) {
    %c0_i32 = arith.constant 0 : i32
    %c0_i32_0 = arith.constant 0 : i32
    %c0_i32_1 = arith.constant 0 : i32
    %c0_i32_2 = arith.constant 0 : i32
    return %arg0, %c0_i32, %c0_i32_0, %c0_i32_1 : i32, i32, i32, i32
  }
}

</mosaic_0001>

<llo_original>
// kernel: group_relaxed_tf1_basic_block_forward.1
$region0: #{group_relaxed_tf1_basic_block_forward.1}
  #allocation0 [shape = 'u32[]', space=smem, size = 0x4, offset = 0x4, fixed_abs, tag = 'smem constant byte address 0x4 - core index']
  #allocation1 [shape = 'u32[144,128]{1,0:T(1,128)}', space=vmem, size = 0x12000, scoped, tag = 'internal scratch']
  #allocation2 [shape = 'f32[18,18,4]{2,1,0:T(8,128)}', space=vmem, size = 0x36000, scoped, tag = 'scratch operand']
  #allocation3 [shape = 'f32[18,18,8]{2,1,0:T(8,128)}', space=vmem, size = 0x36000, scoped, tag = 'scratch operand']
  #allocation4 [shape = 'f32[256,8]{1,0:T(8,128)}', space=vmem, size = 0x20000, scoped, tag = 'scratch operand']
  #allocation5 [shape = 'f32[64,8]{1,0:T(8,128)}', space=vmem, size = 0x8000, scoped, tag = 'scratch operand']
  %s0 = inlined_call_operand.vmem [shape: f32[2,16,16,4], index: 0, kind: input, shape index: {}]
  %s1 = inlined_call_operand.vmem [shape: f32[1,4], index: 1, kind: input, shape index: {}]
  %s2 = inlined_call_operand.vmem [shape: f32[1,4], index: 2, kind: input, shape index: {}]
  %s3 = inlined_call_operand.vmem [shape: f32[9,4,8], index: 3, kind: input, shape index: {}]
  %s4 = inlined_call_operand.vmem [shape: f32[1,8], index: 4, kind: input, shape index: {}]
  %s5 = inlined_call_operand.vmem [shape: f32[1,8], index: 5, kind: input, shape index: {}]
  %s6 = inlined_call_operand.vmem [shape: f32[9,8,8], index: 6, kind: input, shape index: {}]
  %s7 = inlined_call_operand.vmem [shape: f32[4,8], index: 7, kind: input, shape index: {}]
  %s8 = inlined_call_operand.vmem [shape: f32[2,8,8,8], index: 8, kind: output, shape index: {}]
  %s9 = sld [smem:[#allocation0]]
  $region65: #{group_relaxed_tf1_basic_block_forward.1} parent=0
    _
  %s11 = ssub.s32 1, %s9
  %s12 = scalar_select 0, %s11, %s9
  loop: start=0, step=1, limit=4
  $region2: #{group_relaxed_tf1_basic_block_forward.1} parent=0 // loop_pre_header
    _
  $region3: #{group_relaxed_tf1_basic_block_forward.1} parent=0 // loop_header
    %s14 = sphi 0, %s18
    %p15 = scmp.ge.s32.totalorder %s14, 4
    %s24 = sphi 0, %s26
    %s27 = sphi 0, %s24
    %s28 = sphi 0, %s27
    %s44 = sphi 0, %s28
    %s48 = sphi 0, %s48
    %s50 = sphi 0, %s48
    %s51 = sphi 0, %s50
    %s65 = sphi 0, %s51
    %s69 = sphi 0, %s69
    %s71 = sphi 0, %s69
    %s72 = sphi 0, %s71
    %s86 = sphi 0, %s72
    %s90 = sphi 0, %s90
    %s92 = sphi 0, %s90
    %s93 = sphi 0, %s92
    %s107 = sphi 0, %s93
    %s111 = sphi 0, %s111
    %s113 = sphi 0, %s111
    %s114 = sphi 0, %s113
    %s128 = sphi 0, %s114
    %s132 = sphi 0, %s132
    %s134 = sphi 0, %s132
    %s135 = sphi 0, %s134
    %s149 = sphi 0, %s135
    %s153 = sphi 0, %s153
    %s155 = sphi 0, %s153
    %s156 = sphi 0, %s155
    %s170 = sphi 0, %s156
    %s174 = sphi 0, %s174
    %s176 = sphi 0, %s174
    %s177 = sphi 0, %s176
    %s191 = sphi 0, %s177
    %s197 = sphi 0, %s199
    %s200 = sphi 0, %s197
    %s201 = sphi 0, %s200
    %s217 = sphi 0, %s201
  $region4: #{group_relaxed_tf1_basic_block_forward.1} parent=0 // loop_header_branch
    %17 = sbr.rel (%p15) target = $region8
  $region5: #{group_relaxed_tf1_basic_block_forward.1} parent=0 // loop_body
    %s19 = ssub.s32 %s14, 1
    %s20 = ssub.s32 %s14, 2
    %s21 = sadd.s32 %s14, 1
    %s22 = ssub.s32 %s14, %s21
    %p23 = scmp.eq.s32.totalorder %s22, 0
    %s25 = sadd.s32 %s24, 1
    %s26 = scalar_select %p23, %s24, %s25
    %p29 = pneg %p23
    %p30 = scmp.eq.s32.totalorder %s14, 1
    %p31 = por %p29, %p30
    %p32 = scmp.ne.s32.totalorder %s24, %s27
    %p33 = scmp.eq.s32.totalorder %s14, 0
    %p34 = por %p32, %p33
    %p35 = scmp.ne.s32.totalorder %s24, %s27
    %p36 = scmp.eq.s32.totalorder %s19, 1
    %p37 = por %p35, %p36
    %p38 = scmp.ne.s32.totalorder %s27, %s28
    %p39 = scmp.eq.s32.totalorder %s19, 0
    %p40 = por %p38, %p39
    %p41 = scmp.ne.s32.totalorder %s27, %s28
    %p42 = scmp.eq.s32.totalorder %s20, 1
    %p43 = por %p41, %p42
    %p45 = scmp.ne.s32.totalorder %s28, %s44
    %p46 = scmp.eq.s32.totalorder %s20, 0
    %p47 = por %p45, %p46
    %s49 = sadd.s32 %s48, 1
    %p52 = scmp.eq.s32.totalorder %s14, 1
    %p53 = scmp.ne.s32.totalorder %s48, %s50
    %p54 = scmp.eq.s32.totalorder %s14, 0
    %p55 = por %p53, %p54
    %p56 = scmp.ne.s32.totalorder %s48, %s50
    %p57 = scmp.eq.s32.totalorder %s19, 1
    %p58 = por %p56, %p57
    %p59 = scmp.ne.s32.totalorder %s50, %s51
    %p60 = scmp.eq.s32.totalorder %s19, 0
    %p61 = por %p59, %p60
    %p62 = scmp.ne.s32.totalorder %s50, %s51
    %p63 = scmp.eq.s32.totalorder %s20, 1
    %p64 = por %p62, %p63
    %p66 = scmp.ne.s32.totalorder %s51, %s65
    %p67 = scmp.eq.s32.totalorder %s20, 0
    %p68 = por %p66, %p67
    %s70 = sadd.s32 %s69, 1
    %p73 = scmp.eq.s32.totalorder %s14, 1
    %p74 = scmp.ne.s32.totalorder %s69, %s71
    %p75 = scmp.eq.s32.totalorder %s14, 0
    %p76 = por %p74, %p75
    %p77 = scmp.ne.s32.totalorder %s69, %s71
    %p78 = scmp.eq.s32.totalorder %s19, 1
    %p79 = por %p77, %p78
    %p80 = scmp.ne.s32.totalorder %s71, %s72
    %p81 = scmp.eq.s32.totalorder %s19, 0
    %p82 = por %p80, %p81
    %p83 = scmp.ne.s32.totalorder %s71, %s72
    %p84 = scmp.eq.s32.totalorder %s20, 1
    %p85 = por %p83, %p84
    %p87 = scmp.ne.s32.totalorder %s72, %s86
    %p88 = scmp.eq.s32.totalorder %s20, 0
    %p89 = por %p87, %p88
    %s91 = sadd.s32 %s90, 1
    %p94 = scmp.eq.s32.totalorder %s14, 1
    %p95 = scmp.ne.s32.totalorder %s90, %s92
    %p96 = scmp.eq.s32.totalorder %s14, 0
    %p97 = por %p95, %p96
    %p98 = scmp.ne.s32.totalorder %s90, %s92
    %p99 = scmp.eq.s32.totalorder %s19, 1
    %p100 = por %p98, %p99
    %p101 = scmp.ne.s32.totalorder %s92, %s93
    %p102 = scmp.eq.s32.totalorder %s19, 0
    %p103 = por %p101, %p102
    %p104 = scmp.ne.s32.totalorder %s92, %s93
    %p105 = scmp.eq.s32.totalorder %s20, 1
    %p106 = por %p104, %p105
    %p108 = scmp.ne.s32.totalorder %s93, %s107
    %p109 = scmp.eq.s32.totalorder %s20, 0
    %p110 = por %p108, %p109
    %s112 = sadd.s32 %s111, 1
    %p115 = scmp.eq.s32.totalorder %s14, 1
    %p116 = scmp.ne.s32.totalorder %s111, %s113
    %p117 = scmp.eq.s32.totalorder %s14, 0
    %p118 = por %p116, %p117
    %p119 = scmp.ne.s32.totalorder %s111, %s113
    %p120 = scmp.eq.s32.totalorder %s19, 1
    %p121 = por %p119, %p120
    %p122 = scmp.ne.s32.totalorder %s113, %s114
    %p123 = scmp.eq.s32.totalorder %s19, 0
    %p124 = por %p122, %p123
    %p125 = scmp.ne.s32.totalorder %s113, %s114
    %p126 = scmp.eq.s32.totalorder %s20, 1
    %p127 = por %p125, %p126
    %p129 = scmp.ne.s32.totalorder %s114, %s128
    %p130 = scmp.eq.s32.totalorder %s20, 0
    %p131 = por %p129, %p130
    %s133 = sadd.s32 %s132, 1
    %p136 = scmp.eq.s32.totalorder %s14, 1
    %p137 = scmp.ne.s32.totalorder %s132, %s134
    %p138 = scmp.eq.s32.totalorder %s14, 0
    %p139 = por %p137, %p138
    %p140 = scmp.ne.s32.totalorder %s132, %s134
    %p141 = scmp.eq.s32.totalorder %s19, 1
    %p142 = por %p140, %p141
    %p143 = scmp.ne.s32.totalorder %s134, %s135
    %p144 = scmp.eq.s32.totalorder %s19, 0
    %p145 = por %p143, %p144
    %p146 = scmp.ne.s32.totalorder %s134, %s135
    %p147 = scmp.eq.s32.totalorder %s20, 1
    %p148 = por %p146, %p147
    %p150 = scmp.ne.s32.totalorder %s135, %s149
    %p151 = scmp.eq.s32.totalorder %s20, 0
    %p152 = por %p150, %p151
    %s154 = sadd.s32 %s153, 1
    %p157 = scmp.eq.s32.totalorder %s14, 1
    %p158 = scmp.ne.s32.totalorder %s153, %s155
    %p159 = scmp.eq.s32.totalorder %s14, 0
    %p160 = por %p158, %p159
    %p161 = scmp.ne.s32.totalorder %s153, %s155
    %p162 = scmp.eq.s32.totalorder %s19, 1
    %p163 = por %p161, %p162
    %p164 = scmp.ne.s32.totalorder %s155, %s156
    %p165 = scmp.eq.s32.totalorder %s19, 0
    %p166 = por %p164, %p165
    %p167 = scmp.ne.s32.totalorder %s155, %s156
    %p168 = scmp.eq.s32.totalorder %s20, 1
    %p169 = por %p167, %p168
    %p171 = scmp.ne.s32.totalorder %s156, %s170
    %p172 = scmp.eq.s32.totalorder %s20, 0
    %p173 = por %p171, %p172
    %s175 = sadd.s32 %s174, 1
    %p178 = scmp.eq.s32.totalorder %s14, 1
    %p179 = scmp.ne.s32.totalorder %s174, %s176
    %p180 = scmp.eq.s32.totalorder %s14, 0
    %p181 = por %p179, %p180
    %p182 = scmp.ne.s32.totalorder %s174, %s176
    %p183 = scmp.eq.s32.totalorder %s19, 1
    %p184 = por %p182, %p183
    %p185 = scmp.ne.s32.totalorder %s176, %s177
    %p186 = scmp.eq.s32.totalorder %s19, 0
    %p187 = por %p185, %p186
    %p188 = scmp.ne.s32.totalorder %s176, %s177
    %p189 = scmp.eq.s32.totalorder %s20, 1
    %p190 = por %p188, %p189
    %p192 = scmp.ne.s32.totalorder %s177, %s191
    %p193 = scmp.eq.s32.totalorder %s20, 0
    %p194 = por %p192, %p193
    %s195 = ssub.s32 %s14, %s21
    %p196 = scmp.eq.s32.totalorder %s195, 0
    %s198 = sadd.s32 %s197, 1
    %s199 = scalar_select %p196, %s197, %s198
    %p202 = pneg %p196
    %p203 = scmp.eq.s32.totalorder %s14, 1
    %p204 = por %p202, %p203
    %p205 = scmp.ne.s32.totalorder %s197, %s200
    %p206 = scmp.eq.s32.totalorder %s14, 0
    %p207 = por %p205, %p206
    %p208 = scmp.ne.s32.totalorder %s197, %s200
    %p209 = scmp.eq.s32.totalorder %s19, 1
    %p210 = por %p208, %p209
    %p211 = scmp.ne.s32.totalorder %s200, %s201
    %p212 = scmp.eq.s32.totalorder %s19, 0
    %p213 = por %p211, %p212
    %p214 = scmp.ne.s32.totalorder %s200, %s201
    %p215 = scmp.eq.s32.totalorder %s20, 1
    %p216 = por %p214, %p215
    %p218 = scmp.ne.s32.totalorder %s201, %s217
    %p219 = scmp.eq.s32.totalorder %s20, 0
    %p220 = por %p218, %p219
    %p221 = scmp.le.s32.totalorder 1, %s14
    %p222 = scmp.lt.s32.totalorder %s14, 3
    %p223 = pnand %p221, %p222
    %p224 = pneg %p223
    // Predicated region
    $region9: #{group_relaxed_tf1_basic_block_forward.1} parent=5 // pred_check
      _
    $region10: #{group_relaxed_tf1_basic_block_forward.1} parent=5 // pred_check_branch
      %226 = sbr.rel (%p223) target = $region12
    $region11: #{group_relaxed_tf1_basic_block_forward.1} parent=5 // pred_region
      %s227 = ssub.s32 %s14, 1
      // Predicated region
      $region13: #{group_relaxed_tf1_basic_block_forward.1} parent=11 // pred_check
        %p228 = pneg %p61
      $region14: #{group_relaxed_tf1_basic_block_forward.1} parent=11 // pred_check_branch
        %230 = sbr.rel (%p228) target = $region16
      $region15: #{group_relaxed_tf1_basic_block_forward.1} parent=11 // pred_region
        _
      $region16: #{group_relaxed_tf1_basic_block_forward.1} parent=11 // pred_fallthru
        _
      // Predicated region
      $region17: #{group_relaxed_tf1_basic_block_forward.1} parent=11 // pred_check
        %p231 = pneg %p82
      $region18: #{group_relaxed_tf1_basic_block_forward.1} parent=11 // pred_check_branch
        %233 = sbr.rel (%p231) target = $region20
      $region19: #{group_relaxed_tf1_basic_block_forward.1} parent=11 // pred_region
        _
      $region20: #{group_relaxed_tf1_basic_block_forward.1} parent=11 // pred_fallthru
        _
      // Predicated region
      $region21: #{group_relaxed_tf1_basic_block_forward.1} parent=11 // pred_check
        %p234 = pneg %p103
      $region22: #{group_relaxed_tf1_basic_block_forward.1} parent=11 // pred_check_branch
        %236 = sbr.rel (%p234) target = $region24
      $region23: #{group_relaxed_tf1_basic_block_forward.1} parent=11 // pred_region
        _
      $region24: #{group_relaxed_tf1_basic_block_forward.1} parent=11 // pred_fallthru
        _
      // Predicated region
      $region25: #{group_relaxed_tf1_basic_block_forward.1} parent=11 // pred_check
        %p237 = pneg %p124
      $region26: #{group_relaxed_tf1_basic_block_forward.1} parent=11 // pred_check_branch
        %239 = sbr.rel (%p237) target = $region28
      $region27: #{group_relaxed_tf1_basic_block_forward.1} parent=11 // pred_region
        _
      $region28: #{group_relaxed_tf1_basic_block_forward.1} parent=11 // pred_fallthru
        _
      // Predicated region
      $region29: #{group_relaxed_tf1_basic_block_forward.1} parent=11 // pred_check
        %p240 = pneg %p145
      $region30: #{group_relaxed_tf1_basic_block_forward.1} parent=11 // pred_check_branch
        %242 = sbr.rel (%p240) target = $region32
      $region31: #{group_relaxed_tf1_basic_block_forward.1} parent=11 // pred_region
        _
      $region32: #{group_relaxed_tf1_basic_block_forward.1} parent=11 // pred_fallthru
        _
      // Predicated region
      $region33: #{group_relaxed_tf1_basic_block_forward.1} parent=11 // pred_check
        %p243 = pneg %p166
      $region34: #{group_relaxed_tf1_basic_block_forward.1} parent=11 // pred_check_branch
        %245 = sbr.rel (%p243) target = $region36
      $region35: #{group_relaxed_tf1_basic_block_forward.1} parent=11 // pred_region
        _
      $region36: #{group_relaxed_tf1_basic_block_forward.1} parent=11 // pred_fallthru
        _
      // Predicated region
      $region37: #{group_relaxed_tf1_basic_block_forward.1} parent=11 // pred_check
        %p246 = pneg %p187
      $region38: #{group_relaxed_tf1_basic_block_forward.1} parent=11 // pred_check_branch
        %248 = sbr.rel (%p246) target = $region40
      $region39: #{group_relaxed_tf1_basic_block_forward.1} parent=11 // pred_region
        _
      $region40: #{group_relaxed_tf1_basic_block_forward.1} parent=11 // pred_fallthru
        _
    $region12: #{group_relaxed_tf1_basic_block_forward.1} parent=5 // pred_fallthru
      _
    %p249 = scmp.lt.s32.totalorder %s14, 2
    // Predicated region
    $region41: #{group_relaxed_tf1_basic_block_forward.1} parent=5 // pred_check
      %p250 = pneg %p249
    $region42: #{group_relaxed_tf1_basic_block_forward.1} parent=5 // pred_check_branch
      %252 = sbr.rel (%p250) target = $region44
    $region43: #{group_relaxed_tf1_basic_block_forward.1} parent=5 // pred_region
      // Predicated region
      $region45: #{group_relaxed_tf1_basic_block_forward.1} parent=43 // pred_check
        %p253 = pneg %p34
      $region46: #{group_relaxed_tf1_basic_block_forward.1} parent=43 // pred_check_branch
        %255 = sbr.rel (%p253) target = $region48
      $region47: #{group_relaxed_tf1_basic_block_forward.1} parent=43 // pred_region
        %p256 = scmp.lt.s32.totalorder %s14, 1
        %s257 = scalar_select %p256, %s14, 1
        %s258 = smul.addr %s257, 32
        %s259 = smul.addr %s258, 8
        %s260 = scalar_lea.vmem %s0, %s259
      $region48: #{group_relaxed_tf1_basic_block_forward.1} parent=43 // pred_fallthru
        _
    $region44: #{group_relaxed_tf1_basic_block_forward.1} parent=5 // pred_fallthru
      _
    %p261 = scmp.le.s32.totalorder 1, %s14
    %p262 = scmp.lt.s32.totalorder %s14, 3
    %p263 = pnand %p261, %p262
    %p264 = pneg %p263
    // Predicated region
    $region49: #{group_relaxed_tf1_basic_block_forward.1} parent=5 // pred_check
      _
    $region50: #{group_relaxed_tf1_basic_block_forward.1} parent=5 // pred_check_branch
      %266 = sbr.rel (%p263) target = $region52
    $region51: #{group_relaxed_tf1_basic_block_forward.1} parent=5 // pred_region
      %s267 = ssub.s32 %s14, 1
      %p268 = scmp.lt.s32.totalorder %s19, 1
      %s269 = scalar_select %p268, %s19, 1
      %s270 = smul.addr %s269, 32
      %s271 = smul.addr %s270, 8
      %s272 = scalar_lea.vmem %s0, %s271
      %p273 = pneg %p40
      %p274 = pneg %p37
      %p275 = pneg %p61
      %p276 = pneg %p58
      %p277 = pneg %p82
      %p278 = pneg %p79
      %p279 = pneg %p103
      %p280 = pneg %p100
      %p281 = pneg %p124
      %p282 = pneg %p121
      %p283 = pneg %p145
      %p284 = pneg %p142
      %p285 = pneg %p166
      %p286 = pneg %p163
      %p287 = pneg %p187
      %p288 = pneg %p184
      %p289 = pneg %p213
      %p290 = pneg %p210
      %p291 = scmp.lt.s32.totalorder %s19, 1
      %s292 = scalar_select %p291, %s19, 1
      %s293 = smul.addr %s292, 8
      %s294 = smul.addr %s293, 8
      %s295 = scalar_lea.vmem %s8, %s294
      %p296 = scmp.lt.s32.totalorder %s19, 1
      %s297 = scalar_select %p296, %s19, 1
      %s298 = smul.addr %s297, 32
      %s299 = smul.addr %s298, 8
      %s300 = scalar_lea.vmem %s0, %s299
      %p301 = scmp.lt.s32.totalorder %s19, 1
      %s302 = scalar_select %p301, %s19, 1
      %s303 = smul.addr %s302, 8
      %s304 = smul.addr %s303, 8
      %s305 = scalar_lea.vmem %s8, %s304
      %vm306 = vcmask 31744
      %307 = vst.msk [vmem:[#allocation2] sm:$0xff] %vm306, 0.0
      %308 = vst.msk [vmem:[#allocation2 + $0x8] sm:$0xff] %vm306, 0.0
      %vm309 = vcmask 25600
      %310 = vst.msk [vmem:[#allocation2 + $0x10] sm:$0x3] %vm309, 0.0
      %s311 = scalar_lea.vmem [#allocation2], 408
      %312 = vst.msk [vmem:[%s311] sm:$0xff] %vm306, 0.0
      %313 = vst.msk [vmem:[%s311 + $0x8] sm:$0xff] %vm306, 0.0
      %314 = vst.msk [vmem:[%s311 + $0x10] sm:$0x3] %vm309, 0.0
      %vm315 = vcmask 24576
      %316 = vst.msk [vmem:[#allocation2] sm:$0x1] %vm315, 0.0
      %317 = vst.msk [vmem:[#allocation2 + $0x18] sm:$0x1] %vm315, 0.0
      %318 = vst.msk [vmem:[#allocation2 + $0x30] sm:$0x1] %vm315, 0.0
      %319 = vst.msk [vmem:[#allocation2 + $0x48] sm:$0x1] %vm315, 0.0
      %320 = vst.msk [vmem:[#allocation2 + $0x60] sm:$0x1] %vm315, 0.0
      %321 = vst.msk [vmem:[#allocation2 + $0x78] sm:$0x1] %vm315, 0.0
      %322 = vst.msk [vmem:[#allocation2 + $0x90] sm:$0x1] %vm315, 0.0
      %323 = vst.msk [vmem:[#allocation2 + $0xa8] sm:$0x1] %vm315, 0.0
      %324 = vst.msk [vmem:[#allocation2 + $0xc0] sm:$0x1] %vm315, 0.0
      %325 = vst.msk [vmem:[#allocation2 + $0xd8] sm:$0x1] %vm315, 0.0
      %326 = vst.msk [vmem:[#allocation2 + $0xf0] sm:$0x1] %vm315, 0.0
      %327 = vst.msk [vmem:[#allocation2 + $0x108] sm:$0x1] %vm315, 0.0
      %328 = vst.msk [vmem:[#allocation2 + $0x120] sm:$0x1] %vm315, 0.0
      %329 = vst.msk [vmem:[#allocation2 + $0x138] sm:$0x1] %vm315, 0.0
      %330 = vst.msk [vmem:[#allocation2 + $0x150] sm:$0x1] %vm315, 0.0
      %331 = vst.msk [vmem:[#allocation2 + $0x168] sm:$0x1] %vm315, 0.0
      %332 = vst.msk [vmem:[#allocation2 + $0x180] sm:$0x1] %vm315, 0.0
      %333 = vst.msk [vmem:[#allocation2 + $0x198] sm:$0x1] %vm315, 0.0
      %334 = vst.msk [vmem:[#allocation2 + $0x11] sm:$0x1] %vm315, 0.0
      %335 = vst.msk [vmem:[#allocation2 + $0x29] sm:$0x1] %vm315, 0.0
      %336 = vst.msk [vmem:[#allocation2 + $0x41] sm:$0x1] %vm315, 0.0
      %337 = vst.msk [vmem:[#allocation2 + $0x59] sm:$0x1] %vm315, 0.0
      %338 = vst.msk [vmem:[#allocation2 + $0x71] sm:$0x1] %vm315, 0.0
      %339 = vst.msk [vmem:[#allocation2 + $0x89] sm:$0x1] %vm315, 0.0
      %340 = vst.msk [vmem:[#allocation2 + $0xa1] sm:$0x1] %vm315, 0.0
      %341 = vst.msk [vmem:[#allocation2 + $0xb9] sm:$0x1] %vm315, 0.0
      %342 = vst.msk [vmem:[#allocation2 + $0xd1] sm:$0x1] %vm315, 0.0
      %343 = vst.msk [vmem:[#allocation2 + $0xe9] sm:$0x1] %vm315, 0.0
      %344 = vst.msk [vmem:[#allocation2 + $0x101] sm:$0x1] %vm315, 0.0
      %345 = vst.msk [vmem:[#allocation2 + $0x119] sm:$0x1] %vm315, 0.0
      %346 = vst.msk [vmem:[#allocation2 + $0x131] sm:$0x1] %vm315, 0.0
      %347 = vst.msk [vmem:[#allocation2 + $0x149] sm:$0x1] %vm315, 0.0
      %348 = vst.msk [vmem:[#allocation2 + $0x161] sm:$0x1] %vm315, 0.0
      %349 = vst.msk [vmem:[#allocation2 + $0x179] sm:$0x1] %vm315, 0.0
      %350 = vst.msk [vmem:[#allocation2 + $0x191] sm:$0x1] %vm315, 0.0
      %351 = vst.msk [vmem:[#allocation2 + $0x1a9] sm:$0x1] %vm315, 0.0
      %vm352 = vcmask 64512
      %353 = vst.msk [vmem:[#allocation3] sm:$0xff] %vm352, 0.0
      %354 = vst.msk [vmem:[#allocation3 + $0x8] sm:$0xff] %vm352, 0.0
      %vm355 = vcmask 58368
      %356 = vst.msk [vmem:[#allocation3 + $0x10] sm:$0x3] %vm355, 0.0
      %s357 = scalar_lea.vmem [#allocation3], 408
      %358 = vst.msk [vmem:[%s357] sm:$0xff] %vm352, 0.0
      %359 = vst.msk [vmem:[%s357 + $0x8] sm:$0xff] %vm352, 0.0
      %360 = vst.msk [vmem:[%s357 + $0x10] sm:$0x3] %vm355, 0.0
      %vm361 = vcmask 57344
      %362 = vst.msk [vmem:[#allocation3] sm:$0x1] %vm361, 0.0
      %363 = vst.msk [vmem:[#allocation3 + $0x18] sm:$0x1] %vm361, 0.0
      %364 = vst.msk [vmem:[#allocation3 + $0x30] sm:$0x1] %vm361, 0.0
      %365 = vst.msk [vmem:[#allocation3 + $0x48] sm:$0x1] %vm361, 0.0
      %366 = vst.msk [vmem:[#allocation3 + $0x60] sm:$0x1] %vm361, 0.0
      %367 = vst.msk [vmem:[#allocation3 + $0x78] sm:$0x1] %vm361, 0.0
      %368 = vst.msk [vmem:[#allocation3 + $0x90] sm:$0x1] %vm361, 0.0
      %369 = vst.msk [vmem:[#allocation3 + $0xa8] sm:$0x1] %vm361, 0.0
      %370 = vst.msk [vmem:[#allocation3 + $0xc0] sm:$0x1] %vm361, 0.0
      %371 = vst.msk [vmem:[#allocation3 + $0xd8] sm:$0x1] %vm361, 0.0
      %372 = vst.msk [vmem:[#allocation3 + $0xf0] sm:$0x1] %vm361, 0.0
      %373 = vst.msk [vmem:[#allocation3 + $0x108] sm:$0x1] %vm361, 0.0
      %374 = vst.msk [vmem:[#allocation3 + $0x120] sm:$0x1] %vm361, 0.0
      %375 = vst.msk [vmem:[#allocation3 + $0x138] sm:$0x1] %vm361, 0.0
      %376 = vst.msk [vmem:[#allocation3 + $0x150] sm:$0x1] %vm361, 0.0
      %377 = vst.msk [vmem:[#allocation3 + $0x168] sm:$0x1] %vm361, 0.0
      %378 = vst.msk [vmem:[#allocation3 + $0x180] sm:$0x1] %vm361, 0.0
      %379 = vst.msk [vmem:[#allocation3 + $0x198] sm:$0x1] %vm361, 0.0
      %380 = vst.msk [vmem:[#allocation3 + $0x11] sm:$0x1] %vm361, 0.0
      %381 = vst.msk [vmem:[#allocation3 + $0x29] sm:$0x1] %vm361, 0.0
      %382 = vst.msk [vmem:[#allocation3 + $0x41] sm:$0x1] %vm361, 0.0
      %383 = vst.msk [vmem:[#allocation3 + $0x59] sm:$0x1] %vm361, 0.0
      %384 = vst.msk [vmem:[#allocation3 + $0x71] sm:$0x1] %vm361, 0.0
      %385 = vst.msk [vmem:[#allocation3 + $0x89] sm:$0x1] %vm361, 0.0
      %386 = vst.msk [vmem:[#allocation3 + $0xa1] sm:$0x1] %vm361, 0.0
      %387 = vst.msk [vmem:[#allocation3 + $0xb9] sm:$0x1] %vm361, 0.0
      %388 = vst.msk [vmem:[#allocation3 + $0xd1] sm:$0x1] %vm361, 0.0
      %389 = vst.msk [vmem:[#allocation3 + $0xe9] sm:$0x1] %vm361, 0.0
      %390 = vst.msk [vmem:[#allocation3 + $0x101] sm:$0x1] %vm361, 0.0
      %391 = vst.msk [vmem:[#allocation3 + $0x119] sm:$0x1] %vm361, 0.0
      %392 = vst.msk [vmem:[#allocation3 + $0x131] sm:$0x1] %vm361, 0.0
      %393 = vst.msk [vmem:[#allocation3 + $0x149] sm:$0x1] %vm361, 0.0
      %394 = vst.msk [vmem:[#allocation3 + $0x161] sm:$0x1] %vm361, 0.0
      %395 = vst.msk [vmem:[#allocation3 + $0x179] sm:$0x1] %vm361, 0.0
      %396 = vst.msk [vmem:[#allocation3 + $0x191] sm:$0x1] %vm361, 0.0
      %397 = vst.msk [vmem:[#allocation3 + $0x1a9] sm:$0x1] %vm361, 0.0
      %v398 = vld [vmem:[%s300] sm:$0xff]
      %v399 = vld [vmem:[%s300 + $0x8] sm:$0xff]
      %v400 = vld [vmem:[%s300 + $0x10] sm:$0xff]
      %v401 = vld [vmem:[%s300 + $0x18] sm:$0xff]
      %v402 = vld [vmem:[%s300 + $0x20] sm:$0xff]
      %v403 = vld [vmem:[%s300 + $0x28] sm:$0xff]
      %v404 = vld [vmem:[%s300 + $0x30] sm:$0xff]
      %v405 = vld [vmem:[%s300 + $0x38] sm:$0xff]
      %v406 = vld [vmem:[%s300 + $0x40] sm:$0xff]
      %v407 = vld [vmem:[%s300 + $0x48] sm:$0xff]
      %v408 = vld [vmem:[%s300 + $0x50] sm:$0xff]
      %v409 = vld [vmem:[%s300 + $0x58] sm:$0xff]
      %v410 = vld [vmem:[%s300 + $0x60] sm:$0xff]
      %v411 = vld [vmem:[%s300 + $0x68] sm:$0xff]
      %v412 = vld [vmem:[%s300 + $0x70] sm:$0xff]
      %v413 = vld [vmem:[%s300 + $0x78] sm:$0xff]
      %v414 = vld [vmem:[%s300 + $0x80] sm:$0xff]
      %v415 = vld [vmem:[%s300 + $0x88] sm:$0xff]
      %v416 = vld [vmem:[%s300 + $0x90] sm:$0xff]
      %v417 = vld [vmem:[%s300 + $0x98] sm:$0xff]
      %v418 = vld [vmem:[%s300 + $0xa0] sm:$0xff]
      %v419 = vld [vmem:[%s300 + $0xa8] sm:$0xff]
      %v420 = vld [vmem:[%s300 + $0xb0] sm:$0xff]
      %v421 = vld [vmem:[%s300 + $0xb8] sm:$0xff]
      %v422 = vld [vmem:[%s300 + $0xc0] sm:$0xff]
      %v423 = vld [vmem:[%s300 + $0xc8] sm:$0xff]
      %v424 = vld [vmem:[%s300 + $0xd0] sm:$0xff]
      %v425 = vld [vmem:[%s300 + $0xd8] sm:$0xff]
      %v426 = vld [vmem:[%s300 + $0xe0] sm:$0xff]
      %v427 = vld [vmem:[%s300 + $0xe8] sm:$0xff]
      %v428 = vld [vmem:[%s300 + $0xf0] sm:$0xff]
      %v429 = vld [vmem:[%s300 + $0xf8] sm:$0xff]
      %v430 = vld [vmem:[%s1] sm:$0x1]
      %v431 = vld [vmem:[%s2] sm:$0x1]
      %v433 = vlaneseq
      %v434 = vshrl.u32 %v433, 7
      %v435 = vsub.s32 0, %v434
      %v436 = vrot.slane %v430, %v435
      %v438 = vmul.f32 %v398, %v436
      %v439 = vmul.f32 %v399, %v436
      %v440 = vmul.f32 %v400, %v436
      %v441 = vmul.f32 %v401, %v436
      %v442 = vmul.f32 %v402, %v436
      %v443 = vmul.f32 %v403, %v436
      %v444 = vmul.f32 %v404, %v436
      %v445 = vmul.f32 %v405, %v436
      %v446 = vmul.f32 %v406, %v436
      %v447 = vmul.f32 %v407, %v436
      %v448 = vmul.f32 %v408, %v436
      %v449 = vmul.f32 %v409, %v436
      %v450 = vmul.f32 %v410, %v436
      %v451 = vmul.f32 %v411, %v436
      %v452 = vmul.f32 %v412, %v436
      %v453 = vmul.f32 %v413, %v436
      %v454 = vmul.f32 %v414, %v436
      %v455 = vmul.f32 %v415, %v436
      %v456 = vmul.f32 %v416, %v436
      %v457 = vmul.f32 %v417, %v436
      %v458 = vmul.f32 %v418, %v436
      %v459 = vmul.f32 %v419, %v436
      %v460 = vmul.f32 %v420, %v436
      %v461 = vmul.f32 %v421, %v436
      %v462 = vmul.f32 %v422, %v436
      %v463 = vmul.f32 %v423, %v436
      %v464 = vmul.f32 %v424, %v436
      %v465 = vmul.f32 %v425, %v436
      %v466 = vmul.f32 %v426, %v436
      %v467 = vmul.f32 %v427, %v436
      %v468 = vmul.f32 %v428, %v436
      %v469 = vmul.f32 %v429, %v436
      %v471 = vlaneseq
      %v472 = vshrl.u32 %v471, 7
      %v473 = vsub.s32 0, %v472
      %v474 = vrot.slane %v431, %v473
      %v476 = vadd.f32 %v438, %v474
      %v477 = vadd.f32 %v439, %v474
      %v478 = vadd.f32 %v440, %v474
      %v479 = vadd.f32 %v441, %v474
      %v480 = vadd.f32 %v442, %v474
      %v481 = vadd.f32 %v443, %v474
      %v482 = vadd.f32 %v444, %v474
      %v483 = vadd.f32 %v445, %v474
      %v484 = vadd.f32 %v446, %v474
      %v485 = vadd.f32 %v447, %v474
      %v486 = vadd.f32 %v448, %v474
      %v487 = vadd.f32 %v449, %v474
      %v488 = vadd.f32 %v450, %v474
      %v489 = vadd.f32 %v451, %v474
      %v490 = vadd.f32 %v452, %v474
      %v491 = vadd.f32 %v453, %v474
      %v492 = vadd.f32 %v454, %v474
      %v493 = vadd.f32 %v455, %v474
      %v494 = vadd.f32 %v456, %v474
      %v495 = vadd.f32 %v457, %v474
      %v496 = vadd.f32 %v458, %v474
      %v497 = vadd.f32 %v459, %v474
      %v498 = vadd.f32 %v460, %v474
      %v499 = vadd.f32 %v461, %v474
      %v500 = vadd.f32 %v462, %v474
      %v501 = vadd.f32 %v463, %v474
      %v502 = vadd.f32 %v464, %v474
      %v503 = vadd.f32 %v465, %v474
      %v504 = vadd.f32 %v466, %v474
      %v505 = vadd.f32 %v467, %v474
      %v506 = vadd.f32 %v468, %v474
      %v507 = vadd.f32 %v469, %v474
      %v508 = vmax.f32 %v476, 0.0
      %v509 = vmax.f32 %v477, 0.0
      %v510 = vmax.f32 %v478, 0.0
      %v511 = vmax.f32 %v479, 0.0
      %v512 = vmax.f32 %v480, 0.0
      %v513 = vmax.f32 %v481, 0.0
      %v514 = vmax.f32 %v482, 0.0
      %v515 = vmax.f32 %v483, 0.0
      %v516 = vmax.f32 %v484, 0.0
      %v517 = vmax.f32 %v485, 0.0
      %v518 = vmax.f32 %v486, 0.0
      %v519 = vmax.f32 %v487, 0.0
      %v520 = vmax.f32 %v488, 0.0
      %v521 = vmax.f32 %v489, 0.0
      %v522 = vmax.f32 %v490, 0.0
      %v523 = vmax.f32 %v491, 0.0
      %v524 = vmax.f32 %v492, 0.0
      %v525 = vmax.f32 %v493, 0.0
      %v526 = vmax.f32 %v494, 0.0
      %v527 = vmax.f32 %v495, 0.0
      %v528 = vmax.f32 %v496, 0.0
      %v529 = vmax.f32 %v497, 0.0
      %v530 = vmax.f32 %v498, 0.0
      %v531 = vmax.f32 %v499, 0.0
      %v532 = vmax.f32 %v500, 0.0
      %v533 = vmax.f32 %v501, 0.0
      %v534 = vmax.f32 %v502, 0.0
      %v535 = vmax.f32 %v503, 0.0
      %v536 = vmax.f32 %v504, 0.0
      %v537 = vmax.f32 %v505, 0.0
      %v538 = vmax.f32 %v506, 0.0
      %v539 = vmax.f32 %v507, 0.0
      %s540 = scalar_lea.vmem [#allocation2], 24
      %541 = vst.msk [vmem:[%s540 + $0x1] sm:$0xff] %vm306, %v508
      %542 = vst.msk [vmem:[%s540 + $0x9] sm:$0xff] %vm306, %v509
      %543 = vst.msk [vmem:[%s540 + $0x19] sm:$0xff] %vm306, %v510
      %544 = vst.msk [vmem:[%s540 + $0x21] sm:$0xff] %vm306, %v511
      %545 = vst.msk [vmem:[%s540 + $0x31] sm:$0xff] %vm306, %v512
      %546 = vst.msk [vmem:[%s540 + $0x39] sm:$0xff] %vm306, %v513
      %547 = vst.msk [vmem:[%s540 + $0x49] sm:$0xff] %vm306, %v514
      %548 = vst.msk [vmem:[%s540 + $0x51] sm:$0xff] %vm306, %v515
      %549 = vst.msk [vmem:[%s540 + $0x61] sm:$0xff] %vm306, %v516
      %550 = vst.msk [vmem:[%s540 + $0x69] sm:$0xff] %vm306, %v517
      %551 = vst.msk [vmem:[%s540 + $0x79] sm:$0xff] %vm306, %v518
      %552 = vst.msk [vmem:[%s540 + $0x81] sm:$0xff] %vm306, %v519
      %553 = vst.msk [vmem:[%s540 + $0x91] sm:$0xff] %vm306, %v520
      %554 = vst.msk [vmem:[%s540 + $0x99] sm:$0xff] %vm306, %v521
      %555 = vst.msk [vmem:[%s540 + $0xa9] sm:$0xff] %vm306, %v522
      %556 = vst.msk [vmem:[%s540 + $0xb1] sm:$0xff] %vm306, %v523
      %557 = vst.msk [vmem:[%s540 + $0xc1] sm:$0xff] %vm306, %v524
      %558 = vst.msk [vmem:[%s540 + $0xc9] sm:$0xff] %vm306, %v525
      %559 = vst.msk [vmem:[%s540 + $0xd9] sm:$0xff] %vm306, %v526
      %560 = vst.msk [vmem:[%s540 + $0xe1] sm:$0xff] %vm306, %v527
      %561 = vst.msk [vmem:[%s540 + $0xf1] sm:$0xff] %vm306, %v528
      %562 = vst.msk [vmem:[%s540 + $0xf9] sm:$0xff] %vm306, %v529
      %563 = vst.msk [vmem:[%s540 + $0x109] sm:$0xff] %vm306, %v530
      %564 = vst.msk [vmem:[%s540 + $0x111] sm:$0xff] %vm306, %v531
      %565 = vst.msk [vmem:[%s540 + $0x121] sm:$0xff] %vm306, %v532
      %566 = vst.msk [vmem:[%s540 + $0x129] sm:$0xff] %vm306, %v533
      %567 = vst.msk [vmem:[%s540 + $0x139] sm:$0xff] %vm306, %v534
      %568 = vst.msk [vmem:[%s540 + $0x141] sm:$0xff] %vm306, %v535
      %569 = vst.msk [vmem:[%s540 + $0x151] sm:$0xff] %vm306, %v536
      %570 = vst.msk [vmem:[%s540 + $0x159] sm:$0xff] %vm306, %v537
      %571 = vst.msk [vmem:[%s540 + $0x169] sm:$0xff] %vm306, %v538
      %572 = vst.msk [vmem:[%s540 + $0x171] sm:$0xff] %vm306, %v539
      %v573 = vld [vmem:[#allocation2] sm:$0xff]
      %v574 = vld [vmem:[#allocation2 + $0x8] sm:$0xff]
      %v575 = vld [vmem:[#allocation2 + $0x18] sm:$0xff]
      %v576 = vld [vmem:[#allocation2 + $0x20] sm:$0xff]
      %v577 = vld [vmem:[#allocation2 + $0x30] sm:$0xff]
      %v578 = vld [vmem:[#allocation2 + $0x38] sm:$0xff]
      %v579 = vld [vmem:[#allocation2 + $0x48] sm:$0xff]
      %v580 = vld [vmem:[#allocation2 + $0x50] sm:$0xff]
      %v581 = vld [vmem:[#allocation2 + $0x60] sm:$0xff]
      %v582 = vld [vmem:[#allocation2 + $0x68] sm:$0xff]
      %v583 = vld [vmem:[#allocation2 + $0x78] sm:$0xff]
      %v584 = vld [vmem:[#allocation2 + $0x80] sm:$0xff]
      %v585 = vld [vmem:[#allocation2 + $0x90] sm:$0xff]
      %v586 = vld [vmem:[#allocation2 + $0x98] sm:$0xff]
      %v587 = vld [vmem:[#allocation2 + $0xa8] sm:$0xff]
      %v588 = vld [vmem:[#allocation2 + $0xb0] sm:$0xff]
      %v589 = vld [vmem:[#allocation2 + $0xc0] sm:$0xff]
      %v590 = vld [vmem:[#allocation2 + $0xc8] sm:$0xff]
      %v591 = vld [vmem:[#allocation2 + $0xd8] sm:$0xff]
      %v592 = vld [vmem:[#allocation2 + $0xe0] sm:$0xff]
      %v593 = vld [vmem:[#allocation2 + $0xf0] sm:$0xff]
      %v594 = vld [vmem:[#allocation2 + $0xf8] sm:$0xff]
      %v595 = vld [vmem:[#allocation2 + $0x108] sm:$0xff]
      %v596 = vld [vmem:[#allocation2 + $0x110] sm:$0xff]
      %v597 = vld [vmem:[#allocation2 + $0x120] sm:$0xff]
      %v598 = vld [vmem:[#allocation2 + $0x128] sm:$0xff]
      %v599 = vld [vmem:[#allocation2 + $0x138] sm:$0xff]
      %v600 = vld [vmem:[#allocation2 + $0x140] sm:$0xff]
      %v601 = vld [vmem:[#allocation2 + $0x150] sm:$0xff]
      %v602 = vld [vmem:[#allocation2 + $0x158] sm:$0xff]
      %v603 = vld [vmem:[#allocation2 + $0x168] sm:$0xff]
      %v604 = vld [vmem:[#allocation2 + $0x170] sm:$0xff]
      %v605 = vld [vmem:[%s3] sm:$0xf]
      %v607 = vsel %vm306, %v573, 0
      %v610 = vsel %vm306, %v574, 0
      %v613 = vsel %vm306, %v575, 0
      %v616 = vsel %vm306, %v576, 0
      %v619 = vsel %vm306, %v577, 0
      %v622 = vsel %vm306, %v578, 0
      %v625 = vsel %vm306, %v579, 0
      %v628 = vsel %vm306, %v580, 0
      %v631 = vsel %vm306, %v581, 0
      %v634 = vsel %vm306, %v582, 0
      %v637 = vsel %vm306, %v583, 0
      %v640 = vsel %vm306, %v584, 0
      %v643 = vsel %vm306, %v585, 0
      %v646 = vsel %vm306, %v586, 0
      %v649 = vsel %vm306, %v587, 0
      %v652 = vsel %vm306, %v588, 0
      %v655 = vsel %vm306, %v589, 0
      %v658 = vsel %vm306, %v590, 0
      %v661 = vsel %vm306, %v591, 0
      %v664 = vsel %vm306, %v592, 0
      %v667 = vsel %vm306, %v593, 0
      %v670 = vsel %vm306, %v594, 0
      %v673 = vsel %vm306, %v595, 0
      %v676 = vsel %vm306, %v596, 0
      %v679 = vsel %vm306, %v597, 0
      %v682 = vsel %vm306, %v598, 0
      %v685 = vsel %vm306, %v599, 0
      %v688 = vsel %vm306, %v600, 0
      %v691 = vsel %vm306, %v601, 0
      %v694 = vsel %vm306, %v602, 0
      %v697 = vsel %vm306, %v603, 0
      %v700 = vsel %vm306, %v604, 0
      %vm702 = vcmask 1043456
      %v704 = vsel %vm702, %v605, 0
      %706 = vmatprep.subr.mxu0 0.0
      %707 = vmatpush1.msra.mxu0 %v704
      %708 = vmatprep.subr.mxu0 0.0
      %709 = vmatpush1.msra.mxu0 0.0
      %710 = vmatprep.subr.mxu0 0.0
      %711 = vmatpush1.msra.mxu0 0.0
      %712 = vmatprep.subr.mxu0 0.0
      %713 = vmatpush1.msra.mxu0 0.0
      %714 = vmatprep.subr.mxu0 0.0
      %715 = vmatpush1.msra.mxu0 0.0
      %716 = vmatprep.subr.mxu0 0.0
      %717 = vmatpush1.msra.mxu0 0.0
      %718 = vmatprep.subr.mxu0 0.0
      %719 = vmatpush1.msra.mxu0 0.0
      %720 = vmatprep.subr.mxu0 0.0
      %721 = vmatpush1.msra.mxu0 0.0
      %722 = vmatprep.subr.mxu0 0.0
      %723 = vmatpush1.msra.mxu0 0.0
      %724 = vmatprep.subr.mxu0 0.0
      %725 = vmatpush1.msra.mxu0 0.0
      %726 = vmatprep.subr.mxu0 0.0
      %727 = vmatpush1.msra.mxu0 0.0
      %728 = vmatprep.subr.mxu0 0.0
      %729 = vmatpush1.msra.mxu0 0.0
      %730 = vmatprep.subr.mxu0 0.0
      %731 = vmatpush1.msra.mxu0 0.0
      %732 = vmatprep.subr.mxu0 0.0
      %733 = vmatpush1.msra.mxu0 0.0
      %734 = vmatprep.subr.mxu0 0.0
      %735 = vmatpush1.msra.mxu0 0.0
      %736 = vmatprep.subr.mxu0 0.0
      %737 = vmatpush1.msra.mxu0 0.0
      %738 = vmatprep.subr.mxu0 0.0
      %739 = vmatpush1.msra.mxu0 0.0
      %740 = vmatprep.subr.mxu0 0.0
      %741 = vmatpush1.msra.mxu0 0.0
      %742 = vmatprep.subr.mxu0 0.0
      %743 = vmatpush1.msra.mxu0 0.0
      %744 = vmatprep.subr.mxu0 0.0
      %745 = vmatpush1.msra.mxu0 0.0
      %746 = vmatprep.subr.mxu0 0.0
      %747 = vmatpush1.msra.mxu0 0.0
      %748 = vmatprep.subr.mxu0 0.0
      %749 = vmatpush1.msra.mxu0 0.0
      %750 = vmatprep.subr.mxu0 0.0
      %751 = vmatpush1.msra.mxu0 0.0
      %752 = vmatprep.subr.mxu0 0.0
      %753 = vmatpush1.msra.mxu0 0.0
      %754 = vmatprep.subr.mxu0 0.0
      %755 = vmatpush1.msra.mxu0 0.0
      %756 = vmatprep.subr.mxu0 0.0
      %757 = vmatpush1.msra.mxu0 0.0
      %758 = vmatprep.subr.mxu0 0.0
      %759 = vmatpush1.msra.mxu0 0.0
      %760 = vmatprep.subr.mxu0 0.0
      %761 = vmatpush1.msra.mxu0 0.0
      %762 = vmatprep.subr.mxu0 0.0
      %763 = vmatpush1.msra.mxu0 0.0
      %764 = vmatprep.subr.mxu0 0.0
      %765 = vmatpush1.msra.mxu0 0.0
      %766 = vmatprep.subr.mxu0 0.0
      %767 = vmatpush1.msra.mxu0 0.0
      %768 = vmatprep.subr.mxu0 0.0
      %769 = vmatpush1.msra.mxu0 0.0
      %770 = vmatprep.mubr.f32.mxu0 0.0
      %771 = vmatmul.mubr.f32.gmra.mrb[0].mxu0 %v607
      %v772 = vpop.f32.mrb[0].mxu0
      %v773 = vadd.f32 0.0, %v772
      %v774 = vpop.f32.mrb[0].mxu0
      %775 = vmatprep.mubr.f32.mxu0 0.0
      %776 = vmatmul.mubr.f32.gmra.mrb[0].mxu0 %v610
      %v777 = vpop.f32.mrb[0].mxu0
      %v778 = vadd.f32 0.0, %v777
      %v779 = vpop.f32.mrb[0].mxu0
      %780 = vmatprep.mubr.f32.mxu0 0.0
      %781 = vmatmul.mubr.f32.gmra.mrb[0].mxu0 %v613
      %v782 = vpop.f32.mrb[0].mxu0
      %v783 = vadd.f32 0.0, %v782
      %v784 = vpop.f32.mrb[0].mxu0
      %785 = vmatprep.mubr.f32.mxu0 0.0
      %786 = vmatmul.mubr.f32.gmra.mrb[0].mxu0 %v616
      %v787 = vpop.f32.mrb[0].mxu0
      %v788 = vadd.f32 0.0, %v787
      %v789 = vpop.f32.mrb[0].mxu0
      %790 = vmatprep.mubr.f32.mxu0 0.0
      %791 = vmatmul.mubr.f32.gmra.mrb[0].mxu0 %v619
      %v792 = vpop.f32.mrb[0].mxu0
      %v793 = vadd.f32 0.0, %v792
      %v794 = vpop.f32.mrb[0].mxu0
      %795 = vmatprep.mubr.f32.mxu0 0.0
      %796 = vmatmul.mubr.f32.gmra.mrb[0].mxu0 %v622
      %v797 = vpop.f32.mrb[0].mxu0
      %v798 = vadd.f32 0.0, %v797
      %v799 = vpop.f32.mrb[0].mxu0
      %800 = vmatprep.mubr.f32.mxu0 0.0
      %801 = vmatmul.mubr.f32.gmra.mrb[0].mxu0 %v625
      %v802 = vpop.f32.mrb[0].mxu0
      %v803 = vadd.f32 0.0, %v802
      %v804 = vpop.f32.mrb[0].mxu0
      %805 = vmatprep.mubr.f32.mxu0 0.0
      %806 = vmatmul.mubr.f32.gmra.mrb[0].mxu0 %v628
      %v807 = vpop.f32.mrb[0].mxu0
      %v808 = vadd.f32 0.0, %v807
      %v809 = vpop.f32.mrb[0].mxu0
      %810 = vmatprep.mubr.f32.mxu0 0.0
      %811 = vmatmul.mubr.f32.gmra.mrb[0].mxu0 %v631
      %v812 = vpop.f32.mrb[0].mxu0
      %v813 = vadd.f32 0.0, %v812
      %v814 = vpop.f32.mrb[0].mxu0
      %815 = vmatprep.mubr.f32.mxu0 0.0
      %816 = vmatmul.mubr.f32.gmra.mrb[0].mxu0 %v634
      %v817 = vpop.f32.mrb[0].mxu0
      %v818 = vadd.f32 0.0, %v817
      %v819 = vpop.f32.mrb[0].mxu0
      %820 = vmatprep.mubr.f32.mxu0 0.0
      %821 = vmatmul.mubr.f32.gmra.mrb[0].mxu0 %v637
      %v822 = vpop.f32.mrb[0].mxu0
      %v823 = vadd.f32 0.0, %v822
      %v824 = vpop.f32.mrb[0].mxu0
      %825 = vmatprep.mubr.f32.mxu0 0.0
      %826 = vmatmul.mubr.f32.gmra.mrb[0].mxu0 %v640
      %v827 = vpop.f32.mrb[0].mxu0
      %v828 = vadd.f32 0.0, %v827
      %v829 = vpop.f32.mrb[0].mxu0
      %830 = vmatprep.mubr.f32.mxu0 0.0
      %831 = vmatmul.mubr.f32.gmra.mrb[0].mxu0 %v643
      %v832 = vpop.f32.mrb[0].mxu0
      %v833 = vadd.f32 0.0, %v832
      %v834 = vpop.f32.mrb[0].mxu0
      %835 = vmatprep.mubr.f32.mxu0 0.0
      %836 = vmatmul.mubr.f32.gmra.mrb[0].mxu0 %v646
      %v837 = vpop.f32.mrb[0].mxu0
      %v838 = vadd.f32 0.0, %v837
      %v839 = vpop.f32.mrb[0].mxu0
      %840 = vmatprep.mubr.f32.mxu0 0.0
      %841 = vmatmul.mubr.f32.gmra.mrb[0].mxu0 %v649
      %v842 = vpop.f32.mrb[0].mxu0
      %v843 = vadd.f32 0.0, %v842
      %v844 = vpop.f32.mrb[0].mxu0
      %845 = vmatprep.mubr.f32.mxu0 0.0
      %846 = vmatmul.mubr.f32.gmra.mrb[0].mxu0 %v652
      %v847 = vpop.f32.mrb[0].mxu0
      %v848 = vadd.f32 0.0, %v847
      %v849 = vpop.f32.mrb[0].mxu0
      %850 = vmatprep.mubr.f32.mxu0 0.0
      %851 = vmatmul.mubr.f32.gmra.mrb[0].mxu0 %v655
      %v852 = vpop.f32.mrb[0].mxu0
      %v853 = vadd.f32 0.0, %v852
      %v854 = vpop.f32.mrb[0].mxu0
      %855 = vmatprep.mubr.f32.mxu0 0.0
      %856 = vmatmul.mubr.f32.gmra.mrb[0].mxu0 %v658
      %v857 = vpop.f32.mrb[0].mxu0
      %v858 = vadd.f32 0.0, %v857
      %v859 = vpop.f32.mrb[0].mxu0
      %860 = vmatprep.mubr.f32.mxu0 0.0
      %861 = vmatmul.mubr.f32.gmra.mrb[0].mxu0 %v661
      %v862 = vpop.f32.mrb[0].mxu0
      %v863 = vadd.f32 0.0, %v862
      %v864 = vpop.f32.mrb[0].mxu0
      %865 = vmatprep.mubr.f32.mxu0 0.0
      %866 = vmatmul.mubr.f32.gmra.mrb[0].mxu0 %v664
      %v867 = vpop.f32.mrb[0].mxu0
      %v868 = vadd.f32 0.0, %v867
      %v869 = vpop.f32.mrb[0].mxu0
      %870 = vmatprep.mubr.f32.mxu0 0.0
      %871 = vmatmul.mubr.f32.gmra.mrb[0].mxu0 %v667
      %v872 = vpop.f32.mrb[0].mxu0
      %v873 = vadd.f32 0.0, %v872
      %v874 = vpop.f32.mrb[0].mxu0
      %875 = vmatprep.mubr.f32.mxu0 0.0
      %876 = vmatmul.mubr.f32.gmra.mrb[0].mxu0 %v670
      %v877 = vpop.f32.mrb[0].mxu0
      %v878 = vadd.f32 0.0, %v877
      %v879 = vpop.f32.mrb[0].mxu0
      %880 = vmatprep.mubr.f32.mxu0 0.0
      %881 = vmatmul.mubr.f32.gmra.mrb[0].mxu0 %v673
      %v882 = vpop.f32.mrb[0].mxu0
      %v883 = vadd.f32 0.0, %v882
      %v884 = vpop.f32.mrb[0].mxu0
      %885 = vmatprep.mubr.f32.mxu0 0.0
      %886 = vmatmul.mubr.f32.gmra.mrb[0].mxu0 %v676
      %v887 = vpop.f32.mrb[0].mxu0
      %v888 = vadd.f32 0.0, %v887
      %v889 = vpop.f32.mrb[0].mxu0
      %890 = vmatprep.mubr.f32.mxu0 0.0
      %891 = vmatmul.mubr.f32.gmra.mrb[0].mxu0 %v679
      %v892 = vpop.f32.mrb[0].mxu0
      %v893 = vadd.f32 0.0, %v892
      %v894 = vpop.f32.mrb[0].mxu0
      %895 = vmatprep.mubr.f32.mxu0 0.0
      %896 = vmatmul.mubr.f32.gmra.mrb[0].mxu0 %v682
      %v897 = vpop.f32.mrb[0].mxu0
      %v898 = vadd.f32 0.0, %v897
      %v899 = vpop.f32.mrb[0].mxu0
      %900 = vmatprep.mubr.f32.mxu0 0.0
      %901 = vmatmul.mubr.f32.gmra.mrb[0].mxu0 %v685
      %v902 = vpop.f32.mrb[0].mxu0
      %v903 = vadd.f32 0.0, %v902
      %v904 = vpop.f32.mrb[0].mxu0
      %905 = vmatprep.mubr.f32.mxu0 0.0
      %906 = vmatmul.mubr.f32.gmra.mrb[0].mxu0 %v688
      %v907 = vpop.f32.mrb[0].mxu0
      %v908 = vadd.f32 0.0, %v907
      %v909 = vpop.f32.mrb[0].mxu0
      %910 = vmatprep.mubr.f32.mxu0 0.0
      %911 = vmatmul.mubr.f32.gmra.mrb[0].mxu0 %v691
      %v912 = vpop.f32.mrb[0].mxu0
      %v913 = vadd.f32 0.0, %v912
      %v914 = vpop.f32.mrb[0].mxu0
      %915 = vmatprep.mubr.f32.mxu0 0.0
      %916 = vmatmul.mubr.f32.gmra.mrb[0].mxu0 %v694
      %v917 = vpop.f32.mrb[0].mxu0
      %v918 = vadd.f32 0.0, %v917
      %v919 = vpop.f32.mrb[0].mxu0
      %920 = vmatprep.mubr.f32.mxu0 0.0
      %921 = vmatmul.mubr.f32.gmra.mrb[0].mxu0 %v697
      %v922 = vpop.f32.mrb[0].mxu0
      %v923 = vadd.f32 0.0, %v922
      %v924 = vpop.f32.mrb[0].mxu0
      %925 = vmatprep.mubr.f32.mxu0 0.0
      %926 = vmatmul.mubr.f32.gmra.mrb[0].mxu0 %v700
      %v927 = vpop.f32.mrb[0].mxu0
      %v928 = vadd.f32 0.0, %v927
      %v929 = vpop.f32.mrb[0].mxu0
      %930 = vdwg.mxu0
      %931 = vst.msk [vmem:[#allocation4] sm:$0xff] %vm352, %v773
      %932 = vst.msk [vmem:[#allocation4 + $0x8] sm:$0xff] %vm352, %v778
      %933 = vst.msk [vmem:[#allocation4 + $0x10] sm:$0xff] %vm352, %v783
      %934 = vst.msk [vmem:[#allocation4 + $0x18] sm:$0xff] %vm352, %v788
      %935 = vst.msk [vmem:[#allocation4 + $0x20] sm:$0xff] %vm352, %v793
      %936 = vst.msk [vmem:[#allocation4 + $0x28] sm:$0xff] %vm352, %v798
      %937 = vst.msk [vmem:[#allocation4 + $0x30] sm:$0xff] %vm352, %v803
      %938 = vst.msk [vmem:[#allocation4 + $0x38] sm:$0xff] %vm352, %v808
      %939 = vst.msk [vmem:[#allocation4 + $0x40] sm:$0xff] %vm352, %v813
      %940 = vst.msk [vmem:[#allocation4 + $0x48] sm:$0xff] %vm352, %v818
      %941 = vst.msk [vmem:[#allocation4 + $0x50] sm:$0xff] %vm352, %v823
      %942 = vst.msk [vmem:[#allocation4 + $0x58] sm:$0xff] %vm352, %v828
      %943 = vst.msk [vmem:[#allocation4 + $0x60] sm:$0xff] %vm352, %v833
      %944 = vst.msk [vmem:[#allocation4 + $0x68] sm:$0xff] %vm352, %v838
      %945 = vst.msk [vmem:[#allocation4 + $0x70] sm:$0xff] %vm352, %v843
      %946 = vst.msk [vmem:[#allocation4 + $0x78] sm:$0xff] %vm352, %v848
      %947 = vst.msk [vmem:[#allocation4 + $0x80] sm:$0xff] %vm352, %v853
      %948 = vst.msk [vmem:[#allocation4 + $0x88] sm:$0xff] %vm352, %v858
      %949 = vst.msk [vmem:[#allocation4 + $0x90] sm:$0xff] %vm352, %v863
      %950 = vst.msk [vmem:[#allocation4 + $0x98] sm:$0xff] %vm352, %v868
      %951 = vst.msk [vmem:[#allocation4 + $0xa0] sm:$0xff] %vm352, %v873
      %952 = vst.msk [vmem:[#allocation4 + $0xa8] sm:$0xff] %vm352, %v878
      %953 = vst.msk [vmem:[#allocation4 + $0xb0] sm:$0xff] %vm352, %v883
      %954 = vst.msk [vmem:[#allocation4 + $0xb8] sm:$0xff] %vm352, %v888
      %955 = vst.msk [vmem:[#allocation4 + $0xc0] sm:$0xff] %vm352, %v893
      %956 = vst.msk [vmem:[#allocation4 + $0xc8] sm:$0xff] %vm352, %v898
      %957 = vst.msk [vmem:[#allocation4 + $0xd0] sm:$0xff] %vm352, %v903
      %958 = vst.msk [vmem:[#allocation4 + $0xd8] sm:$0xff] %vm352, %v908
      %959 = vst.msk [vmem:[#allocation4 + $0xe0] sm:$0xff] %vm352, %v913
      %960 = vst.msk [vmem:[#allocation4 + $0xe8] sm:$0xff] %vm352, %v918
      %961 = vst.msk [vmem:[#allocation4 + $0xf0] sm:$0xff] %vm352, %v923
      %962 = vst.msk [vmem:[#allocation4 + $0xf8] sm:$0xff] %vm352, %v928
      %v963 = vld [vmem:[#allocation2 + $0x1] sm:$0xff]
      %v964 = vld [vmem:[#allocation2 + $0x9] sm:$0xff]
      %v965 = vld [vmem:[#allocation2 + $0x19] sm:$0xff]
      %v966 = vld [vmem:[#allocation2 + $0x21] sm:$0xff]
      %v967 = vld [vmem:[#allocation2 + $0x31] sm:$0xff]
      %v968 = vld [vmem:[#allocation2 + $0x39] sm:$0xff]
      %v969 = vld [vmem:[#allocation2 + $0x49] sm:$0xff]
      %v970 = vld [vmem:[#allocation2 + $0x51] sm:$0xff]
      %v971 = vld [vmem:[#allocation2 + $0x61] sm:$0xff]
      %v972 = vld [vmem:[#allocation2 + $0x69] sm:$0xff]
      %v973 = vld [vmem:[#allocation2 + $0x79] sm:$0xff]
      %v974 = vld [vmem:[#allocation2 + $0x81] sm:$0xff]
      %v975 = vld [vmem:[#allocation2 + $0x91] sm:$0xff]
      %v976 = vld [vmem:[#allocation2 + $0x99] sm:$0xff]
      %v977 = vld [vmem:[#allocation2 + $0xa9] sm:$0xff]
      %v978 = vld [vmem:[#allocation2 + $0xb1] sm:$0xff]
      %v979 = vld [vmem:[#allocation2 + $0xc1] sm:$0xff]
      %v980 = vld [vmem:[#allocation2 + $0xc9] sm:$0xff]
      %v981 = vld [vmem:[#allocation2 + $0xd9] sm:$0xff]
      %v982 = vld [vmem:[#allocation2 + $0xe1] sm:$0xff]
      %v983 = vld [vmem:[#allocation2 + $0xf1] sm:$0xff]
      %v984 = vld [vmem:[#allocation2 + $0xf9] sm:$0xff]
      %v985 = vld [vmem:[#allocation2 + $0x109] sm:$0xff]
      %v986 = vld [vmem:[#allocation2 + $0x111] sm:$0xff]
      %v987 = vld [vmem:[#allocation2 + $0x121] sm:$0xff]
      %v988 = vld [vmem:[#allocation2 + $0x129] sm:$0xff]
      %v989 = vld [vmem:[#allocation2 + $0x139] sm:$0xff]
      %v990 = vld [vmem:[#allocation2 + $0x141] sm:$0xff]
      %v991 = vld [vmem:[#allocation2 + $0x151] sm:$0xff]
      %v992 = vld [vmem:[#allocation2 + $0x159] sm:$0xff]
      %v993 = vld [vmem:[#allocation2 + $0x169] sm:$0xff]
      %v994 = vld [vmem:[#allocation2 + $0x171] sm:$0xff]
      %s995 = scalar_lea.vmem %s3, 4
      %v996 = vld [vmem:[%s995] sm:$0xf]
      %v998 = vsel %vm306, %v963, 0
      %v1001 = vsel %vm306, %v964, 0
      %v1004 = vsel %vm306, %v965, 0
      %v1007 = vsel %vm306, %v966, 0
      %v1010 = vsel %vm306, %v967, 0
      %v1013 = vsel %vm306, %v968, 0
      %v1016 = vsel %vm306, %v969, 0
      %v1019 = vsel %vm306, %v970, 0
      %v1022 = vsel %vm306, %v971, 0
      %v1025 = vsel %vm306, %v972, 0
      %v1028 = vsel %vm306, %v973, 0
      %v1031 = vsel %vm306, %v974, 0
      %v1034 = vsel %vm306, %v975, 0
      %v1037 = vsel %vm306, %v976, 0
      %v1040 = vsel %vm306, %v977, 0
      %v1043 = vsel %vm306, %v978, 0
      %v1046 = vsel %vm306, %v979, 0
      %v1049 = vsel %vm306, %v980, 0
      %v1052 = vsel %vm306, %v981, 0
      %v1055 = vsel %vm306, %v982, 0
      %v1058 = vsel %vm306, %v983, 0
      %v1061 = vsel %vm306, %v984, 0
      %v1064 = vsel %vm306, %v985, 0
      %v1067 = vsel %vm306, %v986, 0
      %v1070 = vsel %vm306, %v987, 0
      %v1073 = vsel %vm306, %v988, 0
      %v1076 = vsel %vm306, %v989, 0
      %v1079 = vsel %vm306, %v990, 0
      %v1082 = vsel %vm306, %v991, 0
      %v1085 = vsel %vm306, %v992, 0
      %v1088 = vsel %vm306, %v993, 0
      %v1091 = vsel %vm306, %v994, 0
      %v1094 = vsel %vm702, %v996, 0
      %1096 = vmatprep.subr.mxu0 0.0
      %1097 = vmatpush1.msra.mxu0 %v1094
      %1098 = vmatprep.subr.mxu0 0.0
      %1099 = vmatpush1.msra.mxu0 0.0
      %1100 = vmatprep.subr.mxu0 0.0
      %1101 = vmatpush1.msra.mxu0 0.0
      %1102 = vmatprep.subr.mxu0 0.0
      %1103 = vmatpush1.msra.mxu0 0.0
      %1104 = vmatprep.subr.mxu0 0.0
      %1105 = vmatpush1.msra.mxu0 0.0
      %1106 = vmatprep.subr.mxu0 0.0
      %1107 = vmatpush1.msra.mxu0 0.0
      %1108 = vmatprep.subr.mxu0 0.0
      %1109 = vmatpush1.msra.mxu0 0.0
      %1110 = vmatprep.subr.mxu0 0.0
      %1111 = vmatpush1.msra.mxu0 0.0
      %1112 = vmatprep.subr.mxu0 0.0
      %1113 = vmatpush1.msra.mxu0 0.0
      %1114 = vmatprep.subr.mxu0 0.0
      %1115 = vmatpush1.msra.mxu0 0.0
      %1116 = vmatprep.subr.mxu0 0.0
      %1117 = vmatpush1.msra.mxu0 0.0
      %1118 = vmatprep.subr.mxu0 0.0
      %1119 = vmatpush1.msra.mxu0 0.0
      %1120 = vmatprep.subr.mxu0 0.0
      %1121 = vmatpush1.msra.mxu0 0.0
      %1122 = vmatprep.subr.mxu0 0.0
      %1123 = vmatpush1.msra.mxu0 0.0
      %1124 = vmatprep.subr.mxu0 0.0
      %1125 = vmatpush1.msra.mxu0 0.0
      %1126 = vmatprep.subr.mxu0 0.0
      %1127 = vmatpush1.msra.mxu0 0.0
      %1128 = vmatprep.subr.mxu0 0.0
      %1129 = vmatpush1.msra.mxu0 0.0
      %1130 = vmatprep.subr.mxu0 0.0
      %1131 = vmatpush1.msra.mxu0 0.0
      %1132 = vmatprep.subr.mxu0 0.0
      %1133 = vmatpush1.msra.mxu0 0.0
      %1134 = vmatprep.subr.mxu0 0.0
      %1135 = vmatpush1.msra.mxu0 0.0
      %1136 = vmatprep.subr.mxu0 0.0
      %1137 = vmatpush1.msra.mxu0 0.0
      %1138 = vmatprep.subr.mxu0 0.0
      %1139 = vmatpush1.msra.mxu0 0.0
      %1140 = vmatprep.subr.mxu0 0.0
      %1141 = vmatpush1.msra.mxu0 0.0
      %1142 = vmatprep.subr.mxu0 0.0
      %1143 = vmatpush1.msra.mxu0 0.0
      %1144 = vmatprep.subr.mxu0 0.0
      %1145 = vmatpush1.msra.mxu0 0.0
      %1146 = vmatprep.subr.mxu0 0.0
      %1147 = vmatpush1.msra.mxu0 0.0
      %1148 = vmatprep.subr.mxu0 0.0
      %1149 = vmatpush1.msra.mxu0 0.0
      %1150 = vmatprep.subr.mxu0 0.0
      %1151 = vmatpush1.msra.mxu0 0.0
      %1152 = vmatprep.subr.mxu0 0.0
      %1153 = vmatpush1.msra.mxu0 0.0
      %1154 = vmatprep.subr.mxu0 0.0
      %1155 = vmatpush1.msra.mxu0 0.0
      %1156 = vmatprep.subr.mxu0 0.0
      %1157 = vmatpush1.msra.mxu0 0.0
      %1158 = vmatprep.subr.mxu0 0.0
      %1159 = vmatpush1.msra.mxu0 0.0
      %1160 = vmatprep.mubr.f32.mxu0 0.0
      %1161 = vmatmul.mubr.f32.gmra.mrb[0].mxu0 %v998
      %v1162 = vpop.f32.mrb[0].mxu0
      %v1163 = vadd.f32 0.0, %v1162
      %v1164 = vpop.f32.mrb[0].mxu0
      %1165 = vmatprep.mubr.f32.mxu0 0.0
      %1166 = vmatmul.mubr.f32.gmra.mrb[0].mxu0 %v1001
      %v1167 = vpop.f32.mrb[0].mxu0
      %v1168 = vadd.f32 0.0, %v1167
      %v1169 = vpop.f32.mrb[0].mxu0
      %1170 = vmatprep.mubr.f32.mxu0 0.0
      %1171 = vmatmul.mubr.f32.gmra.mrb[0].mxu0 %v1004
      %v1172 = vpop.f32.mrb[0].mxu0
      %v1173 = vadd.f32 0.0, %v1172
      %v1174 = vpop.f32.mrb[0].mxu0
      %1175 = vmatprep.mubr.f32.mxu0 0.0
      %1176 = vmatmul.mubr.f32.gmra.mrb[0].mxu0 %v1007
      %v1177 = vpop.f32.mrb[0].mxu0
      %v1178 = vadd.f32 0.0, %v1177
      %v1179 = vpop.f32.mrb[0].mxu0
      %1180 = vmatprep.mubr.f32.mxu0 0.0
      %1181 = vmatmul.mubr.f32.gmra.mrb[0].mxu0 %v1010
      %v1182 = vpop.f32.mrb[0].mxu0
      %v1183 = vadd.f32 0.0, %v1182
      %v1184 = vpop.f32.mrb[0].mxu0
      %1185 = vmatprep.mubr.f32.mxu0 0.0
      %1186 = vmatmul.mubr.f32.gmra.mrb[0].mxu0 %v1013
      %v1187 = vpop.f32.mrb[0].mxu0
      %v1188 = vadd.f32 0.0, %v1187
      %v1189 = vpop.f32.mrb[0].mxu0
      %1190 = vmatprep.mubr.f32.mxu0 0.0
      %1191 = vmatmul.mubr.f32.gmra.mrb[0].mxu0 %v1016
      %v1192 = vpop.f32.mrb[0].mxu0
      %v1193 = vadd.f32 0.0, %v1192
      %v1194 = vpop.f32.mrb[0].mxu0
      %1195 = vmatprep.mubr.f32.mxu0 0.0
      %1196 = vmatmul.mubr.f32.gmra.mrb[0].mxu0 %v1019
      %v1197 = vpop.f32.mrb[0].mxu0
      %v1198 = vadd.f32 0.0, %v1197
      %v1199 = vpop.f32.mrb[0].mxu0
      %1200 = vmatprep.mubr.f32.mxu0 0.0
      %1201 = vmatmul.mubr.f32.gmra.mrb[0].mxu0 %v1022
      %v1202 = vpop.f32.mrb[0].mxu0
      %v1203 = vadd.f32 0.0, %v1202
      %v1204 = vpop.f32.mrb[0].mxu0
      %1205 = vmatprep.mubr.f32.mxu0 0.0
      %1206 = vmatmul.mubr.f32.gmra.mrb[0].mxu0 %v1025
      %v1207 = vpop.f32.mrb[0].mxu0
      %v1208 = vadd.f32 0.0, %v1207
      %v1209 = vpop.f32.mrb[0].mxu0
      %1210 = vmatprep.mubr.f32.mxu0 0.0
      %1211 = vmatmul.mubr.f32.gmra.mrb[0].mxu0 %v1028
      %v1212 = vpop.f32.mrb[0].mxu0
      %v1213 = vadd.f32 0.0, %v1212
      %v1214 = vpop.f32.mrb[0].mxu0
      %1215 = vmatprep.mubr.f32.mxu0 0.0
      %1216 = vmatmul.mubr.f32.gmra.mrb[0].mxu0 %v1031
      %v1217 = vpop.f32.mrb[0].mxu0
      %v1218 = vadd.f32 0.0, %v1217
      %v1219 = vpop.f32.mrb[0].mxu0
      %1220 = vmatprep.mubr.f32.mxu0 0.0
      %1221 = vmatmul.mubr.f32.gmra.mrb[0].mxu0 %v1034
      %v1222 = vpop.f32.mrb[0].mxu0
      %v1223 = vadd.f32 0.0, %v1222
      %v1224 = vpop.f32.mrb[0].mxu0
      %1225 = vmatprep.mubr.f32.mxu0 0.0
      %1226 = vmatmul.mubr.f32.gmra.mrb[0].mxu0 %v1037
      %v1227 = vpop.f32.mrb[0].mxu0
      %v1228 = vadd.f32 0.0, %v1227
      %v1229 = vpop.f32.mrb[0].mxu0
      %1230 = vmatprep.mubr.f32.mxu0 0.0
      %1231 = vmatmul.mubr.f32.gmra.mrb[0].mxu0 %v1040
      %v1232 = vpop.f32.mrb[0].mxu0
      %v1233 = vadd.f32 0.0, %v1232
      %v1234 = vpop.f32.mrb[0].mxu0
      %1235 = vmatprep.mubr.f32.mxu0 0.0
      %1236 = vmatmul.mubr.f32.gmra.mrb[0].mxu0 %v1043
      %v1237 = vpop.f32.mrb[0].mxu0
      %v1238 = vadd.f32 0.0, %v1237
      %v1239 = vpop.f32.mrb[0].mxu0
      %1240 = vmatprep.mubr.f32.mxu0 0.0
      %1241 = vmatmul.mubr.f32.gmra.mrb[0].mxu0 %v1046
      %v1242 = vpop.f32.mrb[0].mxu0
      %v1243 = vadd.f32 0.0, %v1242
      %v1244 = vpop.f32.mrb[0].mxu0
      %1245 = vmatprep.mubr.f32.mxu0 0.0
      %1246 = vmatmul.mubr.f32.gmra.mrb[0].mxu0 %v1049
      %v1247 = vpop.f32.mrb[0].mxu0
      %v1248 = vadd.f32 0.0, %v1247
      %v1249 = vpop.f32.mrb[0].mxu0
      %1250 = vmatprep.mubr.f32.mxu0 0.0
      %1251 = vmatmul.mubr.f32.gmra.mrb[0].mxu0 %v1052
      %v1252 = vpop.f32.mrb[0].mxu0
      %v1253 = vadd.f32 0.0, %v1252
      %v1254 = vpop.f32.mrb[0].mxu0
      %1255 = vmatprep.mubr.f32.mxu0 0.0
      %1256 = vmatmul.mubr.f32.gmra.mrb[0].mxu0 %v1055
      %v1257 = vpop.f32.mrb[0].mxu0
      %v1258 = vadd.f32 0.0, %v1257
      %v1259 = vpop.f32.mrb[0].mxu0
      %1260 = vmatprep.mubr.f32.mxu0 0.0
      %1261 = vmatmul.mubr.f32.gmra.mrb[0].mxu0 %v1058
      %v1262 = vpop.f32.mrb[0].mxu0
      %v1263 = vadd.f32 0.0, %v1262
      %v1264 = vpop.f32.mrb[0].mxu0
      %1265 = vmatprep.mubr.f32.mxu0 0.0
      %1266 = vmatmul.mubr.f32.gmra.mrb[0].mxu0 %v1061
      %v1267 = vpop.f32.mrb[0].mxu0
      %v1268 = vadd.f32 0.0, %v1267
      %v1269 = vpop.f32.mrb[0].mxu0
      %1270 = vmatprep.mubr.f32.mxu0 0.0
      %1271 = vmatmul.mubr.f32.gmra.mrb[0].mxu0 %v1064
      %v1272 = vpop.f32.mrb[0].mxu0
      %v1273 = vadd.f32 0.0, %v1272
      %v1274 = vpop.f32.mrb[0].mxu0
      %1275 = vmatprep.mubr.f32.mxu0 0.0
      %1276 = vmatmul.mubr.f32.gmra.mrb[0].mxu0 %v1067
      %v1277 = vpop.f32.mrb[0].mxu0
      %v1278 = vadd.f32 0.0, %v1277
      %v1279 = vpop.f32.mrb[0].mxu0
      %1280 = vmatprep.mubr.f32.mxu0 0.0
      %1281 = vmatmul.mubr.f32.gmra.mrb[0].mxu0 %v1070
      %v1282 = vpop.f32.mrb[0].mxu0
      %v1283 = vadd.f32 0.0, %v1282
      %v1284 = vpop.f32.mrb[0].mxu0
      %1285 = vmatprep.mubr.f32.mxu0 0.0
      %1286 = vmatmul.mubr.f32.gmra.mrb[0].mxu0 %v1073
      %v1287 = vpop.f32.mrb[0].mxu0
      %v1288 = vadd.f32 0.0, %v1287
      %v1289 = vpop.f32.mrb[0].mxu0
      %1290 = vmatprep.mubr.f32.mxu0 0.0
      %1291 = vmatmul.mubr.f32.gmra.mrb[0].mxu0 %v1076
      %v1292 = vpop.f32.mrb[0].mxu0
      %v1293 = vadd.f32 0.0, %v1292
      %v1294 = vpop.f32.mrb[0].mxu0
      %1295 = vmatprep.mubr.f32.mxu0 0.0
      %1296 = vmatmul.mubr.f32.gmra.mrb[0].mxu0 %v1079
      %v1297 = vpop.f32.mrb[0].mxu0
      %v1298 = vadd.f32 0.0, %v1297
      %v1299 = vpop.f32.mrb[0].mxu0
      %1300 = vmatprep.mubr.f32.mxu0 0.0
      %1301 = vmatmul.mubr.f32.gmra.mrb[0].mxu0 %v1082
      %v1302 = vpop.f32.mrb[0].mxu0
      %v1303 = vadd.f32 0.0, %v1302
      %v1304 = vpop.f32.mrb[0].mxu0
      %1305 = vmatprep.mubr.f32.mxu0 0.0
      %1306 = vmatmul.mubr.f32.gmra.mrb[0].mxu0 %v1085
      %v1307 = vpop.f32.mrb[0].mxu0
      %v1308 = vadd.f32 0.0, %v1307
      %v1309 = vpop.f32.mrb[0].mxu0
      %1310 = vmatprep.mubr.f32.mxu0 0.0
      %1311 = vmatmul.mubr.f32.gmra.mrb[0].mxu0 %v1088
      %v1312 = vpop.f32.mrb[0].mxu0
      %v1313 = vadd.f32 0.0, %v1312
      %v1314 = vpop.f32.mrb[0].mxu0
      %1315 = vmatprep.mubr.f32.mxu0 0.0
      %1316 = vmatmul.mubr.f32.gmra.mrb[0].mxu0 %v1091
      %v1317 = vpop.f32.mrb[0].mxu0
      %v1318 = vadd.f32 0.0, %v1317
      %v1319 = vpop.f32.mrb[0].mxu0
      %1320 = vdwg.mxu0
      %v1321 = vld [vmem:[#allocation4] sm:$0xff]
      %v1322 = vld [vmem:[#allocation4 + $0x8] sm:$0xff]
      %v1323 = vld [vmem:[#allocation4 + $0x10] sm:$0xff]
      %v1324 = vld [vmem:[#allocation4 + $0x18] sm:$0xff]
      %v1325 = vld [vmem:[#allocation4 + $0x20] sm:$0xff]
      %v1326 = vld [vmem:[#allocation4 + $0x28] sm:$0xff]
      %v1327 = vld [vmem:[#allocation4 + $0x30] sm:$0xff]
      %v1328 = vld [vmem:[#allocation4 + $0x38] sm:$0xff]
      %v1329 = vld [vmem:[#allocation4 + $0x40] sm:$0xff]
      %v1330 = vld [vmem:[#allocation4 + $0x48] sm:$0xff]
      %v1331 = vld [vmem:[#allocation4 + $0x50] sm:$0xff]
      %v1332 = vld [vmem:[#allocation4 + $0x58] sm:$0xff]
      %v1333 = vld [vmem:[#allocation4 + $0x60] sm:$0xff]
      %v1334 = vld [vmem:[#allocation4 + $0x68] sm:$0xff]
      %v1335 = vld [vmem:[#allocation4 + $0x70] sm:$0xff]
      %v1336 = vld [vmem:[#allocation4 + $0x78] sm:$0xff]
      %v1337 = vld [vmem:[#allocation4 + $0x80] sm:$0xff]
      %v1338 = vld [vmem:[#allocation4 + $0x88] sm:$0xff]
      %v1339 = vld [vmem:[#allocation4 + $0x90] sm:$0xff]
      %v1340 = vld [vmem:[#allocation4 + $0x98] sm:$0xff]
      %v1341 = vld [vmem:[#allocation4 + $0xa0] sm:$0xff]
      %v1342 = vld [vmem:[#allocation4 + $0xa8] sm:$0xff]
      %v1343 = vld [vmem:[#allocation4 + $0xb0] sm:$0xff]
      %v1344 = vld [vmem:[#allocation4 + $0xb8] sm:$0xff]
      %v1345 = vld [vmem:[#allocation4 + $0xc0] sm:$0xff]
      %v1346 = vld [vmem:[#allocation4 + $0xc8] sm:$0xff]
      %v1347 = vld [vmem:[#allocation4 + $0xd0] sm:$0xff]
      %v1348 = vld [vmem:[#allocation4 + $0xd8] sm:$0xff]
      %v1349 = vld [vmem:[#allocation4 + $0xe0] sm:$0xff]
      %v1350 = vld [vmem:[#allocation4 + $0xe8] sm:$0xff]
      %v1351 = vld [vmem:[#allocation4 + $0xf0] sm:$0xff]
      %v1352 = vld [vmem:[#allocation4 + $0xf8] sm:$0xff]
      %v1353 = vadd.f32 %v1321, %v1163
      %v1354 = vadd.f32 %v1322, %v1168
      %v1355 = vadd.f32 %v1323, %v1173
      %v1356 = vadd.f32 %v1324, %v1178
      %v1357 = vadd.f32 %v1325, %v1183
      %v1358 = vadd.f32 %v1326, %v1188
      %v1359 = vadd.f32 %v1327, %v1193
      %v1360 = vadd.f32 %v1328, %v1198
      %v1361 = vadd.f32 %v1329, %v1203
      %v1362 = vadd.f32 %v1330, %v1208
      %v1363 = vadd.f32 %v1331, %v1213
      %v1364 = vadd.f32 %v1332, %v1218
      %v1365 = vadd.f32 %v1333, %v1223
      %v1366 = vadd.f32 %v1334, %v1228
      %v1367 = vadd.f32 %v1335, %v1233
      %v1368 = vadd.f32 %v1336, %v1238
      %v1369 = vadd.f32 %v1337, %v1243
      %v1370 = vadd.f32 %v1338, %v1248
      %v1371 = vadd.f32 %v1339, %v1253
      %v1372 = vadd.f32 %v1340, %v1258
      %v1373 = vadd.f32 %v1341, %v1263
      %v1374 = vadd.f32 %v1342, %v1268
      %v1375 = vadd.f32 %v1343, %v1273
      %v1376 = vadd.f32 %v1344, %v1278
      %v1377 = vadd.f32 %v1345, %v1283
      %v1378 = vadd.f32 %v1346, %v1288
      %v1379 = vadd.f32 %v1347, %v1293
      %v1380 = vadd.f32 %v1348, %v1298
      %v1381 = vadd.f32 %v1349, %v1303
      %v1382 = vadd.f32 %v1350, %v1308
      %v1383 = vadd.f32 %v1351, %v1313
      %v1384 = vadd.f32 %v1352, %v1318
      %1385 = vst.msk [vmem:[#allocation4] sm:$0xff] %vm352, %v1353
      %1386 = vst.msk [vmem:[#allocation4 + $0x8] sm:$0xff] %vm352, %v1354
      %1387 = vst.msk [vmem:[#allocation4 + $0x10] sm:$0xff] %vm352, %v1355
      %1388 = vst.msk [vmem:[#allocation4 + $0x18] sm:$0xff] %vm352, %v1356
      %1389 = vst.msk [vmem:[#allocation4 + $0x20] sm:$0xff] %vm352, %v1357
      %1390 = vst.msk [vmem:[#allocation4 + $0x28] sm:$0xff] %vm352, %v1358
      %1391 = vst.msk [vmem:[#allocation4 + $0x30] sm:$0xff] %vm352, %v1359
      %1392 = vst.msk [vmem:[#allocation4 + $0x38] sm:$0xff] %vm352, %v1360
      %1393 = vst.msk [vmem:[#allocation4 + $0x40] sm:$0xff] %vm352, %v1361
      %1394 = vst.msk [vmem:[#allocation4 + $0x48] sm:$0xff] %vm352, %v1362
      %1395 = vst.msk [vmem:[#allocation4 + $0x50] sm:$0xff] %vm352, %v1363
      %1396 = vst.msk [vmem:[#allocation4 + $0x58] sm:$0xff] %vm352, %v1364
      %1397 = vst.msk [vmem:[#allocation4 + $0x60] sm:$0xff] %vm352, %v1365
      %1398 = vst.msk [vmem:[#allocation4 + $0x68] sm:$0xff] %vm352, %v1366
      %1399 = vst.msk [vmem:[#allocation4 + $0x70] sm:$0xff] %vm352, %v1367
      %1400 = vst.msk [vmem:[#allocation4 + $0x78] sm:$0xff] %vm352, %v1368
      %1401 = vst.msk [vmem:[#allocation4 + $0x80] sm:$0xff] %vm352, %v1369
      %1402 = vst.msk [vmem:[#allocation4 + $0x88] sm:$0xff] %vm352, %v1370
      %1403 = vst.msk [vmem:[#allocation4 + $0x90] sm:$0xff] %vm352, %v1371
      %1404 = vst.msk [vmem:[#allocation4 + $0x98] sm:$0xff] %vm352, %v1372
      %1405 = vst.msk [vmem:[#allocation4 + $0xa0] sm:$0xff] %vm352, %v1373
      %1406 = vst.msk [vmem:[#allocation4 + $0xa8] sm:$0xff] %vm352, %v1374
      %1407 = vst.msk [vmem:[#allocation4 + $0xb0] sm:$0xff] %vm352, %v1375
      %1408 = vst.msk [vmem:[#allocation4 + $0xb8] sm:$0xff] %vm352, %v1376
      %1409 = vst.msk [vmem:[#allocation4 + $0xc0] sm:$0xff] %vm352, %v1377
      %1410 = vst.msk [vmem:[#allocation4 + $0xc8] sm:$0xff] %vm352, %v1378
      %1411 = vst.msk [vmem:[#allocation4 + $0xd0] sm:$0xff] %vm352, %v1379
      %1412 = vst.msk [vmem:[#allocation4 + $0xd8] sm:$0xff] %vm352, %v1380
      %1413 = vst.msk [vmem:[#allocation4 + $0xe0] sm:$0xff] %vm352, %v1381
      %1414 = vst.msk [vmem:[#allocation4 + $0xe8] sm:$0xff] %vm352, %v1382
      %1415 = vst.msk [vmem:[#allocation4 + $0xf0] sm:$0xff] %vm352, %v1383
      %1416 = vst.msk [vmem:[#allocation4 + $0xf8] sm:$0xff] %vm352, %v1384
      %v1417 = vld [vmem:[#allocation2 + $0x2] sm:$0xff]
      %v1418 = vld [vmem:[#allocation2 + $0xa] sm:$0xff]
      %v1419 = vld [vmem:[#allocation2 + $0x1a] sm:$0xff]
      %v1420 = vld [vmem:[#allocation2 + $0x22] sm:$0xff]
      %v1421 = vld [vmem:[#allocation2 + $0x32] sm:$0xff]
      %v1422 = vld [vmem:[#allocation2 + $0x3a] sm:$0xff]
      %v1423 = vld [vmem:[#allocation2 + $0x4a] sm:$0xff]
      %v1424 = vld [vmem:[#allocation2 + $0x52] sm:$0xff]
      %v1425 = vld [vmem:[#allocation2 + $0x62] sm:$0xff]
      %v1426 = vld [vmem:[#allocation2 + $0x6a] sm:$0xff]
      %v1427 = vld [vmem:[#allocation2 + $0x7a] sm:$0xff]
      %v1428 = vld [vmem:[#allocation2 + $0x82] sm:$0xff]
      %v1429 = vld [vmem:[#allocation2 + $0x92] sm:$0xff]
      %v1430 = vld [vmem:[#allocation2 + $0x9a] sm:$0xff]
      %v1431 = vld [vmem:[#allocation2 + $0xaa] sm:$0xff]
      %v1432 = vld [vmem:[#allocation2 + $0xb2] sm:$0xff]
      %v1433 = vld [vmem:[#allocation2 + $0xc2] sm:$0xff]
      %v1434 = vld [vmem:[#allocation2 + $0xca] sm:$0xff]
      %v1435 = vld [vmem:[#allocation2 + $0xda] sm:$0xff]
      %v1436 = vld [vmem:[#allocation2 + $0xe2] sm:$0xff]
      %v1437 = vld [vmem:[#allocation2 + $0xf2] sm:$0xff]
      %v1438 = vld [vmem:[#allocation2 + $0xfa] sm:$0xff]
      %v1439 = vld [vmem:[#allocation2 + $0x10a] sm:$0xff]
      %v1440 = vld [vmem:[#allocation2 + $0x112] sm:$0xff]
      %v1441 = vld [vmem:[#allocation2 + $0x122] sm:$0xff]
      %v1442 = vld [vmem:[#allocation2 + $0x12a] sm:$0xff]
      %v1443 = vld [vmem:[#allocation2 + $0x13a] sm:$0xff]
      %v1444 = vld [vmem:[#allocation2 + $0x142] sm:$0xff]
      %v1445 = vld [vmem:[#allocation2 + $0x152] sm:$0xff]
      %v1446 = vld [vmem:[#allocation2 + $0x15a] sm:$0xff]
      %v1447 = vld [vmem:[#allocation2 + $0x16a] sm:$0xff]
      %v1448 = vld [vmem:[#allocation2 + $0x172] sm:$0xff]
      %s1449 = scalar_lea.vmem %s3, 8
      %v1450 = vld [vmem:[%s1449] sm:$0xf]
      %v1452 = vsel %vm306, %v1417, 0
      %v1455 = vsel %vm306, %v1418, 0
      %v1458 = vsel %vm306, %v1419, 0
      %v1461 = vsel %vm306, %v1420, 0
      %v1464 = vsel %vm306, %v1421, 0
      %v1467 = vsel %vm306, %v1422, 0
      %v1470 = vsel %vm306, %v1423, 0
      %v1473 = vsel %vm306, %v1424, 0
      %v1476 = vsel %vm306, %v1425, 0
      %v1479 = vsel %vm306, %v1426, 0
      %v1482 = vsel %vm306, %v1427, 0
      %v1485 = vsel %vm306, %v1428, 0
      %v1488 = vsel %vm306, %v1429, 0
      %v1491 = vsel %vm306, %v1430, 0
      %v1494 = vsel %vm306, %v1431, 0
      %v1497 = vsel %vm306, %v1432, 0
      %v1500 = vsel %vm306, %v1433, 0
      %v1503 = vsel %vm306, %v1434, 0
      %v1506 = vsel %vm306, %v1435, 0
      %v1509 = vsel %vm306, %v1436, 0
      %v1512 = vsel %vm306, %v1437, 0
      %v1515 = vsel %vm306, %v1438, 0
      %v1518 = vsel %vm306, %v1439, 0
      %v1521 = vsel %vm306, %v1440, 0
      %v1524 = vsel %vm306, %v1441, 0
      %v1527 = vsel %vm306, %v1442, 0
      %v1530 = vsel %vm306, %v1443, 0
      %v1533 = vsel %vm306, %v1444, 0
      %v1536 = vsel %vm306, %v1445, 0
      %v1539 = vsel %vm306, %v1446, 0
      %v1542 = vsel %vm306, %v1447, 0
      %v1545 = vsel %vm306, %v1448, 0
      %v1548 = vsel %vm702, %v1450, 0
      %1550 = vmatprep.subr.mxu0 0.0
      %1551 = vmatpush1.msra.mxu0 %v1548
      %1552 = vmatprep.subr.mxu0 0.0
      %1553 = vmatpush1.msra.mxu0 0.0
      %1554 = vmatprep.subr.mxu0 0.0
      %1555 = vmatpush1.msra.mxu0 0.0
      %1556 = vmatprep.subr.mxu0 0.0
      %1557 = vmatpush1.msra.mxu0 0.0
      %1558 = vmatprep.subr.mxu0 0.0
      %1559 = vmatpush1.msra.mxu0 0.0
      %1560 = vmatprep.subr.mxu0 0.0
      %1561 = vmatpush1.msra.mxu0 0.0
      %1562 = vmatprep.subr.mxu0 0.0
      %1563 = vmatpush1.msra.mxu0 0.0
      %1564 = vmatprep.subr.mxu0 0.0
      %1565 = vmatpush1.msra.mxu0 0.0
      %1566 = vmatprep.subr.mxu0 0.0
      %1567 = vmatpush1.msra.mxu0 0.0
      %1568 = vmatprep.subr.mxu0 0.0
      %1569 = vmatpush1.msra.mxu0 0.0
      %1570 = vmatprep.subr.mxu0 0.0
      %1571 = vmatpush1.msra.mxu0 0.0
      %1572 = vmatprep.subr.mxu0 0.0
      %1573 = vmatpush1.msra.mxu0 0.0
      %1574 = vmatprep.subr.mxu0 0.0
      %1575 = vmatpush1.msra.mxu0 0.0
      %1576 = vmatprep.subr.mxu0 0.0
      %1577 = vmatpush1.msra.mxu0 0.0
      %1578 = vmatprep.subr.mxu0 0.0
      %1579 = vmatpush1.msra.mxu0 0.0
      %1580 = vmatprep.subr.mxu0 0.0
      %1581 = vmatpush1.msra.mxu0 0.0
      %1582 = vmatprep.subr.mxu0 0.0
      %1583 = vmatpush1.msra.mxu0 0.0
      %1584 = vmatprep.subr.mxu0 0.0
      %1585 = vmatpush1.msra.mxu0 0.0
      %1586 = vmatprep.subr.mxu0 0.0
      %1587 = vmatpush1.msra.mxu0 0.0
      %1588 = vmatprep.subr.mxu0 0.0
      %1589 = vmatpush1.msra.mxu0 0.0
      %1590 = vmatprep.subr.mxu0 0.0
      %1591 = vmatpush1.msra.mxu0 0.0
      %1592 = vmatprep.subr.mxu0 0.0
      %1593 = vmatpush1.msra.mxu0 0.0
      %1594 = vmatprep.subr.mxu0 0.0
      %1595 = vmatpush1.msra.mxu0 0.0
      %1596 = vmatprep.subr.mxu0 0.0
      %1597 = vmatpush1.msra.mxu0 0.0
      %1598 = vmatprep.subr.mxu0 0.0
      %1599 = vmatpush1.msra.mxu0 0.0
      %1600 = vmatprep.subr.mxu0 0.0
      %1601 = vmatpush1.msra.mxu0 0.0
      %1602 = vmatprep.subr.mxu0 0.0
      %1603 = vmatpush1.msra.mxu0 0.0
      %1604 = vmatprep.subr.mxu0 0.0
      %1605 = vmatpush1.msra.mxu0 0.0
      %1606 = vmatprep.subr.mxu0 0.0
      %1607 = vmatpush1.msra.mxu0 0.0
      %1608 = vmatprep.subr.mxu0 0.0
      %1609 = vmatpush1.msra.mxu0 0.0
      %1610 = vmatprep.subr.mxu0 0.0
      %1611 = vmatpush1.msra.mxu0 0.0
      %1612 = vmatprep.subr.mxu0 0.0
      %1613 = vmatpush1.msra.mxu0 0.0
      %1614 = vmatprep.mubr.f32.mxu0 0.0
      %1615 = vmatmul.mubr.f32.gmra.mrb[0].mxu0 %v1452
      %v1616 = vpop.f32.mrb[0].mxu0
      %v1617 = vadd.f32 0.0, %v1616
      %v1618 = vpop.f32.mrb[0].mxu0
      %1619 = vmatprep.mubr.f32.mxu0 0.0
      %1620 = vmatmul.mubr.f32.gmra.mrb[0].mxu0 %v1455
      %v1621 = vpop.f32.mrb[0].mxu0
      %v1622 = vadd.f32 0.0, %v1621
      %v1623 = vpop.f32.mrb[0].mxu0
      %1624 = vmatprep.mubr.f32.mxu0 0.0
      %1625 = vmatmul.mubr.f32.gmra.mrb[0].mxu0 %v1458
      %v1626 = vpop.f32.mrb[0].mxu0
      %v1627 = vadd.f32 0.0, %v1626
      %v1628 = vpop.f32.mrb[0].mxu0
      %1629 = vmatprep.mubr.f32.mxu0 0.0
      %1630 = vmatmul.mubr.f32.gmra.mrb[0].mxu0 %v1461
      %v1631 = vpop.f32.mrb[0].mxu0
      %v1632 = vadd.f32 0.0, %v1631
      %v1633 = vpop.f32.mrb[0].mxu0
      %1634 = vmatprep.mubr.f32.mxu0 0.0
      %1635 = vmatmul.mubr.f32.gmra.mrb[0].mxu0 %v1464
      %v1636 = vpop.f32.mrb[0].mxu0
      %v1637 = vadd.f32 0.0, %v1636
      %v1638 = vpop.f32.mrb[0].mxu0
      %1639 = vmatprep.mubr.f32.mxu0 0.0
      %1640 = vmatmul.mubr.f32.gmra.mrb[0].mxu0 %v1467
      %v1641 = vpop.f32.mrb[0].mxu0
      %v1642 = vadd.f32 0.0, %v1641
      %v1643 = vpop.f32.mrb[0].mxu0
      %1644 = vmatprep.mubr.f32.mxu0 0.0
      %1645 = vmatmul.mubr.f32.gmra.mrb[0].mxu0 %v1470
      %v1646 = vpop.f32.mrb[0].mxu0
      %v1647 = vadd.f32 0.0, %v1646
      %v1648 = vpop.f32.mrb[0].mxu0
      %1649 = vmatprep.mubr.f32.mxu0 0.0
      %1650 = vmatmul.mubr.f32.gmra.mrb[0].mxu0 %v1473
      %v1651 = vpop.f32.mrb[0].mxu0
      %v1652 = vadd.f32 0.0, %v1651
      %v1653 = vpop.f32.mrb[0].mxu0
      %1654 = vmatprep.mubr.f32.mxu0 0.0
      %1655 = vmatmul.mubr.f32.gmra.mrb[0].mxu0 %v1476
      %v1656 = vpop.f32.mrb[0].mxu0
      %v1657 = vadd.f32 0.0, %v1656
      %v1658 = vpop.f32.mrb[0].mxu0
      %1659 = vmatprep.mubr.f32.mxu0 0.0
      %1660 = vmatmul.mubr.f32.gmra.mrb[0].mxu0 %v1479
      %v1661 = vpop.f32.mrb[0].mxu0
      %v1662 = vadd.f32 0.0, %v1661
      %v1663 = vpop.f32.mrb[0].mxu0
      %1664 = vmatprep.mubr.f32.mxu0 0.0
      %1665 = vmatmul.mubr.f32.gmra.mrb[0].mxu0 %v1482
      %v1666 = vpop.f32.mrb[0].mxu0
      %v1667 = vadd.f32 0.0, %v1666
      %v1668 = vpop.f32.mrb[0].mxu0
      %1669 = vmatprep.mubr.f32.mxu0 0.0
      %1670 = vmatmul.mubr.f32.gmra.mrb[0].mxu0 %v1485
      %v1671 = vpop.f32.mrb[0].mxu0
      %v1672 = vadd.f32 0.0, %v1671
      %v1673 = vpop.f32.mrb[0].mxu0
      %1674 = vmatprep.mubr.f32.mxu0 0.0
      %1675 = vmatmul.mubr.f32.gmra.mrb[0].mxu0 %v1488
      %v1676 = vpop.f32.mrb[0].mxu0
      %v1677 = vadd.f32 0.0, %v1676
      %v1678 = vpop.f32.mrb[0].mxu0
      %1679 = vmatprep.mubr.f32.mxu0 0.0
      %1680 = vmatmul.mubr.f32.gmra.mrb[0].mxu0 %v1491
      %v1681 = vpop.f32.mrb[0].mxu0
      %v1682 = vadd.f32 0.0, %v1681
      %v1683 = vpop.f32.mrb[0].mxu0
      %1684 = vmatprep.mubr.f32.mxu0 0.0
      %1685 = vmatmul.mubr.f32.gmra.mrb[0].mxu0 %v1494
      %v1686 = vpop.f32.mrb[0].mxu0
      %v1687 = vadd.f32 0.0, %v1686
      %v1688 = vpop.f32.mrb[0].mxu0
      %1689 = vmatprep.mubr.f32.mxu0 0.0
      %1690 = vmatmul.mubr.f32.gmra.mrb[0].mxu0 %v1497
      %v1691 = vpop.f32.mrb[0].mxu0
      %v1692 = vadd.f32 0.0, %v1691
      %v1693 = vpop.f32.mrb[0].mxu0
      %1694 = vmatprep.mubr.f32.mxu0 0.0
      %1695 = vmatmul.mubr.f32.gmra.mrb[0].mxu0 %v1500
      %v1696 = vpop.f32.mrb[0].mxu0
      %v1697 = vadd.f32 0.0, %v1696
      %v1698 = vpop.f32.mrb[0].mxu0
      %1699 = vmatprep.mubr.f32.mxu0 0.0
      %1700 = vmatmul.mubr.f32.gmra.mrb[0].mxu0 %v1503
      %v1701 = vpop.f32.mrb[0].mxu0
      %v1702 = vadd.f32 0.0, %v1701
      %v1703 = vpop.f32.mrb[0].mxu0
      %1704 = vmatprep.mubr.f32.mxu0 0.0
      %1705 = vmatmul.mubr.f32.gmra.mrb[0].mxu0 %v1506
      %v1706 = vpop.f32.mrb[0].mxu0
      %v1707 = vadd.f32 0.0, %v1706
      %v1708 = vpop.f32.mrb[0].mxu0
      %1709 = vmatprep.mubr.f32.mxu0 0.0
      %1710 = vmatmul.mubr.f32.gmra.mrb[0].mxu0 %v1509
      %v1711 = vpop.f32.mrb[0].mxu0
      %v1712 = vadd.f32 0.0, %v1711
      %v1713 = vpop.f32.mrb[0].mxu0
      %1714 = vmatprep.mubr.f32.mxu0 0.0
      %1715 = vmatmul.mubr.f32.gmra.mrb[0].mxu0 %v1512
      %v1716 = vpop.f32.mrb[0].mxu0
      %v1717 = vadd.f32 0.0, %v1716
      %v1718 = vpop.f32.mrb[0].mxu0
      %1719 = vmatprep.mubr.f32.mxu0 0.0
      %1720 = vmatmul.mubr.f32.gmra.mrb[0].mxu0 %v1515
      %v1721 = vpop.f32.mrb[0].mxu0
      %v1722 = vadd.f32 0.0, %v1721
      %v1723 = vpop.f32.mrb[0].mxu0
      %1724 = vmatprep.mubr.f32.mxu0 0.0
      %1725 = vmatmul.mubr.f32.gmra.mrb[0].mxu0 %v1518
      %v1726 = vpop.f32.mrb[0].mxu0
      %v1727 = vadd.f32 0.0, %v1726
      %v1728 = vpop.f32.mrb[0].mxu0
      %1729 = vmatprep.mubr.f32.mxu0 0.0
      %1730 = vmatmul.mubr.f32.gmra.mrb[0].mxu0 %v1521
      %v1731 = vpop.f32.mrb[0].mxu0
      %v1732 = vadd.f32 0.0, %v1731
      %v1733 = vpop.f32.mrb[0].mxu0
      %1734 = vmatprep.mubr.f32.mxu0 0.0
      %1735 = vmatmul.mubr.f32.gmra.mrb[0].mxu0 %v1524
      %v1736 = vpop.f32.mrb[0].mxu0
      %v1737 = vadd.f32 0.0, %v1736
      %v1738 = vpop.f32.mrb[0].mxu0
      %1739 = vmatprep.mubr.f32.mxu0 0.0
      %1740 = vmatmul.mubr.f32.gmra.mrb[0].mxu0 %v1527
      %v1741 = vpop.f32.mrb[0].mxu0
      %v1742 = vadd.f32 0.0, %v1741
      %v1743 = vpop.f32.mrb[0].mxu0
      %1744 = vmatprep.mubr.f32.mxu0 0.0
      %1745 = vmatmul.mubr.f32.gmra.mrb[0].mxu0 %v1530
      %v1746 = vpop.f32.mrb[0].mxu0
      %v1747 = vadd.f32 0.0, %v1746
      %v1748 = vpop.f32.mrb[0].mxu0
      %1749 = vmatprep.mubr.f32.mxu0 0.0
      %1750 = vmatmul.mubr.f32.gmra.mrb[0].mxu0 %v1533
      %v1751 = vpop.f32.mrb[0].mxu0
      %v1752 = vadd.f32 0.0, %v1751
      %v1753 = vpop.f32.mrb[0].mxu0
      %1754 = vmatprep.mubr.f32.mxu0 0.0
      %1755 = vmatmul.mubr.f32.gmra.mrb[0].mxu0 %v1536
      %v1756 = vpop.f32.mrb[0].mxu0
      %v1757 = vadd.f32 0.0, %v1756
      %v1758 = vpop.f32.mrb[0].mxu0
      %1759 = vmatprep.mubr.f32.mxu0 0.0
      %1760 = vmatmul.mubr.f32.gmra.mrb[0].mxu0 %v1539
      %v1761 = vpop.f32.mrb[0].mxu0
      %v1762 = vadd.f32 0.0, %v1761
      %v1763 = vpop.f32.mrb[0].mxu0
      %1764 = vmatprep.mubr.f32.mxu0 0.0
      %1765 = vmatmul.mubr.f32.gmra.mrb[0].mxu0 %v1542
      %v1766 = vpop.f32.mrb[0].mxu0
      %v1767 = vadd.f32 0.0, %v1766
      %v1768 = vpop.f32.mrb[0].mxu0
      %1769 = vmatprep.mubr.f32.mxu0 0.0
      %1770 = vmatmul.mubr.f32.gmra.mrb[0].mxu0 %v1545
      %v1771 = vpop.f32.mrb[0].mxu0
      %v1772 = vadd.f32 0.0, %v1771
      %v1773 = vpop.f32.mrb[0].mxu0
      %1774 = vdwg.mxu0
      %v1775 = vld [vmem:[#allocation4] sm:$0xff]
      %v1776 = vld [vmem:[#allocation4 + $0x8] sm:$0xff]
      %v1777 = vld [vmem:[#allocation4 + $0x10] sm:$0xff]
      %v1778 = vld [vmem:[#allocation4 + $0x18] sm:$0xff]
      %v1779 = vld [vmem:[#allocation4 + $0x20] sm:$0xff]
      %v1780 = vld [vmem:[#allocation4 + $0x28] sm:$0xff]
      %v1781 = vld [vmem:[#allocation4 + $0x30] sm:$0xff]
      %v1782 = vld [vmem:[#allocation4 + $0x38] sm:$0xff]
      %v1783 = vld [vmem:[#allocation4 + $0x40] sm:$0xff]
      %v1784 = vld [vmem:[#allocation4 + $0x48] sm:$0xff]
      %v1785 = vld [vmem:[#allocation4 + $0x50] sm:$0xff]
      %v1786 = vld [vmem:[#allocation4 + $0x58] sm:$0xff]
      %v1787 = vld [vmem:[#allocation4 + $0x60] sm:$0xff]
      %v1788 = vld [vmem:[#allocation4 + $0x68] sm:$0xff]
      %v1789 = vld [vmem:[#allocation4 + $0x70] sm:$0xff]
      %v1790 = vld [vmem:[#allocation4 + $0x78] sm:$0xff]
      %v1791 = vld [vmem:[#allocation4 + $0x80] sm:$0xff]
      %v1792 = vld [vmem:[#allocation4 + $0x88] sm:$0xff]
      %v1793 = vld [vmem:[#allocation4 + $0x90] sm:$0xff]
      %v1794 = vld [vmem:[#allocation4 + $0x98] sm:$0xff]
      %v1795 = vld [vmem:[#allocation4 + $0xa0] sm:$0xff]
      %v1796 = vld [vmem:[#allocation4 + $0xa8] sm:$0xff]
      %v1797 = vld [vmem:[#allocation4 + $0xb0] sm:$0xff]
      %v1798 = vld [vmem:[#allocation4 + $0xb8] sm:$0xff]
      %v1799 = vld [vmem:[#allocation4 + $0xc0] sm:$0xff]
      %v1800 = vld [vmem:[#allocation4 + $0xc8] sm:$0xff]
      %v1801 = vld [vmem:[#allocation4 + $0xd0] sm:$0xff]
      %v1802 = vld [vmem:[#allocation4 + $0xd8] sm:$0xff]
      %v1803 = vld [vmem:[#allocation4 + $0xe0] sm:$0xff]
      %v1804 = vld [vmem:[#allocation4 + $0xe8] sm:$0xff]
      %v1805 = vld [vmem:[#allocation4 + $0xf0] sm:$0xff]
      %v1806 = vld [vmem:[#allocation4 + $0xf8] sm:$0xff]
      %v1807 = vadd.f32 %v1775, %v1617
      %v1808 = vadd.f32 %v1776, %v1622
      %v1809 = vadd.f32 %v1777, %v1627
      %v1810 = vadd.f32 %v1778, %v1632
      %v1811 = vadd.f32 %v1779, %v1637
      %v1812 = vadd.f32 %v1780, %v1642
      %v1813 = vadd.f32 %v1781, %v1647
      %v1814 = vadd.f32 %v1782, %v1652
      %v1815 = vadd.f32 %v1783, %v1657
      %v1816 = vadd.f32 %v1784, %v1662
      %v1817 = vadd.f32 %v1785, %v1667
      %v1818 = vadd.f32 %v1786, %v1672
      %v1819 = vadd.f32 %v1787, %v1677
      %v1820 = vadd.f32 %v1788, %v1682
      %v1821 = vadd.f32 %v1789, %v1687
      %v1822 = vadd.f32 %v1790, %v1692
      %v1823 = vadd.f32 %v1791, %v1697
      %v1824 = vadd.f32 %v1792, %v1702
      %v1825 = vadd.f32 %v1793, %v1707
      %v1826 = vadd.f32 %v1794, %v1712
      %v1827 = vadd.f32 %v1795, %v1717
      %v1828 = vadd.f32 %v1796, %v1722
      %v1829 = vadd.f32 %v1797, %v1727
      %v1830 = vadd.f32 %v1798, %v1732
      %v1831 = vadd.f32 %v1799, %v1737
      %v1832 = vadd.f32 %v1800, %v1742
      %v1833 = vadd.f32 %v1801, %v1747
      %v1834 = vadd.f32 %v1802, %v1752
      %v1835 = vadd.f32 %v1803, %v1757
      %v1836 = vadd.f32 %v1804, %v1762
      %v1837 = vadd.f32 %v1805, %v1767
      %v1838 = vadd.f32 %v1806, %v1772
      %1839 = vst.msk [vmem:[#allocation4] sm:$0xff] %vm352, %v1807
      %1840 = vst.msk [vmem:[#allocation4 + $0x8] sm:$0xff] %vm352, %v1808
      %1841 = vst.msk [vmem:[#allocation4 + $0x10] sm:$0xff] %vm352, %v1809
      %1842 = vst.msk [vmem:[#allocation4 + $0x18] sm:$0xff] %vm352, %v1810
      %1843 = vst.msk [vmem:[#allocation4 + $0x20] sm:$0xff] %vm352, %v1811
      %1844 = vst.msk [vmem:[#allocation4 + $0x28] sm:$0xff] %vm352, %v1812
      %1845 = vst.msk [vmem:[#allocation4 + $0x30] sm:$0xff] %vm352, %v1813
      %1846 = vst.msk [vmem:[#allocation4 + $0x38] sm:$0xff] %vm352, %v1814
      %1847 = vst.msk [vmem:[#allocation4 + $0x40] sm:$0xff] %vm352, %v1815
      %1848 = vst.msk [vmem:[#allocation4 + $0x48] sm:$0xff] %vm352, %v1816
      %1849 = vst.msk [vmem:[#allocation4 + $0x50] sm:$0xff] %vm352, %v1817
      %1850 = vst.msk [vmem:[#allocation4 + $0x58] sm:$0xff] %vm352, %v1818
      %1851 = vst.msk [vmem:[#allocation4 + $0x60] sm:$0xff] %vm352, %v1819
      %1852 = vst.msk [vmem:[#allocation4 + $0x68] sm:$0xff] %vm352, %v1820
      %1853 = vst.msk [vmem:[#allocation4 + $0x70] sm:$0xff] %vm352, %v1821
      %1854 = vst.msk [vmem:[#allocation4 + $0x78] sm:$0xff] %vm352, %v1822
      %1855 = vst.msk [vmem:[#allocation4 + $0x80] sm:$0xff] %vm352, %v1823
      %1856 = vst.msk [vmem:[#allocation4 + $0x88] sm:$0xff] %vm352, %v1824
      %1857 = vst.msk [vmem:[#allocation4 + $0x90] sm:$0xff] %vm352, %v1825
      %1858 = vst.msk [vmem:[#allocation4 + $0x98] sm:$0xff] %vm352, %v1826
      %1859 = vst.msk [vmem:[#allocation4 + $0xa0] sm:$0xff] %vm352, %v1827
      %1860 = vst.msk [vmem:[#allocation4 + $0xa8] sm:$0xff] %vm352, %v1828
      %1861 = vst.msk [vmem:[#allocation4 + $0xb0] sm:$0xff] %vm352, %v1829
      %1862 = vst.msk [vmem:[#allocation4 + $0xb8] sm:$0xff] %vm352, %v1830
      %1863 = vst.msk [vmem:[#allocation4 + $0xc0] sm:$0xff] %vm352, %v1831
      %1864 = vst.msk [vmem:[#allocation4 + $0xc8] sm:$0xff] %vm352, %v1832
      %1865 = vst.msk [vmem:[#allocation4 + $0xd0] sm:$0xff] %vm352, %v1833
      %1866 = vst.msk [vmem:[#allocation4 + $0xd8] sm:$0xff] %vm352, %v1834
      %1867 = vst.msk [vmem:[#allocation4 + $0xe0] sm:$0xff] %vm352, %v1835
      %1868 = vst.msk [vmem:[#allocation4 + $0xe8] sm:$0xff] %vm352, %v1836
      %1869 = vst.msk [vmem:[#allocation4 + $0xf0] sm:$0xff] %vm352, %v1837
      %1870 = vst.msk [vmem:[#allocation4 + $0xf8] sm:$0xff] %vm352, %v1838
      %v1871 = vld [vmem:[%s540] sm:$0xff]
      %v1872 = vld [vmem:[%s540 + $0x8] sm:$0xff]
      %v1873 = vld [vmem:[%s540 + $0x18] sm:$0xff]
      %v1874 = vld [vmem:[%s540 + $0x20] sm:$0xff]
      %v1875 = vld [vmem:[%s540 + $0x30] sm:$0xff]
      %v1876 = vld [vmem:[%s540 + $0x38] sm:$0xff]
      %v1877 = vld [vmem:[%s540 + $0x48] sm:$0xff]
      %v1878 = vld [vmem:[%s540 + $0x50] sm:$0xff]
      %v1879 = vld [vmem:[%s540 + $0x60] sm:$0xff]
      %v1880 = vld [vmem:[%s540 + $0x68] sm:$0xff]
      %v1881 = vld [vmem:[%s540 + $0x78] sm:$0xff]
      %v1882 = vld [vmem:[%s540 + $0x80] sm:$0xff]
      %v1883 = vld [vmem:[%s540 + $0x90] sm:$0xff]
      %v1884 = vld [vmem:[%s540 + $0x98] sm:$0xff]
      %v1885 = vld [vmem:[%s540 + $0xa8] sm:$0xff]
      %v1886 = vld [vmem:[%s540 + $0xb0] sm:$0xff]
      %v1887 = vld [vmem:[%s540 + $0xc0] sm:$0xff]
      %v1888 = vld [vmem:[%s540 + $0xc8] sm:$0xff]
      %v1889 = vld [vmem:[%s540 + $0xd8] sm:$0xff]
      %v1890 = vld [vmem:[%s540 + $0xe0] sm:$0xff]
      %v1891 = vld [vmem:[%s540 + $0xf0] sm:$0xff]
      %v1892 = vld [vmem:[%s540 + $0xf8] sm:$0xff]
      %v1893 = vld [vmem:[%s540 + $0x108] sm:$0xff]
      %v1894 = vld [vmem:[%s540 + $0x110] sm:$0xff]
      %v1895 = vld [vmem:[%s540 + $0x120] sm:$0xff]
      %v1896 = vld [vmem:[%s540 + $0x128] sm:$0xff]
      %v1897 = vld [vmem:[%s540 + $0x138] sm:$0xff]
      %v1898 = vld [vmem:[%s540 + $0x140] sm:$0xff]
      %v1899 = vld [vmem:[%s540 + $0x150] sm:$0xff]
      %v1900 = vld [vmem:[%s540 + $0x158] sm:$0xff]
      %v1901 = vld [vmem:[%s540 + $0x168] sm:$0xff]
      %v1902 = vld [vmem:[%s540 + $0x170] sm:$0xff]
      %s1903 = scalar_lea.vmem %s3, 12
      %v1904 = vld [vmem:[%s1903] sm:$0xf]
      %v1906 = vsel %vm306, %v1871, 0
      %v1909 = vsel %vm306, %v1872, 0
      %v1912 = vsel %vm306, %v1873, 0
      %v1915 = vsel %vm306, %v1874, 0
      %v1918 = vsel %vm306, %v1875, 0
      %v1921 = vsel %vm306, %v1876, 0
      %v1924 = vsel %vm306, %v1877, 0
      %v1927 = vsel %vm306, %v1878, 0
      %v1930 = vsel %vm306, %v1879, 0
      %v1933 = vsel %vm306, %v1880, 0
      %v1936 = vsel %vm306, %v1881, 0
      %v1939 = vsel %vm306, %v1882, 0
      %v1942 = vsel %vm306, %v1883, 0
      %v1945 = vsel %vm306, %v1884, 0
      %v1948 = vsel %vm306, %v1885, 0
      %v1951 = vsel %vm306, %v1886, 0
      %v1954 = vsel %vm306, %v1887, 0
      %v1957 = vsel %vm306, %v1888, 0
      %v1960 = vsel %vm306, %v1889, 0
      %v1963 = vsel %vm306, %v1890, 0
      %v1966 = vsel %vm306, %v1891, 0
      %v1969 = vsel %vm306, %v1892, 0
      %v1972 = vsel %vm306, %v1893, 0
      %v1975 = vsel %vm306, %v1894, 0
      %v1978 = vsel %vm306, %v1895, 0
      %v1981 = vsel %vm306, %v1896, 0
      %v1984 = vsel %vm306, %v1897, 0
      %v1987 = vsel %vm306, %v1898, 0
      %v1990 = vsel %vm306, %v1899, 0
      %v1993 = vsel %vm306, %v1900, 0
      %v1996 = vsel %vm306, %v1901, 0
      %v1999 = vsel %vm306, %v1902, 0
      %v2002 = vsel %vm702, %v1904, 0
      %2004 = vmatprep.subr.mxu0 0.0
      %2005 = vmatpush1.msra.mxu0 %v2002
      %2006 = vmatprep.subr.mxu0 0.0
      %2007 = vmatpush1.msra.mxu0 0.0
      %2008 = vmatprep.subr.mxu0 0.0
      %2009 = vmatpush1.msra.mxu0 0.0
      %2010 = vmatprep.subr.mxu0 0.0
      %2011 = vmatpush1.msra.mxu0 0.0
      %2012 = vmatprep.subr.mxu0 0.0
      %2013 = vmatpush1.msra.mxu0 0.0
      %2014 = vmatprep.subr.mxu0 0.0
      %2015 = vmatpush1.msra.mxu0 0.0
      %2016 = vmatprep.subr.mxu0 0.0
      %2017 = vmatpush1.msra.mxu0 0.0
      %2018 = vmatprep.subr.mxu0 0.0
      %2019 = vmatpush1.msra.mxu0 0.0
      %2020 = vmatprep.subr.mxu0 0.0
      %2021 = vmatpush1.msra.mxu0 0.0
      %2022 = vmatprep.subr.mxu0 0.0
      %2023 = vmatpush1.msra.mxu0 0.0
      %2024 = vmatprep.subr.mxu0 0.0
      %2025 = vmatpush1.msra.mxu0 0.0
      %2026 = vmatprep.subr.mxu0 0.0
      %2027 = vmatpush1.msra.mxu0 0.0
      %2028 = vmatprep.subr.mxu0 0.0
      %2029 = vmatpush1.msra.mxu0 0.0
      %2030 = vmatprep.subr.mxu0 0.0
      %2031 = vmatpush1.msra.mxu0 0.0
      %2032 = vmatprep.subr.mxu0 0.0
      %2033 = vmatpush1.msra.mxu0 0.0
      %2034 = vmatprep.subr.mxu0 0.0
      %2035 = vmatpush1.msra.mxu0 0.0
      %2036 = vmatprep.subr.mxu0 0.0
      %2037 = vmatpush1.msra.mxu0 0.0
      %2038 = vmatprep.subr.mxu0 0.0
      %2039 = vmatpush1.msra.mxu0 0.0
      %2040 = vmatprep.subr.mxu0 0.0
      %2041 = vmatpush1.msra.mxu0 0.0
      %2042 = vmatprep.subr.mxu0 0.0
      %2043 = vmatpush1.msra.mxu0 0.0
      %2044 = vmatprep.subr.mxu0 0.0
      %2045 = vmatpush1.msra.mxu0 0.0
      %2046 = vmatprep.subr.mxu0 0.0
      %2047 = vmatpush1.msra.mxu0 0.0
      %2048 = vmatprep.subr.mxu0 0.0
      %2049 = vmatpush1.msra.mxu0 0.0
      %2050 = vmatprep.subr.mxu0 0.0
      %2051 = vmatpush1.msra.mxu0 0.0
      %2052 = vmatprep.subr.mxu0 0.0
      %2053 = vmatpush1.msra.mxu0 0.0
      %2054 = vmatprep.subr.mxu0 0.0
      %2055 = vmatpush1.msra.mxu0 0.0
      %2056 = vmatprep.subr.mxu0 0.0
      %2057 = vmatpush1.msra.mxu0 0.0
      %2058 = vmatprep.subr.mxu0 0.0
      %2059 = vmatpush1.msra.mxu0 0.0
      %2060 = vmatprep.subr.mxu0 0.0
      %2061 = vmatpush1.msra.mxu0 0.0
      %2062 = vmatprep.subr.mxu0 0.0
      %2063 = vmatpush1.msra.mxu0 0.0
      %2064 = vmatprep.subr.mxu0 0.0
      %2065 = vmatpush1.msra.mxu0 0.0
      %2066 = vmatprep.subr.mxu0 0.0
      %2067 = vmatpush1.msra.mxu0 0.0
      %2068 = vmatprep.mubr.f32.mxu0 0.0
      %2069 = vmatmul.mubr.f32.gmra.mrb[0].mxu0 %v1906
      %v2070 = vpop.f32.mrb[0].mxu0
      %v2071 = vadd.f32 0.0, %v2070
      %v2072 = vpop.f32.mrb[0].mxu0
      %2073 = vmatprep.mubr.f32.mxu0 0.0
      %2074 = vmatmul.mubr.f32.gmra.mrb[0].mxu0 %v1909
      %v2075 = vpop.f32.mrb[0].mxu0
      %v2076 = vadd.f32 0.0, %v2075
      %v2077 = vpop.f32.mrb[0].mxu0
      %2078 = vmatprep.mubr.f32.mxu0 0.0
      %2079 = vmatmul.mubr.f32.gmra.mrb[0].mxu0 %v1912
      %v2080 = vpop.f32.mrb[0].mxu0
      %v2081 = vadd.f32 0.0, %v2080
      %v2082 = vpop.f32.mrb[0].mxu0
      %2083 = vmatprep.mubr.f32.mxu0 0.0
      %2084 = vmatmul.mubr.f32.gmra.mrb[0].mxu0 %v1915
      %v2085 = vpop.f32.mrb[0].mxu0
      %v2086 = vadd.f32 0.0, %v2085
      %v2087 = vpop.f32.mrb[0].mxu0
      %2088 = vmatprep.mubr.f32.mxu0 0.0
      %2089 = vmatmul.mubr.f32.gmra.mrb[0].mxu0 %v1918
      %v2090 = vpop.f32.mrb[0].mxu0
      %v2091 = vadd.f32 0.0, %v2090
      %v2092 = vpop.f32.mrb[0].mxu0
      %2093 = vmatprep.mubr.f32.mxu0 0.0
      %2094 = vmatmul.mubr.f32.gmra.mrb[0].mxu0 %v1921
      %v2095 = vpop.f32.mrb[0].mxu0
      %v2096 = vadd.f32 0.0, %v2095
      %v2097 = vpop.f32.mrb[0].mxu0
      %2098 = vmatprep.mubr.f32.mxu0 0.0
      %2099 = vmatmul.mubr.f32.gmra.mrb[0].mxu0 %v1924
      %v2100 = vpop.f32.mrb[0].mxu0
      %v2101 = vadd.f32 0.0, %v2100
      %v2102 = vpop.f32.mrb[0].mxu0
      %2103 = vmatprep.mubr.f32.mxu0 0.0
      %2104 = vmatmul.mubr.f32.gmra.mrb[0].mxu0 %v1927
      %v2105 = vpop.f32.mrb[0].mxu0
      %v2106 = vadd.f32 0.0, %v2105
      %v2107 = vpop.f32.mrb[0].mxu0
      %2108 = vmatprep.mubr.f32.mxu0 0.0
      %2109 = vmatmul.mubr.f32.gmra.mrb[0].mxu0 %v1930
      %v2110 = vpop.f32.mrb[0].mxu0
      %v2111 = vadd.f32 0.0, %v2110
      %v2112 = vpop.f32.mrb[0].mxu0
      %2113 = vmatprep.mubr.f32.mxu0 0.0
      %2114 = vmatmul.mubr.f32.gmra.mrb[0].mxu0 %v1933
      %v2115 = vpop.f32.mrb[0].mxu0
      %v2116 = vadd.f32 0.0, %v2115
      %v2117 = vpop.f32.mrb[0].mxu0
      %2118 = vmatprep.mubr.f32.mxu0 0.0
      %2119 = vmatmul.mubr.f32.gmra.mrb[0].mxu0 %v1936
      %v2120 = vpop.f32.mrb[0].mxu0
      %v2121 = vadd.f32 0.0, %v2120
      %v2122 = vpop.f32.mrb[0].mxu0
      %2123 = vmatprep.mubr.f32.mxu0 0.0
      %2124 = vmatmul.mubr.f32.gmra.mrb[0].mxu0 %v1939
      %v2125 = vpop.f32.mrb[0].mxu0
      %v2126 = vadd.f32 0.0, %v2125
      %v2127 = vpop.f32.mrb[0].mxu0
      %2128 = vmatprep.mubr.f32.mxu0 0.0
      %2129 = vmatmul.mubr.f32.gmra.mrb[0].mxu0 %v1942
      %v2130 = vpop.f32.mrb[0].mxu0
      %v2131 = vadd.f32 0.0, %v2130
      %v2132 = vpop.f32.mrb[0].mxu0
      %2133 = vmatprep.mubr.f32.mxu0 0.0
      %2134 = vmatmul.mubr.f32.gmra.mrb[0].mxu0 %v1945
      %v2135 = vpop.f32.mrb[0].mxu0
      %v2136 = vadd.f32 0.0, %v2135
      %v2137 = vpop.f32.mrb[0].mxu0
      %2138 = vmatprep.mubr.f32.mxu0 0.0
      %2139 = vmatmul.mubr.f32.gmra.mrb[0].mxu0 %v1948
      %v2140 = vpop.f32.mrb[0].mxu0
      %v2141 = vadd.f32 0.0, %v2140
      %v2142 = vpop.f32.mrb[0].mxu0
      %2143 = vmatprep.mubr.f32.mxu0 0.0
      %2144 = vmatmul.mubr.f32.gmra.mrb[0].mxu0 %v1951
      %v2145 = vpop.f32.mrb[0].mxu0
      %v2146 = vadd.f32 0.0, %v2145
      %v2147 = vpop.f32.mrb[0].mxu0
      %2148 = vmatprep.mubr.f32.mxu0 0.0
      %2149 = vmatmul.mubr.f32.gmra.mrb[0].mxu0 %v1954
      %v2150 = vpop.f32.mrb[0].mxu0
      %v2151 = vadd.f32 0.0, %v2150
      %v2152 = vpop.f32.mrb[0].mxu0
      %2153 = vmatprep.mubr.f32.mxu0 0.0
      %2154 = vmatmul.mubr.f32.gmra.mrb[0].mxu0 %v1957
      %v2155 = vpop.f32.mrb[0].mxu0
      %v2156 = vadd.f32 0.0, %v2155
      %v2157 = vpop.f32.mrb[0].mxu0
      %2158 = vmatprep.mubr.f32.mxu0 0.0
      %2159 = vmatmul.mubr.f32.gmra.mrb[0].mxu0 %v1960
      %v2160 = vpop.f32.mrb[0].mxu0
      %v2161 = vadd.f32 0.0, %v2160
      %v2162 = vpop.f32.mrb[0].mxu0
      %2163 = vmatprep.mubr.f32.mxu0 0.0
      %2164 = vmatmul.mubr.f32.gmra.mrb[0].mxu0 %v1963
      %v2165 = vpop.f32.mrb[0].mxu0
      %v2166 = vadd.f32 0.0, %v2165
      %v2167 = vpop.f32.mrb[0].mxu0
      %2168 = vmatprep.mubr.f32.mxu0 0.0
      %2169 = vmatmul.mubr.f32.gmra.mrb[0].mxu0 %v1966
      %v2170 = vpop.f32.mrb[0].mxu0
      %v2171 = vadd.f32 0.0, %v2170
      %v2172 = vpop.f32.mrb[0].mxu0
      %2173 = vmatprep.mubr.f32.mxu0 0.0
      %2174 = vmatmul.mubr.f32.gmra.mrb[0].mxu0 %v1969
      %v2175 = vpop.f32.mrb[0].mxu0
      %v2176 = vadd.f32 0.0, %v2175
      %v2177 = vpop.f32.mrb[0].mxu0
      %2178 = vmatprep.mubr.f32.mxu0 0.0
      %2179 = vmatmul.mubr.f32.gmra.mrb[0].mxu0 %v1972
      %v2180 = vpop.f32.mrb[0].mxu0
      %v2181 = vadd.f32 0.0, %v2180
      %v2182 = vpop.f32.mrb[0].mxu0
      %2183 = vmatprep.mubr.f32.mxu0 0.0
      %2184 = vmatmul.mubr.f32.gmra.mrb[0].mxu0 %v1975
      %v2185 = vpop.f32.mrb[0].mxu0
      %v2186 = vadd.f32 0.0, %v2185
      %v2187 = vpop.f32.mrb[0].mxu0
      %2188 = vmatprep.mubr.f32.mxu0 0.0
      %2189 = vmatmul.mubr.f32.gmra.mrb[0].mxu0 %v1978
      %v2190 = vpop.f32.mrb[0].mxu0
      %v2191 = vadd.f32 0.0, %v2190
      %v2192 = vpop.f32.mrb[0].mxu0
      %2193 = vmatprep.mubr.f32.mxu0 0.0
      %2194 = vmatmul.mubr.f32.gmra.mrb[0].mxu0 %v1981
      %v2195 = vpop.f32.mrb[0].mxu0
      %v2196 = vadd.f32 0.0, %v2195
      %v2197 = vpop.f32.mrb[0].mxu0
      %2198 = vmatprep.mubr.f32.mxu0 0.0
      %2199 = vmatmul.mubr.f32.gmra.mrb[0].mxu0 %v1984
      %v2200 = vpop.f32.mrb[0].mxu0
      %v2201 = vadd.f32 0.0, %v2200
      %v2202 = vpop.f32.mrb[0].mxu0
      %2203 = vmatprep.mubr.f32.mxu0 0.0
      %2204 = vmatmul.mubr.f32.gmra.mrb[0].mxu0 %v1987
      %v2205 = vpop.f32.mrb[0].mxu0
      %v2206 = vadd.f32 0.0, %v2205
      %v2207 = vpop.f32.mrb[0].mxu0
      %2208 = vmatprep.mubr.f32.mxu0 0.0
      %2209 = vmatmul.mubr.f32.gmra.mrb[0].mxu0 %v1990
      %v2210 = vpop.f32.mrb[0].mxu0
      %v2211 = vadd.f32 0.0, %v2210
      %v2212 = vpop.f32.mrb[0].mxu0
      %2213 = vmatprep.mubr.f32.mxu0 0.0
      %2214 = vmatmul.mubr.f32.gmra.mrb[0].mxu0 %v1993
      %v2215 = vpop.f32.mrb[0].mxu0
      %v2216 = vadd.f32 0.0, %v2215
      %v2217 = vpop.f32.mrb[0].mxu0
      %2218 = vmatprep.mubr.f32.mxu0 0.0
      %2219 = vmatmul.mubr.f32.gmra.mrb[0].mxu0 %v1996
      %v2220 = vpop.f32.mrb[0].mxu0
      %v2221 = vadd.f32 0.0, %v2220
      %v2222 = vpop.f32.mrb[0].mxu0
      %2223 = vmatprep.mubr.f32.mxu0 0.0
      %2224 = vmatmul.mubr.f32.gmra.mrb[0].mxu0 %v1999
      %v2225 = vpop.f32.mrb[0].mxu0
      %v2226 = vadd.f32 0.0, %v2225
      %v2227 = vpop.f32.mrb[0].mxu0
      %2228 = vdwg.mxu0
      %v2229 = vld [vmem:[#allocation4] sm:$0xff]
      %v2230 = vld [vmem:[#allocation4 + $0x8] sm:$0xff]
      %v2231 = vld [vmem:[#allocation4 + $0x10] sm:$0xff]
      %v2232 = vld [vmem:[#allocation4 + $0x18] sm:$0xff]
      %v2233 = vld [vmem:[#allocation4 + $0x20] sm:$0xff]
      %v2234 = vld [vmem:[#allocation4 + $0x28] sm:$0xff]
      %v2235 = vld [vmem:[#allocation4 + $0x30] sm:$0xff]
      %v2236 = vld [vmem:[#allocation4 + $0x38] sm:$0xff]
      %v2237 = vld [vmem:[#allocation4 + $0x40] sm:$0xff]
      %v2238 = vld [vmem:[#allocation4 + $0x48] sm:$0xff]
      %v2239 = vld [vmem:[#allocation4 + $0x50] sm:$0xff]
      %v2240 = vld [vmem:[#allocation4 + $0x58] sm:$0xff]
      %v2241 = vld [vmem:[#allocation4 + $0x60] sm:$0xff]
      %v2242 = vld [vmem:[#allocation4 + $0x68] sm:$0xff]
      %v2243 = vld [vmem:[#allocation4 + $0x70] sm:$0xff]
      %v2244 = vld [vmem:[#allocation4 + $0x78] sm:$0xff]
      %v2245 = vld [vmem:[#allocation4 + $0x80] sm:$0xff]
      %v2246 = vld [vmem:[#allocation4 + $0x88] sm:$0xff]
      %v2247 = vld [vmem:[#allocation4 + $0x90] sm:$0xff]
      %v2248 = vld [vmem:[#allocation4 + $0x98] sm:$0xff]
      %v2249 = vld [vmem:[#allocation4 + $0xa0] sm:$0xff]
      %v2250 = vld [vmem:[#allocation4 + $0xa8] sm:$0xff]
      %v2251 = vld [vmem:[#allocation4 + $0xb0] sm:$0xff]
      %v2252 = vld [vmem:[#allocation4 + $0xb8] sm:$0xff]
      %v2253 = vld [vmem:[#allocation4 + $0xc0] sm:$0xff]
      %v2254 = vld [vmem:[#allocation4 + $0xc8] sm:$0xff]
      %v2255 = vld [vmem:[#allocation4 + $0xd0] sm:$0xff]
      %v2256 = vld [vmem:[#allocation4 + $0xd8] sm:$0xff]
      %v2257 = vld [vmem:[#allocation4 + $0xe0] sm:$0xff]
      %v2258 = vld [vmem:[#allocation4 + $0xe8] sm:$0xff]
      %v2259 = vld [vmem:[#allocation4 + $0xf0] sm:$0xff]
      %v2260 = vld [vmem:[#allocation4 + $0xf8] sm:$0xff]
      %v2261 = vadd.f32 %v2229, %v2071
      %v2262 = vadd.f32 %v2230, %v2076
      %v2263 = vadd.f32 %v2231, %v2081
      %v2264 = vadd.f32 %v2232, %v2086
      %v2265 = vadd.f32 %v2233, %v2091
      %v2266 = vadd.f32 %v2234, %v2096
      %v2267 = vadd.f32 %v2235, %v2101
      %v2268 = vadd.f32 %v2236, %v2106
      %v2269 = vadd.f32 %v2237, %v2111
      %v2270 = vadd.f32 %v2238, %v2116
      %v2271 = vadd.f32 %v2239, %v2121
      %v2272 = vadd.f32 %v2240, %v2126
      %v2273 = vadd.f32 %v2241, %v2131
      %v2274 = vadd.f32 %v2242, %v2136
      %v2275 = vadd.f32 %v2243, %v2141
      %v2276 = vadd.f32 %v2244, %v2146
      %v2277 = vadd.f32 %v2245, %v2151
      %v2278 = vadd.f32 %v2246, %v2156
      %v2279 = vadd.f32 %v2247, %v2161
      %v2280 = vadd.f32 %v2248, %v2166
      %v2281 = vadd.f32 %v2249, %v2171
      %v2282 = vadd.f32 %v2250, %v2176
      %v2283 = vadd.f32 %v2251, %v2181
      %v2284 = vadd.f32 %v2252, %v2186
      %v2285 = vadd.f32 %v2253, %v2191
      %v2286 = vadd.f32 %v2254, %v2196
      %v2287 = vadd.f32 %v2255, %v2201
      %v2288 = vadd.f32 %v2256, %v2206
      %v2289 = vadd.f32 %v2257, %v2211
      %v2290 = vadd.f32 %v2258, %v2216
      %v2291 = vadd.f32 %v2259, %v2221
      %v2292 = vadd.f32 %v2260, %v2226
      %2293 = vst.msk [vmem:[#allocation4] sm:$0xff] %vm352, %v2261
      %2294 = vst.msk [vmem:[#allocation4 + $0x8] sm:$0xff] %vm352, %v2262
      %2295 = vst.msk [vmem:[#allocation4 + $0x10] sm:$0xff] %vm352, %v2263
      %2296 = vst.msk [vmem:[#allocation4 + $0x18] sm:$0xff] %vm352, %v2264
      %2297 = vst.msk [vmem:[#allocation4 + $0x20] sm:$0xff] %vm352, %v2265
      %2298 = vst.msk [vmem:[#allocation4 + $0x28] sm:$0xff] %vm352, %v2266
      %2299 = vst.msk [vmem:[#allocation4 + $0x30] sm:$0xff] %vm352, %v2267
      %2300 = vst.msk [vmem:[#allocation4 + $0x38] sm:$0xff] %vm352, %v2268
      %2301 = vst.msk [vmem:[#allocation4 + $0x40] sm:$0xff] %vm352, %v2269
      %2302 = vst.msk [vmem:[#allocation4 + $0x48] sm:$0xff] %vm352, %v2270
      %2303 = vst.msk [vmem:[#allocation4 + $0x50] sm:$0xff] %vm352, %v2271
      %2304 = vst.msk [vmem:[#allocation4 + $0x58] sm:$0xff] %vm352, %v2272
      %2305 = vst.msk [vmem:[#allocation4 + $0x60] sm:$0xff] %vm352, %v2273
      %2306 = vst.msk [vmem:[#allocation4 + $0x68] sm:$0xff] %vm352, %v2274
      %2307 = vst.msk [vmem:[#allocation4 + $0x70] sm:$0xff] %vm352, %v2275
      %2308 = vst.msk [vmem:[#allocation4 + $0x78] sm:$0xff] %vm352, %v2276
      %2309 = vst.msk [vmem:[#allocation4 + $0x80] sm:$0xff] %vm352, %v2277
      %2310 = vst.msk [vmem:[#allocation4 + $0x88] sm:$0xff] %vm352, %v2278
      %2311 = vst.msk [vmem:[#allocation4 + $0x90] sm:$0xff] %vm352, %v2279
      %2312 = vst.msk [vmem:[#allocation4 + $0x98] sm:$0xff] %vm352, %v2280
      %2313 = vst.msk [vmem:[#allocation4 + $0xa0] sm:$0xff] %vm352, %v2281
      %2314 = vst.msk [vmem:[#allocation4 + $0xa8] sm:$0xff] %vm352, %v2282
      %2315 = vst.msk [vmem:[#allocation4 + $0xb0] sm:$0xff] %vm352, %v2283
      %2316 = vst.msk [vmem:[#allocation4 + $0xb8] sm:$0xff] %vm352, %v2284
      %2317 = vst.msk [vmem:[#allocation4 + $0xc0] sm:$0xff] %vm352, %v2285
      %2318 = vst.msk [vmem:[#allocation4 + $0xc8] sm:$0xff] %vm352, %v2286
      %2319 = vst.msk [vmem:[#allocation4 + $0xd0] sm:$0xff] %vm352, %v2287
      %2320 = vst.msk [vmem:[#allocation4 + $0xd8] sm:$0xff] %vm352, %v2288
      %2321 = vst.msk [vmem:[#allocation4 + $0xe0] sm:$0xff] %vm352, %v2289
      %2322 = vst.msk [vmem:[#allocation4 + $0xe8] sm:$0xff] %vm352, %v2290
      %2323 = vst.msk [vmem:[#allocation4 + $0xf0] sm:$0xff] %vm352, %v2291
      %2324 = vst.msk [vmem:[#allocation4 + $0xf8] sm:$0xff] %vm352, %v2292
      %v2325 = vld [vmem:[%s540 + $0x1] sm:$0xff]
      %v2326 = vld [vmem:[%s540 + $0x9] sm:$0xff]
      %v2327 = vld [vmem:[%s540 + $0x19] sm:$0xff]
      %v2328 = vld [vmem:[%s540 + $0x21] sm:$0xff]
      %v2329 = vld [vmem:[%s540 + $0x31] sm:$0xff]
      %v2330 = vld [vmem:[%s540 + $0x39] sm:$0xff]
      %v2331 = vld [vmem:[%s540 + $0x49] sm:$0xff]
      %v2332 = vld [vmem:[%s540 + $0x51] sm:$0xff]
      %v2333 = vld [vmem:[%s540 + $0x61] sm:$0xff]
      %v2334 = vld [vmem:[%s540 + $0x69] sm:$0xff]
      %v2335 = vld [vmem:[%s540 + $0x79] sm:$0xff]
      %v2336 = vld [vmem:[%s540 + $0x81] sm:$0xff]
      %v2337 = vld [vmem:[%s540 + $0x91] sm:$0xff]
      %v2338 = vld [vmem:[%s540 + $0x99] sm:$0xff]
      %v2339 = vld [vmem:[%s540 + $0xa9] sm:$0xff]
      %v2340 = vld [vmem:[%s540 + $0xb1] sm:$0xff]
      %v2341 = vld [vmem:[%s540 + $0xc1] sm:$0xff]
      %v2342 = vld [vmem:[%s540 + $0xc9] sm:$0xff]
      %v2343 = vld [vmem:[%s540 + $0xd9] sm:$0xff]
      %v2344 = vld [vmem:[%s540 + $0xe1] sm:$0xff]
      %v2345 = vld [vmem:[%s540 + $0xf1] sm:$0xff]
      %v2346 = vld [vmem:[%s540 + $0xf9] sm:$0xff]
      %v2347 = vld [vmem:[%s540 + $0x109] sm:$0xff]
      %v2348 = vld [vmem:[%s540 + $0x111] sm:$0xff]
      %v2349 = vld [vmem:[%s540 + $0x121] sm:$0xff]
      %v2350 = vld [vmem:[%s540 + $0x129] sm:$0xff]
      %v2351 = vld [vmem:[%s540 + $0x139] sm:$0xff]
      %v2352 = vld [vmem:[%s540 + $0x141] sm:$0xff]
      %v2353 = vld [vmem:[%s540 + $0x151] sm:$0xff]
      %v2354 = vld [vmem:[%s540 + $0x159] sm:$0xff]
      %v2355 = vld [vmem:[%s540 + $0x169] sm:$0xff]
      %v2356 = vld [vmem:[%s540 + $0x171] sm:$0xff]
      %s2357 = scalar_lea.vmem %s3, 16
      %v2358 = vld [vmem:[%s2357] sm:$0xf]
      %v2360 = vsel %vm306, %v2325, 0
      %v2363 = vsel %vm306, %v2326, 0
      %v2366 = vsel %vm306, %v2327, 0
      %v2369 = vsel %vm306, %v2328, 0
      %v2372 = vsel %vm306, %v2329, 0
      %v2375 = vsel %vm306, %v2330, 0
      %v2378 = vsel %vm306, %v2331, 0
      %v2381 = vsel %vm306, %v2332, 0
      %v2384 = vsel %vm306, %v2333, 0
      %v2387 = vsel %vm306, %v2334, 0
      %v2390 = vsel %vm306, %v2335, 0
      %v2393 = vsel %vm306, %v2336, 0
      %v2396 = vsel %vm306, %v2337, 0
      %v2399 = vsel %vm306, %v2338, 0
      %v2402 = vsel %vm306, %v2339, 0
      %v2405 = vsel %vm306, %v2340, 0
      %v2408 = vsel %vm306, %v2341, 0
      %v2411 = vsel %vm306, %v2342, 0
      %v2414 = vsel %vm306, %v2343, 0
      %v2417 = vsel %vm306, %v2344, 0
      %v2420 = vsel %vm306, %v2345, 0
      %v2423 = vsel %vm306, %v2346, 0
      %v2426 = vsel %vm306, %v2347, 0
      %v2429 = vsel %vm306, %v2348, 0
      %v2432 = vsel %vm306, %v2349, 0
      %v2435 = vsel %vm306, %v2350, 0
      %v2438 = vsel %vm306, %v2351, 0
      %v2441 = vsel %vm306, %v2352, 0
      %v2444 = vsel %vm306, %v2353, 0
      %v2447 = vsel %vm306, %v2354, 0
      %v2450 = vsel %vm306, %v2355, 0
      %v2453 = vsel %vm306, %v2356, 0
      %v2456 = vsel %vm702, %v2358, 0
      %2458 = vmatprep.subr.mxu0 0.0
      %2459 = vmatpush1.msra.mxu0 %v2456
      %2460 = vmatprep.subr.mxu0 0.0
      %2461 = vmatpush1.msra.mxu0 0.0
      %2462 = vmatprep.subr.mxu0 0.0
      %2463 = vmatpush1.msra.mxu0 0.0
      %2464 = vmatprep.subr.mxu0 0.0
      %2465 = vmatpush1.msra.mxu0 0.0
      %2466 = vmatprep.subr.mxu0 0.0
      %2467 = vmatpush1.msra.mxu0 0.0
      %2468 = vmatprep.subr.mxu0 0.0
      %2469 = vmatpush1.msra.mxu0 0.0
      %2470 = vmatprep.subr.mxu0 0.0
      %2471 = vmatpush1.msra.mxu0 0.0
      %2472 = vmatprep.subr.mxu0 0.0
      %2473 = vmatpush1.msra.mxu0 0.0
      %2474 = vmatprep.subr.mxu0 0.0
      %2475 = vmatpush1.msra.mxu0 0.0
      %2476 = vmatprep.subr.mxu0 0.0
      %2477 = vmatpush1.msra.mxu0 0.0
      %2478 = vmatprep.subr.mxu0 0.0
      %2479 = vmatpush1.msra.mxu0 0.0
      %2480 = vmatprep.subr.mxu0 0.0
      %2481 = vmatpush1.msra.mxu0 0.0
      %2482 = vmatprep.subr.mxu0 0.0
      %2483 = vmatpush1.msra.mxu0 0.0
      %2484 = vmatprep.subr.mxu0 0.0
      %2485 = vmatpush1.msra.mxu0 0.0
      %2486 = vmatprep.subr.mxu0 0.0
      %2487 = vmatpush1.msra.mxu0 0.0
      %2488 = vmatprep.subr.mxu0 0.0
      %2489 = vmatpush1.msra.mxu0 0.0
      %2490 = vmatprep.subr.mxu0 0.0
      %2491 = vmatpush1.msra.mxu0 0.0
      %2492 = vmatprep.subr.mxu0 0.0
      %2493 = vmatpush1.msra.mxu0 0.0
      %2494 = vmatprep.subr.mxu0 0.0
      %2495 = vmatpush1.msra.mxu0 0.0
      %2496 = vmatprep.subr.mxu0 0.0
      %2497 = vmatpush1.msra.mxu0 0.0
      %2498 = vmatprep.subr.mxu0 0.0
      %2499 = vmatpush1.msra.mxu0 0.0
      %2500 = vmatprep.subr.mxu0 0.0
      %2501 = vmatpush1.msra.mxu0 0.0
      %2502 = vmatprep.subr.mxu0 0.0
      %2503 = vmatpush1.msra.mxu0 0.0
      %2504 = vmatprep.subr.mxu0 0.0
      %2505 = vmatpush1.msra.mxu0 0.0
      %2506 = vmatprep.subr.mxu0 0.0
      %2507 = vmatpush1.msra.mxu0 0.0
      %2508 = vmatprep.subr.mxu0 0.0
      %2509 = vmatpush1.msra.mxu0 0.0
      %2510 = vmatprep.subr.mxu0 0.0
      %2511 = vmatpush1.msra.mxu0 0.0
      %2512 = vmatprep.subr.mxu0 0.0
      %2513 = vmatpush1.msra.mxu0 0.0
      %2514 = vmatprep.subr.mxu0 0.0
      %2515 = vmatpush1.msra.mxu0 0.0
      %2516 = vmatprep.subr.mxu0 0.0
      %2517 = vmatpush1.msra.mxu0 0.0
      %2518 = vmatprep.subr.mxu0 0.0
      %2519 = vmatpush1.msra.mxu0 0.0
      %2520 = vmatprep.subr.mxu0 0.0
      %2521 = vmatpush1.msra.mxu0 0.0
      %2522 = vmatprep.mubr.f32.mxu0 0.0
      %2523 = vmatmul.mubr.f32.gmra.mrb[0].mxu0 %v2360
      %v2524 = vpop.f32.mrb[0].mxu0
      %v2525 = vadd.f32 0.0, %v2524
      %v2526 = vpop.f32.mrb[0].mxu0
      %2527 = vmatprep.mubr.f32.mxu0 0.0
      %2528 = vmatmul.mubr.f32.gmra.mrb[0].mxu0 %v2363
      %v2529 = vpop.f32.mrb[0].mxu0
      %v2530 = vadd.f32 0.0, %v2529
      %v2531 = vpop.f32.mrb[0].mxu0
      %2532 = vmatprep.mubr.f32.mxu0 0.0
      %2533 = vmatmul.mubr.f32.gmra.mrb[0].mxu0 %v2366
      %v2534 = vpop.f32.mrb[0].mxu0
      %v2535 = vadd.f32 0.0, %v2534
      %v2536 = vpop.f32.mrb[0].mxu0
      %2537 = vmatprep.mubr.f32.mxu0 0.0
      %2538 = vmatmul.mubr.f32.gmra.mrb[0].mxu0 %v2369
      %v2539 = vpop.f32.mrb[0].mxu0
      %v2540 = vadd.f32 0.0, %v2539
      %v2541 = vpop.f32.mrb[0].mxu0
      %2542 = vmatprep.mubr.f32.mxu0 0.0
      %2543 = vmatmul.mubr.f32.gmra.mrb[0].mxu0 %v2372
      %v2544 = vpop.f32.mrb[0].mxu0
      %v2545 = vadd.f32 0.0, %v2544
      %v2546 = vpop.f32.mrb[0].mxu0
      %2547 = vmatprep.mubr.f32.mxu0 0.0
      %2548 = vmatmul.mubr.f32.gmra.mrb[0].mxu0 %v2375
      %v2549 = vpop.f32.mrb[0].mxu0
      %v2550 = vadd.f32 0.0, %v2549
      %v2551 = vpop.f32.mrb[0].mxu0
      %2552 = vmatprep.mubr.f32.mxu0 0.0
      %2553 = vmatmul.mubr.f32.gmra.mrb[0].mxu0 %v2378
      %v2554 = vpop.f32.mrb[0].mxu0
      %v2555 = vadd.f32 0.0, %v2554
      %v2556 = vpop.f32.mrb[0].mxu0
      %2557 = vmatprep.mubr.f32.mxu0 0.0
      %2558 = vmatmul.mubr.f32.gmra.mrb[0].mxu0 %v2381
      %v2559 = vpop.f32.mrb[0].mxu0
      %v2560 = vadd.f32 0.0, %v2559
      %v2561 = vpop.f32.mrb[0].mxu0
      %2562 = vmatprep.mubr.f32.mxu0 0.0
      %2563 = vmatmul.mubr.f32.gmra.mrb[0].mxu0 %v2384
      %v2564 = vpop.f32.mrb[0].mxu0
      %v2565 = vadd.f32 0.0, %v2564
      %v2566 = vpop.f32.mrb[0].mxu0
      %2567 = vmatprep.mubr.f32.mxu0 0.0
      %2568 = vmatmul.mubr.f32.gmra.mrb[0].mxu0 %v2387
      %v2569 = vpop.f32.mrb[0].mxu0
      %v2570 = vadd.f32 0.0, %v2569
      %v2571 = vpop.f32.mrb[0].mxu0
      %2572 = vmatprep.mubr.f32.mxu0 0.0
      %2573 = vmatmul.mubr.f32.gmra.mrb[0].mxu0 %v2390
      %v2574 = vpop.f32.mrb[0].mxu0
      %v2575 = vadd.f32 0.0, %v2574
      %v2576 = vpop.f32.mrb[0].mxu0
      %2577 = vmatprep.mubr.f32.mxu0 0.0
      %2578 = vmatmul.mubr.f32.gmra.mrb[0].mxu0 %v2393
      %v2579 = vpop.f32.mrb[0].mxu0
      %v2580 = vadd.f32 0.0, %v2579
      %v2581 = vpop.f32.mrb[0].mxu0
      %2582 = vmatprep.mubr.f32.mxu0 0.0
      %2583 = vmatmul.mubr.f32.gmra.mrb[0].mxu0 %v2396
      %v2584 = vpop.f32.mrb[0].mxu0
      %v2585 = vadd.f32 0.0, %v2584
      %v2586 = vpop.f32.mrb[0].mxu0
      %2587 = vmatprep.mubr.f32.mxu0 0.0
      %2588 = vmatmul.mubr.f32.gmra.mrb[0].mxu0 %v2399
      %v2589 = vpop.f32.mrb[0].mxu0
      %v2590 = vadd.f32 0.0, %v2589
      %v2591 = vpop.f32.mrb[0].mxu0
      %2592 = vmatprep.mubr.f32.mxu0 0.0
      %2593 = vmatmul.mubr.f32.gmra.mrb[0].mxu0 %v2402
      %v2594 = vpop.f32.mrb[0].mxu0
      %v2595 = vadd.f32 0.0, %v2594
      %v2596 = vpop.f32.mrb[0].mxu0
      %2597 = vmatprep.mubr.f32.mxu0 0.0
      %2598 = vmatmul.mubr.f32.gmra.mrb[0].mxu0 %v2405
      %v2599 = vpop.f32.mrb[0].mxu0
      %v2600 = vadd.f32 0.0, %v2599
      %v2601 = vpop.f32.mrb[0].mxu0
      %2602 = vmatprep.mubr.f32.mxu0 0.0
      %2603 = vmatmul.mubr.f32.gmra.mrb[0].mxu0 %v2408
      %v2604 = vpop.f32.mrb[0].mxu0
      %v2605 = vadd.f32 0.0, %v2604
      %v2606 = vpop.f32.mrb[0].mxu0
      %2607 = vmatprep.mubr.f32.mxu0 0.0
      %2608 = vmatmul.mubr.f32.gmra.mrb[0].mxu0 %v2411
      %v2609 = vpop.f32.mrb[0].mxu0
      %v2610 = vadd.f32 0.0, %v2609
      %v2611 = vpop.f32.mrb[0].mxu0
      %2612 = vmatprep.mubr.f32.mxu0 0.0
      %2613 = vmatmul.mubr.f32.gmra.mrb[0].mxu0 %v2414
      %v2614 = vpop.f32.mrb[0].mxu0
      %v2615 = vadd.f32 0.0, %v2614
      %v2616 = vpop.f32.mrb[0].mxu0
      %2617 = vmatprep.mubr.f32.mxu0 0.0
      %2618 = vmatmul.mubr.f32.gmra.mrb[0].mxu0 %v2417
      %v2619 = vpop.f32.mrb[0].mxu0
      %v2620 = vadd.f32 0.0, %v2619
      %v2621 = vpop.f32.mrb[0].mxu0
      %2622 = vmatprep.mubr.f32.mxu0 0.0
      %2623 = vmatmul.mubr.f32.gmra.mrb[0].mxu0 %v2420
      %v2624 = vpop.f32.mrb[0].mxu0
      %v2625 = vadd.f32 0.0, %v2624
      %v2626 = vpop.f32.mrb[0].mxu0
      %2627 = vmatprep.mubr.f32.mxu0 0.0
      %2628 = vmatmul.mubr.f32.gmra.mrb[0].mxu0 %v2423
      %v2629 = vpop.f32.mrb[0].mxu0
      %v2630 = vadd.f32 0.0, %v2629
      %v2631 = vpop.f32.mrb[0].mxu0
      %2632 = vmatprep.mubr.f32.mxu0 0.0
      %2633 = vmatmul.mubr.f32.gmra.mrb[0].mxu0 %v2426
      %v2634 = vpop.f32.mrb[0].mxu0
      %v2635 = vadd.f32 0.0, %v2634
      %v2636 = vpop.f32.mrb[0].mxu0
      %2637 = vmatprep.mubr.f32.mxu0 0.0
      %2638 = vmatmul.mubr.f32.gmra.mrb[0].mxu0 %v2429
      %v2639 = vpop.f32.mrb[0].mxu0
      %v2640 = vadd.f32 0.0, %v2639
      %v2641 = vpop.f32.mrb[0].mxu0
      %2642 = vmatprep.mubr.f32.mxu0 0.0
      %2643 = vmatmul.mubr.f32.gmra.mrb[0].mxu0 %v2432
      %v2644 = vpop.f32.mrb[0].mxu0
      %v2645 = vadd.f32 0.0, %v2644
      %v2646 = vpop.f32.mrb[0].mxu0
      %2647 = vmatprep.mubr.f32.mxu0 0.0
      %2648 = vmatmul.mubr.f32.gmra.mrb[0].mxu0 %v2435
      %v2649 = vpop.f32.mrb[0].mxu0
      %v2650 = vadd.f32 0.0, %v2649
      %v2651 = vpop.f32.mrb[0].mxu0
      %2652 = vmatprep.mubr.f32.mxu0 0.0
      %2653 = vmatmul.mubr.f32.gmra.mrb[0].mxu0 %v2438
      %v2654 = vpop.f32.mrb[0].mxu0
      %v2655 = vadd.f32 0.0, %v2654
      %v2656 = vpop.f32.mrb[0].mxu0
      %2657 = vmatprep.mubr.f32.mxu0 0.0
      %2658 = vmatmul.mubr.f32.gmra.mrb[0].mxu0 %v2441
      %v2659 = vpop.f32.mrb[0].mxu0
      %v2660 = vadd.f32 0.0, %v2659
      %v2661 = vpop.f32.mrb[0].mxu0
      %2662 = vmatprep.mubr.f32.mxu0 0.0
      %2663 = vmatmul.mubr.f32.gmra.mrb[0].mxu0 %v2444
      %v2664 = vpop.f32.mrb[0].mxu0
      %v2665 = vadd.f32 0.0, %v2664
      %v2666 = vpop.f32.mrb[0].mxu0
      %2667 = vmatprep.mubr.f32.mxu0 0.0
      %2668 = vmatmul.mubr.f32.gmra.mrb[0].mxu0 %v2447
      %v2669 = vpop.f32.mrb[0].mxu0
      %v2670 = vadd.f32 0.0, %v2669
      %v2671 = vpop.f32.mrb[0].mxu0
      %2672 = vmatprep.mubr.f32.mxu0 0.0
      %2673 = vmatmul.mubr.f32.gmra.mrb[0].mxu0 %v2450
      %v2674 = vpop.f32.mrb[0].mxu0
      %v2675 = vadd.f32 0.0, %v2674
      %v2676 = vpop.f32.mrb[0].mxu0
      %2677 = vmatprep.mubr.f32.mxu0 0.0
      %2678 = vmatmul.mubr.f32.gmra.mrb[0].mxu0 %v2453
      %v2679 = vpop.f32.mrb[0].mxu0
      %v2680 = vadd.f32 0.0, %v2679
      %v2681 = vpop.f32.mrb[0].mxu0
      %2682 = vdwg.mxu0
      %v2683 = vld [vmem:[#allocation4] sm:$0xff]
      %v2684 = vld [vmem:[#allocation4 + $0x8] sm:$0xff]
      %v2685 = vld [vmem:[#allocation4 + $0x10] sm:$0xff]
      %v2686 = vld [vmem:[#allocation4 + $0x18] sm:$0xff]
      %v2687 = vld [vmem:[#allocation4 + $0x20] sm:$0xff]
      %v2688 = vld [vmem:[#allocation4 + $0x28] sm:$0xff]
      %v2689 = vld [vmem:[#allocation4 + $0x30] sm:$0xff]
      %v2690 = vld [vmem:[#allocation4 + $0x38] sm:$0xff]
      %v2691 = vld [vmem:[#allocation4 + $0x40] sm:$0xff]
      %v2692 = vld [vmem:[#allocation4 + $0x48] sm:$0xff]
      %v2693 = vld [vmem:[#allocation4 + $0x50] sm:$0xff]
      %v2694 = vld [vmem:[#allocation4 + $0x58] sm:$0xff]
      %v2695 = vld [vmem:[#allocation4 + $0x60] sm:$0xff]
      %v2696 = vld [vmem:[#allocation4 + $0x68] sm:$0xff]
      %v2697 = vld [vmem:[#allocation4 + $0x70] sm:$0xff]
      %v2698 = vld [vmem:[#allocation4 + $0x78] sm:$0xff]
      %v2699 = vld [vmem:[#allocation4 + $0x80] sm:$0xff]
      %v2700 = vld [vmem:[#allocation4 + $0x88] sm:$0xff]
      %v2701 = vld [vmem:[#allocation4 + $0x90] sm:$0xff]
      %v2702 = vld [vmem:[#allocation4 + $0x98] sm:$0xff]
      %v2703 = vld [vmem:[#allocation4 + $0xa0] sm:$0xff]
      %v2704 = vld [vmem:[#allocation4 + $0xa8] sm:$0xff]
      %v2705 = vld [vmem:[#allocation4 + $0xb0] sm:$0xff]
      %v2706 = vld [vmem:[#allocation4 + $0xb8] sm:$0xff]
      %v2707 = vld [vmem:[#allocation4 + $0xc0] sm:$0xff]
      %v2708 = vld [vmem:[#allocation4 + $0xc8] sm:$0xff]
      %v2709 = vld [vmem:[#allocation4 + $0xd0] sm:$0xff]
      %v2710 = vld [vmem:[#allocation4 + $0xd8] sm:$0xff]
      %v2711 = vld [vmem:[#allocation4 + $0xe0] sm:$0xff]
      %v2712 = vld [vmem:[#allocation4 + $0xe8] sm:$0xff]
      %v2713 = vld [vmem:[#allocation4 + $0xf0] sm:$0xff]
      %v2714 = vld [vmem:[#allocation4 + $0xf8] sm:$0xff]
      %v2715 = vadd.f32 %v2683, %v2525
      %v2716 = vadd.f32 %v2684, %v2530
      %v2717 = vadd.f32 %v2685, %v2535
      %v2718 = vadd.f32 %v2686, %v2540
      %v2719 = vadd.f32 %v2687, %v2545
      %v2720 = vadd.f32 %v2688, %v2550
      %v2721 = vadd.f32 %v2689, %v2555
      %v2722 = vadd.f32 %v2690, %v2560
      %v2723 = vadd.f32 %v2691, %v2565
      %v2724 = vadd.f32 %v2692, %v2570
      %v2725 = vadd.f32 %v2693, %v2575
      %v2726 = vadd.f32 %v2694, %v2580
      %v2727 = vadd.f32 %v2695, %v2585
      %v2728 = vadd.f32 %v2696, %v2590
      %v2729 = vadd.f32 %v2697, %v2595
      %v2730 = vadd.f32 %v2698, %v2600
      %v2731 = vadd.f32 %v2699, %v2605
      %v2732 = vadd.f32 %v2700, %v2610
      %v2733 = vadd.f32 %v2701, %v2615
      %v2734 = vadd.f32 %v2702, %v2620
      %v2735 = vadd.f32 %v2703, %v2625
      %v2736 = vadd.f32 %v2704, %v2630
      %v2737 = vadd.f32 %v2705, %v2635
      %v2738 = vadd.f32 %v2706, %v2640
      %v2739 = vadd.f32 %v2707, %v2645
      %v2740 = vadd.f32 %v2708, %v2650
      %v2741 = vadd.f32 %v2709, %v2655
      %v2742 = vadd.f32 %v2710, %v2660
      %v2743 = vadd.f32 %v2711, %v2665
      %v2744 = vadd.f32 %v2712, %v2670
      %v2745 = vadd.f32 %v2713, %v2675
      %v2746 = vadd.f32 %v2714, %v2680
      %2747 = vst.msk [vmem:[#allocation4] sm:$0xff] %vm352, %v2715
      %2748 = vst.msk [vmem:[#allocation4 + $0x8] sm:$0xff] %vm352, %v2716
      %2749 = vst.msk [vmem:[#allocation4 + $0x10] sm:$0xff] %vm352, %v2717
      %2750 = vst.msk [vmem:[#allocation4 + $0x18] sm:$0xff] %vm352, %v2718
      %2751 = vst.msk [vmem:[#allocation4 + $0x20] sm:$0xff] %vm352, %v2719
      %2752 = vst.msk [vmem:[#allocation4 + $0x28] sm:$0xff] %vm352, %v2720
      %2753 = vst.msk [vmem:[#allocation4 + $0x30] sm:$0xff] %vm352, %v2721
      %2754 = vst.msk [vmem:[#allocation4 + $0x38] sm:$0xff] %vm352, %v2722
      %2755 = vst.msk [vmem:[#allocation4 + $0x40] sm:$0xff] %vm352, %v2723
      %2756 = vst.msk [vmem:[#allocation4 + $0x48] sm:$0xff] %vm352, %v2724
      %2757 = vst.msk [vmem:[#allocation4 + $0x50] sm:$0xff] %vm352, %v2725
      %2758 = vst.msk [vmem:[#allocation4 + $0x58] sm:$0xff] %vm352, %v2726
      %2759 = vst.msk [vmem:[#allocation4 + $0x60] sm:$0xff] %vm352, %v2727
      %2760 = vst.msk [vmem:[#allocation4 + $0x68] sm:$0xff] %vm352, %v2728
      %2761 = vst.msk [vmem:[#allocation4 + $0x70] sm:$0xff] %vm352, %v2729
      %2762 = vst.msk [vmem:[#allocation4 + $0x78] sm:$0xff] %vm352, %v2730
      %2763 = vst.msk [vmem:[#allocation4 + $0x80] sm:$0xff] %vm352, %v2731
      %2764 = vst.msk [vmem:[#allocation4 + $0x88] sm:$0xff] %vm352, %v2732
      %2765 = vst.msk [vmem:[#allocation4 + $0x90] sm:$0xff] %vm352, %v2733
      %2766 = vst.msk [vmem:[#allocation4 + $0x98] sm:$0xff] %vm352, %v2734
      %2767 = vst.msk [vmem:[#allocation4 + $0xa0] sm:$0xff] %vm352, %v2735
      %2768 = vst.msk [vmem:[#allocation4 + $0xa8] sm:$0xff] %vm352, %v2736
      %2769 = vst.msk [vmem:[#allocation4 + $0xb0] sm:$0xff] %vm352, %v2737
      %2770 = vst.msk [vmem:[#allocation4 + $0xb8] sm:$0xff] %vm352, %v2738
      %2771 = vst.msk [vmem:[#allocation4 + $0xc0] sm:$0xff] %vm352, %v2739
      %2772 = vst.msk [vmem:[#allocation4 + $0xc8] sm:$0xff] %vm352, %v2740
      %2773 = vst.msk [vmem:[#allocation4 + $0xd0] sm:$0xff] %vm352, %v2741
      %2774 = vst.msk [vmem:[#allocation4 + $0xd8] sm:$0xff] %vm352, %v2742
      %2775 = vst.msk [vmem:[#allocation4 + $0xe0] sm:$0xff] %vm352, %v2743
      %2776 = vst.msk [vmem:[#allocation4 + $0xe8] sm:$0xff] %vm352, %v2744
      %2777 = vst.msk [vmem:[#allocation4 + $0xf0] sm:$0xff] %vm352, %v2745
      %2778 = vst.msk [vmem:[#allocation4 + $0xf8] sm:$0xff] %vm352, %v2746
      %v2779 = vld [vmem:[%s540 + $0x2] sm:$0xff]
      %v2780 = vld [vmem:[%s540 + $0xa] sm:$0xff]
      %v2781 = vld [vmem:[%s540 + $0x1a] sm:$0xff]
      %v2782 = vld [vmem:[%s540 + $0x22] sm:$0xff]
      %v2783 = vld [vmem:[%s540 + $0x32] sm:$0xff]
      %v2784 = vld [vmem:[%s540 + $0x3a] sm:$0xff]
      %v2785 = vld [vmem:[%s540 + $0x4a] sm:$0xff]
      %v2786 = vld [vmem:[%s540 + $0x52] sm:$0xff]
      %v2787 = vld [vmem:[%s540 + $0x62] sm:$0xff]
      %v2788 = vld [vmem:[%s540 + $0x6a] sm:$0xff]
      %v2789 = vld [vmem:[%s540 + $0x7a] sm:$0xff]
      %v2790 = vld [vmem:[%s540 + $0x82] sm:$0xff]
      %v2791 = vld [vmem:[%s540 + $0x92] sm:$0xff]
      %v2792 = vld [vmem:[%s540 + $0x9a] sm:$0xff]
      %v2793 = vld [vmem:[%s540 + $0xaa] sm:$0xff]
      %v2794 = vld [vmem:[%s540 + $0xb2] sm:$0xff]
      %v2795 = vld [vmem:[%s540 + $0xc2] sm:$0xff]
      %v2796 = vld [vmem:[%s540 + $0xca] sm:$0xff]
      %v2797 = vld [vmem:[%s540 + $0xda] sm:$0xff]
      %v2798 = vld [vmem:[%s540 + $0xe2] sm:$0xff]
      %v2799 = vld [vmem:[%s540 + $0xf2] sm:$0xff]
      %v2800 = vld [vmem:[%s540 + $0xfa] sm:$0xff]
      %v2801 = vld [vmem:[%s540 + $0x10a] sm:$0xff]
      %v2802 = vld [vmem:[%s540 + $0x112] sm:$0xff]
      %v2803 = vld [vmem:[%s540 + $0x122] sm:$0xff]
      %v2804 = vld [vmem:[%s540 + $0x12a] sm:$0xff]
      %v2805 = vld [vmem:[%s540 + $0x13a] sm:$0xff]
      %v2806 = vld [vmem:[%s540 + $0x142] sm:$0xff]
      %v2807 = vld [vmem:[%s540 + $0x152] sm:$0xff]
      %v2808 = vld [vmem:[%s540 + $0x15a] sm:$0xff]
      %v2809 = vld [vmem:[%s540 + $0x16a] sm:$0xff]
      %v2810 = vld [vmem:[%s540 + $0x172] sm:$0xff]
      %s2811 = scalar_lea.vmem %s3, 20
      %v2812 = vld [vmem:[%s2811] sm:$0xf]
      %v2814 = vsel %vm306, %v2779, 0
      %v2817 = vsel %vm306, %v2780, 0
      %v2820 = vsel %vm306, %v2781, 0
      %v2823 = vsel %vm306, %v2782, 0
      %v2826 = vsel %vm306, %v2783, 0
      %v2829 = vsel %vm306, %v2784, 0
      %v2832 = vsel %vm306, %v2785, 0
      %v2835 = vsel %vm306, %v2786, 0
      %v2838 = vsel %vm306, %v2787, 0
      %v2841 = vsel %vm306, %v2788, 0
      %v2844 = vsel %vm306, %v2789, 0
      %v2847 = vsel %vm306, %v2790, 0
      %v2850 = vsel %vm306, %v2791, 0
      %v2853 = vsel %vm306, %v2792, 0
      %v2856 = vsel %vm306, %v2793, 0
      %v2859 = vsel %vm306, %v2794, 0
      %v2862 = vsel %vm306, %v2795, 0
      %v2865 = vsel %vm306, %v2796, 0
      %v2868 = vsel %vm306, %v2797, 0
      %v2871 = vsel %vm306, %v2798, 0
      %v2874 = vsel %vm306, %v2799, 0
      %v2877 = vsel %vm306, %v2800, 0
      %v2880 = vsel %vm306, %v2801, 0
      %v2883 = vsel %vm306, %v2802, 0
      %v2886 = vsel %vm306, %v2803, 0
      %v2889 = vsel %vm306, %v2804, 0
      %v2892 = vsel %vm306, %v2805, 0
      %v2895 = vsel %vm306, %v2806, 0
      %v2898 = vsel %vm306, %v2807, 0
      %v2901 = vsel %vm306, %v2808, 0
      %v2904 = vsel %vm306, %v2809, 0
      %v2907 = vsel %vm306, %v2810, 0
      %v2910 = vsel %vm702, %v2812, 0
      %2912 = vmatprep.subr.mxu0 0.0
      %2913 = vmatpush1.msra.mxu0 %v2910
      %2914 = vmatprep.subr.mxu0 0.0
      %2915 = vmatpush1.msra.mxu0 0.0
      %2916 = vmatprep.subr.mxu0 0.0
      %2917 = vmatpush1.msra.mxu0 0.0
      %2918 = vmatprep.subr.mxu0 0.0
      %2919 = vmatpush1.msra.mxu0 0.0
      %2920 = vmatprep.subr.mxu0 0.0
      %2921 = vmatpush1.msra.mxu0 0.0
      %2922 = vmatprep.subr.mxu0 0.0
      %2923 = vmatpush1.msra.mxu0 0.0
      %2924 = vmatprep.subr.mxu0 0.0
      %2925 = vmatpush1.msra.mxu0 0.0
      %2926 = vmatprep.subr.mxu0 0.0
      %2927 = vmatpush1.msra.mxu0 0.0
      %2928 = vmatprep.subr.mxu0 0.0
      %2929 = vmatpush1.msra.mxu0 0.0
      %2930 = vmatprep.subr.mxu0 0.0
      %2931 = vmatpush1.msra.mxu0 0.0
      %2932 = vmatprep.subr.mxu0 0.0
      %2933 = vmatpush1.msra.mxu0 0.0
      %2934 = vmatprep.subr.mxu0 0.0
      %2935 = vmatpush1.msra.mxu0 0.0
      %2936 = vmatprep.subr.mxu0 0.0
      %2937 = vmatpush1.msra.mxu0 0.0
      %2938 = vmatprep.subr.mxu0 0.0
      %2939 = vmatpush1.msra.mxu0 0.0
      %2940 = vmatprep.subr.mxu0 0.0
      %2941 = vmatpush1.msra.mxu0 0.0
      %2942 = vmatprep.subr.mxu0 0.0
      %2943 = vmatpush1.msra.mxu0 0.0
      %2944 = vmatprep.subr.mxu0 0.0
      %2945 = vmatpush1.msra.mxu0 0.0
      %2946 = vmatprep.subr.mxu0 0.0
      %2947 = vmatpush1.msra.mxu0 0.0
      %2948 = vmatprep.subr.mxu0 0.0
      %2949 = vmatpush1.msra.mxu0 0.0
      %2950 = vmatprep.subr.mxu0 0.0
      %2951 = vmatpush1.msra.mxu0 0.0
      %2952 = vmatprep.subr.mxu0 0.0
      %2953 = vmatpush1.msra.mxu0 0.0
      %2954 = vmatprep.subr.mxu0 0.0
      %2955 = vmatpush1.msra.mxu0 0.0
      %2956 = vmatprep.subr.mxu0 0.0
      %2957 = vmatpush1.msra.mxu0 0.0
      %2958 = vmatprep.subr.mxu0 0.0
      %2959 = vmatpush1.msra.mxu0 0.0
      %2960 = vmatprep.subr.mxu0 0.0
      %2961 = vmatpush1.msra.mxu0 0.0
      %2962 = vmatprep.subr.mxu0 0.0
      %2963 = vmatpush1.msra.mxu0 0.0
      %2964 = vmatprep.subr.mxu0 0.0
      %2965 = vmatpush1.msra.mxu0 0.0
      %2966 = vmatprep.subr.mxu0 0.0
      %2967 = vmatpush1.msra.mxu0 0.0
      %2968 = vmatprep.subr.mxu0 0.0
      %2969 = vmatpush1.msra.mxu0 0.0
      %2970 = vmatprep.subr.mxu0 0.0
      %2971 = vmatpush1.msra.mxu0 0.0
      %2972 = vmatprep.subr.mxu0 0.0
      %2973 = vmatpush1.msra.mxu0 0.0
      %2974 = vmatprep.subr.mxu0 0.0
      %2975 = vmatpush1.msra.mxu0 0.0
      %2976 = vmatprep.mubr.f32.mxu0 0.0
      %2977 = vmatmul.mubr.f32.gmra.mrb[0].mxu0 %v2814
      %v2978 = vpop.f32.mrb[0].mxu0
      %v2979 = vadd.f32 0.0, %v2978
      %v2980 = vpop.f32.mrb[0].mxu0
      %2981 = vmatprep.mubr.f32.mxu0 0.0
      %2982 = vmatmul.mubr.f32.gmra.mrb[0].mxu0 %v2817
      %v2983 = vpop.f32.mrb[0].mxu0
      %v2984 = vadd.f32 0.0, %v2983
      %v2985 = vpop.f32.mrb[0].mxu0
      %2986 = vmatprep.mubr.f32.mxu0 0.0
      %2987 = vmatmul.mubr.f32.gmra.mrb[0].mxu0 %v2820
      %v2988 = vpop.f32.mrb[0].mxu0
      %v2989 = vadd.f32 0.0, %v2988
      %v2990 = vpop.f32.mrb[0].mxu0
      %2991 = vmatprep.mubr.f32.mxu0 0.0
      %2992 = vmatmul.mubr.f32.gmra.mrb[0].mxu0 %v2823
      %v2993 = vpop.f32.mrb[0].mxu0
      %v2994 = vadd.f32 0.0, %v2993
      %v2995 = vpop.f32.mrb[0].mxu0
      %2996 = vmatprep.mubr.f32.mxu0 0.0
      %2997 = vmatmul.mubr.f32.gmra.mrb[0].mxu0 %v2826
      %v2998 = vpop.f32.mrb[0].mxu0
      %v2999 = vadd.f32 0.0, %v2998
      %v3000 = vpop.f32.mrb[0].mxu0
      %3001 = vmatprep.mubr.f32.mxu0 0.0
      %3002 = vmatmul.mubr.f32.gmra.mrb[0].mxu0 %v2829
      %v3003 = vpop.f32.mrb[0].mxu0
      %v3004 = vadd.f32 0.0, %v3003
      %v3005 = vpop.f32.mrb[0].mxu0
      %3006 = vmatprep.mubr.f32.mxu0 0.0
      %3007 = vmatmul.mubr.f32.gmra.mrb[0].mxu0 %v2832
      %v3008 = vpop.f32.mrb[0].mxu0
      %v3009 = vadd.f32 0.0, %v3008
      %v3010 = vpop.f32.mrb[0].mxu0
      %3011 = vmatprep.mubr.f32.mxu0 0.0
      %3012 = vmatmul.mubr.f32.gmra.mrb[0].mxu0 %v2835
      %v3013 = vpop.f32.mrb[0].mxu0
      %v3014 = vadd.f32 0.0, %v3013
      %v3015 = vpop.f32.mrb[0].mxu0
      %3016 = vmatprep.mubr.f32.mxu0 0.0
      %3017 = vmatmul.mubr.f32.gmra.mrb[0].mxu0 %v2838
      %v3018 = vpop.f32.mrb[0].mxu0
      %v3019 = vadd.f32 0.0, %v3018
      %v3020 = vpop.f32.mrb[0].mxu0
      %3021 = vmatprep.mubr.f32.mxu0 0.0
      %3022 = vmatmul.mubr.f32.gmra.mrb[0].mxu0 %v2841
      %v3023 = vpop.f32.mrb[0].mxu0
      %v3024 = vadd.f32 0.0, %v3023
      %v3025 = vpop.f32.mrb[0].mxu0
      %3026 = vmatprep.mubr.f32.mxu0 0.0
      %3027 = vmatmul.mubr.f32.gmra.mrb[0].mxu0 %v2844
      %v3028 = vpop.f32.mrb[0].mxu0
      %v3029 = vadd.f32 0.0, %v3028
      %v3030 = vpop.f32.mrb[0].mxu0
      %3031 = vmatprep.mubr.f32.mxu0 0.0
      %3032 = vmatmul.mubr.f32.gmra.mrb[0].mxu0 %v2847
      %v3033 = vpop.f32.mrb[0].mxu0
      %v3034 = vadd.f32 0.0, %v3033
      %v3035 = vpop.f32.mrb[0].mxu0
      %3036 = vmatprep.mubr.f32.mxu0 0.0
      %3037 = vmatmul.mubr.f32.gmra.mrb[0].mxu0 %v2850
      %v3038 = vpop.f32.mrb[0].mxu0
      %v3039 = vadd.f32 0.0, %v3038
      %v3040 = vpop.f32.mrb[0].mxu0
      %3041 = vmatprep.mubr.f32.mxu0 0.0
      %3042 = vmatmul.mubr.f32.gmra.mrb[0].mxu0 %v2853
      %v3043 = vpop.f32.mrb[0].mxu0
      %v3044 = vadd.f32 0.0, %v3043
      %v3045 = vpop.f32.mrb[0].mxu0
      %3046 = vmatprep.mubr.f32.mxu0 0.0
      %3047 = vmatmul.mubr.f32.gmra.mrb[0].mxu0 %v2856
      %v3048 = vpop.f32.mrb[0].mxu0
      %v3049 = vadd.f32 0.0, %v3048
      %v3050 = vpop.f32.mrb[0].mxu0
      %3051 = vmatprep.mubr.f32.mxu0 0.0
      %3052 = vmatmul.mubr.f32.gmra.mrb[0].mxu0 %v2859
      %v3053 = vpop.f32.mrb[0].mxu0
      %v3054 = vadd.f32 0.0, %v3053
      %v3055 = vpop.f32.mrb[0].mxu0
      %3056 = vmatprep.mubr.f32.mxu0 0.0
      %3057 = vmatmul.mubr.f32.gmra.mrb[0].mxu0 %v2862
      %v3058 = vpop.f32.mrb[0].mxu0
      %v3059 = vadd.f32 0.0, %v3058
      %v3060 = vpop.f32.mrb[0].mxu0
      %3061 = vmatprep.mubr.f32.mxu0 0.0
      %3062 = vmatmul.mubr.f32.gmra.mrb[0].mxu0 %v2865
      %v3063 = vpop.f32.mrb[0].mxu0
      %v3064 = vadd.f32 0.0, %v3063
      %v3065 = vpop.f32.mrb[0].mxu0
      %3066 = vmatprep.mubr.f32.mxu0 0.0
      %3067 = vmatmul.mubr.f32.gmra.mrb[0].mxu0 %v2868
      %v3068 = vpop.f32.mrb[0].mxu0
      %v3069 = vadd.f32 0.0, %v3068
      %v3070 = vpop.f32.mrb[0].mxu0
      %3071 = vmatprep.mubr.f32.mxu0 0.0
      %3072 = vmatmul.mubr.f32.gmra.mrb[0].mxu0 %v2871
      %v3073 = vpop.f32.mrb[0].mxu0
      %v3074 = vadd.f32 0.0, %v3073
      %v3075 = vpop.f32.mrb[0].mxu0
      %3076 = vmatprep.mubr.f32.mxu0 0.0
      %3077 = vmatmul.mubr.f32.gmra.mrb[0].mxu0 %v2874
      %v3078 = vpop.f32.mrb[0].mxu0
      %v3079 = vadd.f32 0.0, %v3078
      %v3080 = vpop.f32.mrb[0].mxu0
      %3081 = vmatprep.mubr.f32.mxu0 0.0
      %3082 = vmatmul.mubr.f32.gmra.mrb[0].mxu0 %v2877
      %v3083 = vpop.f32.mrb[0].mxu0
      %v3084 = vadd.f32 0.0, %v3083
      %v3085 = vpop.f32.mrb[0].mxu0
      %3086 = vmatprep.mubr.f32.mxu0 0.0
      %3087 = vmatmul.mubr.f32.gmra.mrb[0].mxu0 %v2880
      %v3088 = vpop.f32.mrb[0].mxu0
      %v3089 = vadd.f32 0.0, %v3088
      %v3090 = vpop.f32.mrb[0].mxu0
      %3091 = vmatprep.mubr.f32.mxu0 0.0
      %3092 = vmatmul.mubr.f32.gmra.mrb[0].mxu0 %v2883
      %v3093 = vpop.f32.mrb[0].mxu0
      %v3094 = vadd.f32 0.0, %v3093
      %v3095 = vpop.f32.mrb[0].mxu0
      %3096 = vmatprep.mubr.f32.mxu0 0.0
      %3097 = vmatmul.mubr.f32.gmra.mrb[0].mxu0 %v2886
      %v3098 = vpop.f32.mrb[0].mxu0
      %v3099 = vadd.f32 0.0, %v3098
      %v3100 = vpop.f32.mrb[0].mxu0
      %3101 = vmatprep.mubr.f32.mxu0 0.0
      %3102 = vmatmul.mubr.f32.gmra.mrb[0].mxu0 %v2889
      %v3103 = vpop.f32.mrb[0].mxu0
      %v3104 = vadd.f32 0.0, %v3103
      %v3105 = vpop.f32.mrb[0].mxu0
      %3106 = vmatprep.mubr.f32.mxu0 0.0
      %3107 = vmatmul.mubr.f32.gmra.mrb[0].mxu0 %v2892
      %v3108 = vpop.f32.mrb[0].mxu0
      %v3109 = vadd.f32 0.0, %v3108
      %v3110 = vpop.f32.mrb[0].mxu0
      %3111 = vmatprep.mubr.f32.mxu0 0.0
      %3112 = vmatmul.mubr.f32.gmra.mrb[0].mxu0 %v2895
      %v3113 = vpop.f32.mrb[0].mxu0
      %v3114 = vadd.f32 0.0, %v3113
      %v3115 = vpop.f32.mrb[0].mxu0
      %3116 = vmatprep.mubr.f32.mxu0 0.0
      %3117 = vmatmul.mubr.f32.gmra.mrb[0].mxu0 %v2898
      %v3118 = vpop.f32.mrb[0].mxu0
      %v3119 = vadd.f32 0.0, %v3118
      %v3120 = vpop.f32.mrb[0].mxu0
      %3121 = vmatprep.mubr.f32.mxu0 0.0
      %3122 = vmatmul.mubr.f32.gmra.mrb[0].mxu0 %v2901
      %v3123 = vpop.f32.mrb[0].mxu0
      %v3124 = vadd.f32 0.0, %v3123
      %v3125 = vpop.f32.mrb[0].mxu0
      %3126 = vmatprep.mubr.f32.mxu0 0.0
      %3127 = vmatmul.mubr.f32.gmra.mrb[0].mxu0 %v2904
      %v3128 = vpop.f32.mrb[0].mxu0
      %v3129 = vadd.f32 0.0, %v3128
      %v3130 = vpop.f32.mrb[0].mxu0
      %3131 = vmatprep.mubr.f32.mxu0 0.0
      %3132 = vmatmul.mubr.f32.gmra.mrb[0].mxu0 %v2907
      %v3133 = vpop.f32.mrb[0].mxu0
      %v3134 = vadd.f32 0.0, %v3133
      %v3135 = vpop.f32.mrb[0].mxu0
      %3136 = vdwg.mxu0
      %v3137 = vld [vmem:[#allocation4] sm:$0xff]
      %v3138 = vld [vmem:[#allocation4 + $0x8] sm:$0xff]
      %v3139 = vld [vmem:[#allocation4 + $0x10] sm:$0xff]
      %v3140 = vld [vmem:[#allocation4 + $0x18] sm:$0xff]
      %v3141 = vld [vmem:[#allocation4 + $0x20] sm:$0xff]
      %v3142 = vld [vmem:[#allocation4 + $0x28] sm:$0xff]
      %v3143 = vld [vmem:[#allocation4 + $0x30] sm:$0xff]
      %v3144 = vld [vmem:[#allocation4 + $0x38] sm:$0xff]
      %v3145 = vld [vmem:[#allocation4 + $0x40] sm:$0xff]
      %v3146 = vld [vmem:[#allocation4 + $0x48] sm:$0xff]
      %v3147 = vld [vmem:[#allocation4 + $0x50] sm:$0xff]
      %v3148 = vld [vmem:[#allocation4 + $0x58] sm:$0xff]
      %v3149 = vld [vmem:[#allocation4 + $0x60] sm:$0xff]
      %v3150 = vld [vmem:[#allocation4 + $0x68] sm:$0xff]
      %v3151 = vld [vmem:[#allocation4 + $0x70] sm:$0xff]
      %v3152 = vld [vmem:[#allocation4 + $0x78] sm:$0xff]
      %v3153 = vld [vmem:[#allocation4 + $0x80] sm:$0xff]
      %v3154 = vld [vmem:[#allocation4 + $0x88] sm:$0xff]
      %v3155 = vld [vmem:[#allocation4 + $0x90] sm:$0xff]
      %v3156 = vld [vmem:[#allocation4 + $0x98] sm:$0xff]
      %v3157 = vld [vmem:[#allocation4 + $0xa0] sm:$0xff]
      %v3158 = vld [vmem:[#allocation4 + $0xa8] sm:$0xff]
      %v3159 = vld [vmem:[#allocation4 + $0xb0] sm:$0xff]
      %v3160 = vld [vmem:[#allocation4 + $0xb8] sm:$0xff]
      %v3161 = vld [vmem:[#allocation4 + $0xc0] sm:$0xff]
      %v3162 = vld [vmem:[#allocation4 + $0xc8] sm:$0xff]
      %v3163 = vld [vmem:[#allocation4 + $0xd0] sm:$0xff]
      %v3164 = vld [vmem:[#allocation4 + $0xd8] sm:$0xff]
      %v3165 = vld [vmem:[#allocation4 + $0xe0] sm:$0xff]
      %v3166 = vld [vmem:[#allocation4 + $0xe8] sm:$0xff]
      %v3167 = vld [vmem:[#allocation4 + $0xf0] sm:$0xff]
      %v3168 = vld [vmem:[#allocation4 + $0xf8] sm:$0xff]
      %v3169 = vadd.f32 %v3137, %v2979
      %v3170 = vadd.f32 %v3138, %v2984
      %v3171 = vadd.f32 %v3139, %v2989
      %v3172 = vadd.f32 %v3140, %v2994
      %v3173 = vadd.f32 %v3141, %v2999
      %v3174 = vadd.f32 %v3142, %v3004
      %v3175 = vadd.f32 %v3143, %v3009
      %v3176 = vadd.f32 %v3144, %v3014
      %v3177 = vadd.f32 %v3145, %v3019
      %v3178 = vadd.f32 %v3146, %v3024
      %v3179 = vadd.f32 %v3147, %v3029
      %v3180 = vadd.f32 %v3148, %v3034
      %v3181 = vadd.f32 %v3149, %v3039
      %v3182 = vadd.f32 %v3150, %v3044
      %v3183 = vadd.f32 %v3151, %v3049
      %v3184 = vadd.f32 %v3152, %v3054
      %v3185 = vadd.f32 %v3153, %v3059
      %v3186 = vadd.f32 %v3154, %v3064
      %v3187 = vadd.f32 %v3155, %v3069
      %v3188 = vadd.f32 %v3156, %v3074
      %v3189 = vadd.f32 %v3157, %v3079
      %v3190 = vadd.f32 %v3158, %v3084
      %v3191 = vadd.f32 %v3159, %v3089
      %v3192 = vadd.f32 %v3160, %v3094
      %v3193 = vadd.f32 %v3161, %v3099
      %v3194 = vadd.f32 %v3162, %v3104
      %v3195 = vadd.f32 %v3163, %v3109
      %v3196 = vadd.f32 %v3164, %v3114
      %v3197 = vadd.f32 %v3165, %v3119
      %v3198 = vadd.f32 %v3166, %v3124
      %v3199 = vadd.f32 %v3167, %v3129
      %v3200 = vadd.f32 %v3168, %v3134
      %3201 = vst.msk [vmem:[#allocation4] sm:$0xff] %vm352, %v3169
      %3202 = vst.msk [vmem:[#allocation4 + $0x8] sm:$0xff] %vm352, %v3170
      %3203 = vst.msk [vmem:[#allocation4 + $0x10] sm:$0xff] %vm352, %v3171
      %3204 = vst.msk [vmem:[#allocation4 + $0x18] sm:$0xff] %vm352, %v3172
      %3205 = vst.msk [vmem:[#allocation4 + $0x20] sm:$0xff] %vm352, %v3173
      %3206 = vst.msk [vmem:[#allocation4 + $0x28] sm:$0xff] %vm352, %v3174
      %3207 = vst.msk [vmem:[#allocation4 + $0x30] sm:$0xff] %vm352, %v3175
      %3208 = vst.msk [vmem:[#allocation4 + $0x38] sm:$0xff] %vm352, %v3176
      %3209 = vst.msk [vmem:[#allocation4 + $0x40] sm:$0xff] %vm352, %v3177
      %3210 = vst.msk [vmem:[#allocation4 + $0x48] sm:$0xff] %vm352, %v3178
      %3211 = vst.msk [vmem:[#allocation4 + $0x50] sm:$0xff] %vm352, %v3179
      %3212 = vst.msk [vmem:[#allocation4 + $0x58] sm:$0xff] %vm352, %v3180
      %3213 = vst.msk [vmem:[#allocation4 + $0x60] sm:$0xff] %vm352, %v3181
      %3214 = vst.msk [vmem:[#allocation4 + $0x68] sm:$0xff] %vm352, %v3182
      %3215 = vst.msk [vmem:[#allocation4 + $0x70] sm:$0xff] %vm352, %v3183
      %3216 = vst.msk [vmem:[#allocation4 + $0x78] sm:$0xff] %vm352, %v3184
      %3217 = vst.msk [vmem:[#allocation4 + $0x80] sm:$0xff] %vm352, %v3185
      %3218 = vst.msk [vmem:[#allocation4 + $0x88] sm:$0xff] %vm352, %v3186
      %3219 = vst.msk [vmem:[#allocation4 + $0x90] sm:$0xff] %vm352, %v3187
      %3220 = vst.msk [vmem:[#allocation4 + $0x98] sm:$0xff] %vm352, %v3188
      %3221 = vst.msk [vmem:[#allocation4 + $0xa0] sm:$0xff] %vm352, %v3189
      %3222 = vst.msk [vmem:[#allocation4 + $0xa8] sm:$0xff] %vm352, %v3190
      %3223 = vst.msk [vmem:[#allocation4 + $0xb0] sm:$0xff] %vm352, %v3191
      %3224 = vst.msk [vmem:[#allocation4 + $0xb8] sm:$0xff] %vm352, %v3192
      %3225 = vst.msk [vmem:[#allocation4 + $0xc0] sm:$0xff] %vm352, %v3193
      %3226 = vst.msk [vmem:[#allocation4 + $0xc8] sm:$0xff] %vm352, %v3194
      %3227 = vst.msk [vmem:[#allocation4 + $0xd0] sm:$0xff] %vm352, %v3195
      %3228 = vst.msk [vmem:[#allocation4 + $0xd8] sm:$0xff] %vm352, %v3196
      %3229 = vst.msk [vmem:[#allocation4 + $0xe0] sm:$0xff] %vm352, %v3197
      %3230 = vst.msk [vmem:[#allocation4 + $0xe8] sm:$0xff] %vm352, %v3198
      %3231 = vst.msk [vmem:[#allocation4 + $0xf0] sm:$0xff] %vm352, %v3199
      %3232 = vst.msk [vmem:[#allocation4 + $0xf8] sm:$0xff] %vm352, %v3200
      %s3233 = scalar_lea.vmem [#allocation2], 48
      %v3234 = vld [vmem:[%s3233] sm:$0xff]
      %v3235 = vld [vmem:[%s3233 + $0x8] sm:$0xff]
      %v3236 = vld [vmem:[%s3233 + $0x18] sm:$0xff]
      %v3237 = vld [vmem:[%s3233 + $0x20] sm:$0xff]
      %v3238 = vld [vmem:[%s3233 + $0x30] sm:$0xff]
      %v3239 = vld [vmem:[%s3233 + $0x38] sm:$0xff]
      %v3240 = vld [vmem:[%s3233 + $0x48] sm:$0xff]
      %v3241 = vld [vmem:[%s3233 + $0x50] sm:$0xff]
      %v3242 = vld [vmem:[%s3233 + $0x60] sm:$0xff]
      %v3243 = vld [vmem:[%s3233 + $0x68] sm:$0xff]
      %v3244 = vld [vmem:[%s3233 + $0x78] sm:$0xff]
      %v3245 = vld [vmem:[%s3233 + $0x80] sm:$0xff]
      %v3246 = vld [vmem:[%s3233 + $0x90] sm:$0xff]
      %v3247 = vld [vmem:[%s3233 + $0x98] sm:$0xff]
      %v3248 = vld [vmem:[%s3233 + $0xa8] sm:$0xff]
      %v3249 = vld [vmem:[%s3233 + $0xb0] sm:$0xff]
      %v3250 = vld [vmem:[%s3233 + $0xc0] sm:$0xff]
      %v3251 = vld [vmem:[%s3233 + $0xc8] sm:$0xff]
      %v3252 = vld [vmem:[%s3233 + $0xd8] sm:$0xff]
      %v3253 = vld [vmem:[%s3233 + $0xe0] sm:$0xff]
      %v3254 = vld [vmem:[%s3233 + $0xf0] sm:$0xff]
      %v3255 = vld [vmem:[%s3233 + $0xf8] sm:$0xff]
      %v3256 = vld [vmem:[%s3233 + $0x108] sm:$0xff]
      %v3257 = vld [vmem:[%s3233 + $0x110] sm:$0xff]
      %v3258 = vld [vmem:[%s3233 + $0x120] sm:$0xff]
      %v3259 = vld [vmem:[%s3233 + $0x128] sm:$0xff]
      %v3260 = vld [vmem:[%s3233 + $0x138] sm:$0xff]
      %v3261 = vld [vmem:[%s3233 + $0x140] sm:$0xff]
      %v3262 = vld [vmem:[%s3233 + $0x150] sm:$0xff]
      %v3263 = vld [vmem:[%s3233 + $0x158] sm:$0xff]
      %v3264 = vld [vmem:[%s3233 + $0x168] sm:$0xff]
      %v3265 = vld [vmem:[%s3233 + $0x170] sm:$0xff]
      %s3266 = scalar_lea.vmem %s3, 24
      %v3267 = vld [vmem:[%s3266] sm:$0xf]
      %v3269 = vsel %vm306, %v3234, 0
      %v3272 = vsel %vm306, %v3235, 0
      %v3275 = vsel %vm306, %v3236, 0
      %v3278 = vsel %vm306, %v3237, 0
      %v3281 = vsel %vm306, %v3238, 0
      %v3284 = vsel %vm306, %v3239, 0
      %v3287 = vsel %vm306, %v3240, 0
      %v3290 = vsel %vm306, %v3241, 0
      %v3293 = vsel %vm306, %v3242, 0
      %v3296 = vsel %vm306, %v3243, 0
      %v3299 = vsel %vm306, %v3244, 0
      %v3302 = vsel %vm306, %v3245, 0
      %v3305 = vsel %vm306, %v3246, 0
      %v3308 = vsel %vm306, %v3247, 0
      %v3311 = vsel %vm306, %v3248, 0
      %v3314 = vsel %vm306, %v3249, 0
      %v3317 = vsel %vm306, %v3250, 0
      %v3320 = vsel %vm306, %v3251, 0
      %v3323 = vsel %vm306, %v3252, 0
      %v3326 = vsel %vm306, %v3253, 0
      %v3329 = vsel %vm306, %v3254, 0
      %v3332 = vsel %vm306, %v3255, 0
      %v3335 = vsel %vm306, %v3256, 0
      %v3338 = vsel %vm306, %v3257, 0
      %v3341 = vsel %vm306, %v3258, 0
      %v3344 = vsel %vm306, %v3259, 0
      %v3347 = vsel %vm306, %v3260, 0
      %v3350 = vsel %vm306, %v3261, 0
      %v3353 = vsel %vm306, %v3262, 0
      %v3356 = vsel %vm306, %v3263, 0
      %v3359 = vsel %vm306, %v3264, 0
      %v3362 = vsel %vm306, %v3265, 0
      %v3365 = vsel %vm702, %v3267, 0
      %3367 = vmatprep.subr.mxu0 0.0
      %3368 = vmatpush1.msra.mxu0 %v3365
      %3369 = vmatprep.subr.mxu0 0.0
      %3370 = vmatpush1.msra.mxu0 0.0
      %3371 = vmatprep.subr.mxu0 0.0
      %3372 = vmatpush1.msra.mxu0 0.0
      %3373 = vmatprep.subr.mxu0 0.0
      %3374 = vmatpush1.msra.mxu0 0.0
      %3375 = vmatprep.subr.mxu0 0.0
      %3376 = vmatpush1.msra.mxu0 0.0
      %3377 = vmatprep.subr.mxu0 0.0
      %3378 = vmatpush1.msra.mxu0 0.0
      %3379 = vmatprep.subr.mxu0 0.0
      %3380 = vmatpush1.msra.mxu0 0.0
      %3381 = vmatprep.subr.mxu0 0.0
      %3382 = vmatpush1.msra.mxu0 0.0
      %3383 = vmatprep.subr.mxu0 0.0
      %3384 = vmatpush1.msra.mxu0 0.0
      %3385 = vmatprep.subr.mxu0 0.0
      %3386 = vmatpush1.msra.mxu0 0.0
      %3387 = vmatprep.subr.mxu0 0.0
      %3388 = vmatpush1.msra.mxu0 0.0
      %3389 = vmatprep.subr.mxu0 0.0
      %3390 = vmatpush1.msra.mxu0 0.0
      %3391 = vmatprep.subr.mxu0 0.0
      %3392 = vmatpush1.msra.mxu0 0.0
      %3393 = vmatprep.subr.mxu0 0.0
      %3394 = vmatpush1.msra.mxu0 0.0
      %3395 = vmatprep.subr.mxu0 0.0
      %3396 = vmatpush1.msra.mxu0 0.0
      %3397 = vmatprep.subr.mxu0 0.0
      %3398 = vmatpush1.msra.mxu0 0.0
      %3399 = vmatprep.subr.mxu0 0.0
      %3400 = vmatpush1.msra.mxu0 0.0
      %3401 = vmatprep.subr.mxu0 0.0
      %3402 = vmatpush1.msra.mxu0 0.0
      %3403 = vmatprep.subr.mxu0 0.0
      %3404 = vmatpush1.msra.mxu0 0.0
      %3405 = vmatprep.subr.mxu0 0.0
      %3406 = vmatpush1.msra.mxu0 0.0
      %3407 = vmatprep.subr.mxu0 0.0
      %3408 = vmatpush1.msra.mxu0 0.0
      %3409 = vmatprep.subr.mxu0 0.0
      %3410 = vmatpush1.msra.mxu0 0.0
      %3411 = vmatprep.subr.mxu0 0.0
      %3412 = vmatpush1.msra.mxu0 0.0
      %3413 = vmatprep.subr.mxu0 0.0
      %3414 = vmatpush1.msra.mxu0 0.0
      %3415 = vmatprep.subr.mxu0 0.0
      %3416 = vmatpush1.msra.mxu0 0.0
      %3417 = vmatprep.subr.mxu0 0.0
      %3418 = vmatpush1.msra.mxu0 0.0
      %3419 = vmatprep.subr.mxu0 0.0
      %3420 = vmatpush1.msra.mxu0 0.0
      %3421 = vmatprep.subr.mxu0 0.0
      %3422 = vmatpush1.msra.mxu0 0.0
      %3423 = vmatprep.subr.mxu0 0.0
      %3424 = vmatpush1.msra.mxu0 0.0
      %3425 = vmatprep.subr.mxu0 0.0
      %3426 = vmatpush1.msra.mxu0 0.0
      %3427 = vmatprep.subr.mxu0 0.0
      %3428 = vmatpush1.msra.mxu0 0.0
      %3429 = vmatprep.subr.mxu0 0.0
      %3430 = vmatpush1.msra.mxu0 0.0
      %3431 = vmatprep.mubr.f32.mxu0 0.0
      %3432 = vmatmul.mubr.f32.gmra.mrb[0].mxu0 %v3269
      %v3433 = vpop.f32.mrb[0].mxu0
      %v3434 = vadd.f32 0.0, %v3433
      %v3435 = vpop.f32.mrb[0].mxu0
      %3436 = vmatprep.mubr.f32.mxu0 0.0
      %3437 = vmatmul.mubr.f32.gmra.mrb[0].mxu0 %v3272
      %v3438 = vpop.f32.mrb[0].mxu0
      %v3439 = vadd.f32 0.0, %v3438
      %v3440 = vpop.f32.mrb[0].mxu0
      %3441 = vmatprep.mubr.f32.mxu0 0.0
      %3442 = vmatmul.mubr.f32.gmra.mrb[0].mxu0 %v3275
      %v3443 = vpop.f32.mrb[0].mxu0
      %v3444 = vadd.f32 0.0, %v3443
      %v3445 = vpop.f32.mrb[0].mxu0
      %3446 = vmatprep.mubr.f32.mxu0 0.0
      %3447 = vmatmul.mubr.f32.gmra.mrb[0].mxu0 %v3278
      %v3448 = vpop.f32.mrb[0].mxu0
      %v3449 = vadd.f32 0.0, %v3448
      %v3450 = vpop.f32.mrb[0].mxu0
      %3451 = vmatprep.mubr.f32.mxu0 0.0
      %3452 = vmatmul.mubr.f32.gmra.mrb[0].mxu0 %v3281
      %v3453 = vpop.f32.mrb[0].mxu0
      %v3454 = vadd.f32 0.0, %v3453
      %v3455 = vpop.f32.mrb[0].mxu0
      %3456 = vmatprep.mubr.f32.mxu0 0.0
      %3457 = vmatmul.mubr.f32.gmra.mrb[0].mxu0 %v3284
      %v3458 = vpop.f32.mrb[0].mxu0
      %v3459 = vadd.f32 0.0, %v3458
      %v3460 = vpop.f32.mrb[0].mxu0
      %3461 = vmatprep.mubr.f32.mxu0 0.0
      %3462 = vmatmul.mubr.f32.gmra.mrb[0].mxu0 %v3287
      %v3463 = vpop.f32.mrb[0].mxu0
      %v3464 = vadd.f32 0.0, %v3463
      %v3465 = vpop.f32.mrb[0].mxu0
      %3466 = vmatprep.mubr.f32.mxu0 0.0
      %3467 = vmatmul.mubr.f32.gmra.mrb[0].mxu0 %v3290
      %v3468 = vpop.f32.mrb[0].mxu0
      %v3469 = vadd.f32 0.0, %v3468
      %v3470 = vpop.f32.mrb[0].mxu0
      %3471 = vmatprep.mubr.f32.mxu0 0.0
      %3472 = vmatmul.mubr.f32.gmra.mrb[0].mxu0 %v3293
      %v3473 = vpop.f32.mrb[0].mxu0
      %v3474 = vadd.f32 0.0, %v3473
      %v3475 = vpop.f32.mrb[0].mxu0
      %3476 = vmatprep.mubr.f32.mxu0 0.0
      %3477 = vmatmul.mubr.f32.gmra.mrb[0].mxu0 %v3296
      %v3478 = vpop.f32.mrb[0].mxu0
      %v3479 = vadd.f32 0.0, %v3478
      %v3480 = vpop.f32.mrb[0].mxu0
      %3481 = vmatprep.mubr.f32.mxu0 0.0
      %3482 = vmatmul.mubr.f32.gmra.mrb[0].mxu0 %v3299
      %v3483 = vpop.f32.mrb[0].mxu0
      %v3484 = vadd.f32 0.0, %v3483
      %v3485 = vpop.f32.mrb[0].mxu0
      %3486 = vmatprep.mubr.f32.mxu0 0.0
      %3487 = vmatmul.mubr.f32.gmra.mrb[0].mxu0 %v3302
      %v3488 = vpop.f32.mrb[0].mxu0
      %v3489 = vadd.f32 0.0, %v3488
      %v3490 = vpop.f32.mrb[0].mxu0
      %3491 = vmatprep.mubr.f32.mxu0 0.0
      %3492 = vmatmul.mubr.f32.gmra.mrb[0].mxu0 %v3305
      %v3493 = vpop.f32.mrb[0].mxu0
      %v3494 = vadd.f32 0.0, %v3493
      %v3495 = vpop.f32.mrb[0].mxu0
      %3496 = vmatprep.mubr.f32.mxu0 0.0
      %3497 = vmatmul.mubr.f32.gmra.mrb[0].mxu0 %v3308
      %v3498 = vpop.f32.mrb[0].mxu0
      %v3499 = vadd.f32 0.0, %v3498
      %v3500 = vpop.f32.mrb[0].mxu0
      %3501 = vmatprep.mubr.f32.mxu0 0.0
      %3502 = vmatmul.mubr.f32.gmra.mrb[0].mxu0 %v3311
      %v3503 = vpop.f32.mrb[0].mxu0
      %v3504 = vadd.f32 0.0, %v3503
      %v3505 = vpop.f32.mrb[0].mxu0
      %3506 = vmatprep.mubr.f32.mxu0 0.0
      %3507 = vmatmul.mubr.f32.gmra.mrb[0].mxu0 %v3314
      %v3508 = vpop.f32.mrb[0].mxu0
      %v3509 = vadd.f32 0.0, %v3508
      %v3510 = vpop.f32.mrb[0].mxu0
      %3511 = vmatprep.mubr.f32.mxu0 0.0
      %3512 = vmatmul.mubr.f32.gmra.mrb[0].mxu0 %v3317
      %v3513 = vpop.f32.mrb[0].mxu0
      %v3514 = vadd.f32 0.0, %v3513
      %v3515 = vpop.f32.mrb[0].mxu0
      %3516 = vmatprep.mubr.f32.mxu0 0.0
      %3517 = vmatmul.mubr.f32.gmra.mrb[0].mxu0 %v3320
      %v3518 = vpop.f32.mrb[0].mxu0
      %v3519 = vadd.f32 0.0, %v3518
      %v3520 = vpop.f32.mrb[0].mxu0
      %3521 = vmatprep.mubr.f32.mxu0 0.0
      %3522 = vmatmul.mubr.f32.gmra.mrb[0].mxu0 %v3323
      %v3523 = vpop.f32.mrb[0].mxu0
      %v3524 = vadd.f32 0.0, %v3523
      %v3525 = vpop.f32.mrb[0].mxu0
      %3526 = vmatprep.mubr.f32.mxu0 0.0
      %3527 = vmatmul.mubr.f32.gmra.mrb[0].mxu0 %v3326
      %v3528 = vpop.f32.mrb[0].mxu0
      %v3529 = vadd.f32 0.0, %v3528
      %v3530 = vpop.f32.mrb[0].mxu0
      %3531 = vmatprep.mubr.f32.mxu0 0.0
      %3532 = vmatmul.mubr.f32.gmra.mrb[0].mxu0 %v3329
      %v3533 = vpop.f32.mrb[0].mxu0
      %v3534 = vadd.f32 0.0, %v3533
      %v3535 = vpop.f32.mrb[0].mxu0
      %3536 = vmatprep.mubr.f32.mxu0 0.0
      %3537 = vmatmul.mubr.f32.gmra.mrb[0].mxu0 %v3332
      %v3538 = vpop.f32.mrb[0].mxu0
      %v3539 = vadd.f32 0.0, %v3538
      %v3540 = vpop.f32.mrb[0].mxu0
      %3541 = vmatprep.mubr.f32.mxu0 0.0
      %3542 = vmatmul.mubr.f32.gmra.mrb[0].mxu0 %v3335
      %v3543 = vpop.f32.mrb[0].mxu0
      %v3544 = vadd.f32 0.0, %v3543
      %v3545 = vpop.f32.mrb[0].mxu0
      %3546 = vmatprep.mubr.f32.mxu0 0.0
      %3547 = vmatmul.mubr.f32.gmra.mrb[0].mxu0 %v3338
      %v3548 = vpop.f32.mrb[0].mxu0
      %v3549 = vadd.f32 0.0, %v3548
      %v3550 = vpop.f32.mrb[0].mxu0
      %3551 = vmatprep.mubr.f32.mxu0 0.0
      %3552 = vmatmul.mubr.f32.gmra.mrb[0].mxu0 %v3341
      %v3553 = vpop.f32.mrb[0].mxu0
      %v3554 = vadd.f32 0.0, %v3553
      %v3555 = vpop.f32.mrb[0].mxu0
      %3556 = vmatprep.mubr.f32.mxu0 0.0
      %3557 = vmatmul.mubr.f32.gmra.mrb[0].mxu0 %v3344
      %v3558 = vpop.f32.mrb[0].mxu0
      %v3559 = vadd.f32 0.0, %v3558
      %v3560 = vpop.f32.mrb[0].mxu0
      %3561 = vmatprep.mubr.f32.mxu0 0.0
      %3562 = vmatmul.mubr.f32.gmra.mrb[0].mxu0 %v3347
      %v3563 = vpop.f32.mrb[0].mxu0
      %v3564 = vadd.f32 0.0, %v3563
      %v3565 = vpop.f32.mrb[0].mxu0
      %3566 = vmatprep.mubr.f32.mxu0 0.0
      %3567 = vmatmul.mubr.f32.gmra.mrb[0].mxu0 %v3350
      %v3568 = vpop.f32.mrb[0].mxu0
      %v3569 = vadd.f32 0.0, %v3568
      %v3570 = vpop.f32.mrb[0].mxu0
      %3571 = vmatprep.mubr.f32.mxu0 0.0
      %3572 = vmatmul.mubr.f32.gmra.mrb[0].mxu0 %v3353
      %v3573 = vpop.f32.mrb[0].mxu0
      %v3574 = vadd.f32 0.0, %v3573
      %v3575 = vpop.f32.mrb[0].mxu0
      %3576 = vmatprep.mubr.f32.mxu0 0.0
      %3577 = vmatmul.mubr.f32.gmra.mrb[0].mxu0 %v3356
      %v3578 = vpop.f32.mrb[0].mxu0
      %v3579 = vadd.f32 0.0, %v3578
      %v3580 = vpop.f32.mrb[0].mxu0
      %3581 = vmatprep.mubr.f32.mxu0 0.0
      %3582 = vmatmul.mubr.f32.gmra.mrb[0].mxu0 %v3359
      %v3583 = vpop.f32.mrb[0].mxu0
      %v3584 = vadd.f32 0.0, %v3583
      %v3585 = vpop.f32.mrb[0].mxu0
      %3586 = vmatprep.mubr.f32.mxu0 0.0
      %3587 = vmatmul.mubr.f32.gmra.mrb[0].mxu0 %v3362
      %v3588 = vpop.f32.mrb[0].mxu0
      %v3589 = vadd.f32 0.0, %v3588
      %v3590 = vpop.f32.mrb[0].mxu0
      %3591 = vdwg.mxu0
      %v3592 = vld [vmem:[#allocation4] sm:$0xff]
      %v3593 = vld [vmem:[#allocation4 + $0x8] sm:$0xff]
      %v3594 = vld [vmem:[#allocation4 + $0x10] sm:$0xff]
      %v3595 = vld [vmem:[#allocation4 + $0x18] sm:$0xff]
      %v3596 = vld [vmem:[#allocation4 + $0x20] sm:$0xff]
      %v3597 = vld [vmem:[#allocation4 + $0x28] sm:$0xff]
      %v3598 = vld [vmem:[#allocation4 + $0x30] sm:$0xff]
      %v3599 = vld [vmem:[#allocation4 + $0x38] sm:$0xff]
      %v3600 = vld [vmem:[#allocation4 + $0x40] sm:$0xff]
      %v3601 = vld [vmem:[#allocation4 + $0x48] sm:$0xff]
      %v3602 = vld [vmem:[#allocation4 + $0x50] sm:$0xff]
      %v3603 = vld [vmem:[#allocation4 + $0x58] sm:$0xff]
      %v3604 = vld [vmem:[#allocation4 + $0x60] sm:$0xff]
      %v3605 = vld [vmem:[#allocation4 + $0x68] sm:$0xff]
      %v3606 = vld [vmem:[#allocation4 + $0x70] sm:$0xff]
      %v3607 = vld [vmem:[#allocation4 + $0x78] sm:$0xff]
      %v3608 = vld [vmem:[#allocation4 + $0x80] sm:$0xff]
      %v3609 = vld [vmem:[#allocation4 + $0x88] sm:$0xff]
      %v3610 = vld [vmem:[#allocation4 + $0x90] sm:$0xff]
      %v3611 = vld [vmem:[#allocation4 + $0x98] sm:$0xff]
      %v3612 = vld [vmem:[#allocation4 + $0xa0] sm:$0xff]
      %v3613 = vld [vmem:[#allocation4 + $0xa8] sm:$0xff]
      %v3614 = vld [vmem:[#allocation4 + $0xb0] sm:$0xff]
      %v3615 = vld [vmem:[#allocation4 + $0xb8] sm:$0xff]
      %v3616 = vld [vmem:[#allocation4 + $0xc0] sm:$0xff]
      %v3617 = vld [vmem:[#allocation4 + $0xc8] sm:$0xff]
      %v3618 = vld [vmem:[#allocation4 + $0xd0] sm:$0xff]
      %v3619 = vld [vmem:[#allocation4 + $0xd8] sm:$0xff]
      %v3620 = vld [vmem:[#allocation4 + $0xe0] sm:$0xff]
      %v3621 = vld [vmem:[#allocation4 + $0xe8] sm:$0xff]
      %v3622 = vld [vmem:[#allocation4 + $0xf0] sm:$0xff]
      %v3623 = vld [vmem:[#allocation4 + $0xf8] sm:$0xff]
      %v3624 = vadd.f32 %v3592, %v3434
      %v3625 = vadd.f32 %v3593, %v3439
      %v3626 = vadd.f32 %v3594, %v3444
      %v3627 = vadd.f32 %v3595, %v3449
      %v3628 = vadd.f32 %v3596, %v3454
      %v3629 = vadd.f32 %v3597, %v3459
      %v3630 = vadd.f32 %v3598, %v3464
      %v3631 = vadd.f32 %v3599, %v3469
      %v3632 = vadd.f32 %v3600, %v3474
      %v3633 = vadd.f32 %v3601, %v3479
      %v3634 = vadd.f32 %v3602, %v3484
      %v3635 = vadd.f32 %v3603, %v3489
      %v3636 = vadd.f32 %v3604, %v3494
      %v3637 = vadd.f32 %v3605, %v3499
      %v3638 = vadd.f32 %v3606, %v3504
      %v3639 = vadd.f32 %v3607, %v3509
      %v3640 = vadd.f32 %v3608, %v3514
      %v3641 = vadd.f32 %v3609, %v3519
      %v3642 = vadd.f32 %v3610, %v3524
      %v3643 = vadd.f32 %v3611, %v3529
      %v3644 = vadd.f32 %v3612, %v3534
      %v3645 = vadd.f32 %v3613, %v3539
      %v3646 = vadd.f32 %v3614, %v3544
      %v3647 = vadd.f32 %v3615, %v3549
      %v3648 = vadd.f32 %v3616, %v3554
      %v3649 = vadd.f32 %v3617, %v3559
      %v3650 = vadd.f32 %v3618, %v3564
      %v3651 = vadd.f32 %v3619, %v3569
      %v3652 = vadd.f32 %v3620, %v3574
      %v3653 = vadd.f32 %v3621, %v3579
      %v3654 = vadd.f32 %v3622, %v3584
      %v3655 = vadd.f32 %v3623, %v3589
      %3656 = vst.msk [vmem:[#allocation4] sm:$0xff] %vm352, %v3624
      %3657 = vst.msk [vmem:[#allocation4 + $0x8] sm:$0xff] %vm352, %v3625
      %3658 = vst.msk [vmem:[#allocation4 + $0x10] sm:$0xff] %vm352, %v3626
      %3659 = vst.msk [vmem:[#allocation4 + $0x18] sm:$0xff] %vm352, %v3627
      %3660 = vst.msk [vmem:[#allocation4 + $0x20] sm:$0xff] %vm352, %v3628
      %3661 = vst.msk [vmem:[#allocation4 + $0x28] sm:$0xff] %vm352, %v3629
      %3662 = vst.msk [vmem:[#allocation4 + $0x30] sm:$0xff] %vm352, %v3630
      %3663 = vst.msk [vmem:[#allocation4 + $0x38] sm:$0xff] %vm352, %v3631
      %3664 = vst.msk [vmem:[#allocation4 + $0x40] sm:$0xff] %vm352, %v3632
      %3665 = vst.msk [vmem:[#allocation4 + $0x48] sm:$0xff] %vm352, %v3633
      %3666 = vst.msk [vmem:[#allocation4 + $0x50] sm:$0xff] %vm352, %v3634
      %3667 = vst.msk [vmem:[#allocation4 + $0x58] sm:$0xff] %vm352, %v3635
      %3668 = vst.msk [vmem:[#allocation4 + $0x60] sm:$0xff] %vm352, %v3636
      %3669 = vst.msk [vmem:[#allocation4 + $0x68] sm:$0xff] %vm352, %v3637
      %3670 = vst.msk [vmem:[#allocation4 + $0x70] sm:$0xff] %vm352, %v3638
      %3671 = vst.msk [vmem:[#allocation4 + $0x78] sm:$0xff] %vm352, %v3639
      %3672 = vst.msk [vmem:[#allocation4 + $0x80] sm:$0xff] %vm352, %v3640
      %3673 = vst.msk [vmem:[#allocation4 + $0x88] sm:$0xff] %vm352, %v3641
      %3674 = vst.msk [vmem:[#allocation4 + $0x90] sm:$0xff] %vm352, %v3642
      %3675 = vst.msk [vmem:[#allocation4 + $0x98] sm:$0xff] %vm352, %v3643
      %3676 = vst.msk [vmem:[#allocation4 + $0xa0] sm:$0xff] %vm352, %v3644
      %3677 = vst.msk [vmem:[#allocation4 + $0xa8] sm:$0xff] %vm352, %v3645
      %3678 = vst.msk [vmem:[#allocation4 + $0xb0] sm:$0xff] %vm352, %v3646
      %3679 = vst.msk [vmem:[#allocation4 + $0xb8] sm:$0xff] %vm352, %v3647
      %3680 = vst.msk [vmem:[#allocation4 + $0xc0] sm:$0xff] %vm352, %v3648
      %3681 = vst.msk [vmem:[#allocation4 + $0xc8] sm:$0xff] %vm352, %v3649
      %3682 = vst.msk [vmem:[#allocation4 + $0xd0] sm:$0xff] %vm352, %v3650
      %3683 = vst.msk [vmem:[#allocation4 + $0xd8] sm:$0xff] %vm352, %v3651
      %3684 = vst.msk [vmem:[#allocation4 + $0xe0] sm:$0xff] %vm352, %v3652
      %3685 = vst.msk [vmem:[#allocation4 + $0xe8] sm:$0xff] %vm352, %v3653
      %3686 = vst.msk [vmem:[#allocation4 + $0xf0] sm:$0xff] %vm352, %v3654
      %3687 = vst.msk [vmem:[#allocation4 + $0xf8] sm:$0xff] %vm352, %v3655
      %v3688 = vld [vmem:[%s3233 + $0x1] sm:$0xff]
      %v3689 = vld [vmem:[%s3233 + $0x9] sm:$0xff]
      %v3690 = vld [vmem:[%s3233 + $0x19] sm:$0xff]
      %v3691 = vld [vmem:[%s3233 + $0x21] sm:$0xff]
      %v3692 = vld [vmem:[%s3233 + $0x31] sm:$0xff]
      %v3693 = vld [vmem:[%s3233 + $0x39] sm:$0xff]
      %v3694 = vld [vmem:[%s3233 + $0x49] sm:$0xff]
      %v3695 = vld [vmem:[%s3233 + $0x51] sm:$0xff]
      %v3696 = vld [vmem:[%s3233 + $0x61] sm:$0xff]
      %v3697 = vld [vmem:[%s3233 + $0x69] sm:$0xff]
      %v3698 = vld [vmem:[%s3233 + $0x79] sm:$0xff]
      %v3699 = vld [vmem:[%s3233 + $0x81] sm:$0xff]
      %v3700 = vld [vmem:[%s3233 + $0x91] sm:$0xff]
      %v3701 = vld [vmem:[%s3233 + $0x99] sm:$0xff]
      %v3702 = vld [vmem:[%s3233 + $0xa9] sm:$0xff]
      %v3703 = vld [vmem:[%s3233 + $0xb1] sm:$0xff]
      %v3704 = vld [vmem:[%s3233 + $0xc1] sm:$0xff]
      %v3705 = vld [vmem:[%s3233 + $0xc9] sm:$0xff]
      %v3706 = vld [vmem:[%s3233 + $0xd9] sm:$0xff]
      %v3707 = vld [vmem:[%s3233 + $0xe1] sm:$0xff]
      %v3708 = vld [vmem:[%s3233 + $0xf1] sm:$0xff]
      %v3709 = vld [vmem:[%s3233 + $0xf9] sm:$0xff]
      %v3710 = vld [vmem:[%s3233 + $0x109] sm:$0xff]
      %v3711 = vld [vmem:[%s3233 + $0x111] sm:$0xff]
      %v3712 = vld [vmem:[%s3233 + $0x121] sm:$0xff]
      %v3713 = vld [vmem:[%s3233 + $0x129] sm:$0xff]
      %v3714 = vld [vmem:[%s3233 + $0x139] sm:$0xff]
      %v3715 = vld [vmem:[%s3233 + $0x141] sm:$0xff]
      %v3716 = vld [vmem:[%s3233 + $0x151] sm:$0xff]
      %v3717 = vld [vmem:[%s3233 + $0x159] sm:$0xff]
      %v3718 = vld [vmem:[%s3233 + $0x169] sm:$0xff]
      %v3719 = vld [vmem:[%s3233 + $0x171] sm:$0xff]
      %s3720 = scalar_lea.vmem %s3, 28
      %v3721 = vld [vmem:[%s3720] sm:$0xf]
      %v3723 = vsel %vm306, %v3688, 0
      %v3726 = vsel %vm306, %v3689, 0
      %v3729 = vsel %vm306, %v3690, 0
      %v3732 = vsel %vm306, %v3691, 0
      %v3735 = vsel %vm306, %v3692, 0
      %v3738 = vsel %vm306, %v3693, 0
      %v3741 = vsel %vm306, %v3694, 0
      %v3744 = vsel %vm306, %v3695, 0
      %v3747 = vsel %vm306, %v3696, 0
      %v3750 = vsel %vm306, %v3697, 0
      %v3753 = vsel %vm306, %v3698, 0
      %v3756 = vsel %vm306, %v3699, 0
      %v3759 = vsel %vm306, %v3700, 0
      %v3762 = vsel %vm306, %v3701, 0
      %v3765 = vsel %vm306, %v3702, 0
      %v3768 = vsel %vm306, %v3703, 0
      %v3771 = vsel %vm306, %v3704, 0
      %v3774 = vsel %vm306, %v3705, 0
      %v3777 = vsel %vm306, %v3706, 0
      %v3780 = vsel %vm306, %v3707, 0
      %v3783 = vsel %vm306, %v3708, 0
      %v3786 = vsel %vm306, %v3709, 0
      %v3789 = vsel %vm306, %v3710, 0
      %v3792 = vsel %vm306, %v3711, 0
      %v3795 = vsel %vm306, %v3712, 0
      %v3798 = vsel %vm306, %v3713, 0
      %v3801 = vsel %vm306, %v3714, 0
      %v3804 = vsel %vm306, %v3715, 0
      %v3807 = vsel %vm306, %v3716, 0
      %v3810 = vsel %vm306, %v3717, 0
      %v3813 = vsel %vm306, %v3718, 0
      %v3816 = vsel %vm306, %v3719, 0
      %v3819 = vsel %vm702, %v3721, 0
      %3821 = vmatprep.subr.mxu0 0.0
      %3822 = vmatpush1.msra.mxu0 %v3819
      %3823 = vmatprep.subr.mxu0 0.0
      %3824 = vmatpush1.msra.mxu0 0.0
      %3825 = vmatprep.subr.mxu0 0.0
      %3826 = vmatpush1.msra.mxu0 0.0
      %3827 = vmatprep.subr.mxu0 0.0
      %3828 = vmatpush1.msra.mxu0 0.0
      %3829 = vmatprep.subr.mxu0 0.0
      %3830 = vmatpush1.msra.mxu0 0.0
      %3831 = vmatprep.subr.mxu0 0.0
      %3832 = vmatpush1.msra.mxu0 0.0
      %3833 = vmatprep.subr.mxu0 0.0
      %3834 = vmatpush1.msra.mxu0 0.0
      %3835 = vmatprep.subr.mxu0 0.0
      %3836 = vmatpush1.msra.mxu0 0.0
      %3837 = vmatprep.subr.mxu0 0.0
      %3838 = vmatpush1.msra.mxu0 0.0
      %3839 = vmatprep.subr.mxu0 0.0
      %3840 = vmatpush1.msra.mxu0 0.0
      %3841 = vmatprep.subr.mxu0 0.0
      %3842 = vmatpush1.msra.mxu0 0.0
      %3843 = vmatprep.subr.mxu0 0.0
      %3844 = vmatpush1.msra.mxu0 0.0
      %3845 = vmatprep.subr.mxu0 0.0
      %3846 = vmatpush1.msra.mxu0 0.0
      %3847 = vmatprep.subr.mxu0 0.0
      %3848 = vmatpush1.msra.mxu0 0.0
      %3849 = vmatprep.subr.mxu0 0.0
      %3850 = vmatpush1.msra.mxu0 0.0
      %3851 = vmatprep.subr.mxu0 0.0
      %3852 = vmatpush1.msra.mxu0 0.0
      %3853 = vmatprep.subr.mxu0 0.0
      %3854 = vmatpush1.msra.mxu0 0.0
      %3855 = vmatprep.subr.mxu0 0.0
      %3856 = vmatpush1.msra.mxu0 0.0
      %3857 = vmatprep.subr.mxu0 0.0
      %3858 = vmatpush1.msra.mxu0 0.0
      %3859 = vmatprep.subr.mxu0 0.0
      %3860 = vmatpush1.msra.mxu0 0.0
      %3861 = vmatprep.subr.mxu0 0.0
      %3862 = vmatpush1.msra.mxu0 0.0
      %3863 = vmatprep.subr.mxu0 0.0
      %3864 = vmatpush1.msra.mxu0 0.0
      %3865 = vmatprep.subr.mxu0 0.0
      %3866 = vmatpush1.msra.mxu0 0.0
      %3867 = vmatprep.subr.mxu0 0.0
      %3868 = vmatpush1.msra.mxu0 0.0
      %3869 = vmatprep.subr.mxu0 0.0
      %3870 = vmatpush1.msra.mxu0 0.0
      %3871 = vmatprep.subr.mxu0 0.0
      %3872 = vmatpush1.msra.mxu0 0.0
      %3873 = vmatprep.subr.mxu0 0.0
      %3874 = vmatpush1.msra.mxu0 0.0
      %3875 = vmatprep.subr.mxu0 0.0
      %3876 = vmatpush1.msra.mxu0 0.0
      %3877 = vmatprep.subr.mxu0 0.0
      %3878 = vmatpush1.msra.mxu0 0.0
      %3879 = vmatprep.subr.mxu0 0.0
      %3880 = vmatpush1.msra.mxu0 0.0
      %3881 = vmatprep.subr.mxu0 0.0
      %3882 = vmatpush1.msra.mxu0 0.0
      %3883 = vmatprep.subr.mxu0 0.0
      %3884 = vmatpush1.msra.mxu0 0.0
      %3885 = vmatprep.mubr.f32.mxu0 0.0
      %3886 = vmatmul.mubr.f32.gmra.mrb[0].mxu0 %v3723
      %v3887 = vpop.f32.mrb[0].mxu0
      %v3888 = vadd.f32 0.0, %v3887
      %v3889 = vpop.f32.mrb[0].mxu0
      %3890 = vmatprep.mubr.f32.mxu0 0.0
      %3891 = vmatmul.mubr.f32.gmra.mrb[0].mxu0 %v3726
      %v3892 = vpop.f32.mrb[0].mxu0
      %v3893 = vadd.f32 0.0, %v3892
      %v3894 = vpop.f32.mrb[0].mxu0
      %3895 = vmatprep.mubr.f32.mxu0 0.0
      %3896 = vmatmul.mubr.f32.gmra.mrb[0].mxu0 %v3729
      %v3897 = vpop.f32.mrb[0].mxu0
      %v3898 = vadd.f32 0.0, %v3897
      %v3899 = vpop.f32.mrb[0].mxu0
      %3900 = vmatprep.mubr.f32.mxu0 0.0
      %3901 = vmatmul.mubr.f32.gmra.mrb[0].mxu0 %v3732
      %v3902 = vpop.f32.mrb[0].mxu0
      %v3903 = vadd.f32 0.0, %v3902
      %v3904 = vpop.f32.mrb[0].mxu0
      %3905 = vmatprep.mubr.f32.mxu0 0.0
      %3906 = vmatmul.mubr.f32.gmra.mrb[0].mxu0 %v3735
      %v3907 = vpop.f32.mrb[0].mxu0
      %v3908 = vadd.f32 0.0, %v3907
      %v3909 = vpop.f32.mrb[0].mxu0
      %3910 = vmatprep.mubr.f32.mxu0 0.0
      %3911 = vmatmul.mubr.f32.gmra.mrb[0].mxu0 %v3738
      %v3912 = vpop.f32.mrb[0].mxu0
      %v3913 = vadd.f32 0.0, %v3912
      %v3914 = vpop.f32.mrb[0].mxu0
      %3915 = vmatprep.mubr.f32.mxu0 0.0
      %3916 = vmatmul.mubr.f32.gmra.mrb[0].mxu0 %v3741
      %v3917 = vpop.f32.mrb[0].mxu0
      %v3918 = vadd.f32 0.0, %v3917
      %v3919 = vpop.f32.mrb[0].mxu0
      %3920 = vmatprep.mubr.f32.mxu0 0.0
      %3921 = vmatmul.mubr.f32.gmra.mrb[0].mxu0 %v3744
      %v3922 = vpop.f32.mrb[0].mxu0
      %v3923 = vadd.f32 0.0, %v3922
      %v3924 = vpop.f32.mrb[0].mxu0
      %3925 = vmatprep.mubr.f32.mxu0 0.0
      %3926 = vmatmul.mubr.f32.gmra.mrb[0].mxu0 %v3747
      %v3927 = vpop.f32.mrb[0].mxu0
      %v3928 = vadd.f32 0.0, %v3927
      %v3929 = vpop.f32.mrb[0].mxu0
      %3930 = vmatprep.mubr.f32.mxu0 0.0
      %3931 = vmatmul.mubr.f32.gmra.mrb[0].mxu0 %v3750
      %v3932 = vpop.f32.mrb[0].mxu0
      %v3933 = vadd.f32 0.0, %v3932
      %v3934 = vpop.f32.mrb[0].mxu0
      %3935 = vmatprep.mubr.f32.mxu0 0.0
      %3936 = vmatmul.mubr.f32.gmra.mrb[0].mxu0 %v3753
      %v3937 = vpop.f32.mrb[0].mxu0
      %v3938 = vadd.f32 0.0, %v3937
      %v3939 = vpop.f32.mrb[0].mxu0
      %3940 = vmatprep.mubr.f32.mxu0 0.0
      %3941 = vmatmul.mubr.f32.gmra.mrb[0].mxu0 %v3756
      %v3942 = vpop.f32.mrb[0].mxu0
      %v3943 = vadd.f32 0.0, %v3942
      %v3944 = vpop.f32.mrb[0].mxu0
      %3945 = vmatprep.mubr.f32.mxu0 0.0
      %3946 = vmatmul.mubr.f32.gmra.mrb[0].mxu0 %v3759
      %v3947 = vpop.f32.mrb[0].mxu0
      %v3948 = vadd.f32 0.0, %v3947
      %v3949 = vpop.f32.mrb[0].mxu0
      %3950 = vmatprep.mubr.f32.mxu0 0.0
      %3951 = vmatmul.mubr.f32.gmra.mrb[0].mxu0 %v3762
      %v3952 = vpop.f32.mrb[0].mxu0
      %v3953 = vadd.f32 0.0, %v3952
      %v3954 = vpop.f32.mrb[0].mxu0
      %3955 = vmatprep.mubr.f32.mxu0 0.0
      %3956 = vmatmul.mubr.f32.gmra.mrb[0].mxu0 %v3765
      %v3957 = vpop.f32.mrb[0].mxu0
      %v3958 = vadd.f32 0.0, %v3957
      %v3959 = vpop.f32.mrb[0].mxu0
      %3960 = vmatprep.mubr.f32.mxu0 0.0
      %3961 = vmatmul.mubr.f32.gmra.mrb[0].mxu0 %v3768
      %v3962 = vpop.f32.mrb[0].mxu0
      %v3963 = vadd.f32 0.0, %v3962
      %v3964 = vpop.f32.mrb[0].mxu0
      %3965 = vmatprep.mubr.f32.mxu0 0.0
      %3966 = vmatmul.mubr.f32.gmra.mrb[0].mxu0 %v3771
      %v3967 = vpop.f32.mrb[0].mxu0
      %v3968 = vadd.f32 0.0, %v3967
      %v3969 = vpop.f32.mrb[0].mxu0
      %3970 = vmatprep.mubr.f32.mxu0 0.0
      %3971 = vmatmul.mubr.f32.gmra.mrb[0].mxu0 %v3774
      %v3972 = vpop.f32.mrb[0].mxu0
      %v3973 = vadd.f32 0.0, %v3972
      %v3974 = vpop.f32.mrb[0].mxu0
      %3975 = vmatprep.mubr.f32.mxu0 0.0
      %3976 = vmatmul.mubr.f32.gmra.mrb[0].mxu0 %v3777
      %v3977 = vpop.f32.mrb[0].mxu0
      %v3978 = vadd.f32 0.0, %v3977
      %v3979 = vpop.f32.mrb[0].mxu0
      %3980 = vmatprep.mubr.f32.mxu0 0.0
      %3981 = vmatmul.mubr.f32.gmra.mrb[0].mxu0 %v3780
      %v3982 = vpop.f32.mrb[0].mxu0
      %v3983 = vadd.f32 0.0, %v3982
      %v3984 = vpop.f32.mrb[0].mxu0
      %3985 = vmatprep.mubr.f32.mxu0 0.0
      %3986 = vmatmul.mubr.f32.gmra.mrb[0].mxu0 %v3783
      %v3987 = vpop.f32.mrb[0].mxu0
      %v3988 = vadd.f32 0.0, %v3987
      %v3989 = vpop.f32.mrb[0].mxu0
      %3990 = vmatprep.mubr.f32.mxu0 0.0
      %3991 = vmatmul.mubr.f32.gmra.mrb[0].mxu0 %v3786
      %v3992 = vpop.f32.mrb[0].mxu0
      %v3993 = vadd.f32 0.0, %v3992
      %v3994 = vpop.f32.mrb[0].mxu0
      %3995 = vmatprep.mubr.f32.mxu0 0.0
      %3996 = vmatmul.mubr.f32.gmra.mrb[0].mxu0 %v3789
      %v3997 = vpop.f32.mrb[0].mxu0
      %v3998 = vadd.f32 0.0, %v3997
      %v3999 = vpop.f32.mrb[0].mxu0
      %4000 = vmatprep.mubr.f32.mxu0 0.0
      %4001 = vmatmul.mubr.f32.gmra.mrb[0].mxu0 %v3792
      %v4002 = vpop.f32.mrb[0].mxu0
      %v4003 = vadd.f32 0.0, %v4002
      %v4004 = vpop.f32.mrb[0].mxu0
      %4005 = vmatprep.mubr.f32.mxu0 0.0
      %4006 = vmatmul.mubr.f32.gmra.mrb[0].mxu0 %v3795
      %v4007 = vpop.f32.mrb[0].mxu0
      %v4008 = vadd.f32 0.0, %v4007
      %v4009 = vpop.f32.mrb[0].mxu0
      %4010 = vmatprep.mubr.f32.mxu0 0.0
      %4011 = vmatmul.mubr.f32.gmra.mrb[0].mxu0 %v3798
      %v4012 = vpop.f32.mrb[0].mxu0
      %v4013 = vadd.f32 0.0, %v4012
      %v4014 = vpop.f32.mrb[0].mxu0
      %4015 = vmatprep.mubr.f32.mxu0 0.0
      %4016 = vmatmul.mubr.f32.gmra.mrb[0].mxu0 %v3801
      %v4017 = vpop.f32.mrb[0].mxu0
      %v4018 = vadd.f32 0.0, %v4017
      %v4019 = vpop.f32.mrb[0].mxu0
      %4020 = vmatprep.mubr.f32.mxu0 0.0
      %4021 = vmatmul.mubr.f32.gmra.mrb[0].mxu0 %v3804
      %v4022 = vpop.f32.mrb[0].mxu0
      %v4023 = vadd.f32 0.0, %v4022
      %v4024 = vpop.f32.mrb[0].mxu0
      %4025 = vmatprep.mubr.f32.mxu0 0.0
      %4026 = vmatmul.mubr.f32.gmra.mrb[0].mxu0 %v3807
      %v4027 = vpop.f32.mrb[0].mxu0
      %v4028 = vadd.f32 0.0, %v4027
      %v4029 = vpop.f32.mrb[0].mxu0
      %4030 = vmatprep.mubr.f32.mxu0 0.0
      %4031 = vmatmul.mubr.f32.gmra.mrb[0].mxu0 %v3810
      %v4032 = vpop.f32.mrb[0].mxu0
      %v4033 = vadd.f32 0.0, %v4032
      %v4034 = vpop.f32.mrb[0].mxu0
      %4035 = vmatprep.mubr.f32.mxu0 0.0
      %4036 = vmatmul.mubr.f32.gmra.mrb[0].mxu0 %v3813
      %v4037 = vpop.f32.mrb[0].mxu0
      %v4038 = vadd.f32 0.0, %v4037
      %v4039 = vpop.f32.mrb[0].mxu0
      %4040 = vmatprep.mubr.f32.mxu0 0.0
      %4041 = vmatmul.mubr.f32.gmra.mrb[0].mxu0 %v3816
      %v4042 = vpop.f32.mrb[0].mxu0
      %v4043 = vadd.f32 0.0, %v4042
      %v4044 = vpop.f32.mrb[0].mxu0
      %4045 = vdwg.mxu0
      %v4046 = vld [vmem:[#allocation4] sm:$0xff]
      %v4047 = vld [vmem:[#allocation4 + $0x8] sm:$0xff]
      %v4048 = vld [vmem:[#allocation4 + $0x10] sm:$0xff]
      %v4049 = vld [vmem:[#allocation4 + $0x18] sm:$0xff]
      %v4050 = vld [vmem:[#allocation4 + $0x20] sm:$0xff]
      %v4051 = vld [vmem:[#allocation4 + $0x28] sm:$0xff]
      %v4052 = vld [vmem:[#allocation4 + $0x30] sm:$0xff]
      %v4053 = vld [vmem:[#allocation4 + $0x38] sm:$0xff]
      %v4054 = vld [vmem:[#allocation4 + $0x40] sm:$0xff]
      %v4055 = vld [vmem:[#allocation4 + $0x48] sm:$0xff]
      %v4056 = vld [vmem:[#allocation4 + $0x50] sm:$0xff]
      %v4057 = vld [vmem:[#allocation4 + $0x58] sm:$0xff]
      %v4058 = vld [vmem:[#allocation4 + $0x60] sm:$0xff]
      %v4059 = vld [vmem:[#allocation4 + $0x68] sm:$0xff]
      %v4060 = vld [vmem:[#allocation4 + $0x70] sm:$0xff]
      %v4061 = vld [vmem:[#allocation4 + $0x78] sm:$0xff]
      %v4062 = vld [vmem:[#allocation4 + $0x80] sm:$0xff]
      %v4063 = vld [vmem:[#allocation4 + $0x88] sm:$0xff]
      %v4064 = vld [vmem:[#allocation4 + $0x90] sm:$0xff]
      %v4065 = vld [vmem:[#allocation4 + $0x98] sm:$0xff]
      %v4066 = vld [vmem:[#allocation4 + $0xa0] sm:$0xff]
      %v4067 = vld [vmem:[#allocation4 + $0xa8] sm:$0xff]
      %v4068 = vld [vmem:[#allocation4 + $0xb0] sm:$0xff]
      %v4069 = vld [vmem:[#allocation4 + $0xb8] sm:$0xff]
      %v4070 = vld [vmem:[#allocation4 + $0xc0] sm:$0xff]
      %v4071 = vld [vmem:[#allocation4 + $0xc8] sm:$0xff]
      %v4072 = vld [vmem:[#allocation4 + $0xd0] sm:$0xff]
      %v4073 = vld [vmem:[#allocation4 + $0xd8] sm:$0xff]
      %v4074 = vld [vmem:[#allocation4 + $0xe0] sm:$0xff]
      %v4075 = vld [vmem:[#allocation4 + $0xe8] sm:$0xff]
      %v4076 = vld [vmem:[#allocation4 + $0xf0] sm:$0xff]
      %v4077 = vld [vmem:[#allocation4 + $0xf8] sm:$0xff]
      %v4078 = vadd.f32 %v4046, %v3888
      %v4079 = vadd.f32 %v4047, %v3893
      %v4080 = vadd.f32 %v4048, %v3898
      %v4081 = vadd.f32 %v4049, %v3903
      %v4082 = vadd.f32 %v4050, %v3908
      %v4083 = vadd.f32 %v4051, %v3913
      %v4084 = vadd.f32 %v4052, %v3918
      %v4085 = vadd.f32 %v4053, %v3923
      %v4086 = vadd.f32 %v4054, %v3928
      %v4087 = vadd.f32 %v4055, %v3933
      %v4088 = vadd.f32 %v4056, %v3938
      %v4089 = vadd.f32 %v4057, %v3943
      %v4090 = vadd.f32 %v4058, %v3948
      %v4091 = vadd.f32 %v4059, %v3953
      %v4092 = vadd.f32 %v4060, %v3958
      %v4093 = vadd.f32 %v4061, %v3963
      %v4094 = vadd.f32 %v4062, %v3968
      %v4095 = vadd.f32 %v4063, %v3973
      %v4096 = vadd.f32 %v4064, %v3978
      %v4097 = vadd.f32 %v4065, %v3983
      %v4098 = vadd.f32 %v4066, %v3988
      %v4099 = vadd.f32 %v4067, %v3993
      %v4100 = vadd.f32 %v4068, %v3998
      %v4101 = vadd.f32 %v4069, %v4003
      %v4102 = vadd.f32 %v4070, %v4008
      %v4103 = vadd.f32 %v4071, %v4013
      %v4104 = vadd.f32 %v4072, %v4018
      %v4105 = vadd.f32 %v4073, %v4023
      %v4106 = vadd.f32 %v4074, %v4028
      %v4107 = vadd.f32 %v4075, %v4033
      %v4108 = vadd.f32 %v4076, %v4038
      %v4109 = vadd.f32 %v4077, %v4043
      %4110 = vst.msk [vmem:[#allocation4] sm:$0xff] %vm352, %v4078
      %4111 = vst.msk [vmem:[#allocation4 + $0x8] sm:$0xff] %vm352, %v4079
      %4112 = vst.msk [vmem:[#allocation4 + $0x10] sm:$0xff] %vm352, %v4080
      %4113 = vst.msk [vmem:[#allocation4 + $0x18] sm:$0xff] %vm352, %v4081
      %4114 = vst.msk [vmem:[#allocation4 + $0x20] sm:$0xff] %vm352, %v4082
      %4115 = vst.msk [vmem:[#allocation4 + $0x28] sm:$0xff] %vm352, %v4083
      %4116 = vst.msk [vmem:[#allocation4 + $0x30] sm:$0xff] %vm352, %v4084
      %4117 = vst.msk [vmem:[#allocation4 + $0x38] sm:$0xff] %vm352, %v4085
      %4118 = vst.msk [vmem:[#allocation4 + $0x40] sm:$0xff] %vm352, %v4086
      %4119 = vst.msk [vmem:[#allocation4 + $0x48] sm:$0xff] %vm352, %v4087
      %4120 = vst.msk [vmem:[#allocation4 + $0x50] sm:$0xff] %vm352, %v4088
      %4121 = vst.msk [vmem:[#allocation4 + $0x58] sm:$0xff] %vm352, %v4089
      %4122 = vst.msk [vmem:[#allocation4 + $0x60] sm:$0xff] %vm352, %v4090
      %4123 = vst.msk [vmem:[#allocation4 + $0x68] sm:$0xff] %vm352, %v4091
      %4124 = vst.msk [vmem:[#allocation4 + $0x70] sm:$0xff] %vm352, %v4092
      %4125 = vst.msk [vmem:[#allocation4 + $0x78] sm:$0xff] %vm352, %v4093
      %4126 = vst.msk [vmem:[#allocation4 + $0x80] sm:$0xff] %vm352, %v4094
      %4127 = vst.msk [vmem:[#allocation4 + $0x88] sm:$0xff] %vm352, %v4095
      %4128 = vst.msk [vmem:[#allocation4 + $0x90] sm:$0xff] %vm352, %v4096
      %4129 = vst.msk [vmem:[#allocation4 + $0x98] sm:$0xff] %vm352, %v4097
      %4130 = vst.msk [vmem:[#allocation4 + $0xa0] sm:$0xff] %vm352, %v4098
      %4131 = vst.msk [vmem:[#allocation4 + $0xa8] sm:$0xff] %vm352, %v4099
      %4132 = vst.msk [vmem:[#allocation4 + $0xb0] sm:$0xff] %vm352, %v4100
      %4133 = vst.msk [vmem:[#allocation4 + $0xb8] sm:$0xff] %vm352, %v4101
      %4134 = vst.msk [vmem:[#allocation4 + $0xc0] sm:$0xff] %vm352, %v4102
      %4135 = vst.msk [vmem:[#allocation4 + $0xc8] sm:$0xff] %vm352, %v4103
      %4136 = vst.msk [vmem:[#allocation4 + $0xd0] sm:$0xff] %vm352, %v4104
      %4137 = vst.msk [vmem:[#allocation4 + $0xd8] sm:$0xff] %vm352, %v4105
      %4138 = vst.msk [vmem:[#allocation4 + $0xe0] sm:$0xff] %vm352, %v4106
      %4139 = vst.msk [vmem:[#allocation4 + $0xe8] sm:$0xff] %vm352, %v4107
      %4140 = vst.msk [vmem:[#allocation4 + $0xf0] sm:$0xff] %vm352, %v4108
      %4141 = vst.msk [vmem:[#allocation4 + $0xf8] sm:$0xff] %vm352, %v4109
      %v4142 = vld [vmem:[%s3233 + $0x2] sm:$0xff]
      %v4143 = vld [vmem:[%s3233 + $0xa] sm:$0xff]
      %v4144 = vld [vmem:[%s3233 + $0x1a] sm:$0xff]
      %v4145 = vld [vmem:[%s3233 + $0x22] sm:$0xff]
      %v4146 = vld [vmem:[%s3233 + $0x32] sm:$0xff]
      %v4147 = vld [vmem:[%s3233 + $0x3a] sm:$0xff]
      %v4148 = vld [vmem:[%s3233 + $0x4a] sm:$0xff]
      %v4149 = vld [vmem:[%s3233 + $0x52] sm:$0xff]
      %v4150 = vld [vmem:[%s3233 + $0x62] sm:$0xff]
      %v4151 = vld [vmem:[%s3233 + $0x6a] sm:$0xff]
      %v4152 = vld [vmem:[%s3233 + $0x7a] sm:$0xff]
      %v4153 = vld [vmem:[%s3233 + $0x82] sm:$0xff]
      %v4154 = vld [vmem:[%s3233 + $0x92] sm:$0xff]
      %v4155 = vld [vmem:[%s3233 + $0x9a] sm:$0xff]
      %v4156 = vld [vmem:[%s3233 + $0xaa] sm:$0xff]
      %v4157 = vld [vmem:[%s3233 + $0xb2] sm:$0xff]
      %v4158 = vld [vmem:[%s3233 + $0xc2] sm:$0xff]
      %v4159 = vld [vmem:[%s3233 + $0xca] sm:$0xff]
      %v4160 = vld [vmem:[%s3233 + $0xda] sm:$0xff]
      %v4161 = vld [vmem:[%s3233 + $0xe2] sm:$0xff]
      %v4162 = vld [vmem:[%s3233 + $0xf2] sm:$0xff]
      %v4163 = vld [vmem:[%s3233 + $0xfa] sm:$0xff]
      %v4164 = vld [vmem:[%s3233 + $0x10a] sm:$0xff]
      %v4165 = vld [vmem:[%s3233 + $0x112] sm:$0xff]
      %v4166 = vld [vmem:[%s3233 + $0x122] sm:$0xff]
      %v4167 = vld [vmem:[%s3233 + $0x12a] sm:$0xff]
      %v4168 = vld [vmem:[%s3233 + $0x13a] sm:$0xff]
      %v4169 = vld [vmem:[%s3233 + $0x142] sm:$0xff]
      %v4170 = vld [vmem:[%s3233 + $0x152] sm:$0xff]
      %v4171 = vld [vmem:[%s3233 + $0x15a] sm:$0xff]
      %v4172 = vld [vmem:[%s3233 + $0x16a] sm:$0xff]
      %v4173 = vld [vmem:[%s3233 + $0x172] sm:$0xff]
      %s4174 = scalar_lea.vmem %s3, 32
      %v4175 = vld [vmem:[%s4174] sm:$0xf]
      %v4177 = vsel %vm306, %v4142, 0
      %v4180 = vsel %vm306, %v4143, 0
      %v4183 = vsel %vm306, %v4144, 0
      %v4186 = vsel %vm306, %v4145, 0
      %v4189 = vsel %vm306, %v4146, 0
      %v4192 = vsel %vm306, %v4147, 0
      %v4195 = vsel %vm306, %v4148, 0
      %v4198 = vsel %vm306, %v4149, 0
      %v4201 = vsel %vm306, %v4150, 0
      %v4204 = vsel %vm306, %v4151, 0
      %v4207 = vsel %vm306, %v4152, 0
      %v4210 = vsel %vm306, %v4153, 0
      %v4213 = vsel %vm306, %v4154, 0
      %v4216 = vsel %vm306, %v4155, 0
      %v4219 = vsel %vm306, %v4156, 0
      %v4222 = vsel %vm306, %v4157, 0
      %v4225 = vsel %vm306, %v4158, 0
      %v4228 = vsel %vm306, %v4159, 0
      %v4231 = vsel %vm306, %v4160, 0
      %v4234 = vsel %vm306, %v4161, 0
      %v4237 = vsel %vm306, %v4162, 0
      %v4240 = vsel %vm306, %v4163, 0
      %v4243 = vsel %vm306, %v4164, 0
      %v4246 = vsel %vm306, %v4165, 0
      %v4249 = vsel %vm306, %v4166, 0
      %v4252 = vsel %vm306, %v4167, 0
      %v4255 = vsel %vm306, %v4168, 0
      %v4258 = vsel %vm306, %v4169, 0
      %v4261 = vsel %vm306, %v4170, 0
      %v4264 = vsel %vm306, %v4171, 0
      %v4267 = vsel %vm306, %v4172, 0
      %v4270 = vsel %vm306, %v4173, 0
      %v4273 = vsel %vm702, %v4175, 0
      %4275 = vmatprep.subr.mxu0 0.0
      %4276 = vmatpush1.msra.mxu0 %v4273
      %4277 = vmatprep.subr.mxu0 0.0
      %4278 = vmatpush1.msra.mxu0 0.0
      %4279 = vmatprep.subr.mxu0 0.0
      %4280 = vmatpush1.msra.mxu0 0.0
      %4281 = vmatprep.subr.mxu0 0.0
      %4282 = vmatpush1.msra.mxu0 0.0
      %4283 = vmatprep.subr.mxu0 0.0
      %4284 = vmatpush1.msra.mxu0 0.0
      %4285 = vmatprep.subr.mxu0 0.0
      %4286 = vmatpush1.msra.mxu0 0.0
      %4287 = vmatprep.subr.mxu0 0.0
      %4288 = vmatpush1.msra.mxu0 0.0
      %4289 = vmatprep.subr.mxu0 0.0
      %4290 = vmatpush1.msra.mxu0 0.0
      %4291 = vmatprep.subr.mxu0 0.0
      %4292 = vmatpush1.msra.mxu0 0.0
      %4293 = vmatprep.subr.mxu0 0.0
      %4294 = vmatpush1.msra.mxu0 0.0
      %4295 = vmatprep.subr.mxu0 0.0
      %4296 = vmatpush1.msra.mxu0 0.0
      %4297 = vmatprep.subr.mxu0 0.0
      %4298 = vmatpush1.msra.mxu0 0.0
      %4299 = vmatprep.subr.mxu0 0.0
      %4300 = vmatpush1.msra.mxu0 0.0
      %4301 = vmatprep.subr.mxu0 0.0
      %4302 = vmatpush1.msra.mxu0 0.0
      %4303 = vmatprep.subr.mxu0 0.0
      %4304 = vmatpush1.msra.mxu0 0.0
      %4305 = vmatprep.subr.mxu0 0.0
      %4306 = vmatpush1.msra.mxu0 0.0
      %4307 = vmatprep.subr.mxu0 0.0
      %4308 = vmatpush1.msra.mxu0 0.0
      %4309 = vmatprep.subr.mxu0 0.0
      %4310 = vmatpush1.msra.mxu0 0.0
      %4311 = vmatprep.subr.mxu0 0.0
      %4312 = vmatpush1.msra.mxu0 0.0
      %4313 = vmatprep.subr.mxu0 0.0
      %4314 = vmatpush1.msra.mxu0 0.0
      %4315 = vmatprep.subr.mxu0 0.0
      %4316 = vmatpush1.msra.mxu0 0.0
      %4317 = vmatprep.subr.mxu0 0.0
      %4318 = vmatpush1.msra.mxu0 0.0
      %4319 = vmatprep.subr.mxu0 0.0
      %4320 = vmatpush1.msra.mxu0 0.0
      %4321 = vmatprep.subr.mxu0 0.0
      %4322 = vmatpush1.msra.mxu0 0.0
      %4323 = vmatprep.subr.mxu0 0.0
      %4324 = vmatpush1.msra.mxu0 0.0
      %4325 = vmatprep.subr.mxu0 0.0
      %4326 = vmatpush1.msra.mxu0 0.0
      %4327 = vmatprep.subr.mxu0 0.0
      %4328 = vmatpush1.msra.mxu0 0.0
      %4329 = vmatprep.subr.mxu0 0.0
      %4330 = vmatpush1.msra.mxu0 0.0
      %4331 = vmatprep.subr.mxu0 0.0
      %4332 = vmatpush1.msra.mxu0 0.0
      %4333 = vmatprep.subr.mxu0 0.0
      %4334 = vmatpush1.msra.mxu0 0.0
      %4335 = vmatprep.subr.mxu0 0.0
      %4336 = vmatpush1.msra.mxu0 0.0
      %4337 = vmatprep.subr.mxu0 0.0
      %4338 = vmatpush1.msra.mxu0 0.0
      %4339 = vmatprep.mubr.f32.mxu0 0.0
      %4340 = vmatmul.mubr.f32.gmra.mrb[0].mxu0 %v4177
      %v4341 = vpop.f32.mrb[0].mxu0
      %v4342 = vadd.f32 0.0, %v4341
      %v4343 = vpop.f32.mrb[0].mxu0
      %4344 = vmatprep.mubr.f32.mxu0 0.0
      %4345 = vmatmul.mubr.f32.gmra.mrb[0].mxu0 %v4180
      %v4346 = vpop.f32.mrb[0].mxu0
      %v4347 = vadd.f32 0.0, %v4346
      %v4348 = vpop.f32.mrb[0].mxu0
      %4349 = vmatprep.mubr.f32.mxu0 0.0
      %4350 = vmatmul.mubr.f32.gmra.mrb[0].mxu0 %v4183
      %v4351 = vpop.f32.mrb[0].mxu0
      %v4352 = vadd.f32 0.0, %v4351
      %v4353 = vpop.f32.mrb[0].mxu0
      %4354 = vmatprep.mubr.f32.mxu0 0.0
      %4355 = vmatmul.mubr.f32.gmra.mrb[0].mxu0 %v4186
      %v4356 = vpop.f32.mrb[0].mxu0
      %v4357 = vadd.f32 0.0, %v4356
      %v4358 = vpop.f32.mrb[0].mxu0
      %4359 = vmatprep.mubr.f32.mxu0 0.0
      %4360 = vmatmul.mubr.f32.gmra.mrb[0].mxu0 %v4189
      %v4361 = vpop.f32.mrb[0].mxu0
      %v4362 = vadd.f32 0.0, %v4361
      %v4363 = vpop.f32.mrb[0].mxu0
      %4364 = vmatprep.mubr.f32.mxu0 0.0
      %4365 = vmatmul.mubr.f32.gmra.mrb[0].mxu0 %v4192
      %v4366 = vpop.f32.mrb[0].mxu0
      %v4367 = vadd.f32 0.0, %v4366
      %v4368 = vpop.f32.mrb[0].mxu0
      %4369 = vmatprep.mubr.f32.mxu0 0.0
      %4370 = vmatmul.mubr.f32.gmra.mrb[0].mxu0 %v4195
      %v4371 = vpop.f32.mrb[0].mxu0
      %v4372 = vadd.f32 0.0, %v4371
      %v4373 = vpop.f32.mrb[0].mxu0
      %4374 = vmatprep.mubr.f32.mxu0 0.0
      %4375 = vmatmul.mubr.f32.gmra.mrb[0].mxu0 %v4198
      %v4376 = vpop.f32.mrb[0].mxu0
      %v4377 = vadd.f32 0.0, %v4376
      %v4378 = vpop.f32.mrb[0].mxu0
      %4379 = vmatprep.mubr.f32.mxu0 0.0
      %4380 = vmatmul.mubr.f32.gmra.mrb[0].mxu0 %v4201
      %v4381 = vpop.f32.mrb[0].mxu0
      %v4382 = vadd.f32 0.0, %v4381
      %v4383 = vpop.f32.mrb[0].mxu0
      %4384 = vmatprep.mubr.f32.mxu0 0.0
      %4385 = vmatmul.mubr.f32.gmra.mrb[0].mxu0 %v4204
      %v4386 = vpop.f32.mrb[0].mxu0
      %v4387 = vadd.f32 0.0, %v4386
      %v4388 = vpop.f32.mrb[0].mxu0
      %4389 = vmatprep.mubr.f32.mxu0 0.0
      %4390 = vmatmul.mubr.f32.gmra.mrb[0].mxu0 %v4207
      %v4391 = vpop.f32.mrb[0].mxu0
      %v4392 = vadd.f32 0.0, %v4391
      %v4393 = vpop.f32.mrb[0].mxu0
      %4394 = vmatprep.mubr.f32.mxu0 0.0
      %4395 = vmatmul.mubr.f32.gmra.mrb[0].mxu0 %v4210
      %v4396 = vpop.f32.mrb[0].mxu0
      %v4397 = vadd.f32 0.0, %v4396
      %v4398 = vpop.f32.mrb[0].mxu0
      %4399 = vmatprep.mubr.f32.mxu0 0.0
      %4400 = vmatmul.mubr.f32.gmra.mrb[0].mxu0 %v4213
      %v4401 = vpop.f32.mrb[0].mxu0
      %v4402 = vadd.f32 0.0, %v4401
      %v4403 = vpop.f32.mrb[0].mxu0
      %4404 = vmatprep.mubr.f32.mxu0 0.0
      %4405 = vmatmul.mubr.f32.gmra.mrb[0].mxu0 %v4216
      %v4406 = vpop.f32.mrb[0].mxu0
      %v4407 = vadd.f32 0.0, %v4406
      %v4408 = vpop.f32.mrb[0].mxu0
      %4409 = vmatprep.mubr.f32.mxu0 0.0
      %4410 = vmatmul.mubr.f32.gmra.mrb[0].mxu0 %v4219
      %v4411 = vpop.f32.mrb[0].mxu0
      %v4412 = vadd.f32 0.0, %v4411
      %v4413 = vpop.f32.mrb[0].mxu0
      %4414 = vmatprep.mubr.f32.mxu0 0.0
      %4415 = vmatmul.mubr.f32.gmra.mrb[0].mxu0 %v4222
      %v4416 = vpop.f32.mrb[0].mxu0
      %v4417 = vadd.f32 0.0, %v4416
      %v4418 = vpop.f32.mrb[0].mxu0
      %4419 = vmatprep.mubr.f32.mxu0 0.0
      %4420 = vmatmul.mubr.f32.gmra.mrb[0].mxu0 %v4225
      %v4421 = vpop.f32.mrb[0].mxu0
      %v4422 = vadd.f32 0.0, %v4421
      %v4423 = vpop.f32.mrb[0].mxu0
      %4424 = vmatprep.mubr.f32.mxu0 0.0
      %4425 = vmatmul.mubr.f32.gmra.mrb[0].mxu0 %v4228
      %v4426 = vpop.f32.mrb[0].mxu0
      %v4427 = vadd.f32 0.0, %v4426
      %v4428 = vpop.f32.mrb[0].mxu0
      %4429 = vmatprep.mubr.f32.mxu0 0.0
      %4430 = vmatmul.mubr.f32.gmra.mrb[0].mxu0 %v4231
      %v4431 = vpop.f32.mrb[0].mxu0
      %v4432 = vadd.f32 0.0, %v4431
      %v4433 = vpop.f32.mrb[0].mxu0
      %4434 = vmatprep.mubr.f32.mxu0 0.0
      %4435 = vmatmul.mubr.f32.gmra.mrb[0].mxu0 %v4234
      %v4436 = vpop.f32.mrb[0].mxu0
      %v4437 = vadd.f32 0.0, %v4436
      %v4438 = vpop.f32.mrb[0].mxu0
      %4439 = vmatprep.mubr.f32.mxu0 0.0
      %4440 = vmatmul.mubr.f32.gmra.mrb[0].mxu0 %v4237
      %v4441 = vpop.f32.mrb[0].mxu0
      %v4442 = vadd.f32 0.0, %v4441
      %v4443 = vpop.f32.mrb[0].mxu0
      %4444 = vmatprep.mubr.f32.mxu0 0.0
      %4445 = vmatmul.mubr.f32.gmra.mrb[0].mxu0 %v4240
      %v4446 = vpop.f32.mrb[0].mxu0
      %v4447 = vadd.f32 0.0, %v4446
      %v4448 = vpop.f32.mrb[0].mxu0
      %4449 = vmatprep.mubr.f32.mxu0 0.0
      %4450 = vmatmul.mubr.f32.gmra.mrb[0].mxu0 %v4243
      %v4451 = vpop.f32.mrb[0].mxu0
      %v4452 = vadd.f32 0.0, %v4451
      %v4453 = vpop.f32.mrb[0].mxu0
      %4454 = vmatprep.mubr.f32.mxu0 0.0
      %4455 = vmatmul.mubr.f32.gmra.mrb[0].mxu0 %v4246
      %v4456 = vpop.f32.mrb[0].mxu0
      %v4457 = vadd.f32 0.0, %v4456
      %v4458 = vpop.f32.mrb[0].mxu0
      %4459 = vmatprep.mubr.f32.mxu0 0.0
      %4460 = vmatmul.mubr.f32.gmra.mrb[0].mxu0 %v4249
      %v4461 = vpop.f32.mrb[0].mxu0
      %v4462 = vadd.f32 0.0, %v4461
      %v4463 = vpop.f32.mrb[0].mxu0
      %4464 = vmatprep.mubr.f32.mxu0 0.0
      %4465 = vmatmul.mubr.f32.gmra.mrb[0].mxu0 %v4252
      %v4466 = vpop.f32.mrb[0].mxu0
      %v4467 = vadd.f32 0.0, %v4466
      %v4468 = vpop.f32.mrb[0].mxu0
      %4469 = vmatprep.mubr.f32.mxu0 0.0
      %4470 = vmatmul.mubr.f32.gmra.mrb[0].mxu0 %v4255
      %v4471 = vpop.f32.mrb[0].mxu0
      %v4472 = vadd.f32 0.0, %v4471
      %v4473 = vpop.f32.mrb[0].mxu0
      %4474 = vmatprep.mubr.f32.mxu0 0.0
      %4475 = vmatmul.mubr.f32.gmra.mrb[0].mxu0 %v4258
      %v4476 = vpop.f32.mrb[0].mxu0
      %v4477 = vadd.f32 0.0, %v4476
      %v4478 = vpop.f32.mrb[0].mxu0
      %4479 = vmatprep.mubr.f32.mxu0 0.0
      %4480 = vmatmul.mubr.f32.gmra.mrb[0].mxu0 %v4261
      %v4481 = vpop.f32.mrb[0].mxu0
      %v4482 = vadd.f32 0.0, %v4481
      %v4483 = vpop.f32.mrb[0].mxu0
      %4484 = vmatprep.mubr.f32.mxu0 0.0
      %4485 = vmatmul.mubr.f32.gmra.mrb[0].mxu0 %v4264
      %v4486 = vpop.f32.mrb[0].mxu0
      %v4487 = vadd.f32 0.0, %v4486
      %v4488 = vpop.f32.mrb[0].mxu0
      %4489 = vmatprep.mubr.f32.mxu0 0.0
      %4490 = vmatmul.mubr.f32.gmra.mrb[0].mxu0 %v4267
      %v4491 = vpop.f32.mrb[0].mxu0
      %v4492 = vadd.f32 0.0, %v4491
      %v4493 = vpop.f32.mrb[0].mxu0
      %4494 = vmatprep.mubr.f32.mxu0 0.0
      %4495 = vmatmul.mubr.f32.gmra.mrb[0].mxu0 %v4270
      %v4496 = vpop.f32.mrb[0].mxu0
      %v4497 = vadd.f32 0.0, %v4496
      %v4498 = vpop.f32.mrb[0].mxu0
      %4499 = vdwg.mxu0
      %v4500 = vld [vmem:[#allocation4] sm:$0xff]
      %v4501 = vld [vmem:[#allocation4 + $0x8] sm:$0xff]
      %v4502 = vld [vmem:[#allocation4 + $0x10] sm:$0xff]
      %v4503 = vld [vmem:[#allocation4 + $0x18] sm:$0xff]
      %v4504 = vld [vmem:[#allocation4 + $0x20] sm:$0xff]
      %v4505 = vld [vmem:[#allocation4 + $0x28] sm:$0xff]
      %v4506 = vld [vmem:[#allocation4 + $0x30] sm:$0xff]
      %v4507 = vld [vmem:[#allocation4 + $0x38] sm:$0xff]
      %v4508 = vld [vmem:[#allocation4 + $0x40] sm:$0xff]
      %v4509 = vld [vmem:[#allocation4 + $0x48] sm:$0xff]
      %v4510 = vld [vmem:[#allocation4 + $0x50] sm:$0xff]
      %v4511 = vld [vmem:[#allocation4 + $0x58] sm:$0xff]
      %v4512 = vld [vmem:[#allocation4 + $0x60] sm:$0xff]
      %v4513 = vld [vmem:[#allocation4 + $0x68] sm:$0xff]
      %v4514 = vld [vmem:[#allocation4 + $0x70] sm:$0xff]
      %v4515 = vld [vmem:[#allocation4 + $0x78] sm:$0xff]
      %v4516 = vld [vmem:[#allocation4 + $0x80] sm:$0xff]
      %v4517 = vld [vmem:[#allocation4 + $0x88] sm:$0xff]
      %v4518 = vld [vmem:[#allocation4 + $0x90] sm:$0xff]
      %v4519 = vld [vmem:[#allocation4 + $0x98] sm:$0xff]
      %v4520 = vld [vmem:[#allocation4 + $0xa0] sm:$0xff]
      %v4521 = vld [vmem:[#allocation4 + $0xa8] sm:$0xff]
      %v4522 = vld [vmem:[#allocation4 + $0xb0] sm:$0xff]
      %v4523 = vld [vmem:[#allocation4 + $0xb8] sm:$0xff]
      %v4524 = vld [vmem:[#allocation4 + $0xc0] sm:$0xff]
      %v4525 = vld [vmem:[#allocation4 + $0xc8] sm:$0xff]
      %v4526 = vld [vmem:[#allocation4 + $0xd0] sm:$0xff]
      %v4527 = vld [vmem:[#allocation4 + $0xd8] sm:$0xff]
      %v4528 = vld [vmem:[#allocation4 + $0xe0] sm:$0xff]
      %v4529 = vld [vmem:[#allocation4 + $0xe8] sm:$0xff]
      %v4530 = vld [vmem:[#allocation4 + $0xf0] sm:$0xff]
      %v4531 = vld [vmem:[#allocation4 + $0xf8] sm:$0xff]
      %v4532 = vadd.f32 %v4500, %v4342
      %v4533 = vadd.f32 %v4501, %v4347
      %v4534 = vadd.f32 %v4502, %v4352
      %v4535 = vadd.f32 %v4503, %v4357
      %v4536 = vadd.f32 %v4504, %v4362
      %v4537 = vadd.f32 %v4505, %v4367
      %v4538 = vadd.f32 %v4506, %v4372
      %v4539 = vadd.f32 %v4507, %v4377
      %v4540 = vadd.f32 %v4508, %v4382
      %v4541 = vadd.f32 %v4509, %v4387
      %v4542 = vadd.f32 %v4510, %v4392
      %v4543 = vadd.f32 %v4511, %v4397
      %v4544 = vadd.f32 %v4512, %v4402
      %v4545 = vadd.f32 %v4513, %v4407
      %v4546 = vadd.f32 %v4514, %v4412
      %v4547 = vadd.f32 %v4515, %v4417
      %v4548 = vadd.f32 %v4516, %v4422
      %v4549 = vadd.f32 %v4517, %v4427
      %v4550 = vadd.f32 %v4518, %v4432
      %v4551 = vadd.f32 %v4519, %v4437
      %v4552 = vadd.f32 %v4520, %v4442
      %v4553 = vadd.f32 %v4521, %v4447
      %v4554 = vadd.f32 %v4522, %v4452
      %v4555 = vadd.f32 %v4523, %v4457
      %v4556 = vadd.f32 %v4524, %v4462
      %v4557 = vadd.f32 %v4525, %v4467
      %v4558 = vadd.f32 %v4526, %v4472
      %v4559 = vadd.f32 %v4527, %v4477
      %v4560 = vadd.f32 %v4528, %v4482
      %v4561 = vadd.f32 %v4529, %v4487
      %v4562 = vadd.f32 %v4530, %v4492
      %v4563 = vadd.f32 %v4531, %v4497
      %4564 = vst.msk [vmem:[#allocation4] sm:$0xff] %vm352, %v4532
      %4565 = vst.msk [vmem:[#allocation4 + $0x8] sm:$0xff] %vm352, %v4533
      %4566 = vst.msk [vmem:[#allocation4 + $0x10] sm:$0xff] %vm352, %v4534
      %4567 = vst.msk [vmem:[#allocation4 + $0x18] sm:$0xff] %vm352, %v4535
      %4568 = vst.msk [vmem:[#allocation4 + $0x20] sm:$0xff] %vm352, %v4536
      %4569 = vst.msk [vmem:[#allocation4 + $0x28] sm:$0xff] %vm352, %v4537
      %4570 = vst.msk [vmem:[#allocation4 + $0x30] sm:$0xff] %vm352, %v4538
      %4571 = vst.msk [vmem:[#allocation4 + $0x38] sm:$0xff] %vm352, %v4539
      %4572 = vst.msk [vmem:[#allocation4 + $0x40] sm:$0xff] %vm352, %v4540
      %4573 = vst.msk [vmem:[#allocation4 + $0x48] sm:$0xff] %vm352, %v4541
      %4574 = vst.msk [vmem:[#allocation4 + $0x50] sm:$0xff] %vm352, %v4542
      %4575 = vst.msk [vmem:[#allocation4 + $0x58] sm:$0xff] %vm352, %v4543
      %4576 = vst.msk [vmem:[#allocation4 + $0x60] sm:$0xff] %vm352, %v4544
      %4577 = vst.msk [vmem:[#allocation4 + $0x68] sm:$0xff] %vm352, %v4545
      %4578 = vst.msk [vmem:[#allocation4 + $0x70] sm:$0xff] %vm352, %v4546
      %4579 = vst.msk [vmem:[#allocation4 + $0x78] sm:$0xff] %vm352, %v4547
      %4580 = vst.msk [vmem:[#allocation4 + $0x80] sm:$0xff] %vm352, %v4548
      %4581 = vst.msk [vmem:[#allocation4 + $0x88] sm:$0xff] %vm352, %v4549
      %4582 = vst.msk [vmem:[#allocation4 + $0x90] sm:$0xff] %vm352, %v4550
      %4583 = vst.msk [vmem:[#allocation4 + $0x98] sm:$0xff] %vm352, %v4551
      %4584 = vst.msk [vmem:[#allocation4 + $0xa0] sm:$0xff] %vm352, %v4552
      %4585 = vst.msk [vmem:[#allocation4 + $0xa8] sm:$0xff] %vm352, %v4553
      %4586 = vst.msk [vmem:[#allocation4 + $0xb0] sm:$0xff] %vm352, %v4554
      %4587 = vst.msk [vmem:[#allocation4 + $0xb8] sm:$0xff] %vm352, %v4555
      %4588 = vst.msk [vmem:[#allocation4 + $0xc0] sm:$0xff] %vm352, %v4556
      %4589 = vst.msk [vmem:[#allocation4 + $0xc8] sm:$0xff] %vm352, %v4557
      %4590 = vst.msk [vmem:[#allocation4 + $0xd0] sm:$0xff] %vm352, %v4558
      %4591 = vst.msk [vmem:[#allocation4 + $0xd8] sm:$0xff] %vm352, %v4559
      %4592 = vst.msk [vmem:[#allocation4 + $0xe0] sm:$0xff] %vm352, %v4560
      %4593 = vst.msk [vmem:[#allocation4 + $0xe8] sm:$0xff] %vm352, %v4561
      %4594 = vst.msk [vmem:[#allocation4 + $0xf0] sm:$0xff] %vm352, %v4562
      %4595 = vst.msk [vmem:[#allocation4 + $0xf8] sm:$0xff] %vm352, %v4563
      %v4596 = vld [vmem:[%s4] sm:$0x1]
      %v4597 = vld [vmem:[%s5] sm:$0x1]
      %v4598 = vld [vmem:[#allocation4] sm:$0xff]
      %v4599 = vld [vmem:[#allocation4 + $0x8] sm:$0xff]
      %v4600 = vld [vmem:[#allocation4 + $0x10] sm:$0xff]
      %v4601 = vld [vmem:[#allocation4 + $0x18] sm:$0xff]
      %v4602 = vld [vmem:[#allocation4 + $0x20] sm:$0xff]
      %v4603 = vld [vmem:[#allocation4 + $0x28] sm:$0xff]
      %v4604 = vld [vmem:[#allocation4 + $0x30] sm:$0xff]
      %v4605 = vld [vmem:[#allocation4 + $0x38] sm:$0xff]
      %v4606 = vld [vmem:[#allocation4 + $0x40] sm:$0xff]
      %v4607 = vld [vmem:[#allocation4 + $0x48] sm:$0xff]
      %v4608 = vld [vmem:[#allocation4 + $0x50] sm:$0xff]
      %v4609 = vld [vmem:[#allocation4 + $0x58] sm:$0xff]
      %v4610 = vld [vmem:[#allocation4 + $0x60] sm:$0xff]
      %v4611 = vld [vmem:[#allocation4 + $0x68] sm:$0xff]
      %v4612 = vld [vmem:[#allocation4 + $0x70] sm:$0xff]
      %v4613 = vld [vmem:[#allocation4 + $0x78] sm:$0xff]
      %v4614 = vld [vmem:[#allocation4 + $0x80] sm:$0xff]
      %v4615 = vld [vmem:[#allocation4 + $0x88] sm:$0xff]
      %v4616 = vld [vmem:[#allocation4 + $0x90] sm:$0xff]
      %v4617 = vld [vmem:[#allocation4 + $0x98] sm:$0xff]
      %v4618 = vld [vmem:[#allocation4 + $0xa0] sm:$0xff]
      %v4619 = vld [vmem:[#allocation4 + $0xa8] sm:$0xff]
      %v4620 = vld [vmem:[#allocation4 + $0xb0] sm:$0xff]
      %v4621 = vld [vmem:[#allocation4 + $0xb8] sm:$0xff]
      %v4622 = vld [vmem:[#allocation4 + $0xc0] sm:$0xff]
      %v4623 = vld [vmem:[#allocation4 + $0xc8] sm:$0xff]
      %v4624 = vld [vmem:[#allocation4 + $0xd0] sm:$0xff]
      %v4625 = vld [vmem:[#allocation4 + $0xd8] sm:$0xff]
      %v4626 = vld [vmem:[#allocation4 + $0xe0] sm:$0xff]
      %v4627 = vld [vmem:[#allocation4 + $0xe8] sm:$0xff]
      %v4628 = vld [vmem:[#allocation4 + $0xf0] sm:$0xff]
      %v4629 = vld [vmem:[#allocation4 + $0xf8] sm:$0xff]
      %v4631 = vlaneseq
      %v4632 = vshrl.u32 %v4631, 7
      %v4633 = vsub.s32 0, %v4632
      %v4634 = vrot.slane %v4596, %v4633
      %v4636 = vmul.f32 %v4598, %v4634
      %v4637 = vmul.f32 %v4599, %v4634
      %v4638 = vmul.f32 %v4600, %v4634
      %v4639 = vmul.f32 %v4601, %v4634
      %v4640 = vmul.f32 %v4602, %v4634
      %v4641 = vmul.f32 %v4603, %v4634
      %v4642 = vmul.f32 %v4604, %v4634
      %v4643 = vmul.f32 %v4605, %v4634
      %v4644 = vmul.f32 %v4606, %v4634
      %v4645 = vmul.f32 %v4607, %v4634
      %v4646 = vmul.f32 %v4608, %v4634
      %v4647 = vmul.f32 %v4609, %v4634
      %v4648 = vmul.f32 %v4610, %v4634
      %v4649 = vmul.f32 %v4611, %v4634
      %v4650 = vmul.f32 %v4612, %v4634
      %v4651 = vmul.f32 %v4613, %v4634
      %v4652 = vmul.f32 %v4614, %v4634
      %v4653 = vmul.f32 %v4615, %v4634
      %v4654 = vmul.f32 %v4616, %v4634
      %v4655 = vmul.f32 %v4617, %v4634
      %v4656 = vmul.f32 %v4618, %v4634
      %v4657 = vmul.f32 %v4619, %v4634
      %v4658 = vmul.f32 %v4620, %v4634
      %v4659 = vmul.f32 %v4621, %v4634
      %v4660 = vmul.f32 %v4622, %v4634
      %v4661 = vmul.f32 %v4623, %v4634
      %v4662 = vmul.f32 %v4624, %v4634
      %v4663 = vmul.f32 %v4625, %v4634
      %v4664 = vmul.f32 %v4626, %v4634
      %v4665 = vmul.f32 %v4627, %v4634
      %v4666 = vmul.f32 %v4628, %v4634
      %v4667 = vmul.f32 %v4629, %v4634
      %v4669 = vlaneseq
      %v4670 = vshrl.u32 %v4669, 7
      %v4671 = vsub.s32 0, %v4670
      %v4672 = vrot.slane %v4597, %v4671
      %v4674 = vadd.f32 %v4636, %v4672
      %v4675 = vadd.f32 %v4637, %v4672
      %v4676 = vadd.f32 %v4638, %v4672
      %v4677 = vadd.f32 %v4639, %v4672
      %v4678 = vadd.f32 %v4640, %v4672
      %v4679 = vadd.f32 %v4641, %v4672
      %v4680 = vadd.f32 %v4642, %v4672
      %v4681 = vadd.f32 %v4643, %v4672
      %v4682 = vadd.f32 %v4644, %v4672
      %v4683 = vadd.f32 %v4645, %v4672
      %v4684 = vadd.f32 %v4646, %v4672
      %v4685 = vadd.f32 %v4647, %v4672
      %v4686 = vadd.f32 %v4648, %v4672
      %v4687 = vadd.f32 %v4649, %v4672
      %v4688 = vadd.f32 %v4650, %v4672
      %v4689 = vadd.f32 %v4651, %v4672
      %v4690 = vadd.f32 %v4652, %v4672
      %v4691 = vadd.f32 %v4653, %v4672
      %v4692 = vadd.f32 %v4654, %v4672
      %v4693 = vadd.f32 %v4655, %v4672
      %v4694 = vadd.f32 %v4656, %v4672
      %v4695 = vadd.f32 %v4657, %v4672
      %v4696 = vadd.f32 %v4658, %v4672
      %v4697 = vadd.f32 %v4659, %v4672
      %v4698 = vadd.f32 %v4660, %v4672
      %v4699 = vadd.f32 %v4661, %v4672
      %v4700 = vadd.f32 %v4662, %v4672
      %v4701 = vadd.f32 %v4663, %v4672
      %v4702 = vadd.f32 %v4664, %v4672
      %v4703 = vadd.f32 %v4665, %v4672
      %v4704 = vadd.f32 %v4666, %v4672
      %v4705 = vadd.f32 %v4667, %v4672
      %v4706 = vmax.f32 %v4674, 0.0
      %v4707 = vmax.f32 %v4675, 0.0
      %v4708 = vmax.f32 %v4676, 0.0
      %v4709 = vmax.f32 %v4677, 0.0
      %v4710 = vmax.f32 %v4678, 0.0
      %v4711 = vmax.f32 %v4679, 0.0
      %v4712 = vmax.f32 %v4680, 0.0
      %v4713 = vmax.f32 %v4681, 0.0
      %v4714 = vmax.f32 %v4682, 0.0
      %v4715 = vmax.f32 %v4683, 0.0
      %v4716 = vmax.f32 %v4684, 0.0
      %v4717 = vmax.f32 %v4685, 0.0
      %v4718 = vmax.f32 %v4686, 0.0
      %v4719 = vmax.f32 %v4687, 0.0
      %v4720 = vmax.f32 %v4688, 0.0
      %v4721 = vmax.f32 %v4689, 0.0
      %v4722 = vmax.f32 %v4690, 0.0
      %v4723 = vmax.f32 %v4691, 0.0
      %v4724 = vmax.f32 %v4692, 0.0
      %v4725 = vmax.f32 %v4693, 0.0
      %v4726 = vmax.f32 %v4694, 0.0
      %v4727 = vmax.f32 %v4695, 0.0
      %v4728 = vmax.f32 %v4696, 0.0
      %v4729 = vmax.f32 %v4697, 0.0
      %v4730 = vmax.f32 %v4698, 0.0
      %v4731 = vmax.f32 %v4699, 0.0
      %v4732 = vmax.f32 %v4700, 0.0
      %v4733 = vmax.f32 %v4701, 0.0
      %v4734 = vmax.f32 %v4702, 0.0
      %v4735 = vmax.f32 %v4703, 0.0
      %v4736 = vmax.f32 %v4704, 0.0
      %v4737 = vmax.f32 %v4705, 0.0
      %s4738 = scalar_lea.vmem [#allocation3], 24
      %4739 = vst.msk [vmem:[%s4738 + $0x1] sm:$0xff] %vm352, %v4706
      %4740 = vst.msk [vmem:[%s4738 + $0x9] sm:$0xff] %vm352, %v4707
      %4741 = vst.msk [vmem:[%s4738 + $0x19] sm:$0xff] %vm352, %v4708
      %4742 = vst.msk [vmem:[%s4738 + $0x21] sm:$0xff] %vm352, %v4709
      %4743 = vst.msk [vmem:[%s4738 + $0x31] sm:$0xff] %vm352, %v4710
      %4744 = vst.msk [vmem:[%s4738 + $0x39] sm:$0xff] %vm352, %v4711
      %4745 = vst.msk [vmem:[%s4738 + $0x49] sm:$0xff] %vm352, %v4712
      %4746 = vst.msk [vmem:[%s4738 + $0x51] sm:$0xff] %vm352, %v4713
      %4747 = vst.msk [vmem:[%s4738 + $0x61] sm:$0xff] %vm352, %v4714
      %4748 = vst.msk [vmem:[%s4738 + $0x69] sm:$0xff] %vm352, %v4715
      %4749 = vst.msk [vmem:[%s4738 + $0x79] sm:$0xff] %vm352, %v4716
      %4750 = vst.msk [vmem:[%s4738 + $0x81] sm:$0xff] %vm352, %v4717
      %4751 = vst.msk [vmem:[%s4738 + $0x91] sm:$0xff] %vm352, %v4718
      %4752 = vst.msk [vmem:[%s4738 + $0x99] sm:$0xff] %vm352, %v4719
      %4753 = vst.msk [vmem:[%s4738 + $0xa9] sm:$0xff] %vm352, %v4720
      %4754 = vst.msk [vmem:[%s4738 + $0xb1] sm:$0xff] %vm352, %v4721
      %4755 = vst.msk [vmem:[%s4738 + $0xc1] sm:$0xff] %vm352, %v4722
      %4756 = vst.msk [vmem:[%s4738 + $0xc9] sm:$0xff] %vm352, %v4723
      %4757 = vst.msk [vmem:[%s4738 + $0xd9] sm:$0xff] %vm352, %v4724
      %4758 = vst.msk [vmem:[%s4738 + $0xe1] sm:$0xff] %vm352, %v4725
      %4759 = vst.msk [vmem:[%s4738 + $0xf1] sm:$0xff] %vm352, %v4726
      %4760 = vst.msk [vmem:[%s4738 + $0xf9] sm:$0xff] %vm352, %v4727
      %4761 = vst.msk [vmem:[%s4738 + $0x109] sm:$0xff] %vm352, %v4728
      %4762 = vst.msk [vmem:[%s4738 + $0x111] sm:$0xff] %vm352, %v4729
      %4763 = vst.msk [vmem:[%s4738 + $0x121] sm:$0xff] %vm352, %v4730
      %4764 = vst.msk [vmem:[%s4738 + $0x129] sm:$0xff] %vm352, %v4731
      %4765 = vst.msk [vmem:[%s4738 + $0x139] sm:$0xff] %vm352, %v4732
      %4766 = vst.msk [vmem:[%s4738 + $0x141] sm:$0xff] %vm352, %v4733
      %4767 = vst.msk [vmem:[%s4738 + $0x151] sm:$0xff] %vm352, %v4734
      %4768 = vst.msk [vmem:[%s4738 + $0x159] sm:$0xff] %vm352, %v4735
      %4769 = vst.msk [vmem:[%s4738 + $0x169] sm:$0xff] %vm352, %v4736
      %4770 = vst.msk [vmem:[%s4738 + $0x171] sm:$0xff] %vm352, %v4737
      %v4771 = vld [vmem:[#allocation3] ss:$2 sm:$0xff]
      %s4772 = scalar_lea.vmem [#allocation3], 24
      %v4773 = vld [vmem:[%s4772] ss:$2 sm:$0xff]
      %s4774 = scalar_lea.vmem [#allocation3], 48
      %v4775 = vld [vmem:[%s4774] ss:$2 sm:$0xff]
      %s4776 = scalar_lea.vmem [#allocation3], 72
      %v4777 = vld [vmem:[%s4776] ss:$2 sm:$0xff]
      %s4778 = scalar_lea.vmem [#allocation3], 96
      %v4779 = vld [vmem:[%s4778] ss:$2 sm:$0xff]
      %s4780 = scalar_lea.vmem [#allocation3], 120
      %v4781 = vld [vmem:[%s4780] ss:$2 sm:$0xff]
      %s4782 = scalar_lea.vmem [#allocation3], 144
      %v4783 = vld [vmem:[%s4782] ss:$2 sm:$0xff]
      %s4784 = scalar_lea.vmem [#allocation3], 168
      %v4785 = vld [vmem:[%s4784] ss:$2 sm:$0xff]
      %s4786 = scalar_lea.vmem [#allocation3], 192
      %v4787 = vld [vmem:[%s4786] ss:$2 sm:$0xff]
      %s4788 = scalar_lea.vmem [#allocation3], 216
      %v4789 = vld [vmem:[%s4788] ss:$2 sm:$0xff]
      %s4790 = scalar_lea.vmem [#allocation3], 240
      %v4791 = vld [vmem:[%s4790] ss:$2 sm:$0xff]
      %s4792 = scalar_lea.vmem [#allocation3], 264
      %v4793 = vld [vmem:[%s4792] ss:$2 sm:$0xff]
      %s4794 = scalar_lea.vmem [#allocation3], 288
      %v4795 = vld [vmem:[%s4794] ss:$2 sm:$0xff]
      %s4796 = scalar_lea.vmem [#allocation3], 312
      %v4797 = vld [vmem:[%s4796] ss:$2 sm:$0xff]
      %s4798 = scalar_lea.vmem [#allocation3], 336
      %v4799 = vld [vmem:[%s4798] ss:$2 sm:$0xff]
      %s4800 = scalar_lea.vmem [#allocation3], 360
      %v4801 = vld [vmem:[%s4800] ss:$2 sm:$0xff]
      %s4802 = scalar_lea.vmem [#allocation3], 384
      %v4803 = vld [vmem:[%s4802] ss:$2 sm:$0xff]
      %v4804 = vld [vmem:[%s6] sm:$0xff]
      %v4806 = vsel %vm352, %v4771, 0
      %v4809 = vsel %vm352, %v4775, 0
      %v4812 = vsel %vm352, %v4779, 0
      %v4815 = vsel %vm352, %v4783, 0
      %v4818 = vsel %vm352, %v4787, 0
      %v4821 = vsel %vm352, %v4791, 0
      %v4824 = vsel %vm352, %v4795, 0
      %v4827 = vsel %vm352, %v4799, 0
      %4829 = vmatprep.subr.mxu0 0.0
      %4830 = vmatpush1.msra.mxu0 %v4804
      %4831 = vmatprep.subr.mxu0 0.0
      %4832 = vmatpush1.msra.mxu0 0.0
      %4833 = vmatprep.subr.mxu0 0.0
      %4834 = vmatpush1.msra.mxu0 0.0
      %4835 = vmatprep.subr.mxu0 0.0
      %4836 = vmatpush1.msra.mxu0 0.0
      %4837 = vmatprep.subr.mxu0 0.0
      %4838 = vmatpush1.msra.mxu0 0.0
      %4839 = vmatprep.subr.mxu0 0.0
      %4840 = vmatpush1.msra.mxu0 0.0
      %4841 = vmatprep.subr.mxu0 0.0
      %4842 = vmatpush1.msra.mxu0 0.0
      %4843 = vmatprep.subr.mxu0 0.0
      %4844 = vmatpush1.msra.mxu0 0.0
      %4845 = vmatprep.subr.mxu0 0.0
      %4846 = vmatpush1.msra.mxu0 0.0
      %4847 = vmatprep.subr.mxu0 0.0
      %4848 = vmatpush1.msra.mxu0 0.0
      %4849 = vmatprep.subr.mxu0 0.0
      %4850 = vmatpush1.msra.mxu0 0.0
      %4851 = vmatprep.subr.mxu0 0.0
      %4852 = vmatpush1.msra.mxu0 0.0
      %4853 = vmatprep.subr.mxu0 0.0
      %4854 = vmatpush1.msra.mxu0 0.0
      %4855 = vmatprep.subr.mxu0 0.0
      %4856 = vmatpush1.msra.mxu0 0.0
      %4857 = vmatprep.subr.mxu0 0.0
      %4858 = vmatpush1.msra.mxu0 0.0
      %4859 = vmatprep.subr.mxu0 0.0
      %4860 = vmatpush1.msra.mxu0 0.0
      %4861 = vmatprep.subr.mxu0 0.0
      %4862 = vmatpush1.msra.mxu0 0.0
      %4863 = vmatprep.subr.mxu0 0.0
      %4864 = vmatpush1.msra.mxu0 0.0
      %4865 = vmatprep.subr.mxu0 0.0
      %4866 = vmatpush1.msra.mxu0 0.0
      %4867 = vmatprep.subr.mxu0 0.0
      %4868 = vmatpush1.msra.mxu0 0.0
      %4869 = vmatprep.subr.mxu0 0.0
      %4870 = vmatpush1.msra.mxu0 0.0
      %4871 = vmatprep.subr.mxu0 0.0
      %4872 = vmatpush1.msra.mxu0 0.0
      %4873 = vmatprep.subr.mxu0 0.0
      %4874 = vmatpush1.msra.mxu0 0.0
      %4875 = vmatprep.subr.mxu0 0.0
      %4876 = vmatpush1.msra.mxu0 0.0
      %4877 = vmatprep.subr.mxu0 0.0
      %4878 = vmatpush1.msra.mxu0 0.0
      %4879 = vmatprep.subr.mxu0 0.0
      %4880 = vmatpush1.msra.mxu0 0.0
      %4881 = vmatprep.subr.mxu0 0.0
      %4882 = vmatpush1.msra.mxu0 0.0
      %4883 = vmatprep.subr.mxu0 0.0
      %4884 = vmatpush1.msra.mxu0 0.0
      %4885 = vmatprep.subr.mxu0 0.0
      %4886 = vmatpush1.msra.mxu0 0.0
      %4887 = vmatprep.subr.mxu0 0.0
      %4888 = vmatpush1.msra.mxu0 0.0
      %4889 = vmatprep.subr.mxu0 0.0
      %4890 = vmatpush1.msra.mxu0 0.0
      %4891 = vmatprep.subr.mxu0 0.0
      %4892 = vmatpush1.msra.mxu0 0.0
      %4893 = vmatprep.mubr.f32.mxu0 0.0
      %4894 = vmatmul.mubr.f32.gmra.mrb[0].mxu0 %v4806
      %v4895 = vpop.f32.mrb[0].mxu0
      %v4896 = vadd.f32 0.0, %v4895
      %v4897 = vpop.f32.mrb[0].mxu0
      %4898 = vmatprep.mubr.f32.mxu0 0.0
      %4899 = vmatmul.mubr.f32.gmra.mrb[0].mxu0 %v4809
      %v4900 = vpop.f32.mrb[0].mxu0
      %v4901 = vadd.f32 0.0, %v4900
      %v4902 = vpop.f32.mrb[0].mxu0
      %4903 = vmatprep.mubr.f32.mxu0 0.0
      %4904 = vmatmul.mubr.f32.gmra.mrb[0].mxu0 %v4812
      %v4905 = vpop.f32.mrb[0].mxu0
      %v4906 = vadd.f32 0.0, %v4905
      %v4907 = vpop.f32.mrb[0].mxu0
      %4908 = vmatprep.mubr.f32.mxu0 0.0
      %4909 = vmatmul.mubr.f32.gmra.mrb[0].mxu0 %v4815
      %v4910 = vpop.f32.mrb[0].mxu0
      %v4911 = vadd.f32 0.0, %v4910
      %v4912 = vpop.f32.mrb[0].mxu0
      %4913 = vmatprep.mubr.f32.mxu0 0.0
      %4914 = vmatmul.mubr.f32.gmra.mrb[0].mxu0 %v4818
      %v4915 = vpop.f32.mrb[0].mxu0
      %v4916 = vadd.f32 0.0, %v4915
      %v4917 = vpop.f32.mrb[0].mxu0
      %4918 = vmatprep.mubr.f32.mxu0 0.0
      %4919 = vmatmul.mubr.f32.gmra.mrb[0].mxu0 %v4821
      %v4920 = vpop.f32.mrb[0].mxu0
      %v4921 = vadd.f32 0.0, %v4920
      %v4922 = vpop.f32.mrb[0].mxu0
      %4923 = vmatprep.mubr.f32.mxu0 0.0
      %4924 = vmatmul.mubr.f32.gmra.mrb[0].mxu0 %v4824
      %v4925 = vpop.f32.mrb[0].mxu0
      %v4926 = vadd.f32 0.0, %v4925
      %v4927 = vpop.f32.mrb[0].mxu0
      %4928 = vmatprep.mubr.f32.mxu0 0.0
      %4929 = vmatmul.mubr.f32.gmra.mrb[0].mxu0 %v4827
      %v4930 = vpop.f32.mrb[0].mxu0
      %v4931 = vadd.f32 0.0, %v4930
      %v4932 = vpop.f32.mrb[0].mxu0
      %4933 = vdwg.mxu0
      %4934 = vst.msk [vmem:[#allocation5] sm:$0xff] %vm352, %v4896
      %4935 = vst.msk [vmem:[#allocation5 + $0x8] sm:$0xff] %vm352, %v4901
      %4936 = vst.msk [vmem:[#allocation5 + $0x10] sm:$0xff] %vm352, %v4906
      %4937 = vst.msk [vmem:[#allocation5 + $0x18] sm:$0xff] %vm352, %v4911
      %4938 = vst.msk [vmem:[#allocation5 + $0x20] sm:$0xff] %vm352, %v4916
      %4939 = vst.msk [vmem:[#allocation5 + $0x28] sm:$0xff] %vm352, %v4921
      %4940 = vst.msk [vmem:[#allocation5 + $0x30] sm:$0xff] %vm352, %v4926
      %4941 = vst.msk [vmem:[#allocation5 + $0x38] sm:$0xff] %vm352, %v4931
      %s4942 = scalar_lea.vmem %s6, 24
      %v4943 = vld [vmem:[%s4942] sm:$0xff]
      %v4945 = vsel %vm352, %v4773, 0
      %v4948 = vsel %vm352, %v4777, 0
      %v4951 = vsel %vm352, %v4781, 0
      %v4954 = vsel %vm352, %v4785, 0
      %v4957 = vsel %vm352, %v4789, 0
      %v4960 = vsel %vm352, %v4793, 0
      %v4963 = vsel %vm352, %v4797, 0
      %v4966 = vsel %vm352, %v4801, 0
      %4968 = vmatprep.subr.mxu0 0.0
      %4969 = vmatpush1.msra.mxu0 %v4943
      %4970 = vmatprep.subr.mxu0 0.0
      %4971 = vmatpush1.msra.mxu0 0.0
      %4972 = vmatprep.subr.mxu0 0.0
      %4973 = vmatpush1.msra.mxu0 0.0
      %4974 = vmatprep.subr.mxu0 0.0
      %4975 = vmatpush1.msra.mxu0 0.0
      %4976 = vmatprep.subr.mxu0 0.0
      %4977 = vmatpush1.msra.mxu0 0.0
      %4978 = vmatprep.subr.mxu0 0.0
      %4979 = vmatpush1.msra.mxu0 0.0
      %4980 = vmatprep.subr.mxu0 0.0
      %4981 = vmatpush1.msra.mxu0 0.0
      %4982 = vmatprep.subr.mxu0 0.0
      %4983 = vmatpush1.msra.mxu0 0.0
      %4984 = vmatprep.subr.mxu0 0.0
      %4985 = vmatpush1.msra.mxu0 0.0
      %4986 = vmatprep.subr.mxu0 0.0
      %4987 = vmatpush1.msra.mxu0 0.0
      %4988 = vmatprep.subr.mxu0 0.0
      %4989 = vmatpush1.msra.mxu0 0.0
      %4990 = vmatprep.subr.mxu0 0.0
      %4991 = vmatpush1.msra.mxu0 0.0
      %4992 = vmatprep.subr.mxu0 0.0
      %4993 = vmatpush1.msra.mxu0 0.0
      %4994 = vmatprep.subr.mxu0 0.0
      %4995 = vmatpush1.msra.mxu0 0.0
      %4996 = vmatprep.subr.mxu0 0.0
      %4997 = vmatpush1.msra.mxu0 0.0
      %4998 = vmatprep.subr.mxu0 0.0
      %4999 = vmatpush1.msra.mxu0 0.0
      %5000 = vmatprep.subr.mxu0 0.0
      %5001 = vmatpush1.msra.mxu0 0.0
      %5002 = vmatprep.subr.mxu0 0.0
      %5003 = vmatpush1.msra.mxu0 0.0
      %5004 = vmatprep.subr.mxu0 0.0
      %5005 = vmatpush1.msra.mxu0 0.0
      %5006 = vmatprep.subr.mxu0 0.0
      %5007 = vmatpush1.msra.mxu0 0.0
      %5008 = vmatprep.subr.mxu0 0.0
      %5009 = vmatpush1.msra.mxu0 0.0
      %5010 = vmatprep.subr.mxu0 0.0
      %5011 = vmatpush1.msra.mxu0 0.0
      %5012 = vmatprep.subr.mxu0 0.0
      %5013 = vmatpush1.msra.mxu0 0.0
      %5014 = vmatprep.subr.mxu0 0.0
      %5015 = vmatpush1.msra.mxu0 0.0
      %5016 = vmatprep.subr.mxu0 0.0
      %5017 = vmatpush1.msra.mxu0 0.0
      %5018 = vmatprep.subr.mxu0 0.0
      %5019 = vmatpush1.msra.mxu0 0.0
      %5020 = vmatprep.subr.mxu0 0.0
      %5021 = vmatpush1.msra.mxu0 0.0
      %5022 = vmatprep.subr.mxu0 0.0
      %5023 = vmatpush1.msra.mxu0 0.0
      %5024 = vmatprep.subr.mxu0 0.0
      %5025 = vmatpush1.msra.mxu0 0.0
      %5026 = vmatprep.subr.mxu0 0.0
      %5027 = vmatpush1.msra.mxu0 0.0
      %5028 = vmatprep.subr.mxu0 0.0
      %5029 = vmatpush1.msra.mxu0 0.0
      %5030 = vmatprep.subr.mxu0 0.0
      %5031 = vmatpush1.msra.mxu0 0.0
      %5032 = vmatprep.mubr.f32.mxu0 0.0
      %5033 = vmatmul.mubr.f32.gmra.mrb[0].mxu0 %v4945
      %v5034 = vpop.f32.mrb[0].mxu0
      %v5035 = vadd.f32 0.0, %v5034
      %v5036 = vpop.f32.mrb[0].mxu0
      %5037 = vmatprep.mubr.f32.mxu0 0.0
      %5038 = vmatmul.mubr.f32.gmra.mrb[0].mxu0 %v4948
      %v5039 = vpop.f32.mrb[0].mxu0
      %v5040 = vadd.f32 0.0, %v5039
      %v5041 = vpop.f32.mrb[0].mxu0
      %5042 = vmatprep.mubr.f32.mxu0 0.0
      %5043 = vmatmul.mubr.f32.gmra.mrb[0].mxu0 %v4951
      %v5044 = vpop.f32.mrb[0].mxu0
      %v5045 = vadd.f32 0.0, %v5044
      %v5046 = vpop.f32.mrb[0].mxu0
      %5047 = vmatprep.mubr.f32.mxu0 0.0
      %5048 = vmatmul.mubr.f32.gmra.mrb[0].mxu0 %v4954
      %v5049 = vpop.f32.mrb[0].mxu0
      %v5050 = vadd.f32 0.0, %v5049
      %v5051 = vpop.f32.mrb[0].mxu0
      %5052 = vmatprep.mubr.f32.mxu0 0.0
      %5053 = vmatmul.mubr.f32.gmra.mrb[0].mxu0 %v4957
      %v5054 = vpop.f32.mrb[0].mxu0
      %v5055 = vadd.f32 0.0, %v5054
      %v5056 = vpop.f32.mrb[0].mxu0
      %5057 = vmatprep.mubr.f32.mxu0 0.0
      %5058 = vmatmul.mubr.f32.gmra.mrb[0].mxu0 %v4960
      %v5059 = vpop.f32.mrb[0].mxu0
      %v5060 = vadd.f32 0.0, %v5059
      %v5061 = vpop.f32.mrb[0].mxu0
      %5062 = vmatprep.mubr.f32.mxu0 0.0
      %5063 = vmatmul.mubr.f32.gmra.mrb[0].mxu0 %v4963
      %v5064 = vpop.f32.mrb[0].mxu0
      %v5065 = vadd.f32 0.0, %v5064
      %v5066 = vpop.f32.mrb[0].mxu0
      %5067 = vmatprep.mubr.f32.mxu0 0.0
      %5068 = vmatmul.mubr.f32.gmra.mrb[0].mxu0 %v4966
      %v5069 = vpop.f32.mrb[0].mxu0
      %v5070 = vadd.f32 0.0, %v5069
      %v5071 = vpop.f32.mrb[0].mxu0
      %5072 = vdwg.mxu0
      %v5073 = vld [vmem:[#allocation5] sm:$0xff]
      %v5074 = vld [vmem:[#allocation5 + $0x8] sm:$0xff]
      %v5075 = vld [vmem:[#allocation5 + $0x10] sm:$0xff]
      %v5076 = vld [vmem:[#allocation5 + $0x18] sm:$0xff]
      %v5077 = vld [vmem:[#allocation5 + $0x20] sm:$0xff]
      %v5078 = vld [vmem:[#allocation5 + $0x28] sm:$0xff]
      %v5079 = vld [vmem:[#allocation5 + $0x30] sm:$0xff]
      %v5080 = vld [vmem:[#allocation5 + $0x38] sm:$0xff]
      %v5081 = vadd.f32 %v5073, %v5035
      %v5082 = vadd.f32 %v5074, %v5040
      %v5083 = vadd.f32 %v5075, %v5045
      %v5084 = vadd.f32 %v5076, %v5050
      %v5085 = vadd.f32 %v5077, %v5055
      %v5086 = vadd.f32 %v5078, %v5060
      %v5087 = vadd.f32 %v5079, %v5065
      %v5088 = vadd.f32 %v5080, %v5070
      %5089 = vst.msk [vmem:[#allocation5] sm:$0xff] %vm352, %v5081
      %5090 = vst.msk [vmem:[#allocation5 + $0x8] sm:$0xff] %vm352, %v5082
      %5091 = vst.msk [vmem:[#allocation5 + $0x10] sm:$0xff] %vm352, %v5083
      %5092 = vst.msk [vmem:[#allocation5 + $0x18] sm:$0xff] %vm352, %v5084
      %5093 = vst.msk [vmem:[#allocation5 + $0x20] sm:$0xff] %vm352, %v5085
      %5094 = vst.msk [vmem:[#allocation5 + $0x28] sm:$0xff] %vm352, %v5086
      %5095 = vst.msk [vmem:[#allocation5 + $0x30] sm:$0xff] %vm352, %v5087
      %5096 = vst.msk [vmem:[#allocation5 + $0x38] sm:$0xff] %vm352, %v5088
      %s5097 = scalar_lea.vmem %s6, 48
      %v5098 = vld [vmem:[%s5097] sm:$0xff]
      %v5100 = vsel %vm352, %v4803, 0
      %5102 = vmatprep.subr.mxu0 0.0
      %5103 = vmatpush1.msra.mxu0 %v5098
      %5104 = vmatprep.subr.mxu0 0.0
      %5105 = vmatpush1.msra.mxu0 0.0
      %5106 = vmatprep.subr.mxu0 0.0
      %5107 = vmatpush1.msra.mxu0 0.0
      %5108 = vmatprep.subr.mxu0 0.0
      %5109 = vmatpush1.msra.mxu0 0.0
      %5110 = vmatprep.subr.mxu0 0.0
      %5111 = vmatpush1.msra.mxu0 0.0
      %5112 = vmatprep.subr.mxu0 0.0
      %5113 = vmatpush1.msra.mxu0 0.0
      %5114 = vmatprep.subr.mxu0 0.0
      %5115 = vmatpush1.msra.mxu0 0.0
      %5116 = vmatprep.subr.mxu0 0.0
      %5117 = vmatpush1.msra.mxu0 0.0
      %5118 = vmatprep.subr.mxu0 0.0
      %5119 = vmatpush1.msra.mxu0 0.0
      %5120 = vmatprep.subr.mxu0 0.0
      %5121 = vmatpush1.msra.mxu0 0.0
      %5122 = vmatprep.subr.mxu0 0.0
      %5123 = vmatpush1.msra.mxu0 0.0
      %5124 = vmatprep.subr.mxu0 0.0
      %5125 = vmatpush1.msra.mxu0 0.0
      %5126 = vmatprep.subr.mxu0 0.0
      %5127 = vmatpush1.msra.mxu0 0.0
      %5128 = vmatprep.subr.mxu0 0.0
      %5129 = vmatpush1.msra.mxu0 0.0
      %5130 = vmatprep.subr.mxu0 0.0
      %5131 = vmatpush1.msra.mxu0 0.0
      %5132 = vmatprep.subr.mxu0 0.0
      %5133 = vmatpush1.msra.mxu0 0.0
      %5134 = vmatprep.subr.mxu0 0.0
      %5135 = vmatpush1.msra.mxu0 0.0
      %5136 = vmatprep.subr.mxu0 0.0
      %5137 = vmatpush1.msra.mxu0 0.0
      %5138 = vmatprep.subr.mxu0 0.0
      %5139 = vmatpush1.msra.mxu0 0.0
      %5140 = vmatprep.subr.mxu0 0.0
      %5141 = vmatpush1.msra.mxu0 0.0
      %5142 = vmatprep.subr.mxu0 0.0
      %5143 = vmatpush1.msra.mxu0 0.0
      %5144 = vmatprep.subr.mxu0 0.0
      %5145 = vmatpush1.msra.mxu0 0.0
      %5146 = vmatprep.subr.mxu0 0.0
      %5147 = vmatpush1.msra.mxu0 0.0
      %5148 = vmatprep.subr.mxu0 0.0
      %5149 = vmatpush1.msra.mxu0 0.0
      %5150 = vmatprep.subr.mxu0 0.0
      %5151 = vmatpush1.msra.mxu0 0.0
      %5152 = vmatprep.subr.mxu0 0.0
      %5153 = vmatpush1.msra.mxu0 0.0
      %5154 = vmatprep.subr.mxu0 0.0
      %5155 = vmatpush1.msra.mxu0 0.0
      %5156 = vmatprep.subr.mxu0 0.0
      %5157 = vmatpush1.msra.mxu0 0.0
      %5158 = vmatprep.subr.mxu0 0.0
      %5159 = vmatpush1.msra.mxu0 0.0
      %5160 = vmatprep.subr.mxu0 0.0
      %5161 = vmatpush1.msra.mxu0 0.0
      %5162 = vmatprep.subr.mxu0 0.0
      %5163 = vmatpush1.msra.mxu0 0.0
      %5164 = vmatprep.subr.mxu0 0.0
      %5165 = vmatpush1.msra.mxu0 0.0
      %5166 = vmatprep.mubr.f32.mxu0 0.0
      %5167 = vmatmul.mubr.f32.gmra.mrb[0].mxu0 %v4809
      %v5168 = vpop.f32.mrb[0].mxu0
      %v5169 = vadd.f32 0.0, %v5168
      %v5170 = vpop.f32.mrb[0].mxu0
      %5171 = vmatprep.mubr.f32.mxu0 0.0
      %5172 = vmatmul.mubr.f32.gmra.mrb[0].mxu0 %v4812
      %v5173 = vpop.f32.mrb[0].mxu0
      %v5174 = vadd.f32 0.0, %v5173
      %v5175 = vpop.f32.mrb[0].mxu0
      %5176 = vmatprep.mubr.f32.mxu0 0.0
      %5177 = vmatmul.mubr.f32.gmra.mrb[0].mxu0 %v4815
      %v5178 = vpop.f32.mrb[0].mxu0
      %v5179 = vadd.f32 0.0, %v5178
      %v5180 = vpop.f32.mrb[0].mxu0
      %5181 = vmatprep.mubr.f32.mxu0 0.0
      %5182 = vmatmul.mubr.f32.gmra.mrb[0].mxu0 %v4818
      %v5183 = vpop.f32.mrb[0].mxu0
      %v5184 = vadd.f32 0.0, %v5183
      %v5185 = vpop.f32.mrb[0].mxu0
      %5186 = vmatprep.mubr.f32.mxu0 0.0
      %5187 = vmatmul.mubr.f32.gmra.mrb[0].mxu0 %v4821
      %v5188 = vpop.f32.mrb[0].mxu0
      %v5189 = vadd.f32 0.0, %v5188
      %v5190 = vpop.f32.mrb[0].mxu0
      %5191 = vmatprep.mubr.f32.mxu0 0.0
      %5192 = vmatmul.mubr.f32.gmra.mrb[0].mxu0 %v4824
      %v5193 = vpop.f32.mrb[0].mxu0
      %v5194 = vadd.f32 0.0, %v5193
      %v5195 = vpop.f32.mrb[0].mxu0
      %5196 = vmatprep.mubr.f32.mxu0 0.0
      %5197 = vmatmul.mubr.f32.gmra.mrb[0].mxu0 %v4827
      %v5198 = vpop.f32.mrb[0].mxu0
      %v5199 = vadd.f32 0.0, %v5198
      %v5200 = vpop.f32.mrb[0].mxu0
      %5201 = vmatprep.mubr.f32.mxu0 0.0
      %5202 = vmatmul.mubr.f32.gmra.mrb[0].mxu0 %v5100
      %v5203 = vpop.f32.mrb[0].mxu0
      %v5204 = vadd.f32 0.0, %v5203
      %v5205 = vpop.f32.mrb[0].mxu0
      %5206 = vdwg.mxu0
      %v5207 = vld [vmem:[#allocation5] sm:$0xff]
      %v5208 = vld [vmem:[#allocation5 + $0x8] sm:$0xff]
      %v5209 = vld [vmem:[#allocation5 + $0x10] sm:$0xff]
      %v5210 = vld [vmem:[#allocation5 + $0x18] sm:$0xff]
      %v5211 = vld [vmem:[#allocation5 + $0x20] sm:$0xff]
      %v5212 = vld [vmem:[#allocation5 + $0x28] sm:$0xff]
      %v5213 = vld [vmem:[#allocation5 + $0x30] sm:$0xff]
      %v5214 = vld [vmem:[#allocation5 + $0x38] sm:$0xff]
      %v5215 = vadd.f32 %v5207, %v5169
      %v5216 = vadd.f32 %v5208, %v5174
      %v5217 = vadd.f32 %v5209, %v5179
      %v5218 = vadd.f32 %v5210, %v5184
      %v5219 = vadd.f32 %v5211, %v5189
      %v5220 = vadd.f32 %v5212, %v5194
      %v5221 = vadd.f32 %v5213, %v5199
      %v5222 = vadd.f32 %v5214, %v5204
      %5223 = vst.msk [vmem:[#allocation5] sm:$0xff] %vm352, %v5215
      %5224 = vst.msk [vmem:[#allocation5 + $0x8] sm:$0xff] %vm352, %v5216
      %5225 = vst.msk [vmem:[#allocation5 + $0x10] sm:$0xff] %vm352, %v5217
      %5226 = vst.msk [vmem:[#allocation5 + $0x18] sm:$0xff] %vm352, %v5218
      %5227 = vst.msk [vmem:[#allocation5 + $0x20] sm:$0xff] %vm352, %v5219
      %5228 = vst.msk [vmem:[#allocation5 + $0x28] sm:$0xff] %vm352, %v5220
      %5229 = vst.msk [vmem:[#allocation5 + $0x30] sm:$0xff] %vm352, %v5221
      %5230 = vst.msk [vmem:[#allocation5 + $0x38] sm:$0xff] %vm352, %v5222
      %s5231 = scalar_lea.vmem [#allocation3], 1
      %v5232 = vld [vmem:[%s5231] ss:$2 sm:$0xff]
      %s5233 = scalar_lea.vmem [#allocation3], 25
      %v5234 = vld [vmem:[%s5233] ss:$2 sm:$0xff]
      %s5235 = scalar_lea.vmem [#allocation3], 49
      %v5236 = vld [vmem:[%s5235] ss:$2 sm:$0xff]
      %s5237 = scalar_lea.vmem [#allocation3], 73
      %v5238 = vld [vmem:[%s5237] ss:$2 sm:$0xff]
      %s5239 = scalar_lea.vmem [#allocation3], 97
      %v5240 = vld [vmem:[%s5239] ss:$2 sm:$0xff]
      %s5241 = scalar_lea.vmem [#allocation3], 121
      %v5242 = vld [vmem:[%s5241] ss:$2 sm:$0xff]
      %s5243 = scalar_lea.vmem [#allocation3], 145
      %v5244 = vld [vmem:[%s5243] ss:$2 sm:$0xff]
      %s5245 = scalar_lea.vmem [#allocation3], 169
      %v5246 = vld [vmem:[%s5245] ss:$2 sm:$0xff]
      %s5247 = scalar_lea.vmem [#allocation3], 193
      %v5248 = vld [vmem:[%s5247] ss:$2 sm:$0xff]
      %s5249 = scalar_lea.vmem [#allocation3], 217
      %v5250 = vld [vmem:[%s5249] ss:$2 sm:$0xff]
      %s5251 = scalar_lea.vmem [#allocation3], 241
      %v5252 = vld [vmem:[%s5251] ss:$2 sm:$0xff]
      %s5253 = scalar_lea.vmem [#allocation3], 265
      %v5254 = vld [vmem:[%s5253] ss:$2 sm:$0xff]
      %s5255 = scalar_lea.vmem [#allocation3], 289
      %v5256 = vld [vmem:[%s5255] ss:$2 sm:$0xff]
      %s5257 = scalar_lea.vmem [#allocation3], 313
      %v5258 = vld [vmem:[%s5257] ss:$2 sm:$0xff]
      %s5259 = scalar_lea.vmem [#allocation3], 337
      %v5260 = vld [vmem:[%s5259] ss:$2 sm:$0xff]
      %s5261 = scalar_lea.vmem [#allocation3], 361
      %v5262 = vld [vmem:[%s5261] ss:$2 sm:$0xff]
      %s5263 = scalar_lea.vmem [#allocation3], 385
      %v5264 = vld [vmem:[%s5263] ss:$2 sm:$0xff]
      %s5265 = scalar_lea.vmem %s6, 8
      %v5266 = vld [vmem:[%s5265] sm:$0xff]
      %v5268 = vsel %vm352, %v5232, 0
      %v5271 = vsel %vm352, %v5236, 0
      %v5274 = vsel %vm352, %v5240, 0
      %v5277 = vsel %vm352, %v5244, 0
      %v5280 = vsel %vm352, %v5248, 0
      %v5283 = vsel %vm352, %v5252, 0
      %v5286 = vsel %vm352, %v5256, 0
      %v5289 = vsel %vm352, %v5260, 0
      %5291 = vmatprep.subr.mxu0 0.0
      %5292 = vmatpush1.msra.mxu0 %v5266
      %5293 = vmatprep.subr.mxu0 0.0
      %5294 = vmatpush1.msra.mxu0 0.0
      %5295 = vmatprep.subr.mxu0 0.0
      %5296 = vmatpush1.msra.mxu0 0.0
      %5297 = vmatprep.subr.mxu0 0.0
      %5298 = vmatpush1.msra.mxu0 0.0
      %5299 = vmatprep.subr.mxu0 0.0
      %5300 = vmatpush1.msra.mxu0 0.0
      %5301 = vmatprep.subr.mxu0 0.0
      %5302 = vmatpush1.msra.mxu0 0.0
      %5303 = vmatprep.subr.mxu0 0.0
      %5304 = vmatpush1.msra.mxu0 0.0
      %5305 = vmatprep.subr.mxu0 0.0
      %5306 = vmatpush1.msra.mxu0 0.0
      %5307 = vmatprep.subr.mxu0 0.0
      %5308 = vmatpush1.msra.mxu0 0.0
      %5309 = vmatprep.subr.mxu0 0.0
      %5310 = vmatpush1.msra.mxu0 0.0
      %5311 = vmatprep.subr.mxu0 0.0
      %5312 = vmatpush1.msra.mxu0 0.0
      %5313 = vmatprep.subr.mxu0 0.0
      %5314 = vmatpush1.msra.mxu0 0.0
      %5315 = vmatprep.subr.mxu0 0.0
      %5316 = vmatpush1.msra.mxu0 0.0
      %5317 = vmatprep.subr.mxu0 0.0
      %5318 = vmatpush1.msra.mxu0 0.0
      %5319 = vmatprep.subr.mxu0 0.0
      %5320 = vmatpush1.msra.mxu0 0.0
      %5321 = vmatprep.subr.mxu0 0.0
      %5322 = vmatpush1.msra.mxu0 0.0
      %5323 = vmatprep.subr.mxu0 0.0
      %5324 = vmatpush1.msra.mxu0 0.0
      %5325 = vmatprep.subr.mxu0 0.0
      %5326 = vmatpush1.msra.mxu0 0.0
      %5327 = vmatprep.subr.mxu0 0.0
      %5328 = vmatpush1.msra.mxu0 0.0
      %5329 = vmatprep.subr.mxu0 0.0
      %5330 = vmatpush1.msra.mxu0 0.0
      %5331 = vmatprep.subr.mxu0 0.0
      %5332 = vmatpush1.msra.mxu0 0.0
      %5333 = vmatprep.subr.mxu0 0.0
      %5334 = vmatpush1.msra.mxu0 0.0
      %5335 = vmatprep.subr.mxu0 0.0
      %5336 = vmatpush1.msra.mxu0 0.0
      %5337 = vmatprep.subr.mxu0 0.0
      %5338 = vmatpush1.msra.mxu0 0.0
      %5339 = vmatprep.subr.mxu0 0.0
      %5340 = vmatpush1.msra.mxu0 0.0
      %5341 = vmatprep.subr.mxu0 0.0
      %5342 = vmatpush1.msra.mxu0 0.0
      %5343 = vmatprep.subr.mxu0 0.0
      %5344 = vmatpush1.msra.mxu0 0.0
      %5345 = vmatprep.subr.mxu0 0.0
      %5346 = vmatpush1.msra.mxu0 0.0
      %5347 = vmatprep.subr.mxu0 0.0
      %5348 = vmatpush1.msra.mxu0 0.0
      %5349 = vmatprep.subr.mxu0 0.0
      %5350 = vmatpush1.msra.mxu0 0.0
      %5351 = vmatprep.subr.mxu0 0.0
      %5352 = vmatpush1.msra.mxu0 0.0
      %5353 = vmatprep.subr.mxu0 0.0
      %5354 = vmatpush1.msra.mxu0 0.0
      %5355 = vmatprep.mubr.f32.mxu0 0.0
      %5356 = vmatmul.mubr.f32.gmra.mrb[0].mxu0 %v5268
      %v5357 = vpop.f32.mrb[0].mxu0
      %v5358 = vadd.f32 0.0, %v5357
      %v5359 = vpop.f32.mrb[0].mxu0
      %5360 = vmatprep.mubr.f32.mxu0 0.0
      %5361 = vmatmul.mubr.f32.gmra.mrb[0].mxu0 %v5271
      %v5362 = vpop.f32.mrb[0].mxu0
      %v5363 = vadd.f32 0.0, %v5362
      %v5364 = vpop.f32.mrb[0].mxu0
      %5365 = vmatprep.mubr.f32.mxu0 0.0
      %5366 = vmatmul.mubr.f32.gmra.mrb[0].mxu0 %v5274
      %v5367 = vpop.f32.mrb[0].mxu0
      %v5368 = vadd.f32 0.0, %v5367
      %v5369 = vpop.f32.mrb[0].mxu0
      %5370 = vmatprep.mubr.f32.mxu0 0.0
      %5371 = vmatmul.mubr.f32.gmra.mrb[0].mxu0 %v5277
      %v5372 = vpop.f32.mrb[0].mxu0
      %v5373 = vadd.f32 0.0, %v5372
      %v5374 = vpop.f32.mrb[0].mxu0
      %5375 = vmatprep.mubr.f32.mxu0 0.0
      %5376 = vmatmul.mubr.f32.gmra.mrb[0].mxu0 %v5280
      %v5377 = vpop.f32.mrb[0].mxu0
      %v5378 = vadd.f32 0.0, %v5377
      %v5379 = vpop.f32.mrb[0].mxu0
      %5380 = vmatprep.mubr.f32.mxu0 0.0
      %5381 = vmatmul.mubr.f32.gmra.mrb[0].mxu0 %v5283
      %v5382 = vpop.f32.mrb[0].mxu0
      %v5383 = vadd.f32 0.0, %v5382
      %v5384 = vpop.f32.mrb[0].mxu0
      %5385 = vmatprep.mubr.f32.mxu0 0.0
      %5386 = vmatmul.mubr.f32.gmra.mrb[0].mxu0 %v5286
      %v5387 = vpop.f32.mrb[0].mxu0
      %v5388 = vadd.f32 0.0, %v5387
      %v5389 = vpop.f32.mrb[0].mxu0
      %5390 = vmatprep.mubr.f32.mxu0 0.0
      %5391 = vmatmul.mubr.f32.gmra.mrb[0].mxu0 %v5289
      %v5392 = vpop.f32.mrb[0].mxu0
      %v5393 = vadd.f32 0.0, %v5392
      %v5394 = vpop.f32.mrb[0].mxu0
      %5395 = vdwg.mxu0
      %v5396 = vld [vmem:[#allocation5] sm:$0xff]
      %v5397 = vld [vmem:[#allocation5 + $0x8] sm:$0xff]
      %v5398 = vld [vmem:[#allocation5 + $0x10] sm:$0xff]
      %v5399 = vld [vmem:[#allocation5 + $0x18] sm:$0xff]
      %v5400 = vld [vmem:[#allocation5 + $0x20] sm:$0xff]
      %v5401 = vld [vmem:[#allocation5 + $0x28] sm:$0xff]
      %v5402 = vld [vmem:[#allocation5 + $0x30] sm:$0xff]
      %v5403 = vld [vmem:[#allocation5 + $0x38] sm:$0xff]
      %v5404 = vadd.f32 %v5396, %v5358
      %v5405 = vadd.f32 %v5397, %v5363
      %v5406 = vadd.f32 %v5398, %v5368
      %v5407 = vadd.f32 %v5399, %v5373
      %v5408 = vadd.f32 %v5400, %v5378
      %v5409 = vadd.f32 %v5401, %v5383
      %v5410 = vadd.f32 %v5402, %v5388
      %v5411 = vadd.f32 %v5403, %v5393
      %5412 = vst.msk [vmem:[#allocation5] sm:$0xff] %vm352, %v5404
      %5413 = vst.msk [vmem:[#allocation5 + $0x8] sm:$0xff] %vm352, %v5405
      %5414 = vst.msk [vmem:[#allocation5 + $0x10] sm:$0xff] %vm352, %v5406
      %5415 = vst.msk [vmem:[#allocation5 + $0x18] sm:$0xff] %vm352, %v5407
      %5416 = vst.msk [vmem:[#allocation5 + $0x20] sm:$0xff] %vm352, %v5408
      %5417 = vst.msk [vmem:[#allocation5 + $0x28] sm:$0xff] %vm352, %v5409
      %5418 = vst.msk [vmem:[#allocation5 + $0x30] sm:$0xff] %vm352, %v5410
      %5419 = vst.msk [vmem:[#allocation5 + $0x38] sm:$0xff] %vm352, %v5411
      %s5420 = scalar_lea.vmem %s6, 32
      %v5421 = vld [vmem:[%s5420] sm:$0xff]
      %v5423 = vsel %vm352, %v5234, 0
      %v5426 = vsel %vm352, %v5238, 0
      %v5429 = vsel %vm352, %v5242, 0
      %v5432 = vsel %vm352, %v5246, 0
      %v5435 = vsel %vm352, %v5250, 0
      %v5438 = vsel %vm352, %v5254, 0
      %v5441 = vsel %vm352, %v5258, 0
      %v5444 = vsel %vm352, %v5262, 0
      %5446 = vmatprep.subr.mxu0 0.0
      %5447 = vmatpush1.msra.mxu0 %v5421
      %5448 = vmatprep.subr.mxu0 0.0
      %5449 = vmatpush1.msra.mxu0 0.0
      %5450 = vmatprep.subr.mxu0 0.0
      %5451 = vmatpush1.msra.mxu0 0.0
      %5452 = vmatprep.subr.mxu0 0.0
      %5453 = vmatpush1.msra.mxu0 0.0
      %5454 = vmatprep.subr.mxu0 0.0
      %5455 = vmatpush1.msra.mxu0 0.0
      %5456 = vmatprep.subr.mxu0 0.0
      %5457 = vmatpush1.msra.mxu0 0.0
      %5458 = vmatprep.subr.mxu0 0.0
      %5459 = vmatpush1.msra.mxu0 0.0
      %5460 = vmatprep.subr.mxu0 0.0
      %5461 = vmatpush1.msra.mxu0 0.0
      %5462 = vmatprep.subr.mxu0 0.0
      %5463 = vmatpush1.msra.mxu0 0.0
      %5464 = vmatprep.subr.mxu0 0.0
      %5465 = vmatpush1.msra.mxu0 0.0
      %5466 = vmatprep.subr.mxu0 0.0
      %5467 = vmatpush1.msra.mxu0 0.0
      %5468 = vmatprep.subr.mxu0 0.0
      %5469 = vmatpush1.msra.mxu0 0.0
      %5470 = vmatprep.subr.mxu0 0.0
      %5471 = vmatpush1.msra.mxu0 0.0
      %5472 = vmatprep.subr.mxu0 0.0
      %5473 = vmatpush1.msra.mxu0 0.0
      %5474 = vmatprep.subr.mxu0 0.0
      %5475 = vmatpush1.msra.mxu0 0.0
      %5476 = vmatprep.subr.mxu0 0.0
      %5477 = vmatpush1.msra.mxu0 0.0
      %5478 = vmatprep.subr.mxu0 0.0
      %5479 = vmatpush1.msra.mxu0 0.0
      %5480 = vmatprep.subr.mxu0 0.0
      %5481 = vmatpush1.msra.mxu0 0.0
      %5482 = vmatprep.subr.mxu0 0.0
      %5483 = vmatpush1.msra.mxu0 0.0
      %5484 = vmatprep.subr.mxu0 0.0
      %5485 = vmatpush1.msra.mxu0 0.0
      %5486 = vmatprep.subr.mxu0 0.0
      %5487 = vmatpush1.msra.mxu0 0.0
      %5488 = vmatprep.subr.mxu0 0.0
      %5489 = vmatpush1.msra.mxu0 0.0
      %5490 = vmatprep.subr.mxu0 0.0
      %5491 = vmatpush1.msra.mxu0 0.0
      %5492 = vmatprep.subr.mxu0 0.0
      %5493 = vmatpush1.msra.mxu0 0.0
      %5494 = vmatprep.subr.mxu0 0.0
      %5495 = vmatpush1.msra.mxu0 0.0
      %5496 = vmatprep.subr.mxu0 0.0
      %5497 = vmatpush1.msra.mxu0 0.0
      %5498 = vmatprep.subr.mxu0 0.0
      %5499 = vmatpush1.msra.mxu0 0.0
      %5500 = vmatprep.subr.mxu0 0.0
      %5501 = vmatpush1.msra.mxu0 0.0
      %5502 = vmatprep.subr.mxu0 0.0
      %5503 = vmatpush1.msra.mxu0 0.0
      %5504 = vmatprep.subr.mxu0 0.0
      %5505 = vmatpush1.msra.mxu0 0.0
      %5506 = vmatprep.subr.mxu0 0.0
      %5507 = vmatpush1.msra.mxu0 0.0
      %5508 = vmatprep.subr.mxu0 0.0
      %5509 = vmatpush1.msra.mxu0 0.0
      %5510 = vmatprep.mubr.f32.mxu0 0.0
      %5511 = vmatmul.mubr.f32.gmra.mrb[0].mxu0 %v5423
      %v5512 = vpop.f32.mrb[0].mxu0
      %v5513 = vadd.f32 0.0, %v5512
      %v5514 = vpop.f32.mrb[0].mxu0
      %5515 = vmatprep.mubr.f32.mxu0 0.0
      %5516 = vmatmul.mubr.f32.gmra.mrb[0].mxu0 %v5426
      %v5517 = vpop.f32.mrb[0].mxu0
      %v5518 = vadd.f32 0.0, %v5517
      %v5519 = vpop.f32.mrb[0].mxu0
      %5520 = vmatprep.mubr.f32.mxu0 0.0
      %5521 = vmatmul.mubr.f32.gmra.mrb[0].mxu0 %v5429
      %v5522 = vpop.f32.mrb[0].mxu0
      %v5523 = vadd.f32 0.0, %v5522
      %v5524 = vpop.f32.mrb[0].mxu0
      %5525 = vmatprep.mubr.f32.mxu0 0.0
      %5526 = vmatmul.mubr.f32.gmra.mrb[0].mxu0 %v5432
      %v5527 = vpop.f32.mrb[0].mxu0
      %v5528 = vadd.f32 0.0, %v5527
      %v5529 = vpop.f32.mrb[0].mxu0
      %5530 = vmatprep.mubr.f32.mxu0 0.0
      %5531 = vmatmul.mubr.f32.gmra.mrb[0].mxu0 %v5435
      %v5532 = vpop.f32.mrb[0].mxu0
      %v5533 = vadd.f32 0.0, %v5532
      %v5534 = vpop.f32.mrb[0].mxu0
      %5535 = vmatprep.mubr.f32.mxu0 0.0
      %5536 = vmatmul.mubr.f32.gmra.mrb[0].mxu0 %v5438
      %v5537 = vpop.f32.mrb[0].mxu0
      %v5538 = vadd.f32 0.0, %v5537
      %v5539 = vpop.f32.mrb[0].mxu0
      %5540 = vmatprep.mubr.f32.mxu0 0.0
      %5541 = vmatmul.mubr.f32.gmra.mrb[0].mxu0 %v5441
      %v5542 = vpop.f32.mrb[0].mxu0
      %v5543 = vadd.f32 0.0, %v5542
      %v5544 = vpop.f32.mrb[0].mxu0
      %5545 = vmatprep.mubr.f32.mxu0 0.0
      %5546 = vmatmul.mubr.f32.gmra.mrb[0].mxu0 %v5444
      %v5547 = vpop.f32.mrb[0].mxu0
      %v5548 = vadd.f32 0.0, %v5547
      %v5549 = vpop.f32.mrb[0].mxu0
      %5550 = vdwg.mxu0
      %v5551 = vld [vmem:[#allocation5] sm:$0xff]
      %v5552 = vld [vmem:[#allocation5 + $0x8] sm:$0xff]
      %v5553 = vld [vmem:[#allocation5 + $0x10] sm:$0xff]
      %v5554 = vld [vmem:[#allocation5 + $0x18] sm:$0xff]
      %v5555 = vld [vmem:[#allocation5 + $0x20] sm:$0xff]
      %v5556 = vld [vmem:[#allocation5 + $0x28] sm:$0xff]
      %v5557 = vld [vmem:[#allocation5 + $0x30] sm:$0xff]
      %v5558 = vld [vmem:[#allocation5 + $0x38] sm:$0xff]
      %v5559 = vadd.f32 %v5551, %v5513
      %v5560 = vadd.f32 %v5552, %v5518
      %v5561 = vadd.f32 %v5553, %v5523
      %v5562 = vadd.f32 %v5554, %v5528
      %v5563 = vadd.f32 %v5555, %v5533
      %v5564 = vadd.f32 %v5556, %v5538
      %v5565 = vadd.f32 %v5557, %v5543
      %v5566 = vadd.f32 %v5558, %v5548
      %5567 = vst.msk [vmem:[#allocation5] sm:$0xff] %vm352, %v5559
      %5568 = vst.msk [vmem:[#allocation5 + $0x8] sm:$0xff] %vm352, %v5560
      %5569 = vst.msk [vmem:[#allocation5 + $0x10] sm:$0xff] %vm352, %v5561
      %5570 = vst.msk [vmem:[#allocation5 + $0x18] sm:$0xff] %vm352, %v5562
      %5571 = vst.msk [vmem:[#allocation5 + $0x20] sm:$0xff] %vm352, %v5563
      %5572 = vst.msk [vmem:[#allocation5 + $0x28] sm:$0xff] %vm352, %v5564
      %5573 = vst.msk [vmem:[#allocation5 + $0x30] sm:$0xff] %vm352, %v5565
      %5574 = vst.msk [vmem:[#allocation5 + $0x38] sm:$0xff] %vm352, %v5566
      %s5575 = scalar_lea.vmem %s6, 56
      %v5576 = vld [vmem:[%s5575] sm:$0xff]
      %v5578 = vsel %vm352, %v5264, 0
      %5580 = vmatprep.subr.mxu0 0.0
      %5581 = vmatpush1.msra.mxu0 %v5576
      %5582 = vmatprep.subr.mxu0 0.0
      %5583 = vmatpush1.msra.mxu0 0.0
      %5584 = vmatprep.subr.mxu0 0.0
      %5585 = vmatpush1.msra.mxu0 0.0
      %5586 = vmatprep.subr.mxu0 0.0
      %5587 = vmatpush1.msra.mxu0 0.0
      %5588 = vmatprep.subr.mxu0 0.0
      %5589 = vmatpush1.msra.mxu0 0.0
      %5590 = vmatprep.subr.mxu0 0.0
      %5591 = vmatpush1.msra.mxu0 0.0
      %5592 = vmatprep.subr.mxu0 0.0
      %5593 = vmatpush1.msra.mxu0 0.0
      %5594 = vmatprep.subr.mxu0 0.0
      %5595 = vmatpush1.msra.mxu0 0.0
      %5596 = vmatprep.subr.mxu0 0.0
      %5597 = vmatpush1.msra.mxu0 0.0
      %5598 = vmatprep.subr.mxu0 0.0
      %5599 = vmatpush1.msra.mxu0 0.0
      %5600 = vmatprep.subr.mxu0 0.0
      %5601 = vmatpush1.msra.mxu0 0.0
      %5602 = vmatprep.subr.mxu0 0.0
      %5603 = vmatpush1.msra.mxu0 0.0
      %5604 = vmatprep.subr.mxu0 0.0
      %5605 = vmatpush1.msra.mxu0 0.0
      %5606 = vmatprep.subr.mxu0 0.0
      %5607 = vmatpush1.msra.mxu0 0.0
      %5608 = vmatprep.subr.mxu0 0.0
      %5609 = vmatpush1.msra.mxu0 0.0
      %5610 = vmatprep.subr.mxu0 0.0
      %5611 = vmatpush1.msra.mxu0 0.0
      %5612 = vmatprep.subr.mxu0 0.0
      %5613 = vmatpush1.msra.mxu0 0.0
      %5614 = vmatprep.subr.mxu0 0.0
      %5615 = vmatpush1.msra.mxu0 0.0
      %5616 = vmatprep.subr.mxu0 0.0
      %5617 = vmatpush1.msra.mxu0 0.0
      %5618 = vmatprep.subr.mxu0 0.0
      %5619 = vmatpush1.msra.mxu0 0.0
      %5620 = vmatprep.subr.mxu0 0.0
      %5621 = vmatpush1.msra.mxu0 0.0
      %5622 = vmatprep.subr.mxu0 0.0
      %5623 = vmatpush1.msra.mxu0 0.0
      %5624 = vmatprep.subr.mxu0 0.0
      %5625 = vmatpush1.msra.mxu0 0.0
      %5626 = vmatprep.subr.mxu0 0.0
      %5627 = vmatpush1.msra.mxu0 0.0
      %5628 = vmatprep.subr.mxu0 0.0
      %5629 = vmatpush1.msra.mxu0 0.0
      %5630 = vmatprep.subr.mxu0 0.0
      %5631 = vmatpush1.msra.mxu0 0.0
      %5632 = vmatprep.subr.mxu0 0.0
      %5633 = vmatpush1.msra.mxu0 0.0
      %5634 = vmatprep.subr.mxu0 0.0
      %5635 = vmatpush1.msra.mxu0 0.0
      %5636 = vmatprep.subr.mxu0 0.0
      %5637 = vmatpush1.msra.mxu0 0.0
      %5638 = vmatprep.subr.mxu0 0.0
      %5639 = vmatpush1.msra.mxu0 0.0
      %5640 = vmatprep.subr.mxu0 0.0
      %5641 = vmatpush1.msra.mxu0 0.0
      %5642 = vmatprep.subr.mxu0 0.0
      %5643 = vmatpush1.msra.mxu0 0.0
      %5644 = vmatprep.mubr.f32.mxu0 0.0
      %5645 = vmatmul.mubr.f32.gmra.mrb[0].mxu0 %v5271
      %v5646 = vpop.f32.mrb[0].mxu0
      %v5647 = vadd.f32 0.0, %v5646
      %v5648 = vpop.f32.mrb[0].mxu0
      %5649 = vmatprep.mubr.f32.mxu0 0.0
      %5650 = vmatmul.mubr.f32.gmra.mrb[0].mxu0 %v5274
      %v5651 = vpop.f32.mrb[0].mxu0
      %v5652 = vadd.f32 0.0, %v5651
      %v5653 = vpop.f32.mrb[0].mxu0
      %5654 = vmatprep.mubr.f32.mxu0 0.0
      %5655 = vmatmul.mubr.f32.gmra.mrb[0].mxu0 %v5277
      %v5656 = vpop.f32.mrb[0].mxu0
      %v5657 = vadd.f32 0.0, %v5656
      %v5658 = vpop.f32.mrb[0].mxu0
      %5659 = vmatprep.mubr.f32.mxu0 0.0
      %5660 = vmatmul.mubr.f32.gmra.mrb[0].mxu0 %v5280
      %v5661 = vpop.f32.mrb[0].mxu0
      %v5662 = vadd.f32 0.0, %v5661
      %v5663 = vpop.f32.mrb[0].mxu0
      %5664 = vmatprep.mubr.f32.mxu0 0.0
      %5665 = vmatmul.mubr.f32.gmra.mrb[0].mxu0 %v5283
      %v5666 = vpop.f32.mrb[0].mxu0
      %v5667 = vadd.f32 0.0, %v5666
      %v5668 = vpop.f32.mrb[0].mxu0
      %5669 = vmatprep.mubr.f32.mxu0 0.0
      %5670 = vmatmul.mubr.f32.gmra.mrb[0].mxu0 %v5286
      %v5671 = vpop.f32.mrb[0].mxu0
      %v5672 = vadd.f32 0.0, %v5671
      %v5673 = vpop.f32.mrb[0].mxu0
      %5674 = vmatprep.mubr.f32.mxu0 0.0
      %5675 = vmatmul.mubr.f32.gmra.mrb[0].mxu0 %v5289
      %v5676 = vpop.f32.mrb[0].mxu0
      %v5677 = vadd.f32 0.0, %v5676
      %v5678 = vpop.f32.mrb[0].mxu0
      %5679 = vmatprep.mubr.f32.mxu0 0.0
      %5680 = vmatmul.mubr.f32.gmra.mrb[0].mxu0 %v5578
      %v5681 = vpop.f32.mrb[0].mxu0
      %v5682 = vadd.f32 0.0, %v5681
      %v5683 = vpop.f32.mrb[0].mxu0
      %5684 = vdwg.mxu0
      %v5685 = vld [vmem:[#allocation5] sm:$0xff]
      %v5686 = vld [vmem:[#allocation5 + $0x8] sm:$0xff]
      %v5687 = vld [vmem:[#allocation5 + $0x10] sm:$0xff]
      %v5688 = vld [vmem:[#allocation5 + $0x18] sm:$0xff]
      %v5689 = vld [vmem:[#allocation5 + $0x20] sm:$0xff]
      %v5690 = vld [vmem:[#allocation5 + $0x28] sm:$0xff]
      %v5691 = vld [vmem:[#allocation5 + $0x30] sm:$0xff]
      %v5692 = vld [vmem:[#allocation5 + $0x38] sm:$0xff]
      %v5693 = vadd.f32 %v5685, %v5647
      %v5694 = vadd.f32 %v5686, %v5652
      %v5695 = vadd.f32 %v5687, %v5657
      %v5696 = vadd.f32 %v5688, %v5662
      %v5697 = vadd.f32 %v5689, %v5667
      %v5698 = vadd.f32 %v5690, %v5672
      %v5699 = vadd.f32 %v5691, %v5677
      %v5700 = vadd.f32 %v5692, %v5682
      %5701 = vst.msk [vmem:[#allocation5] sm:$0xff] %vm352, %v5693
      %5702 = vst.msk [vmem:[#allocation5 + $0x8] sm:$0xff] %vm352, %v5694
      %5703 = vst.msk [vmem:[#allocation5 + $0x10] sm:$0xff] %vm352, %v5695
      %5704 = vst.msk [vmem:[#allocation5 + $0x18] sm:$0xff] %vm352, %v5696
      %5705 = vst.msk [vmem:[#allocation5 + $0x20] sm:$0xff] %vm352, %v5697
      %5706 = vst.msk [vmem:[#allocation5 + $0x28] sm:$0xff] %vm352, %v5698
      %5707 = vst.msk [vmem:[#allocation5 + $0x30] sm:$0xff] %vm352, %v5699
      %5708 = vst.msk [vmem:[#allocation5 + $0x38] sm:$0xff] %vm352, %v5700
      %s5709 = scalar_lea.vmem [#allocation3], 2
      %v5710 = vld [vmem:[%s5709] ss:$2 sm:$0xff]
      %s5711 = scalar_lea.vmem [#allocation3], 26
      %v5712 = vld [vmem:[%s5711] ss:$2 sm:$0xff]
      %s5713 = scalar_lea.vmem [#allocation3], 50
      %v5714 = vld [vmem:[%s5713] ss:$2 sm:$0xff]
      %s5715 = scalar_lea.vmem [#allocation3], 74
      %v5716 = vld [vmem:[%s5715] ss:$2 sm:$0xff]
      %s5717 = scalar_lea.vmem [#allocation3], 98
      %v5718 = vld [vmem:[%s5717] ss:$2 sm:$0xff]
      %s5719 = scalar_lea.vmem [#allocation3], 122
      %v5720 = vld [vmem:[%s5719] ss:$2 sm:$0xff]
      %s5721 = scalar_lea.vmem [#allocation3], 146
      %v5722 = vld [vmem:[%s5721] ss:$2 sm:$0xff]
      %s5723 = scalar_lea.vmem [#allocation3], 170
      %v5724 = vld [vmem:[%s5723] ss:$2 sm:$0xff]
      %s5725 = scalar_lea.vmem [#allocation3], 194
      %v5726 = vld [vmem:[%s5725] ss:$2 sm:$0xff]
      %s5727 = scalar_lea.vmem [#allocation3], 218
      %v5728 = vld [vmem:[%s5727] ss:$2 sm:$0xff]
      %s5729 = scalar_lea.vmem [#allocation3], 242
      %v5730 = vld [vmem:[%s5729] ss:$2 sm:$0xff]
      %s5731 = scalar_lea.vmem [#allocation3], 266
      %v5732 = vld [vmem:[%s5731] ss:$2 sm:$0xff]
      %s5733 = scalar_lea.vmem [#allocation3], 290
      %v5734 = vld [vmem:[%s5733] ss:$2 sm:$0xff]
      %s5735 = scalar_lea.vmem [#allocation3], 314
      %v5736 = vld [vmem:[%s5735] ss:$2 sm:$0xff]
      %s5737 = scalar_lea.vmem [#allocation3], 338
      %v5738 = vld [vmem:[%s5737] ss:$2 sm:$0xff]
      %s5739 = scalar_lea.vmem [#allocation3], 362
      %v5740 = vld [vmem:[%s5739] ss:$2 sm:$0xff]
      %s5741 = scalar_lea.vmem [#allocation3], 386
      %v5742 = vld [vmem:[%s5741] ss:$2 sm:$0xff]
      %s5743 = scalar_lea.vmem %s6, 16
      %v5744 = vld [vmem:[%s5743] sm:$0xff]
      %v5746 = vsel %vm352, %v5710, 0
      %v5749 = vsel %vm352, %v5714, 0
      %v5752 = vsel %vm352, %v5718, 0
      %v5755 = vsel %vm352, %v5722, 0
      %v5758 = vsel %vm352, %v5726, 0
      %v5761 = vsel %vm352, %v5730, 0
      %v5764 = vsel %vm352, %v5734, 0
      %v5767 = vsel %vm352, %v5738, 0
      %5769 = vmatprep.subr.mxu0 0.0
      %5770 = vmatpush1.msra.mxu0 %v5744
      %5771 = vmatprep.subr.mxu0 0.0
      %5772 = vmatpush1.msra.mxu0 0.0
      %5773 = vmatprep.subr.mxu0 0.0
      %5774 = vmatpush1.msra.mxu0 0.0
      %5775 = vmatprep.subr.mxu0 0.0
      %5776 = vmatpush1.msra.mxu0 0.0
      %5777 = vmatprep.subr.mxu0 0.0
      %5778 = vmatpush1.msra.mxu0 0.0
      %5779 = vmatprep.subr.mxu0 0.0
      %5780 = vmatpush1.msra.mxu0 0.0
      %5781 = vmatprep.subr.mxu0 0.0
      %5782 = vmatpush1.msra.mxu0 0.0
      %5783 = vmatprep.subr.mxu0 0.0
      %5784 = vmatpush1.msra.mxu0 0.0
      %5785 = vmatprep.subr.mxu0 0.0
      %5786 = vmatpush1.msra.mxu0 0.0
      %5787 = vmatprep.subr.mxu0 0.0
      %5788 = vmatpush1.msra.mxu0 0.0
      %5789 = vmatprep.subr.mxu0 0.0
      %5790 = vmatpush1.msra.mxu0 0.0
      %5791 = vmatprep.subr.mxu0 0.0
      %5792 = vmatpush1.msra.mxu0 0.0
      %5793 = vmatprep.subr.mxu0 0.0
      %5794 = vmatpush1.msra.mxu0 0.0
      %5795 = vmatprep.subr.mxu0 0.0
      %5796 = vmatpush1.msra.mxu0 0.0
      %5797 = vmatprep.subr.mxu0 0.0
      %5798 = vmatpush1.msra.mxu0 0.0
      %5799 = vmatprep.subr.mxu0 0.0
      %5800 = vmatpush1.msra.mxu0 0.0
      %5801 = vmatprep.subr.mxu0 0.0
      %5802 = vmatpush1.msra.mxu0 0.0
      %5803 = vmatprep.subr.mxu0 0.0
      %5804 = vmatpush1.msra.mxu0 0.0
      %5805 = vmatprep.subr.mxu0 0.0
      %5806 = vmatpush1.msra.mxu0 0.0
      %5807 = vmatprep.subr.mxu0 0.0
      %5808 = vmatpush1.msra.mxu0 0.0
      %5809 = vmatprep.subr.mxu0 0.0
      %5810 = vmatpush1.msra.mxu0 0.0
      %5811 = vmatprep.subr.mxu0 0.0
      %5812 = vmatpush1.msra.mxu0 0.0
      %5813 = vmatprep.subr.mxu0 0.0
      %5814 = vmatpush1.msra.mxu0 0.0
      %5815 = vmatprep.subr.mxu0 0.0
      %5816 = vmatpush1.msra.mxu0 0.0
      %5817 = vmatprep.subr.mxu0 0.0
      %5818 = vmatpush1.msra.mxu0 0.0
      %5819 = vmatprep.subr.mxu0 0.0
      %5820 = vmatpush1.msra.mxu0 0.0
      %5821 = vmatprep.subr.mxu0 0.0
      %5822 = vmatpush1.msra.mxu0 0.0
      %5823 = vmatprep.subr.mxu0 0.0
      %5824 = vmatpush1.msra.mxu0 0.0
      %5825 = vmatprep.subr.mxu0 0.0
      %5826 = vmatpush1.msra.mxu0 0.0
      %5827 = vmatprep.subr.mxu0 0.0
      %5828 = vmatpush1.msra.mxu0 0.0
      %5829 = vmatprep.subr.mxu0 0.0
      %5830 = vmatpush1.msra.mxu0 0.0
      %5831 = vmatprep.subr.mxu0 0.0
      %5832 = vmatpush1.msra.mxu0 0.0
      %5833 = vmatprep.mubr.f32.mxu0 0.0
      %5834 = vmatmul.mubr.f32.gmra.mrb[0].mxu0 %v5746
      %v5835 = vpop.f32.mrb[0].mxu0
      %v5836 = vadd.f32 0.0, %v5835
      %v5837 = vpop.f32.mrb[0].mxu0
      %5838 = vmatprep.mubr.f32.mxu0 0.0
      %5839 = vmatmul.mubr.f32.gmra.mrb[0].mxu0 %v5749
      %v5840 = vpop.f32.mrb[0].mxu0
      %v5841 = vadd.f32 0.0, %v5840
      %v5842 = vpop.f32.mrb[0].mxu0
      %5843 = vmatprep.mubr.f32.mxu0 0.0
      %5844 = vmatmul.mubr.f32.gmra.mrb[0].mxu0 %v5752
      %v5845 = vpop.f32.mrb[0].mxu0
      %v5846 = vadd.f32 0.0, %v5845
      %v5847 = vpop.f32.mrb[0].mxu0
      %5848 = vmatprep.mubr.f32.mxu0 0.0
      %5849 = vmatmul.mubr.f32.gmra.mrb[0].mxu0 %v5755
      %v5850 = vpop.f32.mrb[0].mxu0
      %v5851 = vadd.f32 0.0, %v5850
      %v5852 = vpop.f32.mrb[0].mxu0
      %5853 = vmatprep.mubr.f32.mxu0 0.0
      %5854 = vmatmul.mubr.f32.gmra.mrb[0].mxu0 %v5758
      %v5855 = vpop.f32.mrb[0].mxu0
      %v5856 = vadd.f32 0.0, %v5855
      %v5857 = vpop.f32.mrb[0].mxu0
      %5858 = vmatprep.mubr.f32.mxu0 0.0
      %5859 = vmatmul.mubr.f32.gmra.mrb[0].mxu0 %v5761
      %v5860 = vpop.f32.mrb[0].mxu0
      %v5861 = vadd.f32 0.0, %v5860
      %v5862 = vpop.f32.mrb[0].mxu0
      %5863 = vmatprep.mubr.f32.mxu0 0.0
      %5864 = vmatmul.mubr.f32.gmra.mrb[0].mxu0 %v5764
      %v5865 = vpop.f32.mrb[0].mxu0
      %v5866 = vadd.f32 0.0, %v5865
      %v5867 = vpop.f32.mrb[0].mxu0
      %5868 = vmatprep.mubr.f32.mxu0 0.0
      %5869 = vmatmul.mubr.f32.gmra.mrb[0].mxu0 %v5767
      %v5870 = vpop.f32.mrb[0].mxu0
      %v5871 = vadd.f32 0.0, %v5870
      %v5872 = vpop.f32.mrb[0].mxu0
      %5873 = vdwg.mxu0
      %v5874 = vld [vmem:[#allocation5] sm:$0xff]
      %v5875 = vld [vmem:[#allocation5 + $0x8] sm:$0xff]
      %v5876 = vld [vmem:[#allocation5 + $0x10] sm:$0xff]
      %v5877 = vld [vmem:[#allocation5 + $0x18] sm:$0xff]
      %v5878 = vld [vmem:[#allocation5 + $0x20] sm:$0xff]
      %v5879 = vld [vmem:[#allocation5 + $0x28] sm:$0xff]
      %v5880 = vld [vmem:[#allocation5 + $0x30] sm:$0xff]
      %v5881 = vld [vmem:[#allocation5 + $0x38] sm:$0xff]
      %v5882 = vadd.f32 %v5874, %v5836
      %v5883 = vadd.f32 %v5875, %v5841
      %v5884 = vadd.f32 %v5876, %v5846
      %v5885 = vadd.f32 %v5877, %v5851
      %v5886 = vadd.f32 %v5878, %v5856
      %v5887 = vadd.f32 %v5879, %v5861
      %v5888 = vadd.f32 %v5880, %v5866
      %v5889 = vadd.f32 %v5881, %v5871
      %5890 = vst.msk [vmem:[#allocation5] sm:$0xff] %vm352, %v5882
      %5891 = vst.msk [vmem:[#allocation5 + $0x8] sm:$0xff] %vm352, %v5883
      %5892 = vst.msk [vmem:[#allocation5 + $0x10] sm:$0xff] %vm352, %v5884
      %5893 = vst.msk [vmem:[#allocation5 + $0x18] sm:$0xff] %vm352, %v5885
      %5894 = vst.msk [vmem:[#allocation5 + $0x20] sm:$0xff] %vm352, %v5886
      %5895 = vst.msk [vmem:[#allocation5 + $0x28] sm:$0xff] %vm352, %v5887
      %5896 = vst.msk [vmem:[#allocation5 + $0x30] sm:$0xff] %vm352, %v5888
      %5897 = vst.msk [vmem:[#allocation5 + $0x38] sm:$0xff] %vm352, %v5889
      %s5898 = scalar_lea.vmem %s6, 40
      %v5899 = vld [vmem:[%s5898] sm:$0xff]
      %v5901 = vsel %vm352, %v5712, 0
      %v5904 = vsel %vm352, %v5716, 0
      %v5907 = vsel %vm352, %v5720, 0
      %v5910 = vsel %vm352, %v5724, 0
      %v5913 = vsel %vm352, %v5728, 0
      %v5916 = vsel %vm352, %v5732, 0
      %v5919 = vsel %vm352, %v5736, 0
      %v5922 = vsel %vm352, %v5740, 0
      %5924 = vmatprep.subr.mxu0 0.0
      %5925 = vmatpush1.msra.mxu0 %v5899
      %5926 = vmatprep.subr.mxu0 0.0
      %5927 = vmatpush1.msra.mxu0 0.0
      %5928 = vmatprep.subr.mxu0 0.0
      %5929 = vmatpush1.msra.mxu0 0.0
      %5930 = vmatprep.subr.mxu0 0.0
      %5931 = vmatpush1.msra.mxu0 0.0
      %5932 = vmatprep.subr.mxu0 0.0
      %5933 = vmatpush1.msra.mxu0 0.0
      %5934 = vmatprep.subr.mxu0 0.0
      %5935 = vmatpush1.msra.mxu0 0.0
      %5936 = vmatprep.subr.mxu0 0.0
      %5937 = vmatpush1.msra.mxu0 0.0
      %5938 = vmatprep.subr.mxu0 0.0
      %5939 = vmatpush1.msra.mxu0 0.0
      %5940 = vmatprep.subr.mxu0 0.0
      %5941 = vmatpush1.msra.mxu0 0.0
      %5942 = vmatprep.subr.mxu0 0.0
      %5943 = vmatpush1.msra.mxu0 0.0
      %5944 = vmatprep.subr.mxu0 0.0
      %5945 = vmatpush1.msra.mxu0 0.0
      %5946 = vmatprep.subr.mxu0 0.0
      %5947 = vmatpush1.msra.mxu0 0.0
      %5948 = vmatprep.subr.mxu0 0.0
      %5949 = vmatpush1.msra.mxu0 0.0
      %5950 = vmatprep.subr.mxu0 0.0
      %5951 = vmatpush1.msra.mxu0 0.0
      %5952 = vmatprep.subr.mxu0 0.0
      %5953 = vmatpush1.msra.mxu0 0.0
      %5954 = vmatprep.subr.mxu0 0.0
      %5955 = vmatpush1.msra.mxu0 0.0
      %5956 = vmatprep.subr.mxu0 0.0
      %5957 = vmatpush1.msra.mxu0 0.0
      %5958 = vmatprep.subr.mxu0 0.0
      %5959 = vmatpush1.msra.mxu0 0.0
      %5960 = vmatprep.subr.mxu0 0.0
      %5961 = vmatpush1.msra.mxu0 0.0
      %5962 = vmatprep.subr.mxu0 0.0
      %5963 = vmatpush1.msra.mxu0 0.0
      %5964 = vmatprep.subr.mxu0 0.0
      %5965 = vmatpush1.msra.mxu0 0.0
      %5966 = vmatprep.subr.mxu0 0.0
      %5967 = vmatpush1.msra.mxu0 0.0
      %5968 = vmatprep.subr.mxu0 0.0
      %5969 = vmatpush1.msra.mxu0 0.0
      %5970 = vmatprep.subr.mxu0 0.0
      %5971 = vmatpush1.msra.mxu0 0.0
      %5972 = vmatprep.subr.mxu0 0.0
      %5973 = vmatpush1.msra.mxu0 0.0
      %5974 = vmatprep.subr.mxu0 0.0
      %5975 = vmatpush1.msra.mxu0 0.0
      %5976 = vmatprep.subr.mxu0 0.0
      %5977 = vmatpush1.msra.mxu0 0.0
      %5978 = vmatprep.subr.mxu0 0.0
      %5979 = vmatpush1.msra.mxu0 0.0
      %5980 = vmatprep.subr.mxu0 0.0
      %5981 = vmatpush1.msra.mxu0 0.0
      %5982 = vmatprep.subr.mxu0 0.0
      %5983 = vmatpush1.msra.mxu0 0.0
      %5984 = vmatprep.subr.mxu0 0.0
      %5985 = vmatpush1.msra.mxu0 0.0
      %5986 = vmatprep.subr.mxu0 0.0
      %5987 = vmatpush1.msra.mxu0 0.0
      %5988 = vmatprep.mubr.f32.mxu0 0.0
      %5989 = vmatmul.mubr.f32.gmra.mrb[0].mxu0 %v5901
      %v5990 = vpop.f32.mrb[0].mxu0
      %v5991 = vadd.f32 0.0, %v5990
      %v5992 = vpop.f32.mrb[0].mxu0
      %5993 = vmatprep.mubr.f32.mxu0 0.0
      %5994 = vmatmul.mubr.f32.gmra.mrb[0].mxu0 %v5904
      %v5995 = vpop.f32.mrb[0].mxu0
      %v5996 = vadd.f32 0.0, %v5995
      %v5997 = vpop.f32.mrb[0].mxu0
      %5998 = vmatprep.mubr.f32.mxu0 0.0
      %5999 = vmatmul.mubr.f32.gmra.mrb[0].mxu0 %v5907
      %v6000 = vpop.f32.mrb[0].mxu0
      %v6001 = vadd.f32 0.0, %v6000
      %v6002 = vpop.f32.mrb[0].mxu0
      %6003 = vmatprep.mubr.f32.mxu0 0.0
      %6004 = vmatmul.mubr.f32.gmra.mrb[0].mxu0 %v5910
      %v6005 = vpop.f32.mrb[0].mxu0
      %v6006 = vadd.f32 0.0, %v6005
      %v6007 = vpop.f32.mrb[0].mxu0
      %6008 = vmatprep.mubr.f32.mxu0 0.0
      %6009 = vmatmul.mubr.f32.gmra.mrb[0].mxu0 %v5913
      %v6010 = vpop.f32.mrb[0].mxu0
      %v6011 = vadd.f32 0.0, %v6010
      %v6012 = vpop.f32.mrb[0].mxu0
      %6013 = vmatprep.mubr.f32.mxu0 0.0
      %6014 = vmatmul.mubr.f32.gmra.mrb[0].mxu0 %v5916
      %v6015 = vpop.f32.mrb[0].mxu0
      %v6016 = vadd.f32 0.0, %v6015
      %v6017 = vpop.f32.mrb[0].mxu0
      %6018 = vmatprep.mubr.f32.mxu0 0.0
      %6019 = vmatmul.mubr.f32.gmra.mrb[0].mxu0 %v5919
      %v6020 = vpop.f32.mrb[0].mxu0
      %v6021 = vadd.f32 0.0, %v6020
      %v6022 = vpop.f32.mrb[0].mxu0
      %6023 = vmatprep.mubr.f32.mxu0 0.0
      %6024 = vmatmul.mubr.f32.gmra.mrb[0].mxu0 %v5922
      %v6025 = vpop.f32.mrb[0].mxu0
      %v6026 = vadd.f32 0.0, %v6025
      %v6027 = vpop.f32.mrb[0].mxu0
      %6028 = vdwg.mxu0
      %v6029 = vld [vmem:[#allocation5] sm:$0xff]
      %v6030 = vld [vmem:[#allocation5 + $0x8] sm:$0xff]
      %v6031 = vld [vmem:[#allocation5 + $0x10] sm:$0xff]
      %v6032 = vld [vmem:[#allocation5 + $0x18] sm:$0xff]
      %v6033 = vld [vmem:[#allocation5 + $0x20] sm:$0xff]
      %v6034 = vld [vmem:[#allocation5 + $0x28] sm:$0xff]
      %v6035 = vld [vmem:[#allocation5 + $0x30] sm:$0xff]
      %v6036 = vld [vmem:[#allocation5 + $0x38] sm:$0xff]
      %v6037 = vadd.f32 %v6029, %v5991
      %v6038 = vadd.f32 %v6030, %v5996
      %v6039 = vadd.f32 %v6031, %v6001
      %v6040 = vadd.f32 %v6032, %v6006
      %v6041 = vadd.f32 %v6033, %v6011
      %v6042 = vadd.f32 %v6034, %v6016
      %v6043 = vadd.f32 %v6035, %v6021
      %v6044 = vadd.f32 %v6036, %v6026
      %6045 = vst.msk [vmem:[#allocation5] sm:$0xff] %vm352, %v6037
      %6046 = vst.msk [vmem:[#allocation5 + $0x8] sm:$0xff] %vm352, %v6038
      %6047 = vst.msk [vmem:[#allocation5 + $0x10] sm:$0xff] %vm352, %v6039
      %6048 = vst.msk [vmem:[#allocation5 + $0x18] sm:$0xff] %vm352, %v6040
      %6049 = vst.msk [vmem:[#allocation5 + $0x20] sm:$0xff] %vm352, %v6041
      %6050 = vst.msk [vmem:[#allocation5 + $0x28] sm:$0xff] %vm352, %v6042
      %6051 = vst.msk [vmem:[#allocation5 + $0x30] sm:$0xff] %vm352, %v6043
      %6052 = vst.msk [vmem:[#allocation5 + $0x38] sm:$0xff] %vm352, %v6044
      %s6053 = scalar_lea.vmem %s6, 64
      %v6054 = vld [vmem:[%s6053] sm:$0xff]
      %v6056 = vsel %vm352, %v5742, 0
      %6058 = vmatprep.subr.mxu0 0.0
      %6059 = vmatpush1.msra.mxu0 %v6054
      %6060 = vmatprep.subr.mxu0 0.0
      %6061 = vmatpush1.msra.mxu0 0.0
      %6062 = vmatprep.subr.mxu0 0.0
      %6063 = vmatpush1.msra.mxu0 0.0
      %6064 = vmatprep.subr.mxu0 0.0
      %6065 = vmatpush1.msra.mxu0 0.0
      %6066 = vmatprep.subr.mxu0 0.0
      %6067 = vmatpush1.msra.mxu0 0.0
      %6068 = vmatprep.subr.mxu0 0.0
      %6069 = vmatpush1.msra.mxu0 0.0
      %6070 = vmatprep.subr.mxu0 0.0
      %6071 = vmatpush1.msra.mxu0 0.0
      %6072 = vmatprep.subr.mxu0 0.0
      %6073 = vmatpush1.msra.mxu0 0.0
      %6074 = vmatprep.subr.mxu0 0.0
      %6075 = vmatpush1.msra.mxu0 0.0
      %6076 = vmatprep.subr.mxu0 0.0
      %6077 = vmatpush1.msra.mxu0 0.0
      %6078 = vmatprep.subr.mxu0 0.0
      %6079 = vmatpush1.msra.mxu0 0.0
      %6080 = vmatprep.subr.mxu0 0.0
      %6081 = vmatpush1.msra.mxu0 0.0
      %6082 = vmatprep.subr.mxu0 0.0
      %6083 = vmatpush1.msra.mxu0 0.0
      %6084 = vmatprep.subr.mxu0 0.0
      %6085 = vmatpush1.msra.mxu0 0.0
      %6086 = vmatprep.subr.mxu0 0.0
      %6087 = vmatpush1.msra.mxu0 0.0
      %6088 = vmatprep.subr.mxu0 0.0
      %6089 = vmatpush1.msra.mxu0 0.0
      %6090 = vmatprep.subr.mxu0 0.0
      %6091 = vmatpush1.msra.mxu0 0.0
      %6092 = vmatprep.subr.mxu0 0.0
      %6093 = vmatpush1.msra.mxu0 0.0
      %6094 = vmatprep.subr.mxu0 0.0
      %6095 = vmatpush1.msra.mxu0 0.0
      %6096 = vmatprep.subr.mxu0 0.0
      %6097 = vmatpush1.msra.mxu0 0.0
      %6098 = vmatprep.subr.mxu0 0.0
      %6099 = vmatpush1.msra.mxu0 0.0
      %6100 = vmatprep.subr.mxu0 0.0
      %6101 = vmatpush1.msra.mxu0 0.0
      %6102 = vmatprep.subr.mxu0 0.0
      %6103 = vmatpush1.msra.mxu0 0.0
      %6104 = vmatprep.subr.mxu0 0.0
      %6105 = vmatpush1.msra.mxu0 0.0
      %6106 = vmatprep.subr.mxu0 0.0
      %6107 = vmatpush1.msra.mxu0 0.0
      %6108 = vmatprep.subr.mxu0 0.0
      %6109 = vmatpush1.msra.mxu0 0.0
      %6110 = vmatprep.subr.mxu0 0.0
      %6111 = vmatpush1.msra.mxu0 0.0
      %6112 = vmatprep.subr.mxu0 0.0
      %6113 = vmatpush1.msra.mxu0 0.0
      %6114 = vmatprep.subr.mxu0 0.0
      %6115 = vmatpush1.msra.mxu0 0.0
      %6116 = vmatprep.subr.mxu0 0.0
      %6117 = vmatpush1.msra.mxu0 0.0
      %6118 = vmatprep.subr.mxu0 0.0
      %6119 = vmatpush1.msra.mxu0 0.0
      %6120 = vmatprep.subr.mxu0 0.0
      %6121 = vmatpush1.msra.mxu0 0.0
      %6122 = vmatprep.mubr.f32.mxu0 0.0
      %6123 = vmatmul.mubr.f32.gmra.mrb[0].mxu0 %v5749
      %v6124 = vpop.f32.mrb[0].mxu0
      %v6125 = vadd.f32 0.0, %v6124
      %v6126 = vpop.f32.mrb[0].mxu0
      %6127 = vmatprep.mubr.f32.mxu0 0.0
      %6128 = vmatmul.mubr.f32.gmra.mrb[0].mxu0 %v5752
      %v6129 = vpop.f32.mrb[0].mxu0
      %v6130 = vadd.f32 0.0, %v6129
      %v6131 = vpop.f32.mrb[0].mxu0
      %6132 = vmatprep.mubr.f32.mxu0 0.0
      %6133 = vmatmul.mubr.f32.gmra.mrb[0].mxu0 %v5755
      %v6134 = vpop.f32.mrb[0].mxu0
      %v6135 = vadd.f32 0.0, %v6134
      %v6136 = vpop.f32.mrb[0].mxu0
      %6137 = vmatprep.mubr.f32.mxu0 0.0
      %6138 = vmatmul.mubr.f32.gmra.mrb[0].mxu0 %v5758
      %v6139 = vpop.f32.mrb[0].mxu0
      %v6140 = vadd.f32 0.0, %v6139
      %v6141 = vpop.f32.mrb[0].mxu0
      %6142 = vmatprep.mubr.f32.mxu0 0.0
      %6143 = vmatmul.mubr.f32.gmra.mrb[0].mxu0 %v5761
      %v6144 = vpop.f32.mrb[0].mxu0
      %v6145 = vadd.f32 0.0, %v6144
      %v6146 = vpop.f32.mrb[0].mxu0
      %6147 = vmatprep.mubr.f32.mxu0 0.0
      %6148 = vmatmul.mubr.f32.gmra.mrb[0].mxu0 %v5764
      %v6149 = vpop.f32.mrb[0].mxu0
      %v6150 = vadd.f32 0.0, %v6149
      %v6151 = vpop.f32.mrb[0].mxu0
      %6152 = vmatprep.mubr.f32.mxu0 0.0
      %6153 = vmatmul.mubr.f32.gmra.mrb[0].mxu0 %v5767
      %v6154 = vpop.f32.mrb[0].mxu0
      %v6155 = vadd.f32 0.0, %v6154
      %v6156 = vpop.f32.mrb[0].mxu0
      %6157 = vmatprep.mubr.f32.mxu0 0.0
      %6158 = vmatmul.mubr.f32.gmra.mrb[0].mxu0 %v6056
      %v6159 = vpop.f32.mrb[0].mxu0
      %v6160 = vadd.f32 0.0, %v6159
      %v6161 = vpop.f32.mrb[0].mxu0
      %6162 = vdwg.mxu0
      %v6163 = vld [vmem:[#allocation5] sm:$0xff]
      %v6164 = vld [vmem:[#allocation5 + $0x8] sm:$0xff]
      %v6165 = vld [vmem:[#allocation5 + $0x10] sm:$0xff]
      %v6166 = vld [vmem:[#allocation5 + $0x18] sm:$0xff]
      %v6167 = vld [vmem:[#allocation5 + $0x20] sm:$0xff]
      %v6168 = vld [vmem:[#allocation5 + $0x28] sm:$0xff]
      %v6169 = vld [vmem:[#allocation5 + $0x30] sm:$0xff]
      %v6170 = vld [vmem:[#allocation5 + $0x38] sm:$0xff]
      %v6171 = vadd.f32 %v6163, %v6125
      %v6172 = vadd.f32 %v6164, %v6130
      %v6173 = vadd.f32 %v6165, %v6135
      %v6174 = vadd.f32 %v6166, %v6140
      %v6175 = vadd.f32 %v6167, %v6145
      %v6176 = vadd.f32 %v6168, %v6150
      %v6177 = vadd.f32 %v6169, %v6155
      %v6178 = vadd.f32 %v6170, %v6160
      %6179 = vst.msk [vmem:[#allocation5] sm:$0xff] %vm352, %v6171
      %6180 = vst.msk [vmem:[#allocation5 + $0x8] sm:$0xff] %vm352, %v6172
      %6181 = vst.msk [vmem:[#allocation5 + $0x10] sm:$0xff] %vm352, %v6173
      %6182 = vst.msk [vmem:[#allocation5 + $0x18] sm:$0xff] %vm352, %v6174
      %6183 = vst.msk [vmem:[#allocation5 + $0x20] sm:$0xff] %vm352, %v6175
      %6184 = vst.msk [vmem:[#allocation5 + $0x28] sm:$0xff] %vm352, %v6176
      %6185 = vst.msk [vmem:[#allocation5 + $0x30] sm:$0xff] %vm352, %v6177
      %6186 = vst.msk [vmem:[#allocation5 + $0x38] sm:$0xff] %vm352, %v6178
      %s6187 = scalar_lea.vmem [#allocation2], 25
      %v6188 = vld [vmem:[%s6187] ss:$2 sm:$0xff]
      %s6189 = scalar_lea.vmem [#allocation2], 73
      %v6190 = vld [vmem:[%s6189] ss:$2 sm:$0xff]
      %s6191 = scalar_lea.vmem [#allocation2], 121
      %v6192 = vld [vmem:[%s6191] ss:$2 sm:$0xff]
      %s6193 = scalar_lea.vmem [#allocation2], 169
      %v6194 = vld [vmem:[%s6193] ss:$2 sm:$0xff]
      %s6195 = scalar_lea.vmem [#allocation2], 217
      %v6196 = vld [vmem:[%s6195] ss:$2 sm:$0xff]
      %s6197 = scalar_lea.vmem [#allocation2], 265
      %v6198 = vld [vmem:[%s6197] ss:$2 sm:$0xff]
      %s6199 = scalar_lea.vmem [#allocation2], 313
      %v6200 = vld [vmem:[%s6199] ss:$2 sm:$0xff]
      %s6201 = scalar_lea.vmem [#allocation2], 361
      %v6202 = vld [vmem:[%s6201] ss:$2 sm:$0xff]
      %v6203 = vld [vmem:[%s7] sm:$0xf]
      %v6205 = vsel %vm306, %v6188, 0
      %v6208 = vsel %vm306, %v6190, 0
      %v6211 = vsel %vm306, %v6192, 0
      %v6214 = vsel %vm306, %v6194, 0
      %v6217 = vsel %vm306, %v6196, 0
      %v6220 = vsel %vm306, %v6198, 0
      %v6223 = vsel %vm306, %v6200, 0
      %v6226 = vsel %vm306, %v6202, 0
      %v6229 = vsel %vm702, %v6203, 0
      %6231 = vmatprep.subr.mxu0 0.0
      %6232 = vmatpush1.msra.mxu0 %v6229
      %6233 = vmatprep.subr.mxu0 0.0
      %6234 = vmatpush1.msra.mxu0 0.0
      %6235 = vmatprep.subr.mxu0 0.0
      %6236 = vmatpush1.msra.mxu0 0.0
      %6237 = vmatprep.subr.mxu0 0.0
      %6238 = vmatpush1.msra.mxu0 0.0
      %6239 = vmatprep.subr.mxu0 0.0
      %6240 = vmatpush1.msra.mxu0 0.0
      %6241 = vmatprep.subr.mxu0 0.0
      %6242 = vmatpush1.msra.mxu0 0.0
      %6243 = vmatprep.subr.mxu0 0.0
      %6244 = vmatpush1.msra.mxu0 0.0
      %6245 = vmatprep.subr.mxu0 0.0
      %6246 = vmatpush1.msra.mxu0 0.0
      %6247 = vmatprep.subr.mxu0 0.0
      %6248 = vmatpush1.msra.mxu0 0.0
      %6249 = vmatprep.subr.mxu0 0.0
      %6250 = vmatpush1.msra.mxu0 0.0
      %6251 = vmatprep.subr.mxu0 0.0
      %6252 = vmatpush1.msra.mxu0 0.0
      %6253 = vmatprep.subr.mxu0 0.0
      %6254 = vmatpush1.msra.mxu0 0.0
      %6255 = vmatprep.subr.mxu0 0.0
      %6256 = vmatpush1.msra.mxu0 0.0
      %6257 = vmatprep.subr.mxu0 0.0
      %6258 = vmatpush1.msra.mxu0 0.0
      %6259 = vmatprep.subr.mxu0 0.0
      %6260 = vmatpush1.msra.mxu0 0.0
      %6261 = vmatprep.subr.mxu0 0.0
      %6262 = vmatpush1.msra.mxu0 0.0
      %6263 = vmatprep.subr.mxu0 0.0
      %6264 = vmatpush1.msra.mxu0 0.0
      %6265 = vmatprep.subr.mxu0 0.0
      %6266 = vmatpush1.msra.mxu0 0.0
      %6267 = vmatprep.subr.mxu0 0.0
      %6268 = vmatpush1.msra.mxu0 0.0
      %6269 = vmatprep.subr.mxu0 0.0
      %6270 = vmatpush1.msra.mxu0 0.0
      %6271 = vmatprep.subr.mxu0 0.0
      %6272 = vmatpush1.msra.mxu0 0.0
      %6273 = vmatprep.subr.mxu0 0.0
      %6274 = vmatpush1.msra.mxu0 0.0
      %6275 = vmatprep.subr.mxu0 0.0
      %6276 = vmatpush1.msra.mxu0 0.0
      %6277 = vmatprep.subr.mxu0 0.0
      %6278 = vmatpush1.msra.mxu0 0.0
      %6279 = vmatprep.subr.mxu0 0.0
      %6280 = vmatpush1.msra.mxu0 0.0
      %6281 = vmatprep.subr.mxu0 0.0
      %6282 = vmatpush1.msra.mxu0 0.0
      %6283 = vmatprep.subr.mxu0 0.0
      %6284 = vmatpush1.msra.mxu0 0.0
      %6285 = vmatprep.subr.mxu0 0.0
      %6286 = vmatpush1.msra.mxu0 0.0
      %6287 = vmatprep.subr.mxu0 0.0
      %6288 = vmatpush1.msra.mxu0 0.0
      %6289 = vmatprep.subr.mxu0 0.0
      %6290 = vmatpush1.msra.mxu0 0.0
      %6291 = vmatprep.subr.mxu0 0.0
      %6292 = vmatpush1.msra.mxu0 0.0
      %6293 = vmatprep.subr.mxu0 0.0
      %6294 = vmatpush1.msra.mxu0 0.0
      %6295 = vmatprep.mubr.f32.mxu0 0.0
      %6296 = vmatmul.mubr.f32.gmra.mrb[0].mxu0 %v6205
      %v6297 = vpop.f32.mrb[0].mxu0
      %v6298 = vadd.f32 0.0, %v6297
      %v6299 = vpop.f32.mrb[0].mxu0
      %6300 = vmatprep.mubr.f32.mxu0 0.0
      %6301 = vmatmul.mubr.f32.gmra.mrb[0].mxu0 %v6208
      %v6302 = vpop.f32.mrb[0].mxu0
      %v6303 = vadd.f32 0.0, %v6302
      %v6304 = vpop.f32.mrb[0].mxu0
      %6305 = vmatprep.mubr.f32.mxu0 0.0
      %6306 = vmatmul.mubr.f32.gmra.mrb[0].mxu0 %v6211
      %v6307 = vpop.f32.mrb[0].mxu0
      %v6308 = vadd.f32 0.0, %v6307
      %v6309 = vpop.f32.mrb[0].mxu0
      %6310 = vmatprep.mubr.f32.mxu0 0.0
      %6311 = vmatmul.mubr.f32.gmra.mrb[0].mxu0 %v6214
      %v6312 = vpop.f32.mrb[0].mxu0
      %v6313 = vadd.f32 0.0, %v6312
      %v6314 = vpop.f32.mrb[0].mxu0
      %6315 = vmatprep.mubr.f32.mxu0 0.0
      %6316 = vmatmul.mubr.f32.gmra.mrb[0].mxu0 %v6217
      %v6317 = vpop.f32.mrb[0].mxu0
      %v6318 = vadd.f32 0.0, %v6317
      %v6319 = vpop.f32.mrb[0].mxu0
      %6320 = vmatprep.mubr.f32.mxu0 0.0
      %6321 = vmatmul.mubr.f32.gmra.mrb[0].mxu0 %v6220
      %v6322 = vpop.f32.mrb[0].mxu0
      %v6323 = vadd.f32 0.0, %v6322
      %v6324 = vpop.f32.mrb[0].mxu0
      %6325 = vmatprep.mubr.f32.mxu0 0.0
      %6326 = vmatmul.mubr.f32.gmra.mrb[0].mxu0 %v6223
      %v6327 = vpop.f32.mrb[0].mxu0
      %v6328 = vadd.f32 0.0, %v6327
      %v6329 = vpop.f32.mrb[0].mxu0
      %6330 = vmatprep.mubr.f32.mxu0 0.0
      %6331 = vmatmul.mubr.f32.gmra.mrb[0].mxu0 %v6226
      %v6332 = vpop.f32.mrb[0].mxu0
      %v6333 = vadd.f32 0.0, %v6332
      %v6334 = vpop.f32.mrb[0].mxu0
      %6335 = vdwg.mxu0
      %v6336 = vld [vmem:[#allocation5] sm:$0xff]
      %v6337 = vld [vmem:[#allocation5 + $0x8] sm:$0xff]
      %v6338 = vld [vmem:[#allocation5 + $0x10] sm:$0xff]
      %v6339 = vld [vmem:[#allocation5 + $0x18] sm:$0xff]
      %v6340 = vld [vmem:[#allocation5 + $0x20] sm:$0xff]
      %v6341 = vld [vmem:[#allocation5 + $0x28] sm:$0xff]
      %v6342 = vld [vmem:[#allocation5 + $0x30] sm:$0xff]
      %v6343 = vld [vmem:[#allocation5 + $0x38] sm:$0xff]
      %v6344 = vadd.f32 %v6336, %v6298
      %v6345 = vadd.f32 %v6337, %v6303
      %v6346 = vadd.f32 %v6338, %v6308
      %v6347 = vadd.f32 %v6339, %v6313
      %v6348 = vadd.f32 %v6340, %v6318
      %v6349 = vadd.f32 %v6341, %v6323
      %v6350 = vadd.f32 %v6342, %v6328
      %v6351 = vadd.f32 %v6343, %v6333
      %6352 = vst.msk [vmem:[%s305] sm:$0xff] %vm352, %v6344
      %6353 = vst.msk [vmem:[%s305 + $0x8] sm:$0xff] %vm352, %v6345
      %6354 = vst.msk [vmem:[%s305 + $0x10] sm:$0xff] %vm352, %v6346
      %6355 = vst.msk [vmem:[%s305 + $0x18] sm:$0xff] %vm352, %v6347
      %6356 = vst.msk [vmem:[%s305 + $0x20] sm:$0xff] %vm352, %v6348
      %6357 = vst.msk [vmem:[%s305 + $0x28] sm:$0xff] %vm352, %v6349
      %6358 = vst.msk [vmem:[%s305 + $0x30] sm:$0xff] %vm352, %v6350
      %6359 = vst.msk [vmem:[%s305 + $0x38] sm:$0xff] %vm352, %v6351
      %p6360 = scmp.lt.s32.totalorder %s19, 1
      %s6361 = scalar_select %p6360, %s19, 1
      %s6362 = smul.addr %s6361, 8
      %s6363 = smul.addr %s6362, 8
      %s6364 = scalar_lea.vmem %s8, %s6363
      // Predicated region
      $region53: #{group_relaxed_tf1_basic_block_forward.1} parent=51 // pred_check
        %p6365 = pneg %p210
      $region54: #{group_relaxed_tf1_basic_block_forward.1} parent=51 // pred_check_branch
        %6367 = sbr.rel (%p6365) target = $region56
      $region55: #{group_relaxed_tf1_basic_block_forward.1} parent=51 // pred_region
        _
      $region56: #{group_relaxed_tf1_basic_block_forward.1} parent=51 // pred_fallthru
        _
    $region52: #{group_relaxed_tf1_basic_block_forward.1} parent=5 // pred_fallthru
      _
    %p6368 = scmp.le.s32.totalorder 2, %s14
    // Predicated region
    $region57: #{group_relaxed_tf1_basic_block_forward.1} parent=5 // pred_check
      %p6369 = pneg %p6368
    $region58: #{group_relaxed_tf1_basic_block_forward.1} parent=5 // pred_check_branch
      %6371 = sbr.rel (%p6369) target = $region60
    $region59: #{group_relaxed_tf1_basic_block_forward.1} parent=5 // pred_region
      %s6372 = ssub.s32 %s14, 2
      // Predicated region
      $region61: #{group_relaxed_tf1_basic_block_forward.1} parent=59 // pred_check
        %p6373 = pneg %p216
      $region62: #{group_relaxed_tf1_basic_block_forward.1} parent=59 // pred_check_branch
        %6375 = sbr.rel (%p6373) target = $region64
      $region63: #{group_relaxed_tf1_basic_block_forward.1} parent=59 // pred_region
        %p6376 = scmp.lt.s32.totalorder %s20, 1
        %s6377 = scalar_select %p6376, %s20, 1
        %s6378 = smul.addr %s6377, 8
        %s6379 = smul.addr %s6378, 8
        %s6380 = scalar_lea.vmem %s8, %s6379
      $region64: #{group_relaxed_tf1_basic_block_forward.1} parent=59 // pred_fallthru
        _
    $region60: #{group_relaxed_tf1_basic_block_forward.1} parent=5 // pred_fallthru
      _
  $region6: #{group_relaxed_tf1_basic_block_forward.1} parent=0 // loop_footer
    %s18 = sadd.s32 1, %s14
  $region7: #{group_relaxed_tf1_basic_block_forward.1} parent=0 // loop_footer_branch
    %13 = sbr.rel target = $region3
  $region8: #{group_relaxed_tf1_basic_block_forward.1} parent=0 // loop_exit
    _

</llo_original>
